<compile_context>
chip_gen: v5e
topology: v5e:2x2
jax: 0.10.0
libtpu: 0.0.40
codegen_flags: <defaults>
</compile_context>

<pallas_src>
from functools import partial

import jax
import jax.numpy as jnp
from jax.experimental import pallas as pl
from jax.experimental.pallas import tpu as pltpu

_BN_EPS = 1e-5


# ----------------------------------------------------------------------------
# small helpers
# ----------------------------------------------------------------------------
def _cparams(n_axes):
    return pltpu.CompilerParams(dimension_semantics=("parallel",) * n_axes)


def _pick_tile(m, cap=512):
    """Row tile for the generic matmul; avoid padding whenever possible."""
    if m <= cap:
        mp = max(8, ((m + 7) // 8) * 8)
        return mp, mp
    t = cap
    while t >= 8:
        if m % t == 0:
            return t, m
        t -= 8
    return cap, ((m + cap - 1) // cap) * cap


def _group_size(n_items, cap=16):
    cap = max(1, min(cap, n_items))
    g = cap
    while n_items % g:
        g -= 1
    return g


def _row_tile(h):
    # per-grid-step number of query rows for the CCA kernel
    if h <= 8 or h % 8 != 0:
        return h
    return 8


def _pixel_tile(hw, cap=512):
    if hw <= cap:
        return hw
    t = cap
    while t >= 8:
        if hw % t == 0:
            return t
        t -= 8
    return hw


def _chan_tile(c, cap=256):
    if c <= cap:
        return c
    t = (cap // 128) * 128
    while t >= 128:
        if c % t == 0:
            return t
        t -= 128
    return c


# ----------------------------------------------------------------------------
# generic linear / 1x1 conv kernel:  act((x @ w + b) * scale + shift)
# ----------------------------------------------------------------------------
def _apply_act(y, act):
    if act == "silu":
        return y * jax.nn.sigmoid(y)
    if act == "sigmoid":
        return jax.nn.sigmoid(y)
    if act == "gelu":
        # TODO(synk): nn.GELU default is the exact erf form; the fused kernel
        # uses the tanh approximation (|diff| < ~1e-3) to avoid relying on an
        # in-kernel erf lowering.
        c = 0.7978845608028654  # sqrt(2/pi)
        return 0.5 * y * (1.0 + jnp.tanh(c * (y + 0.044715 * y * y * y)))
    return y


def _linear_kernel(act, a_ref, w_ref, b_ref, sc_ref, sh_ref, o_ref):
    a = a_ref[...].astype(jnp.bfloat16)                      # bf16 MXU operands
    y = jnp.dot(a, w_ref[...], preferred_element_type=jnp.float32)
    y = (y + b_ref[...]) * sc_ref[...] + sh_ref[...]         # bias + folded BN
    o_ref[...] = _apply_act(y, act).astype(o_ref.dtype)


def linear(x, w, b=None, *, scale=None, shift=None, act=None,
           out_dtype=jnp.float32, tile_cap=512):
    K, N = w.shape
    lead = x.shape[:-1]
    a = x.reshape(-1, K)
    M = a.shape[0]
    b = jnp.zeros((N,), jnp.float32) if b is None else b
    scale = jnp.ones((N,), jnp.float32) if scale is None else scale
    shift = jnp.zeros((N,), jnp.float32) if shift is None else shift
    b2 = b.reshape(1, N).astype(jnp.float32)
    sc2 = scale.reshape(1, N).astype(jnp.float32)
    sh2 = shift.reshape(1, N).astype(jnp.float32)
    tm, Mp = _pick_tile(M, tile_cap)
    if Mp != M:
        a = jnp.pad(a, ((0, Mp - M), (0, 0)))
    cost = pl.CostEstimate(flops=2 * Mp * K * N,
                           transcendentals=(Mp * N if act else 0),
                           bytes_accessed=Mp * K * 4 + K * N * 2 + Mp * N * 4)
    out = pl.pallas_call(
        partial(_linear_kernel, act),
        grid=(Mp // tm,),
        in_specs=[
            pl.BlockSpec((tm, K), lambda i: (i, 0)),
            pl.BlockSpec((K, N), lambda i: (0, 0)),
            pl.BlockSpec((1, N), lambda i: (0, 0)),
            pl.BlockSpec((1, N), lambda i: (0, 0)),
            pl.BlockSpec((1, N), lambda i: (0, 0)),
        ],
        out_specs=pl.BlockSpec((tm, N), lambda i: (i, 0)),
        out_shape=jax.ShapeDtypeStruct((Mp, N), out_dtype),
        compiler_params=_cparams(1),
        cost_estimate=cost,
    )(a, w.astype(jnp.bfloat16), b2, sc2, sh2)
    if Mp != M:
        out = out[:M]
    return out.reshape(*lead, N)


def feedforward(x, p, bn=None):
    # GELU fused into the first matmul's epilogue; hidden tensor chained bf16.
    h = linear(x, p["w1"], p["b1"], act="gelu", out_dtype=jnp.bfloat16)
    sc = sh = None
    if bn is not None:                       # fold BatchNormRes: bn(y) + y
        sc, sh = bn["scale"] + 1.0, bn["shift"]
    return linear(h, p["w2"], p["b2"], scale=sc, shift=sh)


# ----------------------------------------------------------------------------
# criss-cross attention: tile-batched MXU matmuls, joint softmax, single fused
# output (column-branch result folded into the same slab; BN+residual epilogue)
# ----------------------------------------------------------------------------
def _cca_kernel(th, q_ref, k_ref, v_ref, qt_ref, kt_ref, vt_ref, x_ref,
                scc_ref, scx_ref, sh_ref, o_ref):
    # q/k/v tiles : (1, th, W, C8|C)  bf16   row branch   (rows leading)
    # qt tile     : (1, W, th, C8)    bf16   column branch (cols leading)
    # kt/vt full  : (1, W, H, C8|C)   bf16
    # x tile      : (1, th, W, C)     f32
    W = q_ref.shape[2]
    H = kt_ref.shape[2]
    r0 = pl.program_id(1) * th
    q = q_ref[0]
    k = k_ref[0]
    v = v_ref[0]
    qt = qt_ref[0]
    kt = kt_ref[0]
    vt = vt_ref[0]
    x = x_ref[0]
    scc = scc_ref[...]
    scx = scx_ref[...]
    sh = sh_ref[...]

    # row-direction energies for all th query rows at once: (th, W, W)
    e_w = jnp.einsum("twc,tvc->twv", q, k, preferred_element_type=jnp.float32)
    # column-direction energies, batched over image columns: (W, th, H)
    e_h = jnp.einsum("wtc,whc->wth", qt, kt, preferred_element_type=jnp.float32)
    # criss-cross -inf on "attend to self via the column branch"
    it = jax.lax.broadcasted_iota(jnp.int32, (W, th, H), 1)
    ih = jax.lax.broadcasted_iota(jnp.int32, (W, th, H), 2)
    e_h = jnp.where(ih == it + r0, -jnp.inf, e_h)

    # joint softmax over the concatenated (H + W) attended axis
    m_w = jnp.max(e_w, axis=-1)                       # (th, W)
    m_h = jnp.max(e_h, axis=-1)                       # (W, th)
    m = jnp.maximum(m_w, m_h.T)                       # (th, W)
    m_t = m.T                                         # (W, th)
    p_w = jnp.exp(e_w - m[:, :, None])                # (th, W, W)
    p_h = jnp.exp(e_h - m_t[:, :, None])              # (W, th, H)
    denom = jnp.sum(p_w, axis=-1) + jnp.sum(p_h, axis=-1).T      # (th, W)
    inv = pl.reciprocal(denom, approx=True)           # EUP divide
    a_w = (p_w * inv[:, :, None]).astype(jnp.bfloat16)
    a_h = (p_h * inv.T[:, :, None]).astype(jnp.bfloat16)

    out_w = jnp.einsum("twv,tvc->twc", a_w, v,
                       preferred_element_type=jnp.float32)       # (th, W, C)
    out_h = jnp.einsum("wth,whc->wtc", a_h, vt,
                       preferred_element_type=jnp.float32)       # (W, th, C)
    # fold column-branch result into the same tile (no second output / no
    # wrapper transpose+add); small static slice/stack realigns (W,th)->(th,W)
    out_ht = jnp.stack([out_h[:, t, :] for t in range(th)], axis=0)
    o_ref[0] = (out_w + out_ht) * scc + x * scx + sh


def criss_cross_attention(x, p, bn=None):
    """cca(x) = gamma*(out_H+out_W)+x; with bn, returns BN(cca(x)) + x with the
    whole affine epilogue folded into the kernel."""
    B, H, W, C = x.shape
    C8 = C // 8
    # fused q/k/v projection (single lane-wide matmul; bf16 activations)
    qkv = linear(x, p["w_qkv"], p["b_qkv"], out_dtype=jnp.bfloat16)
    q = qkv[..., :C8]
    k = qkv[..., C8:2 * C8]
    v = qkv[..., 2 * C8:]
    # column-branch operands presented column-major so every in-kernel matmul
    # has its batch dim leading (canonical for the MXU); channels stay on lanes
    qt = jnp.transpose(q, (0, 2, 1, 3))            # (B, W, H, C8)
    kt = jnp.transpose(k, (0, 2, 1, 3))            # (B, W, H, C8)
    vt = jnp.transpose(v, (0, 2, 1, 3))            # (B, W, H, C)
    gamma = p["gamma"][0]
    ones = jnp.ones((C,), jnp.float32)
    if bn is None:
        scc, scx, sh = gamma * ones, ones, jnp.zeros((C,), jnp.float32)
    else:
        s, t = bn["scale"], bn["shift"]
        scc, scx, sh = gamma * s, s + 1.0, t
    scc2, scx2, sh2 = (u.reshape(1, C).astype(jnp.float32) for u in (scc, scx, sh))
    th = _row_tile(H)
    out = pl.pallas_call(
        partial(_cca_kernel, th),
        grid=(B, H // th),
        in_specs=[
            pl.BlockSpec((1, th, W, C8), lambda b, i: (b, i, 0, 0)),
            pl.BlockSpec((1, th, W, C8), lambda b, i: (b, i, 0, 0)),
            pl.BlockSpec((1, th, W, C), lambda b, i: (b, i, 0, 0)),
            pl.BlockSpec((1, W, th, C8), lambda b, i: (b, 0, i, 0)),
            pl.BlockSpec((1, W, H, C8), lambda b, i: (b, 0, 0, 0)),
            pl.BlockSpec((1, W, H, C), lambda b, i: (b, 0, 0, 0)),
            pl.BlockSpec((1, th, W, C), lambda b, i: (b, i, 0, 0)),
            pl.BlockSpec((1, C), lambda b, i: (0, 0)),
            pl.BlockSpec((1, C), lambda b, i: (0, 0)),
            pl.BlockSpec((1, C), lambda b, i: (0, 0)),
        ],
        out_specs=pl.BlockSpec((1, th, W, C), lambda b, i: (b, i, 0, 0)),
        out_shape=jax.ShapeDtypeStruct((B, H, W, C), jnp.float32),
        compiler_params=_cparams(2),
    )(q, k, v, qt, kt, vt, x, scc2, scx2, sh2)
    return out


# ----------------------------------------------------------------------------
# fused window attention: to_qkv -> MHA(+rel-pos bias) -> to_out -> BN(y)+y
# (no head concat: each head's output is accumulated into the out projection)
# ----------------------------------------------------------------------------
def _window_attn_kernel(scale, heads, dh, x_ref, wqkv_ref, bias_ref, wout_ref,
                        sc_ref, sh_ref, o_ref):
    gw, n, d = x_ref.shape
    xf = x_ref[...].reshape(gw * n, d).astype(jnp.bfloat16)
    qkv = jnp.dot(xf, wqkv_ref[...], preferred_element_type=jnp.float32)  # (gw*n, 3d)
    y = jnp.zeros((gw * n, d), jnp.float32)
    for h in range(heads):
        qh = (qkv[:, h * dh:(h + 1) * dh] * scale).astype(jnp.bfloat16)
        kh = qkv[:, d + h * dh:d + (h + 1) * dh].astype(jnp.bfloat16)
        vh = qkv[:, 2 * d + h * dh:2 * d + (h + 1) * dh].astype(jnp.bfloat16)
        qh = qh.reshape(gw, n, dh)
        kh = kh.reshape(gw, n, dh)
        vh = vh.reshape(gw, n, dh)
        sim = jnp.einsum("gnd,gmd->gnm", qh, kh,
                         preferred_element_type=jnp.float32) + bias_ref[h]
        sim = sim - jnp.max(sim, axis=-1, keepdims=True)
        pr = jnp.exp(sim)
        pr = pr * pl.reciprocal(jnp.sum(pr, axis=-1, keepdims=True), approx=True)
        oh = jnp.einsum("gnm,gmd->gnd", pr.astype(jnp.bfloat16), vh,
                        preferred_element_type=jnp.float32)
        # concat_h(out_h) @ W_out == sum_h out_h @ W_out[h*dh:(h+1)*dh, :]
        y = y + jnp.dot(oh.reshape(gw * n, dh).astype(jnp.bfloat16),
                        wout_ref[h * dh:(h + 1) * dh, :],
                        preferred_element_type=jnp.float32)
    y = y * sc_ref[...] + sh_ref[...]                          # folded BN(y) + y
    o_ref[...] = y.reshape(gw, n, d).astype(o_ref.dtype)


def window_attention(x6, p, dim_head, bn, out_dtype=jnp.bfloat16):
    b, gx, gy, w1, w2, d = x6.shape
    heads = d // dim_head
    bw, n = b * gx * gy, w1 * w2
    xw = x6.reshape(bw, n, d)
    # keep >= 2 grid steps where possible so v7x's two TensorCores share work
    cap = min(16, max(1, bw // 2))
    gw = _group_size(bw, cap) if n % 8 == 0 else 1   # layout-free in-kernel reshapes
    sc = (bn["scale"] + 1.0).reshape(1, d).astype(jnp.float32)
    sh = bn["shift"].reshape(1, d).astype(jnp.float32)
    scale = dim_head ** -0.5
    cost = pl.CostEstimate(
        flops=2 * bw * n * d * 4 * d + 4 * bw * heads * n * n * dim_head,
        transcendentals=bw * heads * n * n,
        bytes_accessed=2 * bw * n * d * 4 + 4 * d * d * 2)
    out = pl.pallas_call(
        partial(_window_attn_kernel, scale, heads, dim_head),
        grid=(bw // gw,),
        in_specs=[
            pl.BlockSpec((gw, n, d), lambda i: (i, 0, 0)),
            pl.BlockSpec((d, 3 * d), lambda i: (0, 0)),
            pl.BlockSpec((heads, n, n), lambda i: (0, 0, 0)),
            pl.BlockSpec((d, d), lambda i: (0, 0)),
            pl.BlockSpec((1, d), lambda i: (0, 0)),
            pl.BlockSpec((1, d), lambda i: (0, 0)),
        ],
        out_specs=pl.BlockSpec((gw, n, d), lambda i: (i, 0, 0)),
        out_shape=jax.ShapeDtypeStruct((bw, n, d), out_dtype),
        compiler_params=_cparams(1),
        cost_estimate=cost,
    )(xw, p["w_qkv"], p["bias"], p["w_out"], sc, sh)
    return out.reshape(b, gx, gy, w1, w2, d)


# ----------------------------------------------------------------------------
# depthwise 3x3 conv, tiled over (batch, channel tiles); in-kernel zero border,
# fused SE mean-pool output
# ----------------------------------------------------------------------------
def _dwconv3x3_kernel(x_ref, w_ref, b_ref, o_ref, pool_ref):
    _, H, W, tc = x_ref.shape
    x = x_ref[0].astype(jnp.float32)

    def shift_rows(a, d):
        if d == 0:
            return a
        z = jnp.zeros((1, W, tc), a.dtype)
        return (jnp.concatenate([a[1:], z], axis=0) if d > 0
                else jnp.concatenate([z, a[:-1]], axis=0))

    def shift_cols(a, d):
        if d == 0:
            return a
        z = jnp.zeros((H, 1, tc), a.dtype)
        return (jnp.concatenate([a[:, 1:], z], axis=1) if d > 0
                else jnp.concatenate([z, a[:, :-1]], axis=1))

    acc = jnp.zeros((H, W, tc), jnp.float32) + b_ref[...]
    for kh in range(3):
        xr = shift_rows(x, kh - 1)
        for kw in range(3):
            acc = acc + shift_cols(xr, kw - 1) * w_ref[kh, kw]
    o_ref[0] = acc.astype(o_ref.dtype)
    pool_ref[...] = jnp.mean(acc, axis=(0, 1)).reshape(1, 1, tc)   # SE squeeze


def dwconv3x3(x, w, b):
    B, H, W, C = x.shape
    tc = _chan_tile(C)
    conv, pooled = pl.pallas_call(
        _dwconv3x3_kernel,
        grid=(B, C // tc),
        in_specs=[
            pl.BlockSpec((1, H, W, tc), lambda b_, c_: (b_, 0, 0, c_)),
            pl.BlockSpec((3, 3, tc), lambda b_, c_: (0, 0, c_)),
            pl.BlockSpec((1, tc), lambda b_, c_: (0, c_)),
        ],
        out_specs=[
            pl.BlockSpec((1, H, W, tc), lambda b_, c_: (b_, 0, 0, c_)),
            pl.BlockSpec((1, 1, tc), lambda b_, c_: (b_, 0, c_)),
        ],
        out_shape=[
            jax.ShapeDtypeStruct((B, H, W, C), jnp.bfloat16),
            jax.ShapeDtypeStruct((B, 1, C), jnp.float32),
        ],
        compiler_params=_cparams(2),
    )(x, w.astype(jnp.float32), b.reshape(1, C).astype(jnp.float32))
    return conv, pooled[:, 0, :]


# ----------------------------------------------------------------------------
# SE-gated 1x1 conv + folded BN + MBConv residual (one kernel)
# ----------------------------------------------------------------------------
def _gated_conv2_kernel(has_res, a_ref, g_ref, w_ref, b_ref, sc_ref, sh_ref, *rest):
    if has_res:
        res_ref, o_ref = rest
    else:
        (o_ref,) = rest
    a = (a_ref[0] * g_ref[0]).astype(jnp.bfloat16)       # SE rescale fused in
    y = jnp.dot(a, w_ref[...], preferred_element_type=jnp.float32)
    y = (y + b_ref[...]) * sc_ref[...] + sh_ref[...]     # conv bias + folded BN
    if has_res:
        y = y + res_ref[0]
    o_ref[0] = y


def gated_pointwise_conv(h, gate, w, b, scale, shift, residual=None):
    B, H, W, C = h.shape
    N = w.shape[1]
    hw = H * W
    t = _pixel_tile(hw)
    hf = h.reshape(B, hw, C)
    has_res = residual is not None
    in_specs = [
        pl.BlockSpec((1, t, C), lambda b_, i: (b_, i, 0)),
        pl.BlockSpec((1, 1, C), lambda b_, i: (b_, 0, 0)),
        pl.BlockSpec((C, N), lambda b_, i: (0, 0)),
        pl.BlockSpec((1, N), lambda b_, i: (0, 0)),
        pl.BlockSpec((1, N), lambda b_, i: (0, 0)),
        pl.BlockSpec((1, N), lambda b_, i: (0, 0)),
    ]
    args = [hf, gate.reshape(B, 1, C).astype(jnp.float32), w.astype(jnp.bfloat16),
            b.reshape(1, N).astype(jnp.float32),
            scale.reshape(1, N).astype(jnp.float32),
            shift.reshape(1, N).astype(jnp.float32)]
    if has_res:
        in_specs.append(pl.BlockSpec((1, t, N), lambda b_, i: (b_, i, 0)))
        args.append(residual.reshape(B, hw, N).astype(jnp.float32))
    out = pl.pallas_call(
        partial(_gated_conv2_kernel, has_res),
        grid=(B, hw // t),
        in_specs=in_specs,
        out_specs=pl.BlockSpec((1, t, N), lambda b_, i: (b_, i, 0)),
        out_shape=jax.ShapeDtypeStruct((B, hw, N), jnp.float32),
        compiler_params=_cparams(2),
        cost_estimate=pl.CostEstimate(flops=2 * B * hw * C * N,
                                      transcendentals=0,
                                      bytes_accessed=B * hw * (C + N) * 4 + C * N * 2),
    )(*args)
    return out.reshape(B, H, W, N)


def mbconv(x, p):
    h = linear(x, p["w1"], p["b1"],
               scale=p["bn1"]["scale"], shift=p["bn1"]["shift"], act="silu",
               out_dtype=jnp.bfloat16)                 # bf16 chained into dwconv
    conv, pooled = dwconv3x3(h, p["dw_w"], p["dw_b"])
    # TODO(synk): the squeeze-excite gate MLP is only (B, C)-sized; it stays in
    # plain JAX (two tiny dots); the rescale itself is fused into the conv2 kernel.
    g = pooled @ p["se_w1"]
    g = g * jax.nn.sigmoid(g)                     # SiLU
    g = jax.nn.sigmoid(g @ p["se_w2"])            # (B, C)
    res = x if p["residual"] else None
    return gated_pointwise_conv(conv, g, p["w2"], p["b2"],
                                p["bn2"]["scale"], p["bn2"]["shift"], residual=res)


# ----------------------------------------------------------------------------
# einops-style window rearranges (plain-JAX layout glue)
# TODO(synk): with w=4 the per-window blocks violate the (8,128) BlockSpec
# alignment, so the window rearranges stay XLA-side instead of index_map-side.
# ----------------------------------------------------------------------------
def to_grid_windows(x, w):        # 'b (w1 x) (w2 y) d -> b x y w1 w2 d'
    b, H, W, d = x.shape
    gx, gy = H // w, W // w
    return x.reshape(b, w, gx, w, gy, d).transpose(0, 2, 4, 1, 3, 5)


def from_grid_windows(x6):
    b, gx, gy, w1, w2, d = x6.shape
    return x6.transpose(0, 3, 1, 4, 2, 5).reshape(b, w1 * gx, w2 * gy, d)


def to_block_windows(x, w):       # 'b (x w1) (y w2) d -> b x y w1 w2 d'
    b, H, W, d = x.shape
    gx, gy = H // w, W // w
    return x.reshape(b, gx, w, gy, w, d).transpose(0, 1, 3, 2, 4, 5)


def from_block_windows(x6):
    b, gx, gy, w1, w2, d = x6.shape
    return x6.transpose(0, 1, 3, 2, 4, 5).reshape(b, gx * w1, gy * w2, d)


def window_branch(x, p_attn, p_ff, bn_attn, bn_ff, w, dim_head, grid_style):
    # BN(+res) is per-channel so it commutes with the window rearranges; the
    # intermediate un-window / re-window pair of the reference is elided.
    x6 = to_grid_windows(x, w) if grid_style else to_block_windows(x, w)
    y6 = window_attention(x6, p_attn, dim_head, bn_attn)   # bf16, BN(y)+y folded
    z6 = feedforward(y6, p_ff, bn=bn_ff)                   # f32, BN(z)+z folded
    return from_grid_windows(z6) if grid_style else from_block_windows(z6)


def maxvit_block(x, p, w, dim_head):
    # --- self.block : CCA, BN(CCA(.)) + res, FF, BN(FF) + FF -----------------
    x = criss_cross_attention(x, p["cca1"])
    x = criss_cross_attention(x, p["cca2"], bn=p["bn_block1"])
    x = feedforward(x, p["ff_block"], bn=p["bn_block2"])
    # --- self.grid : grid window attention + FF ------------------------------
    x = window_branch(x, p["attn_grid"], p["ff_grid"],
                      p["bn_grid1"], p["bn_grid2"], w, dim_head, grid_style=True)
    # --- self.block_like : local window attention + FF -----------------------
    x = window_branch(x, p["attn_blk"], p["ff_blk"],
                      p["bn_blk1"], p["bn_blk2"], w, dim_head, grid_style=False)
    # --- self.Mbconv ----------------------------------------------------------
    return mbconv(x, p["mbconv"])


def maxvit_gan_layer(x_nchw, params, w, dim_head, scale_factor):
    x = jnp.transpose(x_nchw, (0, 2, 3, 1)).astype(jnp.float32)   # NCHW -> NHWC
    for p in params["blocks"]:
        x = maxvit_block(x, p, w, dim_head)
    # nn.Upsample(scale_factor), default mode='nearest'
    x = jnp.repeat(jnp.repeat(x, scale_factor, axis=1), scale_factor, axis=2)
    return jnp.transpose(x, (0, 3, 1, 2))                          # NHWC -> NCHW


# ----------------------------------------------------------------------------
# deterministic parameter initialization
# ----------------------------------------------------------------------------
class KeyGen:
    def __init__(self, seed):
        self._key = jax.random.PRNGKey(seed)

    def __call__(self):
        self._key, sub = jax.random.split(self._key)
        return sub


def _randn(kg, shape, std=0.05):
    return std * jax.random.normal(kg(), shape, dtype=jnp.float32)


def _init_bn(dim):
    return {"scale": jnp.full((dim,), (1.0 + _BN_EPS) ** -0.5, jnp.float32),
            "shift": jnp.zeros((dim,), jnp.float32)}


def _init_cca(kg, dim):
    c8 = dim // 8
    wq, bq = _randn(kg, (dim, c8)), _randn(kg, (c8,))
    wk, bk = _randn(kg, (dim, c8)), _randn(kg, (c8,))
    wv, bv = _randn(kg, (dim, dim)), _randn(kg, (dim,))
    return {
        "w_qkv": jnp.concatenate([wq, wk, wv], axis=1).astype(jnp.bfloat16),
        "b_qkv": jnp.concatenate([bq, bk, bv]),
        # PyTorch inits gamma to 0 (identity); 0.1 keeps the CCA path
        # numerically visible in this self-contained test.
        "gamma": jnp.array([0.1], jnp.float32),
    }


def _init_ff(kg, dim, mult=4):
    inner = int(dim * mult)
    return {"w1": _randn(kg, (dim, inner)).astype(jnp.bfloat16),
            "b1": _randn(kg, (inner,)),
            "w2": _randn(kg, (inner, dim)).astype(jnp.bfloat16),
            "b2": _randn(kg, (dim,))}


def _init_attention(kg, dim, dim_head, w):
    heads = dim // dim_head
    pos = jnp.arange(w)
    gi, gj = jnp.meshgrid(pos, pos, indexing="ij")
    grid = jnp.stack([gi, gj], axis=-1).reshape(-1, 2)
    rel = grid[:, None, :] - grid[None, :, :] + (w - 1)
    rel_idx = (rel[..., 0] * (2 * w - 1) + rel[..., 1]).astype(jnp.int32)
    rel_emb = _randn(kg, ((2 * w - 1) ** 2, heads))
    # relative-position bias gather hoisted out of the forward pass
    bias = jnp.transpose(rel_emb[rel_idx], (2, 0, 1))              # (heads, n, n)
    return {"w_qkv": _randn(kg, (dim, 3 * dim)).astype(jnp.bfloat16),
            "w_out": _randn(kg, (dim, dim)).astype(jnp.bfloat16),
            "bias": bias}


def _init_mbconv(kg, dim_in, dim_out, shrinkage_rate):
    hidden = int(dim_out * shrinkage_rate)
    return {
        "w1": _randn(kg, (dim_in, dim_out)).astype(jnp.bfloat16),
        "b1": _randn(kg, (dim_out,)),
        "bn1": _init_bn(dim_out),
        "dw_w": _randn(kg, (3, 3, dim_out)),
        "dw_b": _randn(kg, (dim_out,)),
        "se_w1": _randn(kg, (dim_out, hidden)),
        "se_w2": _randn(kg, (hidden, dim_out)),
        "w2": _randn(kg, (dim_out, dim_out)).astype(jnp.bfloat16),
        "b2": _randn(kg, (dim_out,)),
        "bn2": _init_bn(dim_out),
        "residual": dim_in == dim_out,
    }


def _init_block(kg, stage_dim_in, layer_dim, shrink, w, dim_head):
    return {
        "cca1": _init_cca(kg, stage_dim_in),
        "cca2": _init_cca(kg, stage_dim_in),
        "bn_block1": _init_bn(stage_dim_in),
        "ff_block": _init_ff(kg, stage_dim_in),
        "bn_block2": _init_bn(stage_dim_in),
        "attn_grid": _init_attention(kg, stage_dim_in, dim_head, w),
        "bn_grid1": _init_bn(stage_dim_in),
        "ff_grid": _init_ff(kg, stage_dim_in),
        "bn_grid2": _init_bn(stage_dim_in),
        "attn_blk": _init_attention(kg, stage_dim_in, dim_head, w),
        "bn_blk1": _init_bn(stage_dim_in),
        "ff_blk": _init_ff(kg, stage_dim_in),
        "bn_blk2": _init_bn(stage_dim_in),
        "mbconv": _init_mbconv(kg, stage_dim_in, layer_dim, shrink),
    }


def init_maxvit_gan_layer(seed, layer_depth, layer_dim_in, layer_dim,
                          mbconv_shrinkage_rate, w, dim_head):
    # mbconv_expansion_rate is accepted by the reference module but unused by
    # its MBConv (hidden_dim is never wired in), so it is omitted here.
    kg = KeyGen(seed)
    blocks = []
    for i in range(layer_depth):
        stage_dim_in = layer_dim_in if i == 0 else layer_dim
        blocks.append(_init_block(kg, stage_dim_in, layer_dim,
                                  mbconv_shrinkage_rate, w, dim_head))
    return {"blocks": blocks}


# ----------------------------------------------------------------------------
if __name__ == "__main__":
    # Config: layer_depth=1, layer_dim_in=layer_dim=16, window w=4, dim_head=8
    # (-> heads=2), mbconv_shrinkage_rate=0.25, dropout=0.0, scale_factor=2.
    B, C, H, W = 2, 16, 8, 8
    layer_depth, layer_dim = 1, 16
    window, dim_head, scale_factor = 4, 8, 2

    data_key, _ = jax.random.split(jax.random.PRNGKey(0))
    params = init_maxvit_gan_layer(0, layer_depth, C, layer_dim,
                                   0.25, window, dim_head)
    x = jax.random.normal(data_key, (B, C, H, W), dtype=jnp.float32)

    fwd = jax.jit(lambda inp: maxvit_gan_layer(inp, params, window,
                                               dim_head, scale_factor))
    out = jax.block_until_ready(fwd(x))
    assert out.shape == (B, layer_dim, H * scale_factor, W * scale_factor)
    assert bool(jnp.all(jnp.isfinite(out)))
    print("KERNEL_OK")
</pallas_src>

<mosaic_0001>
module attributes {stable_mosaic.version = 11 : i64} {
  func.func @_linear_kernel(%arg0: i32, %arg1: memref<128x16xf32, #tpu.memory_space<vmem>>, %arg2: memref<16x20xbf16, #tpu.memory_space<vmem>>, %arg3: memref<1x20xf32, #tpu.memory_space<vmem>>, %arg4: memref<1x20xf32, #tpu.memory_space<vmem>>, %arg5: memref<1x20xf32, #tpu.memory_space<vmem>>, %arg6: memref<128x20xbf16, #tpu.memory_space<vmem>>) attributes {dimension_semantics = [#tpu.dimension_semantics<parallel>], iteration_bounds = array<i64: 1>, scalar_prefetch = 0 : i64, scratch_operands = 0 : i64, tpu.core_type = #tpu.core_type<tc>, window_params = [{transform_indices = @transform_0, window_bounds = array<i64: 128, 16>}, {pipeline_mode = #tpu.pipeline_mode<synchronous>, transform_indices = @transform_1, window_bounds = array<i64: 16, 20>}, {pipeline_mode = #tpu.pipeline_mode<synchronous>, transform_indices = @transform_2, window_bounds = array<i64: 1, 20>}, {pipeline_mode = #tpu.pipeline_mode<synchronous>, transform_indices = @transform_3, window_bounds = array<i64: 1, 20>}, {pipeline_mode = #tpu.pipeline_mode<synchronous>, transform_indices = @transform_4, window_bounds = array<i64: 1, 20>}, {transform_indices = @transform_5, window_bounds = array<i64: 128, 20>}]} {
    %c0 = arith.constant 0 : index
    %c0_0 = arith.constant 0 : index
    %0 = vector.load %arg1[%c0, %c0_0] : memref<128x16xf32, #tpu.memory_space<vmem>>, vector<128x16xf32>
    %1 = arith.truncf %0 : vector<128x16xf32> to vector<128x16xbf16>
    %c0_1 = arith.constant 0 : index
    %c0_2 = arith.constant 0 : index
    %2 = vector.load %arg2[%c0_1, %c0_2] : memref<16x20xbf16, #tpu.memory_space<vmem>>, vector<16x20xbf16>
    %cst = arith.constant dense<0.000000e+00> : vector<128x20xf32>
    %3 = tpu.matmul %1, %2, %cst {dimension_numbers = #tpu.dot_dimension_numbers<[1], [0], [0], [1], [0, 0, 1, 1], [], []>} : vector<128x16xbf16>, vector<16x20xbf16>, vector<128x20xf32> -> vector<128x20xf32>
    %c0_3 = arith.constant 0 : index
    %c0_4 = arith.constant 0 : index
    %4 = vector.load %arg3[%c0_3, %c0_4] : memref<1x20xf32, #tpu.memory_space<vmem>>, vector<1x20xf32>
    %5 = vector.broadcast %4 : vector<1x20xf32> to vector<128x20xf32>
    %6 = arith.addf %3, %5 : vector<128x20xf32>
    %c0_5 = arith.constant 0 : index
    %c0_6 = arith.constant 0 : index
    %7 = vector.load %arg4[%c0_5, %c0_6] : memref<1x20xf32, #tpu.memory_space<vmem>>, vector<1x20xf32>
    %8 = vector.broadcast %7 : vector<1x20xf32> to vector<128x20xf32>
    %9 = arith.mulf %6, %8 : vector<128x20xf32>
    %c0_7 = arith.constant 0 : index
    %c0_8 = arith.constant 0 : index
    %10 = vector.load %arg5[%c0_7, %c0_8] : memref<1x20xf32, #tpu.memory_space<vmem>>, vector<1x20xf32>
    %11 = vector.broadcast %10 : vector<1x20xf32> to vector<128x20xf32>
    %12 = arith.addf %9, %11 : vector<128x20xf32>
    %13 = arith.truncf %12 : vector<128x20xf32> to vector<128x20xbf16>
    %c0_9 = arith.constant 0 : index
    %c0_10 = arith.constant 0 : index
    %14 = vector.load %arg6[%c0_9, %c0_10] : memref<128x20xbf16, #tpu.memory_space<vmem>>, vector<128x20xbf16>
    tpu.vector_store %arg6[%c0_9, %c0_10], %13 {strides = array<i32>} : memref<128x20xbf16, #tpu.memory_space<vmem>>, vector<128x20xbf16>,
    return
  }
  func.func @transform_0(%arg0: i32) -> (i32, i32) {
    %c0_i32 = arith.constant 0 : i32
    %c0_i32_0 = arith.constant 0 : i32
    return %arg0, %c0_i32 : i32, i32
  }
  func.func @transform_1(%arg0: i32) -> (i32, i32) {
    %c0_i32 = arith.constant 0 : i32
    %c0_i32_0 = arith.constant 0 : i32
    %c0_i32_1 = arith.constant 0 : i32
    return %c0_i32, %c0_i32_0 : i32, i32
  }
  func.func @transform_2(%arg0: i32) -> (i32, i32) {
    %c0_i32 = arith.constant 0 : i32
    %c0_i32_0 = arith.constant 0 : i32
    %c0_i32_1 = arith.constant 0 : i32
    return %c0_i32, %c0_i32_0 : i32, i32
  }
  func.func @transform_3(%arg0: i32) -> (i32, i32) {
    %c0_i32 = arith.constant 0 : i32
    %c0_i32_0 = arith.constant 0 : i32
    %c0_i32_1 = arith.constant 0 : i32
    return %c0_i32, %c0_i32_0 : i32, i32
  }
  func.func @transform_4(%arg0: i32) -> (i32, i32) {
    %c0_i32 = arith.constant 0 : i32
    %c0_i32_0 = arith.constant 0 : i32
    %c0_i32_1 = arith.constant 0 : i32
    return %c0_i32, %c0_i32_0 : i32, i32
  }
  func.func @transform_5(%arg0: i32) -> (i32, i32) {
    %c0_i32 = arith.constant 0 : i32
    %c0_i32_0 = arith.constant 0 : i32
    return %arg0, %c0_i32 : i32, i32
  }
}

module attributes {stable_mosaic.version = 11 : i64} {
  func.func @_linear_kernel(%arg0: i32, %arg1: memref<128x16xf32, #tpu.memory_space<vmem>>, %arg2: memref<16x20xbf16, #tpu.memory_space<vmem>>, %arg3: memref<1x20xf32, #tpu.memory_space<vmem>>, %arg4: memref<1x20xf32, #tpu.memory_space<vmem>>, %arg5: memref<1x20xf32, #tpu.memory_space<vmem>>, %arg6: memref<128x20xbf16, #tpu.memory_space<vmem>>) attributes {dimension_semantics = [#tpu.dimension_semantics<parallel>], iteration_bounds = array<i64: 1>, scalar_prefetch = 0 : i64, scratch_operands = 0 : i64, tpu.core_type = #tpu.core_type<tc>, window_params = [{transform_indices = @transform_0, window_bounds = array<i64: 128, 16>}, {pipeline_mode = #tpu.pipeline_mode<synchronous>, transform_indices = @transform_1, window_bounds = array<i64: 16, 20>}, {pipeline_mode = #tpu.pipeline_mode<synchronous>, transform_indices = @transform_2, window_bounds = array<i64: 1, 20>}, {pipeline_mode = #tpu.pipeline_mode<synchronous>, transform_indices = @transform_3, window_bounds = array<i64: 1, 20>}, {pipeline_mode = #tpu.pipeline_mode<synchronous>, transform_indices = @transform_4, window_bounds = array<i64: 1, 20>}, {transform_indices = @transform_5, window_bounds = array<i64: 128, 20>}]} {
    %c0 = arith.constant 0 : index
    %c0_0 = arith.constant 0 : index
    %0 = vector.load %arg1[%c0, %c0_0] : memref<128x16xf32, #tpu.memory_space<vmem>>, vector<128x16xf32>
    %1 = arith.truncf %0 : vector<128x16xf32> to vector<128x16xbf16>
    %c0_1 = arith.constant 0 : index
    %c0_2 = arith.constant 0 : index
    %2 = vector.load %arg2[%c0_1, %c0_2] : memref<16x20xbf16, #tpu.memory_space<vmem>>, vector<16x20xbf16>
    %cst = arith.constant dense<0.000000e+00> : vector<128x20xf32>
    %3 = tpu.matmul %1, %2, %cst {dimension_numbers = #tpu.dot_dimension_numbers<[1], [0], [0], [1], [0, 0, 1, 1], [], []>} : vector<128x16xbf16>, vector<16x20xbf16>, vector<128x20xf32> -> vector<128x20xf32>
    %c0_3 = arith.constant 0 : index
    %c0_4 = arith.constant 0 : index
    %4 = vector.load %arg3[%c0_3, %c0_4] : memref<1x20xf32, #tpu.memory_space<vmem>>, vector<1x20xf32>
    %5 = vector.broadcast %4 : vector<1x20xf32> to vector<128x20xf32>
    %6 = arith.addf %3, %5 : vector<128x20xf32>
    %c0_5 = arith.constant 0 : index
    %c0_6 = arith.constant 0 : index
    %7 = vector.load %arg4[%c0_5, %c0_6] : memref<1x20xf32, #tpu.memory_space<vmem>>, vector<1x20xf32>
    %8 = vector.broadcast %7 : vector<1x20xf32> to vector<128x20xf32>
    %9 = arith.mulf %6, %8 : vector<128x20xf32>
    %c0_7 = arith.constant 0 : index
    %c0_8 = arith.constant 0 : index
    %10 = vector.load %arg5[%c0_7, %c0_8] : memref<1x20xf32, #tpu.memory_space<vmem>>, vector<1x20xf32>
    %11 = vector.broadcast %10 : vector<1x20xf32> to vector<128x20xf32>
    %12 = arith.addf %9, %11 : vector<128x20xf32>
    %13 = arith.truncf %12 : vector<128x20xf32> to vector<128x20xbf16>
    %c0_9 = arith.constant 0 : index
    %c0_10 = arith.constant 0 : index
    %14 = vector.load %arg6[%c0_9, %c0_10] : memref<128x20xbf16, #tpu.memory_space<vmem>>, vector<128x20xbf16>
    tpu.vector_store %arg6[%c0_9, %c0_10], %13 {strides = array<i32>} : memref<128x20xbf16, #tpu.memory_space<vmem>>, vector<128x20xbf16>,
    return
  }
  func.func @transform_0(%arg0: i32) -> (i32, i32) {
    %c0_i32 = arith.constant 0 : i32
    %c0_i32_0 = arith.constant 0 : i32
    return %arg0, %c0_i32 : i32, i32
  }
  func.func @transform_1(%arg0: i32) -> (i32, i32) {
    %c0_i32 = arith.constant 0 : i32
    %c0_i32_0 = arith.constant 0 : i32
    %c0_i32_1 = arith.constant 0 : i32
    return %c0_i32, %c0_i32_0 : i32, i32
  }
  func.func @transform_2(%arg0: i32) -> (i32, i32) {
    %c0_i32 = arith.constant 0 : i32
    %c0_i32_0 = arith.constant 0 : i32
    %c0_i32_1 = arith.constant 0 : i32
    return %c0_i32, %c0_i32_0 : i32, i32
  }
  func.func @transform_3(%arg0: i32) -> (i32, i32) {
    %c0_i32 = arith.constant 0 : i32
    %c0_i32_0 = arith.constant 0 : i32
    %c0_i32_1 = arith.constant 0 : i32
    return %c0_i32, %c0_i32_0 : i32, i32
  }
  func.func @transform_4(%arg0: i32) -> (i32, i32) {
    %c0_i32 = arith.constant 0 : i32
    %c0_i32_0 = arith.constant 0 : i32
    %c0_i32_1 = arith.constant 0 : i32
    return %c0_i32, %c0_i32_0 : i32, i32
  }
  func.func @transform_5(%arg0: i32) -> (i32, i32) {
    %c0_i32 = arith.constant 0 : i32
    %c0_i32_0 = arith.constant 0 : i32
    return %arg0, %c0_i32 : i32, i32
  }
}

module attributes {stable_mosaic.version = 11 : i64} {
  func.func @_cca_kernel(%arg0: i32, %arg1: i32, %arg2: memref<1x8x8x2xbf16, #tpu.memory_space<vmem>>, %arg3: memref<1x8x8x2xbf16, #tpu.memory_space<vmem>>, %arg4: memref<1x8x8x16xbf16, #tpu.memory_space<vmem>>, %arg5: memref<1x8x8x2xbf16, #tpu.memory_space<vmem>>, %arg6: memref<1x8x8x2xbf16, #tpu.memory_space<vmem>>, %arg7: memref<1x8x8x16xbf16, #tpu.memory_space<vmem>>, %arg8: memref<1x8x8x16xf32, #tpu.memory_space<vmem>>, %arg9: memref<1x16xf32, #tpu.memory_space<vmem>>, %arg10: memref<1x16xf32, #tpu.memory_space<vmem>>, %arg11: memref<1x16xf32, #tpu.memory_space<vmem>>, %arg12: memref<1x8x8x16xf32, #tpu.memory_space<vmem>>) attributes {dimension_semantics = [#tpu.dimension_semantics<parallel>, #tpu.dimension_semantics<parallel>], iteration_bounds = array<i64: 2, 1>, scalar_prefetch = 0 : i64, scratch_operands = 0 : i64, tpu.core_type = #tpu.core_type<tc>, window_params = [{transform_indices = @transform_0, window_bounds = array<i64: 1, 8, 8, 2>}, {transform_indices = @transform_1, window_bounds = array<i64: 1, 8, 8, 2>}, {transform_indices = @transform_2, window_bounds = array<i64: 1, 8, 8, 16>}, {transform_indices = @transform_3, window_bounds = array<i64: 1, 8, 8, 2>}, {transform_indices = @transform_4, window_bounds = array<i64: 1, 8, 8, 2>}, {transform_indices = @transform_5, window_bounds = array<i64: 1, 8, 8, 16>}, {transform_indices = @transform_6, window_bounds = array<i64: 1, 8, 8, 16>}, {pipeline_mode = #tpu.pipeline_mode<synchronous>, transform_indices = @transform_7, window_bounds = array<i64: 1, 16>}, {pipeline_mode = #tpu.pipeline_mode<synchronous>, transform_indices = @transform_8, window_bounds = array<i64: 1, 16>}, {pipeline_mode = #tpu.pipeline_mode<synchronous>, transform_indices = @transform_9, window_bounds = array<i64: 1, 16>}, {transform_indices = @transform_10, window_bounds = array<i64: 1, 8, 8, 16>}]} {
    %c8_i32 = arith.constant 8 : i32
    %0 = arith.muli %arg1, %c8_i32 : i32
    %c0 = arith.constant 0 : index
    %c0_0 = arith.constant 0 : index
    %c0_1 = arith.constant 0 : index
    %c0_2 = arith.constant 0 : index
    %1 = vector.load %arg2[%c0, %c0_0, %c0_1, %c0_2] : memref<1x8x8x2xbf16, #tpu.memory_space<vmem>>, vector<1x8x8x2xbf16>
    %2 = vector.shape_cast %1 : vector<1x8x8x2xbf16> to vector<8x8x2xbf16>
    %c0_3 = arith.constant 0 : index
    %c0_4 = arith.constant 0 : index
    %c0_5 = arith.constant 0 : index
    %c0_6 = arith.constant 0 : index
    %3 = vector.load %arg3[%c0_3, %c0_4, %c0_5, %c0_6] : memref<1x8x8x2xbf16, #tpu.memory_space<vmem>>, vector<1x8x8x2xbf16>
    %4 = vector.shape_cast %3 : vector<1x8x8x2xbf16> to vector<8x8x2xbf16>
    %c0_7 = arith.constant 0 : index
    %c0_8 = arith.constant 0 : index
    %c0_9 = arith.constant 0 : index
    %c0_10 = arith.constant 0 : index
    %5 = vector.load %arg4[%c0_7, %c0_8, %c0_9, %c0_10] : memref<1x8x8x16xbf16, #tpu.memory_space<vmem>>, vector<1x8x8x16xbf16>
    %6 = vector.shape_cast %5 : vector<1x8x8x16xbf16> to vector<8x8x16xbf16>
    %c0_11 = arith.constant 0 : index
    %c0_12 = arith.constant 0 : index
    %c0_13 = arith.constant 0 : index
    %c0_14 = arith.constant 0 : index
    %7 = vector.load %arg5[%c0_11, %c0_12, %c0_13, %c0_14] : memref<1x8x8x2xbf16, #tpu.memory_space<vmem>>, vector<1x8x8x2xbf16>
    %8 = vector.shape_cast %7 : vector<1x8x8x2xbf16> to vector<8x8x2xbf16>
    %c0_15 = arith.constant 0 : index
    %c0_16 = arith.constant 0 : index
    %c0_17 = arith.constant 0 : index
    %c0_18 = arith.constant 0 : index
    %9 = vector.load %arg6[%c0_15, %c0_16, %c0_17, %c0_18] : memref<1x8x8x2xbf16, #tpu.memory_space<vmem>>, vector<1x8x8x2xbf16>
    %10 = vector.shape_cast %9 : vector<1x8x8x2xbf16> to vector<8x8x2xbf16>
    %c0_19 = arith.constant 0 : index
    %c0_20 = arith.constant 0 : index
    %c0_21 = arith.constant 0 : index
    %c0_22 = arith.constant 0 : index
    %11 = vector.load %arg7[%c0_19, %c0_20, %c0_21, %c0_22] : memref<1x8x8x16xbf16, #tpu.memory_space<vmem>>, vector<1x8x8x16xbf16>
    %12 = vector.shape_cast %11 : vector<1x8x8x16xbf16> to vector<8x8x16xbf16>
    %c0_23 = arith.constant 0 : index
    %c0_24 = arith.constant 0 : index
    %c0_25 = arith.constant 0 : index
    %c0_26 = arith.constant 0 : index
    %13 = vector.load %arg8[%c0_23, %c0_24, %c0_25, %c0_26] : memref<1x8x8x16xf32, #tpu.memory_space<vmem>>, vector<1x8x8x16xf32>
    %14 = vector.shape_cast %13 : vector<1x8x8x16xf32> to vector<8x8x16xf32>
    %c0_27 = arith.constant 0 : index
    %c0_28 = arith.constant 0 : index
    %15 = vector.load %arg9[%c0_27, %c0_28] : memref<1x16xf32, #tpu.memory_space<vmem>>, vector<1x16xf32>
    %c0_29 = arith.constant 0 : index
    %c0_30 = arith.constant 0 : index
    %16 = vector.load %arg10[%c0_29, %c0_30] : memref<1x16xf32, #tpu.memory_space<vmem>>, vector<1x16xf32>
    %c0_31 = arith.constant 0 : index
    %c0_32 = arith.constant 0 : index
    %17 = vector.load %arg11[%c0_31, %c0_32] : memref<1x16xf32, #tpu.memory_space<vmem>>, vector<1x16xf32>
    "tpu.trace_start"() <{level = 10 : i32, message = "twc,tvc->twv"}> : () -> ()
    %cst = arith.constant dense<0.000000e+00> : vector<8x8x8xf32>
    %18 = tpu.matmul %2, %4, %cst {dimension_numbers = #tpu.dot_dimension_numbers<[2], [2], [1], [1], [0, 0, 0, 1, 1, 1], [0], [0]>} : vector<8x8x2xbf16>, vector<8x8x2xbf16>, vector<8x8x8xf32> -> vector<8x8x8xf32>
    "tpu.trace_stop"() : () -> ()
    "tpu.trace_start"() <{level = 10 : i32, message = "wtc,whc->wth"}> : () -> ()
    %cst_33 = arith.constant dense<0.000000e+00> : vector<8x8x8xf32>
    %19 = tpu.matmul %8, %10, %cst_33 {dimension_numbers = #tpu.dot_dimension_numbers<[2], [2], [1], [1], [0, 0, 0, 1, 1, 1], [0], [0]>} : vector<8x8x2xbf16>, vector<8x8x2xbf16>, vector<8x8x8xf32> -> vector<8x8x8xf32>
    "tpu.trace_stop"() : () -> ()
    %20 = tpu.iota {dimensions = array<i32: 1>} : vector<8x8x8xi32>
    %21 = tpu.iota {dimensions = array<i32: 2>} : vector<8x8x8xi32>
    %22 = vector.broadcast %0 : i32 to vector<8x8x8xi32>
    %23 = arith.addi %20, %22 : vector<8x8x8xi32>
    %24 = arith.cmpi eq, %21, %23 : vector<8x8x8xi32>
    %cst_34 = arith.constant 0xFF800000 : f32
    %25 = vector.broadcast %cst_34 : f32 to vector<8x8x8xf32>
    %26 = arith.select %24, %25, %19 : vector<8x8x8xi1>, vector<8x8x8xf32>
    %cst_35 = arith.constant dense<0xFF800000> : vector<8x8xf32>
    %27 = vector.multi_reduction <maximumf>, %18, %cst_35 [2] : vector<8x8x8xf32> to vector<8x8xf32>
    %cst_36 = arith.constant dense<0xFF800000> : vector<8x8xf32>
    %28 = vector.multi_reduction <maximumf>, %26, %cst_36 [2] : vector<8x8x8xf32> to vector<8x8xf32>
    %29 = tpu.transpose %28, [1, 0] : vector<8x8xf32> -> vector<8x8xf32>
    %30 = arith.maximumf %27, %29 : vector<8x8xf32>
    %31 = tpu.transpose %30, [1, 0] : vector<8x8xf32> -> vector<8x8xf32>
    %32 = vector.shape_cast %30 : vector<8x8xf32> to vector<8x8x1xf32>
    %33 = vector.broadcast %32 : vector<8x8x1xf32> to vector<8x8x8xf32>
    %34 = arith.subf %18, %33 : vector<8x8x8xf32>
    %35 = math.exp %34 : vector<8x8x8xf32>
    %36 = vector.shape_cast %31 : vector<8x8xf32> to vector<8x8x1xf32>
    %37 = vector.broadcast %36 : vector<8x8x1xf32> to vector<8x8x8xf32>
    %38 = arith.subf %26, %37 : vector<8x8x8xf32>
    %39 = math.exp %38 : vector<8x8x8xf32>
    %cst_37 = arith.constant dense<0.000000e+00> : vector<8x8xf32>
    %40 = vector.multi_reduction <add>, %35, %cst_37 [2] : vector<8x8x8xf32> to vector<8x8xf32>
    %cst_38 = arith.constant dense<0.000000e+00> : vector<8x8xf32>
    %41 = vector.multi_reduction <add>, %39, %cst_38 [2] : vector<8x8x8xf32> to vector<8x8xf32>
    %42 = tpu.transpose %41, [1, 0] : vector<8x8xf32> -> vector<8x8xf32>
    %43 = arith.addf %40, %42 : vector<8x8xf32>
    %44 = tpu.reciprocal %43 {approx = true} : vector<8x8xf32> -> vector<8x8xf32>
    %45 = vector.shape_cast %44 : vector<8x8xf32> to vector<8x8x1xf32>
    %46 = vector.broadcast %45 : vector<8x8x1xf32> to vector<8x8x8xf32>
    %47 = arith.mulf %35, %46 : vector<8x8x8xf32>
    %48 = arith.truncf %47 : vector<8x8x8xf32> to vector<8x8x8xbf16>
    %49 = tpu.transpose %44, [1, 0] : vector<8x8xf32> -> vector<8x8xf32>
    %50 = vector.shape_cast %49 : vector<8x8xf32> to vector<8x8x1xf32>
    %51 = vector.broadcast %50 : vector<8x8x1xf32> to vector<8x8x8xf32>
    %52 = arith.mulf %39, %51 : vector<8x8x8xf32>
    %53 = arith.truncf %52 : vector<8x8x8xf32> to vector<8x8x8xbf16>
    "tpu.trace_start"() <{level = 10 : i32, message = "twv,tvc->twc"}> : () -> ()
    %cst_39 = arith.constant dense<0.000000e+00> : vector<8x8x16xf32>
    %54 = tpu.matmul %48, %6, %cst_39 {dimension_numbers = #tpu.dot_dimension_numbers<[2], [1], [1], [2], [0, 0, 0, 1, 1, 2], [0], [0]>} : vector<8x8x8xbf16>, vector<8x8x16xbf16>, vector<8x8x16xf32> -> vector<8x8x16xf32>
    "tpu.trace_stop"() : () -> ()
    "tpu.trace_start"() <{level = 10 : i32, message = "wth,whc->wtc"}> : () -> ()
    %cst_40 = arith.constant dense<0.000000e+00> : vector<8x8x16xf32>
    %55 = tpu.matmul %53, %12, %cst_40 {dimension_numbers = #tpu.dot_dimension_numbers<[2], [1], [1], [2], [0, 0, 0, 1, 1, 2], [0], [0]>} : vector<8x8x8xbf16>, vector<8x8x16xbf16>, vector<8x8x16xf32> -> vector<8x8x16xf32>
    "tpu.trace_stop"() : () -> ()
    %56 = vector.extract_strided_slice %55 {offsets = [0, 0, 0], sizes = [8, 1, 16], strides = [1, 1, 1]} : vector<8x8x16xf32> to vector<8x1x16xf32>
    %57 = vector.shape_cast %56 : vector<8x1x16xf32> to vector<8x16xf32>
    %58 = vector.extract_strided_slice %55 {offsets = [0, 1, 0], sizes = [8, 1, 16], strides = [1, 1, 1]} : vector<8x8x16xf32> to vector<8x1x16xf32>
    %59 = vector.shape_cast %58 : vector<8x1x16xf32> to vector<8x16xf32>
    %60 = vector.extract_strided_slice %55 {offsets = [0, 2, 0], sizes = [8, 1, 16], strides = [1, 1, 1]} : vector<8x8x16xf32> to vector<8x1x16xf32>
    %61 = vector.shape_cast %60 : vector<8x1x16xf32> to vector<8x16xf32>
    %62 = vector.extract_strided_slice %55 {offsets = [0, 3, 0], sizes = [8, 1, 16], strides = [1, 1, 1]} : vector<8x8x16xf32> to vector<8x1x16xf32>
    %63 = vector.shape_cast %62 : vector<8x1x16xf32> to vector<8x16xf32>
    %64 = vector.extract_strided_slice %55 {offsets = [0, 4, 0], sizes = [8, 1, 16], strides = [1, 1, 1]} : vector<8x8x16xf32> to vector<8x1x16xf32>
    %65 = vector.shape_cast %64 : vector<8x1x16xf32> to vector<8x16xf32>
    %66 = vector.extract_strided_slice %55 {offsets = [0, 5, 0], sizes = [8, 1, 16], strides = [1, 1, 1]} : vector<8x8x16xf32> to vector<8x1x16xf32>
    %67 = vector.shape_cast %66 : vector<8x1x16xf32> to vector<8x16xf32>
    %68 = vector.extract_strided_slice %55 {offsets = [0, 6, 0], sizes = [8, 1, 16], strides = [1, 1, 1]} : vector<8x8x16xf32> to vector<8x1x16xf32>
    %69 = vector.shape_cast %68 : vector<8x1x16xf32> to vector<8x16xf32>
    %70 = vector.extract_strided_slice %55 {offsets = [0, 7, 0], sizes = [8, 1, 16], strides = [1, 1, 1]} : vector<8x8x16xf32> to vector<8x1x16xf32>
    %71 = vector.shape_cast %70 : vector<8x1x16xf32> to vector<8x16xf32>
    %72 = vector.shape_cast %57 : vector<8x16xf32> to vector<1x8x16xf32>
    %73 = vector.shape_cast %59 : vector<8x16xf32> to vector<1x8x16xf32>
    %74 = vector.shape_cast %61 : vector<8x16xf32> to vector<1x8x16xf32>
    %75 = vector.shape_cast %63 : vector<8x16xf32> to vector<1x8x16xf32>
    %76 = vector.shape_cast %65 : vector<8x16xf32> to vector<1x8x16xf32>
    %77 = vector.shape_cast %67 : vector<8x16xf32> to vector<1x8x16xf32>
    %78 = vector.shape_cast %69 : vector<8x16xf32> to vector<1x8x16xf32>
    %79 = vector.shape_cast %71 : vector<8x16xf32> to vector<1x8x16xf32>
    %80 = tpu.concatenate %72, %73, %74, %75, %76, %77, %78, %79 in 0 : vector<1x8x16xf32>, vector<1x8x16xf32>, vector<1x8x16xf32>, vector<1x8x16xf32>, vector<1x8x16xf32>, vector<1x8x16xf32>, vector<1x8x16xf32>, vector<1x8x16xf32> -> vector<8x8x16xf32>
    %81 = arith.addf %54, %80 : vector<8x8x16xf32>
    %82 = vector.shape_cast %15 : vector<1x16xf32> to vector<1x1x16xf32>
    %83 = vector.broadcast %82 : vector<1x1x16xf32> to vector<8x8x16xf32>
    %84 = arith.mulf %81, %83 : vector<8x8x16xf32>
    %85 = vector.shape_cast %16 : vector<1x16xf32> to vector<1x1x16xf32>
    %86 = vector.broadcast %85 : vector<1x1x16xf32> to vector<8x8x16xf32>
    %87 = arith.mulf %14, %86 : vector<8x8x16xf32>
    %88 = arith.addf %84, %87 : vector<8x8x16xf32>
    %89 = vector.shape_cast %17 : vector<1x16xf32> to vector<1x1x16xf32>
    %90 = vector.broadcast %89 : vector<1x1x16xf32> to vector<8x8x16xf32>
    %91 = arith.addf %88, %90 : vector<8x8x16xf32>
    %c0_41 = arith.constant 0 : index
    %c0_42 = arith.constant 0 : index
    %c0_43 = arith.constant 0 : index
    %c0_44 = arith.constant 0 : index
    %92 = vector.load %arg12[%c0_41, %c0_42, %c0_43, %c0_44] : memref<1x8x8x16xf32, #tpu.memory_space<vmem>>, vector<1x8x8x16xf32>
    %93 = vector.shape_cast %92 : vector<1x8x8x16xf32> to vector<8x8x16xf32>
    %94 = vector.shape_cast %91 : vector<8x8x16xf32> to vector<1x8x8x16xf32>
    tpu.vector_store %arg12[%c0_41, %c0_42, %c0_43, %c0_44], %94 {strides = array<i32>} : memref<1x8x8x16xf32, #tpu.memory_space<vmem>>, vector<1x8x8x16xf32>,
    return
  }
  func.func @transform_0(%arg0: i32, %arg1: i32) -> (i32, i32, i32, i32) {
    %c0_i32 = arith.constant 0 : i32
    %c0_i32_0 = arith.constant 0 : i32
    %c0_i32_1 = arith.constant 0 : i32
    return %arg0, %arg1, %c0_i32, %c0_i32_0 : i32, i32, i32, i32
  }
  func.func @transform_1(%arg0: i32, %arg1: i32) -> (i32, i32, i32, i32) {
    %c0_i32 = arith.constant 0 : i32
    %c0_i32_0 = arith.constant 0 : i32
    %c0_i32_1 = arith.constant 0 : i32
    return %arg0, %arg1, %c0_i32, %c0_i32_0 : i32, i32, i32, i32
  }
  func.func @transform_2(%arg0: i32, %arg1: i32) -> (i32, i32, i32, i32) {
    %c0_i32 = arith.constant 0 : i32
    %c0_i32_0 = arith.constant 0 : i32
    %c0_i32_1 = arith.constant 0 : i32
    return %arg0, %arg1, %c0_i32, %c0_i32_0 : i32, i32, i32, i32
  }
  func.func @transform_3(%arg0: i32, %arg1: i32) -> (i32, i32, i32, i32) {
    %c0_i32 = arith.constant 0 : i32
    %c0_i32_0 = arith.constant 0 : i32
    %c0_i32_1 = arith.constant 0 : i32
    return %arg0, %c0_i32, %arg1, %c0_i32_0 : i32, i32, i32, i32
  }
  func.func @transform_4(%arg0: i32, %arg1: i32) -> (i32, i32, i32, i32) {
    %c0_i32 = arith.constant 0 : i32
    %c0_i32_0 = arith.constant 0 : i32
    %c0_i32_1 = arith.constant 0 : i32
    %c0_i32_2 = arith.constant 0 : i32
    return %arg0, %c0_i32, %c0_i32_0, %c0_i32_1 : i32, i32, i32, i32
  }
  func.func @transform_5(%arg0: i32, %arg1: i32) -> (i32, i32, i32, i32) {
    %c0_i32 = arith.constant 0 : i32
    %c0_i32_0 = arith.constant 0 : i32
    %c0_i32_1 = arith.constant 0 : i32
    %c0_i32_2 = arith.constant 0 : i32
    return %arg0, %c0_i32, %c0_i32_0, %c0_i32_1 : i32, i32, i32, i32
  }
  func.func @transform_6(%arg0: i32, %arg1: i32) -> (i32, i32, i32, i32) {
    %c0_i32 = arith.constant 0 : i32
    %c0_i32_0 = arith.constant 0 : i32
    %c0_i32_1 = arith.constant 0 : i32
    return %arg0, %arg1, %c0_i32, %c0_i32_0 : i32, i32, i32, i32
  }
  func.func @transform_7(%arg0: i32, %arg1: i32) -> (i32, i32) {
    %c0_i32 = arith.constant 0 : i32
    %c0_i32_0 = arith.constant 0 : i32
    %c0_i32_1 = arith.constant 0 : i32
    return %c0_i32, %c0_i32_0 : i32, i32
  }
  func.func @transform_8(%arg0: i32, %arg1: i32) -> (i32, i32) {
    %c0_i32 = arith.constant 0 : i32
    %c0_i32_0 = arith.constant 0 : i32
    %c0_i32_1 = arith.constant 0 : i32
    return %c0_i32, %c0_i32_0 : i32, i32
  }
  func.func @transform_9(%arg0: i32, %arg1: i32) -> (i32, i32) {
    %c0_i32 = arith.constant 0 : i32
    %c0_i32_0 = arith.constant 0 : i32
    %c0_i32_1 = arith.constant 0 : i32
    return %c0_i32, %c0_i32_0 : i32, i32
  }
  func.func @transform_10(%arg0: i32, %arg1: i32) -> (i32, i32, i32, i32) {
    %c0_i32 = arith.constant 0 : i32
    %c0_i32_0 = arith.constant 0 : i32
    %c0_i32_1 = arith.constant 0 : i32
    return %arg0, %arg1, %c0_i32, %c0_i32_0 : i32, i32, i32, i32
  }
}

module attributes {stable_mosaic.version = 11 : i64} {
  func.func @_linear_kernel(%arg0: i32, %arg1: memref<128x16xf32, #tpu.memory_space<vmem>>, %arg2: memref<16x64xbf16, #tpu.memory_space<vmem>>, %arg3: memref<1x64xf32, #tpu.memory_space<vmem>>, %arg4: memref<1x64xf32, #tpu.memory_space<vmem>>, %arg5: memref<1x64xf32, #tpu.memory_space<vmem>>, %arg6: memref<128x64xbf16, #tpu.memory_space<vmem>>) attributes {dimension_semantics = [#tpu.dimension_semantics<parallel>], iteration_bounds = array<i64: 1>, scalar_prefetch = 0 : i64, scratch_operands = 0 : i64, tpu.core_type = #tpu.core_type<tc>, window_params = [{transform_indices = @transform_0, window_bounds = array<i64: 128, 16>}, {pipeline_mode = #tpu.pipeline_mode<synchronous>, transform_indices = @transform_1, window_bounds = array<i64: 16, 64>}, {pipeline_mode = #tpu.pipeline_mode<synchronous>, transform_indices = @transform_2, window_bounds = array<i64: 1, 64>}, {pipeline_mode = #tpu.pipeline_mode<synchronous>, transform_indices = @transform_3, window_bounds = array<i64: 1, 64>}, {pipeline_mode = #tpu.pipeline_mode<synchronous>, transform_indices = @transform_4, window_bounds = array<i64: 1, 64>}, {transform_indices = @transform_5, window_bounds = array<i64: 128, 64>}]} {
    %c0 = arith.constant 0 : index
    %c0_0 = arith.constant 0 : index
    %0 = vector.load %arg1[%c0, %c0_0] : memref<128x16xf32, #tpu.memory_space<vmem>>, vector<128x16xf32>
    %1 = arith.truncf %0 : vector<128x16xf32> to vector<128x16xbf16>
    %c0_1 = arith.constant 0 : index
    %c0_2 = arith.constant 0 : index
    %2 = vector.load %arg2[%c0_1, %c0_2] : memref<16x64xbf16, #tpu.memory_space<vmem>>, vector<16x64xbf16>
    %cst = arith.constant dense<0.000000e+00> : vector<128x64xf32>
    %3 = tpu.matmul %1, %2, %cst {dimension_numbers = #tpu.dot_dimension_numbers<[1], [0], [0], [1], [0, 0, 1, 1], [], []>} : vector<128x16xbf16>, vector<16x64xbf16>, vector<128x64xf32> -> vector<128x64xf32>
    %c0_3 = arith.constant 0 : index
    %c0_4 = arith.constant 0 : index
    %4 = vector.load %arg3[%c0_3, %c0_4] : memref<1x64xf32, #tpu.memory_space<vmem>>, vector<1x64xf32>
    %5 = vector.broadcast %4 : vector<1x64xf32> to vector<128x64xf32>
    %6 = arith.addf %3, %5 : vector<128x64xf32>
    %c0_5 = arith.constant 0 : index
    %c0_6 = arith.constant 0 : index
    %7 = vector.load %arg4[%c0_5, %c0_6] : memref<1x64xf32, #tpu.memory_space<vmem>>, vector<1x64xf32>
    %8 = vector.broadcast %7 : vector<1x64xf32> to vector<128x64xf32>
    %9 = arith.mulf %6, %8 : vector<128x64xf32>
    %c0_7 = arith.constant 0 : index
    %c0_8 = arith.constant 0 : index
    %10 = vector.load %arg5[%c0_7, %c0_8] : memref<1x64xf32, #tpu.memory_space<vmem>>, vector<1x64xf32>
    %11 = vector.broadcast %10 : vector<1x64xf32> to vector<128x64xf32>
    %12 = arith.addf %9, %11 : vector<128x64xf32>
    %cst_9 = arith.constant 5.000000e-01 : f32
    %13 = vector.broadcast %cst_9 : f32 to vector<128x64xf32>
    %14 = arith.mulf %13, %12 : vector<128x64xf32>
    %cst_10 = arith.constant 4.471500e-02 : f32
    %15 = vector.broadcast %cst_10 : f32 to vector<128x64xf32>
    %16 = arith.mulf %15, %12 : vector<128x64xf32>
    %17 = arith.mulf %16, %12 : vector<128x64xf32>
    %18 = arith.mulf %17, %12 : vector<128x64xf32>
    %19 = arith.addf %12, %18 : vector<128x64xf32>
    %cst_11 = arith.constant 0.797884583 : f32
    %20 = vector.broadcast %cst_11 : f32 to vector<128x64xf32>
    %21 = arith.mulf %20, %19 : vector<128x64xf32>
    %22 = math.tanh %21 : vector<128x64xf32>
    %cst_12 = arith.constant 1.000000e+00 : f32
    %23 = vector.broadcast %cst_12 : f32 to vector<128x64xf32>
    %24 = arith.addf %23, %22 : vector<128x64xf32>
    %25 = arith.mulf %14, %24 : vector<128x64xf32>
    %26 = arith.truncf %25 : vector<128x64xf32> to vector<128x64xbf16>
    %c0_13 = arith.constant 0 : index
    %c0_14 = arith.constant 0 : index
    %27 = vector.load %arg6[%c0_13, %c0_14] : memref<128x64xbf16, #tpu.memory_space<vmem>>, vector<128x64xbf16>
    tpu.vector_store %arg6[%c0_13, %c0_14], %26 {strides = array<i32>} : memref<128x64xbf16, #tpu.memory_space<vmem>>, vector<128x64xbf16>,
    return
  }
  func.func @transform_0(%arg0: i32) -> (i32, i32) {
    %c0_i32 = arith.constant 0 : i32
    %c0_i32_0 = arith.constant 0 : i32
    return %arg0, %c0_i32 : i32, i32
  }
  func.func @transform_1(%arg0: i32) -> (i32, i32) {
    %c0_i32 = arith.constant 0 : i32
    %c0_i32_0 = arith.constant 0 : i32
    %c0_i32_1 = arith.constant 0 : i32
    return %c0_i32, %c0_i32_0 : i32, i32
  }
  func.func @transform_2(%arg0: i32) -> (i32, i32) {
    %c0_i32 = arith.constant 0 : i32
    %c0_i32_0 = arith.constant 0 : i32
    %c0_i32_1 = arith.constant 0 : i32
    return %c0_i32, %c0_i32_0 : i32, i32
  }
  func.func @transform_3(%arg0: i32) -> (i32, i32) {
    %c0_i32 = arith.constant 0 : i32
    %c0_i32_0 = arith.constant 0 : i32
    %c0_i32_1 = arith.constant 0 : i32
    return %c0_i32, %c0_i32_0 : i32, i32
  }
  func.func @transform_4(%arg0: i32) -> (i32, i32) {
    %c0_i32 = arith.constant 0 : i32
    %c0_i32_0 = arith.constant 0 : i32
    %c0_i32_1 = arith.constant 0 : i32
    return %c0_i32, %c0_i32_0 : i32, i32
  }
  func.func @transform_5(%arg0: i32) -> (i32, i32) {
    %c0_i32 = arith.constant 0 : i32
    %c0_i32_0 = arith.constant 0 : i32
    return %arg0, %c0_i32 : i32, i32
  }
}

module attributes {stable_mosaic.version = 11 : i64} {
  func.func @_linear_kernel(%arg0: i32, %arg1: memref<128x64xbf16, #tpu.memory_space<vmem>>, %arg2: memref<64x16xbf16, #tpu.memory_space<vmem>>, %arg3: memref<1x16xf32, #tpu.memory_space<vmem>>, %arg4: memref<1x16xf32, #tpu.memory_space<vmem>>, %arg5: memref<1x16xf32, #tpu.memory_space<vmem>>, %arg6: memref<128x16xf32, #tpu.memory_space<vmem>>) attributes {dimension_semantics = [#tpu.dimension_semantics<parallel>], iteration_bounds = array<i64: 1>, scalar_prefetch = 0 : i64, scratch_operands = 0 : i64, tpu.core_type = #tpu.core_type<tc>, window_params = [{transform_indices = @transform_0, window_bounds = array<i64: 128, 64>}, {pipeline_mode = #tpu.pipeline_mode<synchronous>, transform_indices = @transform_1, window_bounds = array<i64: 64, 16>}, {pipeline_mode = #tpu.pipeline_mode<synchronous>, transform_indices = @transform_2, window_bounds = array<i64: 1, 16>}, {pipeline_mode = #tpu.pipeline_mode<synchronous>, transform_indices = @transform_3, window_bounds = array<i64: 1, 16>}, {pipeline_mode = #tpu.pipeline_mode<synchronous>, transform_indices = @transform_4, window_bounds = array<i64: 1, 16>}, {transform_indices = @transform_5, window_bounds = array<i64: 128, 16>}]} {
    %c0 = arith.constant 0 : index
    %c0_0 = arith.constant 0 : index
    %0 = vector.load %arg1[%c0, %c0_0] : memref<128x64xbf16, #tpu.memory_space<vmem>>, vector<128x64xbf16>
    %c0_1 = arith.constant 0 : index
    %c0_2 = arith.constant 0 : index
    %1 = vector.load %arg2[%c0_1, %c0_2] : memref<64x16xbf16, #tpu.memory_space<vmem>>, vector<64x16xbf16>
    %cst = arith.constant dense<0.000000e+00> : vector<128x16xf32>
    %2 = tpu.matmul %0, %1, %cst {dimension_numbers = #tpu.dot_dimension_numbers<[1], [0], [0], [1], [0, 0, 1, 1], [], []>} : vector<128x64xbf16>, vector<64x16xbf16>, vector<128x16xf32> -> vector<128x16xf32>
    %c0_3 = arith.constant 0 : index
    %c0_4 = arith.constant 0 : index
    %3 = vector.load %arg3[%c0_3, %c0_4] : memref<1x16xf32, #tpu.memory_space<vmem>>, vector<1x16xf32>
    %4 = vector.broadcast %3 : vector<1x16xf32> to vector<128x16xf32>
    %5 = arith.addf %2, %4 : vector<128x16xf32>
    %c0_5 = arith.constant 0 : index
    %c0_6 = arith.constant 0 : index
    %6 = vector.load %arg4[%c0_5, %c0_6] : memref<1x16xf32, #tpu.memory_space<vmem>>, vector<1x16xf32>
    %7 = vector.broadcast %6 : vector<1x16xf32> to vector<128x16xf32>
    %8 = arith.mulf %5, %7 : vector<128x16xf32>
    %c0_7 = arith.constant 0 : index
    %c0_8 = arith.constant 0 : index
    %9 = vector.load %arg5[%c0_7, %c0_8] : memref<1x16xf32, #tpu.memory_space<vmem>>, vector<1x16xf32>
    %10 = vector.broadcast %9 : vector<1x16xf32> to vector<128x16xf32>
    %11 = arith.addf %8, %10 : vector<128x16xf32>
    %c0_9 = arith.constant 0 : index
    %c0_10 = arith.constant 0 : index
    %12 = vector.load %arg6[%c0_9, %c0_10] : memref<128x16xf32, #tpu.memory_space<vmem>>, vector<128x16xf32>
    tpu.vector_store %arg6[%c0_9, %c0_10], %11 {strides = array<i32>} : memref<128x16xf32, #tpu.memory_space<vmem>>, vector<128x16xf32>,
    return
  }
  func.func @transform_0(%arg0: i32) -> (i32, i32) {
    %c0_i32 = arith.constant 0 : i32
    %c0_i32_0 = arith.constant 0 : i32
    return %arg0, %c0_i32 : i32, i32
  }
  func.func @transform_1(%arg0: i32) -> (i32, i32) {
    %c0_i32 = arith.constant 0 : i32
    %c0_i32_0 = arith.constant 0 : i32
    %c0_i32_1 = arith.constant 0 : i32
    return %c0_i32, %c0_i32_0 : i32, i32
  }
  func.func @transform_2(%arg0: i32) -> (i32, i32) {
    %c0_i32 = arith.constant 0 : i32
    %c0_i32_0 = arith.constant 0 : i32
    %c0_i32_1 = arith.constant 0 : i32
    return %c0_i32, %c0_i32_0 : i32, i32
  }
  func.func @transform_3(%arg0: i32) -> (i32, i32) {
    %c0_i32 = arith.constant 0 : i32
    %c0_i32_0 = arith.constant 0 : i32
    %c0_i32_1 = arith.constant 0 : i32
    return %c0_i32, %c0_i32_0 : i32, i32
  }
  func.func @transform_4(%arg0: i32) -> (i32, i32) {
    %c0_i32 = arith.constant 0 : i32
    %c0_i32_0 = arith.constant 0 : i32
    %c0_i32_1 = arith.constant 0 : i32
    return %c0_i32, %c0_i32_0 : i32, i32
  }
  func.func @transform_5(%arg0: i32) -> (i32, i32) {
    %c0_i32 = arith.constant 0 : i32
    %c0_i32_0 = arith.constant 0 : i32
    return %arg0, %c0_i32 : i32, i32
  }
}

module attributes {stable_mosaic.version = 11 : i64} {
  func.func @_window_attn_kernel(%arg0: i32, %arg1: memref<4x16x16xf32, #tpu.memory_space<vmem>>, %arg2: memref<16x48xbf16, #tpu.memory_space<vmem>>, %arg3: memref<2x16x16xf32, #tpu.memory_space<vmem>>, %arg4: memref<16x16xbf16, #tpu.memory_space<vmem>>, %arg5: memref<1x16xf32, #tpu.memory_space<vmem>>, %arg6: memref<1x16xf32, #tpu.memory_space<vmem>>, %arg7: memref<4x16x16xbf16, #tpu.memory_space<vmem>>) attributes {dimension_semantics = [#tpu.dimension_semantics<parallel>], iteration_bounds = array<i64: 2>, scalar_prefetch = 0 : i64, scratch_operands = 0 : i64, tpu.core_type = #tpu.core_type<tc>, window_params = [{transform_indices = @transform_0, window_bounds = array<i64: 4, 16, 16>}, {pipeline_mode = #tpu.pipeline_mode<synchronous>, transform_indices = @transform_1, window_bounds = array<i64: 16, 48>}, {pipeline_mode = #tpu.pipeline_mode<synchronous>, transform_indices = @transform_2, window_bounds = array<i64: 2, 16, 16>}, {pipeline_mode = #tpu.pipeline_mode<synchronous>, transform_indices = @transform_3, window_bounds = array<i64: 16, 16>}, {pipeline_mode = #tpu.pipeline_mode<synchronous>, transform_indices = @transform_4, window_bounds = array<i64: 1, 16>}, {pipeline_mode = #tpu.pipeline_mode<synchronous>, transform_indices = @transform_5, window_bounds = array<i64: 1, 16>}, {transform_indices = @transform_6, window_bounds = array<i64: 4, 16, 16>}]} {
    %c0 = arith.constant 0 : index
    %c0_0 = arith.constant 0 : index
    %c0_1 = arith.constant 0 : index
    %0 = vector.load %arg1[%c0, %c0_0, %c0_1] : memref<4x16x16xf32, #tpu.memory_space<vmem>>, vector<4x16x16xf32>
    %1 = vector.shape_cast %0 : vector<4x16x16xf32> to vector<64x16xf32>
    %2 = arith.truncf %1 : vector<64x16xf32> to vector<64x16xbf16>
    %c0_2 = arith.constant 0 : index
    %c0_3 = arith.constant 0 : index
    %3 = vector.load %arg2[%c0_2, %c0_3] : memref<16x48xbf16, #tpu.memory_space<vmem>>, vector<16x48xbf16>
    %cst = arith.constant dense<0.000000e+00> : vector<64x48xf32>
    %4 = tpu.matmul %2, %3, %cst {dimension_numbers = #tpu.dot_dimension_numbers<[1], [0], [0], [1], [0, 0, 1, 1], [], []>} : vector<64x16xbf16>, vector<16x48xbf16>, vector<64x48xf32> -> vector<64x48xf32>
    %cst_4 = arith.constant 0.000000e+00 : f32
    %5 = vector.broadcast %cst_4 : f32 to vector<64x16xf32>
    %6 = vector.extract_strided_slice %4 {offsets = [0, 0], sizes = [64, 8], strides = [1, 1]} : vector<64x48xf32> to vector<64x8xf32>
    %cst_5 = arith.constant 0.353553385 : f32
    %7 = vector.broadcast %cst_5 : f32 to vector<64x8xf32>
    %8 = arith.mulf %6, %7 : vector<64x8xf32>
    %9 = arith.truncf %8 : vector<64x8xf32> to vector<64x8xbf16>
    %10 = vector.extract_strided_slice %4 {offsets = [0, 16], sizes = [64, 8], strides = [1, 1]} : vector<64x48xf32> to vector<64x8xf32>
    %11 = arith.truncf %10 : vector<64x8xf32> to vector<64x8xbf16>
    %12 = vector.extract_strided_slice %4 {offsets = [0, 32], sizes = [64, 8], strides = [1, 1]} : vector<64x48xf32> to vector<64x8xf32>
    %13 = arith.truncf %12 : vector<64x8xf32> to vector<64x8xbf16>
    %14 = vector.shape_cast %9 : vector<64x8xbf16> to vector<4x16x8xbf16>
    %15 = vector.shape_cast %11 : vector<64x8xbf16> to vector<4x16x8xbf16>
    %16 = vector.shape_cast %13 : vector<64x8xbf16> to vector<4x16x8xbf16>
    "tpu.trace_start"() <{level = 10 : i32, message = "gnd,gmd->gnm"}> : () -> ()
    %cst_6 = arith.constant dense<0.000000e+00> : vector<4x16x16xf32>
    %17 = tpu.matmul %14, %15, %cst_6 {dimension_numbers = #tpu.dot_dimension_numbers<[2], [2], [1], [1], [0, 0, 0, 1, 1, 1], [0], [0]>} : vector<4x16x8xbf16>, vector<4x16x8xbf16>, vector<4x16x16xf32> -> vector<4x16x16xf32>
    "tpu.trace_stop"() : () -> ()
    %c0_7 = arith.constant 0 : index
    %c0_8 = arith.constant 0 : index
    %c0_9 = arith.constant 0 : index
    %18 = vector.load %arg3[%c0_7, %c0_8, %c0_9] : memref<2x16x16xf32, #tpu.memory_space<vmem>>, vector<1x16x16xf32>
    %19 = vector.shape_cast %18 : vector<1x16x16xf32> to vector<16x16xf32>
    %20 = vector.shape_cast %19 : vector<16x16xf32> to vector<1x16x16xf32>
    %21 = vector.broadcast %20 : vector<1x16x16xf32> to vector<4x16x16xf32>
    %22 = arith.addf %17, %21 : vector<4x16x16xf32>
    %cst_10 = arith.constant dense<0xFF800000> : vector<4x16xf32>
    %23 = vector.multi_reduction <maximumf>, %22, %cst_10 [2] : vector<4x16x16xf32> to vector<4x16xf32>
    %24 = vector.shape_cast %23 : vector<4x16xf32> to vector<4x16x1xf32>
    %25 = vector.broadcast %24 : vector<4x16x1xf32> to vector<4x16x16xf32>
    %26 = arith.subf %22, %25 : vector<4x16x16xf32>
    %27 = math.exp %26 : vector<4x16x16xf32>
    %cst_11 = arith.constant dense<0.000000e+00> : vector<4x16xf32>
    %28 = vector.multi_reduction <add>, %27, %cst_11 [2] : vector<4x16x16xf32> to vector<4x16xf32>
    %29 = vector.shape_cast %28 : vector<4x16xf32> to vector<4x16x1xf32>
    %30 = tpu.reciprocal %29 {approx = true} : vector<4x16x1xf32> -> vector<4x16x1xf32>
    %31 = vector.broadcast %30 : vector<4x16x1xf32> to vector<4x16x16xf32>
    %32 = arith.mulf %27, %31 : vector<4x16x16xf32>
    %33 = arith.truncf %32 : vector<4x16x16xf32> to vector<4x16x16xbf16>
    "tpu.trace_start"() <{level = 10 : i32, message = "gnm,gmd->gnd"}> : () -> ()
    %cst_12 = arith.constant dense<0.000000e+00> : vector<4x16x8xf32>
    %34 = tpu.matmul %33, %16, %cst_12 {dimension_numbers = #tpu.dot_dimension_numbers<[2], [1], [1], [2], [0, 0, 0, 1, 1, 2], [0], [0]>} : vector<4x16x16xbf16>, vector<4x16x8xbf16>, vector<4x16x8xf32> -> vector<4x16x8xf32>
    "tpu.trace_stop"() : () -> ()
    %35 = vector.shape_cast %34 : vector<4x16x8xf32> to vector<64x8xf32>
    %36 = arith.truncf %35 : vector<64x8xf32> to vector<64x8xbf16>
    %c0_13 = arith.constant 0 : index
    %c0_14 = arith.constant 0 : index
    %37 = vector.load %arg4[%c0_13, %c0_14] : memref<16x16xbf16, #tpu.memory_space<vmem>>, vector<8x16xbf16>
    %cst_15 = arith.constant dense<0.000000e+00> : vector<64x16xf32>
    %38 = tpu.matmul %36, %37, %cst_15 {dimension_numbers = #tpu.dot_dimension_numbers<[1], [0], [0], [1], [0, 0, 1, 1], [], []>} : vector<64x8xbf16>, vector<8x16xbf16>, vector<64x16xf32> -> vector<64x16xf32>
    %39 = arith.addf %5, %38 : vector<64x16xf32>
    %40 = vector.extract_strided_slice %4 {offsets = [0, 8], sizes = [64, 8], strides = [1, 1]} : vector<64x48xf32> to vector<64x8xf32>
    %cst_16 = arith.constant 0.353553385 : f32
    %41 = vector.broadcast %cst_16 : f32 to vector<64x8xf32>
    %42 = arith.mulf %40, %41 : vector<64x8xf32>
    %43 = arith.truncf %42 : vector<64x8xf32> to vector<64x8xbf16>
    %44 = vector.extract_strided_slice %4 {offsets = [0, 24], sizes = [64, 8], strides = [1, 1]} : vector<64x48xf32> to vector<64x8xf32>
    %45 = arith.truncf %44 : vector<64x8xf32> to vector<64x8xbf16>
    %46 = vector.extract_strided_slice %4 {offsets = [0, 40], sizes = [64, 8], strides = [1, 1]} : vector<64x48xf32> to vector<64x8xf32>
    %47 = arith.truncf %46 : vector<64x8xf32> to vector<64x8xbf16>
    %48 = vector.shape_cast %43 : vector<64x8xbf16> to vector<4x16x8xbf16>
    %49 = vector.shape_cast %45 : vector<64x8xbf16> to vector<4x16x8xbf16>
    %50 = vector.shape_cast %47 : vector<64x8xbf16> to vector<4x16x8xbf16>
    "tpu.trace_start"() <{level = 10 : i32, message = "gnd,gmd->gnm"}> : () -> ()
    %cst_17 = arith.constant dense<0.000000e+00> : vector<4x16x16xf32>
    %51 = tpu.matmul %48, %49, %cst_17 {dimension_numbers = #tpu.dot_dimension_numbers<[2], [2], [1], [1], [0, 0, 0, 1, 1, 1], [0], [0]>} : vector<4x16x8xbf16>, vector<4x16x8xbf16>, vector<4x16x16xf32> -> vector<4x16x16xf32>
    "tpu.trace_stop"() : () -> ()
    %c1 = arith.constant 1 : index
    %c0_18 = arith.constant 0 : index
    %c0_19 = arith.constant 0 : index
    %52 = vector.load %arg3[%c1, %c0_18, %c0_19] : memref<2x16x16xf32, #tpu.memory_space<vmem>>, vector<1x16x16xf32>
    %53 = vector.shape_cast %52 : vector<1x16x16xf32> to vector<16x16xf32>
    %54 = vector.shape_cast %53 : vector<16x16xf32> to vector<1x16x16xf32>
    %55 = vector.broadcast %54 : vector<1x16x16xf32> to vector<4x16x16xf32>
    %56 = arith.addf %51, %55 : vector<4x16x16xf32>
    %cst_20 = arith.constant dense<0xFF800000> : vector<4x16xf32>
    %57 = vector.multi_reduction <maximumf>, %56, %cst_20 [2] : vector<4x16x16xf32> to vector<4x16xf32>
    %58 = vector.shape_cast %57 : vector<4x16xf32> to vector<4x16x1xf32>
    %59 = vector.broadcast %58 : vector<4x16x1xf32> to vector<4x16x16xf32>
    %60 = arith.subf %56, %59 : vector<4x16x16xf32>
    %61 = math.exp %60 : vector<4x16x16xf32>
    %cst_21 = arith.constant dense<0.000000e+00> : vector<4x16xf32>
    %62 = vector.multi_reduction <add>, %61, %cst_21 [2] : vector<4x16x16xf32> to vector<4x16xf32>
    %63 = vector.shape_cast %62 : vector<4x16xf32> to vector<4x16x1xf32>
    %64 = tpu.reciprocal %63 {approx = true} : vector<4x16x1xf32> -> vector<4x16x1xf32>
    %65 = vector.broadcast %64 : vector<4x16x1xf32> to vector<4x16x16xf32>
    %66 = arith.mulf %61, %65 : vector<4x16x16xf32>
    %67 = arith.truncf %66 : vector<4x16x16xf32> to vector<4x16x16xbf16>
    "tpu.trace_start"() <{level = 10 : i32, message = "gnm,gmd->gnd"}> : () -> ()
    %cst_22 = arith.constant dense<0.000000e+00> : vector<4x16x8xf32>
    %68 = tpu.matmul %67, %50, %cst_22 {dimension_numbers = #tpu.dot_dimension_numbers<[2], [1], [1], [2], [0, 0, 0, 1, 1, 2], [0], [0]>} : vector<4x16x16xbf16>, vector<4x16x8xbf16>, vector<4x16x8xf32> -> vector<4x16x8xf32>
    "tpu.trace_stop"() : () -> ()
    %69 = vector.shape_cast %68 : vector<4x16x8xf32> to vector<64x8xf32>
    %70 = arith.truncf %69 : vector<64x8xf32> to vector<64x8xbf16>
    %c8 = arith.constant 8 : index
    %c0_23 = arith.constant 0 : index
    %71 = vector.load %arg4[%c8, %c0_23] : memref<16x16xbf16, #tpu.memory_space<vmem>>, vector<8x16xbf16>
    %cst_24 = arith.constant dense<0.000000e+00> : vector<64x16xf32>
    %72 = tpu.matmul %70, %71, %cst_24 {dimension_numbers = #tpu.dot_dimension_numbers<[1], [0], [0], [1], [0, 0, 1, 1], [], []>} : vector<64x8xbf16>, vector<8x16xbf16>, vector<64x16xf32> -> vector<64x16xf32>
    %73 = arith.addf %39, %72 : vector<64x16xf32>
    %c0_25 = arith.constant 0 : index
    %c0_26 = arith.constant 0 : index
    %74 = vector.load %arg5[%c0_25, %c0_26] : memref<1x16xf32, #tpu.memory_space<vmem>>, vector<1x16xf32>
    %75 = vector.broadcast %74 : vector<1x16xf32> to vector<64x16xf32>
    %76 = arith.mulf %73, %75 : vector<64x16xf32>
    %c0_27 = arith.constant 0 : index
    %c0_28 = arith.constant 0 : index
    %77 = vector.load %arg6[%c0_27, %c0_28] : memref<1x16xf32, #tpu.memory_space<vmem>>, vector<1x16xf32>
    %78 = vector.broadcast %77 : vector<1x16xf32> to vector<64x16xf32>
    %79 = arith.addf %76, %78 : vector<64x16xf32>
    %80 = vector.shape_cast %79 : vector<64x16xf32> to vector<4x16x16xf32>
    %81 = arith.truncf %80 : vector<4x16x16xf32> to vector<4x16x16xbf16>
    %c0_29 = arith.constant 0 : index
    %c0_30 = arith.constant 0 : index
    %c0_31 = arith.constant 0 : index
    %82 = vector.load %arg7[%c0_29, %c0_30, %c0_31] : memref<4x16x16xbf16, #tpu.memory_space<vmem>>, vector<4x16x16xbf16>
    tpu.vector_store %arg7[%c0_29, %c0_30, %c0_31], %81 {strides = array<i32>} : memref<4x16x16xbf16, #tpu.memory_space<vmem>>, vector<4x16x16xbf16>,
    return
  }
  func.func @transform_0(%arg0: i32) -> (i32, i32, i32) {
    %c0_i32 = arith.constant 0 : i32
    %c0_i32_0 = arith.constant 0 : i32
    %c0_i32_1 = arith.constant 0 : i32
    return %arg0, %c0_i32, %c0_i32_0 : i32, i32, i32
  }
  func.func @transform_1(%arg0: i32) -> (i32, i32) {
    %c0_i32 = arith.constant 0 : i32
    %c0_i32_0 = arith.constant 0 : i32
    %c0_i32_1 = arith.constant 0 : i32
    return %c0_i32, %c0_i32_0 : i32, i32
  }
  func.func @transform_2(%arg0: i32) -> (i32, i32, i32) {
    %c0_i32 = arith.constant 0 : i32
    %c0_i32_0 = arith.constant 0 : i32
    %c0_i32_1 = arith.constant 0 : i32
    %c0_i32_2 = arith.constant 0 : i32
    return %c0_i32, %c0_i32_0, %c0_i32_1 : i32, i32, i32
  }
  func.func @transform_3(%arg0: i32) -> (i32, i32) {
    %c0_i32 = arith.constant 0 : i32
    %c0_i32_0 = arith.constant 0 : i32
    %c0_i32_1 = arith.constant 0 : i32
    return %c0_i32, %c0_i32_0 : i32, i32
  }
  func.func @transform_4(%arg0: i32) -> (i32, i32) {
    %c0_i32 = arith.constant 0 : i32
    %c0_i32_0 = arith.constant 0 : i32
    %c0_i32_1 = arith.constant 0 : i32
    return %c0_i32, %c0_i32_0 : i32, i32
  }
  func.func @transform_5(%arg0: i32) -> (i32, i32) {
    %c0_i32 = arith.constant 0 : i32
    %c0_i32_0 = arith.constant 0 : i32
    %c0_i32_1 = arith.constant 0 : i32
    return %c0_i32, %c0_i32_0 : i32, i32
  }
  func.func @transform_6(%arg0: i32) -> (i32, i32, i32) {
    %c0_i32 = arith.constant 0 : i32
    %c0_i32_0 = arith.constant 0 : i32
    %c0_i32_1 = arith.constant 0 : i32
    return %arg0, %c0_i32, %c0_i32_0 : i32, i32, i32
  }
}

module attributes {stable_mosaic.version = 11 : i64} {
  func.func @_linear_kernel(%arg0: i32, %arg1: memref<128x16xbf16, #tpu.memory_space<vmem>>, %arg2: memref<16x64xbf16, #tpu.memory_space<vmem>>, %arg3: memref<1x64xf32, #tpu.memory_space<vmem>>, %arg4: memref<1x64xf32, #tpu.memory_space<vmem>>, %arg5: memref<1x64xf32, #tpu.memory_space<vmem>>, %arg6: memref<128x64xbf16, #tpu.memory_space<vmem>>) attributes {dimension_semantics = [#tpu.dimension_semantics<parallel>], iteration_bounds = array<i64: 1>, scalar_prefetch = 0 : i64, scratch_operands = 0 : i64, tpu.core_type = #tpu.core_type<tc>, window_params = [{transform_indices = @transform_0, window_bounds = array<i64: 128, 16>}, {pipeline_mode = #tpu.pipeline_mode<synchronous>, transform_indices = @transform_1, window_bounds = array<i64: 16, 64>}, {pipeline_mode = #tpu.pipeline_mode<synchronous>, transform_indices = @transform_2, window_bounds = array<i64: 1, 64>}, {pipeline_mode = #tpu.pipeline_mode<synchronous>, transform_indices = @transform_3, window_bounds = array<i64: 1, 64>}, {pipeline_mode = #tpu.pipeline_mode<synchronous>, transform_indices = @transform_4, window_bounds = array<i64: 1, 64>}, {transform_indices = @transform_5, window_bounds = array<i64: 128, 64>}]} {
    %c0 = arith.constant 0 : index
    %c0_0 = arith.constant 0 : index
    %0 = vector.load %arg1[%c0, %c0_0] : memref<128x16xbf16, #tpu.memory_space<vmem>>, vector<128x16xbf16>
    %c0_1 = arith.constant 0 : index
    %c0_2 = arith.constant 0 : index
    %1 = vector.load %arg2[%c0_1, %c0_2] : memref<16x64xbf16, #tpu.memory_space<vmem>>, vector<16x64xbf16>
    %cst = arith.constant dense<0.000000e+00> : vector<128x64xf32>
    %2 = tpu.matmul %0, %1, %cst {dimension_numbers = #tpu.dot_dimension_numbers<[1], [0], [0], [1], [0, 0, 1, 1], [], []>} : vector<128x16xbf16>, vector<16x64xbf16>, vector<128x64xf32> -> vector<128x64xf32>
    %c0_3 = arith.constant 0 : index
    %c0_4 = arith.constant 0 : index
    %3 = vector.load %arg3[%c0_3, %c0_4] : memref<1x64xf32, #tpu.memory_space<vmem>>, vector<1x64xf32>
    %4 = vector.broadcast %3 : vector<1x64xf32> to vector<128x64xf32>
    %5 = arith.addf %2, %4 : vector<128x64xf32>
    %c0_5 = arith.constant 0 : index
    %c0_6 = arith.constant 0 : index
    %6 = vector.load %arg4[%c0_5, %c0_6] : memref<1x64xf32, #tpu.memory_space<vmem>>, vector<1x64xf32>
    %7 = vector.broadcast %6 : vector<1x64xf32> to vector<128x64xf32>
    %8 = arith.mulf %5, %7 : vector<128x64xf32>
    %c0_7 = arith.constant 0 : index
    %c0_8 = arith.constant 0 : index
    %9 = vector.load %arg5[%c0_7, %c0_8] : memref<1x64xf32, #tpu.memory_space<vmem>>, vector<1x64xf32>
    %10 = vector.broadcast %9 : vector<1x64xf32> to vector<128x64xf32>
    %11 = arith.addf %8, %10 : vector<128x64xf32>
    %cst_9 = arith.constant 5.000000e-01 : f32
    %12 = vector.broadcast %cst_9 : f32 to vector<128x64xf32>
    %13 = arith.mulf %12, %11 : vector<128x64xf32>
    %cst_10 = arith.constant 4.471500e-02 : f32
    %14 = vector.broadcast %cst_10 : f32 to vector<128x64xf32>
    %15 = arith.mulf %14, %11 : vector<128x64xf32>
    %16 = arith.mulf %15, %11 : vector<128x64xf32>
    %17 = arith.mulf %16, %11 : vector<128x64xf32>
    %18 = arith.addf %11, %17 : vector<128x64xf32>
    %cst_11 = arith.constant 0.797884583 : f32
    %19 = vector.broadcast %cst_11 : f32 to vector<128x64xf32>
    %20 = arith.mulf %19, %18 : vector<128x64xf32>
    %21 = math.tanh %20 : vector<128x64xf32>
    %cst_12 = arith.constant 1.000000e+00 : f32
    %22 = vector.broadcast %cst_12 : f32 to vector<128x64xf32>
    %23 = arith.addf %22, %21 : vector<128x64xf32>
    %24 = arith.mulf %13, %23 : vector<128x64xf32>
    %25 = arith.truncf %24 : vector<128x64xf32> to vector<128x64xbf16>
    %c0_13 = arith.constant 0 : index
    %c0_14 = arith.constant 0 : index
    %26 = vector.load %arg6[%c0_13, %c0_14] : memref<128x64xbf16, #tpu.memory_space<vmem>>, vector<128x64xbf16>
    tpu.vector_store %arg6[%c0_13, %c0_14], %25 {strides = array<i32>} : memref<128x64xbf16, #tpu.memory_space<vmem>>, vector<128x64xbf16>,
    return
  }
  func.func @transform_0(%arg0: i32) -> (i32, i32) {
    %c0_i32 = arith.constant 0 : i32
    %c0_i32_0 = arith.constant 0 : i32
    return %arg0, %c0_i32 : i32, i32
  }
  func.func @transform_1(%arg0: i32) -> (i32, i32) {
    %c0_i32 = arith.constant 0 : i32
    %c0_i32_0 = arith.constant 0 : i32
    %c0_i32_1 = arith.constant 0 : i32
    return %c0_i32, %c0_i32_0 : i32, i32
  }
  func.func @transform_2(%arg0: i32) -> (i32, i32) {
    %c0_i32 = arith.constant 0 : i32
    %c0_i32_0 = arith.constant 0 : i32
    %c0_i32_1 = arith.constant 0 : i32
    return %c0_i32, %c0_i32_0 : i32, i32
  }
  func.func @transform_3(%arg0: i32) -> (i32, i32) {
    %c0_i32 = arith.constant 0 : i32
    %c0_i32_0 = arith.constant 0 : i32
    %c0_i32_1 = arith.constant 0 : i32
    return %c0_i32, %c0_i32_0 : i32, i32
  }
  func.func @transform_4(%arg0: i32) -> (i32, i32) {
    %c0_i32 = arith.constant 0 : i32
    %c0_i32_0 = arith.constant 0 : i32
    %c0_i32_1 = arith.constant 0 : i32
    return %c0_i32, %c0_i32_0 : i32, i32
  }
  func.func @transform_5(%arg0: i32) -> (i32, i32) {
    %c0_i32 = arith.constant 0 : i32
    %c0_i32_0 = arith.constant 0 : i32
    return %arg0, %c0_i32 : i32, i32
  }
}

module attributes {stable_mosaic.version = 11 : i64} {
  func.func @_dwconv3x3_kernel(%arg0: i32, %arg1: i32, %arg2: memref<1x8x8x16xbf16, #tpu.memory_space<vmem>>, %arg3: memref<3x3x16xf32, #tpu.memory_space<vmem>>, %arg4: memref<1x16xf32, #tpu.memory_space<vmem>>, %arg5: memref<1x8x8x16xbf16, #tpu.memory_space<vmem>>, %arg6: memref<1x1x16xf32, #tpu.memory_space<vmem>>) attributes {dimension_semantics = [#tpu.dimension_semantics<parallel>, #tpu.dimension_semantics<parallel>], iteration_bounds = array<i64: 2, 1>, scalar_prefetch = 0 : i64, scratch_operands = 0 : i64, tpu.core_type = #tpu.core_type<tc>, window_params = [{transform_indices = @transform_0, window_bounds = array<i64: 1, 8, 8, 16>}, {transform_indices = @transform_1, window_bounds = array<i64: 3, 3, 16>}, {transform_indices = @transform_2, window_bounds = array<i64: 1, 16>}, {transform_indices = @transform_3, window_bounds = array<i64: 1, 8, 8, 16>}, {transform_indices = @transform_4, window_bounds = array<i64: 1, 1, 16>}]} {
    %c0 = arith.constant 0 : index
    %c0_0 = arith.constant 0 : index
    %c0_1 = arith.constant 0 : index
    %c0_2 = arith.constant 0 : index
    %0 = vector.load %arg2[%c0, %c0_0, %c0_1, %c0_2] : memref<1x8x8x16xbf16, #tpu.memory_space<vmem>>, vector<1x8x8x16xbf16>
    %1 = vector.shape_cast %0 : vector<1x8x8x16xbf16> to vector<8x8x16xbf16>
    %2 = arith.extf %1 : vector<8x8x16xbf16> to vector<8x8x16xf32>
    %cst = arith.constant 0.000000e+00 : f32
    %3 = vector.broadcast %cst : f32 to vector<8x8x16xf32>
    %c0_3 = arith.constant 0 : index
    %c0_4 = arith.constant 0 : index
    %4 = vector.load %arg4[%c0_3, %c0_4] : memref<1x16xf32, #tpu.memory_space<vmem>>, vector<1x16xf32>
    %5 = vector.shape_cast %4 : vector<1x16xf32> to vector<1x1x16xf32>
    %6 = vector.broadcast %5 : vector<1x1x16xf32> to vector<8x8x16xf32>
    %7 = arith.addf %3, %6 : vector<8x8x16xf32>
    %cst_5 = arith.constant 0.000000e+00 : f32
    %8 = vector.broadcast %cst_5 : f32 to vector<1x8x16xf32>
    %9 = vector.extract_strided_slice %2 {offsets = [0, 0, 0], sizes = [7, 8, 16], strides = [1, 1, 1]} : vector<8x8x16xf32> to vector<7x8x16xf32>
    %10 = tpu.concatenate %8, %9 in 0 : vector<1x8x16xf32>, vector<7x8x16xf32> -> vector<8x8x16xf32>
    %cst_6 = arith.constant 0.000000e+00 : f32
    %11 = vector.broadcast %cst_6 : f32 to vector<8x1x16xf32>
    %12 = vector.extract_strided_slice %10 {offsets = [0, 0, 0], sizes = [8, 7, 16], strides = [1, 1, 1]} : vector<8x8x16xf32> to vector<8x7x16xf32>
    %13 = tpu.concatenate %11, %12 in 1 : vector<8x1x16xf32>, vector<8x7x16xf32> -> vector<8x8x16xf32>
    %c0_7 = arith.constant 0 : index
    %c0_8 = arith.constant 0 : index
    %c0_9 = arith.constant 0 : index
    %14 = vector.load %arg3[%c0_7, %c0_8, %c0_9] : memref<3x3x16xf32, #tpu.memory_space<vmem>>, vector<1x1x16xf32>
    %15 = vector.shape_cast %14 : vector<1x1x16xf32> to vector<16xf32>
    %16 = vector.shape_cast %15 : vector<16xf32> to vector<1x1x16xf32>
    %17 = vector.broadcast %16 : vector<1x1x16xf32> to vector<8x8x16xf32>
    %18 = arith.mulf %13, %17 : vector<8x8x16xf32>
    %19 = arith.addf %7, %18 : vector<8x8x16xf32>
    %c0_10 = arith.constant 0 : index
    %c1 = arith.constant 1 : index
    %c0_11 = arith.constant 0 : index
    %20 = vector.load %arg3[%c0_10, %c1, %c0_11] : memref<3x3x16xf32, #tpu.memory_space<vmem>>, vector<1x1x16xf32>
    %21 = vector.shape_cast %20 : vector<1x1x16xf32> to vector<16xf32>
    %22 = vector.shape_cast %21 : vector<16xf32> to vector<1x1x16xf32>
    %23 = vector.broadcast %22 : vector<1x1x16xf32> to vector<8x8x16xf32>
    %24 = arith.mulf %10, %23 : vector<8x8x16xf32>
    %25 = arith.addf %19, %24 : vector<8x8x16xf32>
    %cst_12 = arith.constant 0.000000e+00 : f32
    %26 = vector.broadcast %cst_12 : f32 to vector<8x1x16xf32>
    %27 = vector.extract_strided_slice %10 {offsets = [0, 1, 0], sizes = [8, 7, 16], strides = [1, 1, 1]} : vector<8x8x16xf32> to vector<8x7x16xf32>
    %28 = tpu.concatenate %27, %26 in 1 : vector<8x7x16xf32>, vector<8x1x16xf32> -> vector<8x8x16xf32>
    %c0_13 = arith.constant 0 : index
    %c2 = arith.constant 2 : index
    %c0_14 = arith.constant 0 : index
    %29 = vector.load %arg3[%c0_13, %c2, %c0_14] : memref<3x3x16xf32, #tpu.memory_space<vmem>>, vector<1x1x16xf32>
    %30 = vector.shape_cast %29 : vector<1x1x16xf32> to vector<16xf32>
    %31 = vector.shape_cast %30 : vector<16xf32> to vector<1x1x16xf32>
    %32 = vector.broadcast %31 : vector<1x1x16xf32> to vector<8x8x16xf32>
    %33 = arith.mulf %28, %32 : vector<8x8x16xf32>
    %34 = arith.addf %25, %33 : vector<8x8x16xf32>
    %cst_15 = arith.constant 0.000000e+00 : f32
    %35 = vector.broadcast %cst_15 : f32 to vector<8x1x16xf32>
    %36 = vector.extract_strided_slice %2 {offsets = [0, 0, 0], sizes = [8, 7, 16], strides = [1, 1, 1]} : vector<8x8x16xf32> to vector<8x7x16xf32>
    %37 = tpu.concatenate %35, %36 in 1 : vector<8x1x16xf32>, vector<8x7x16xf32> -> vector<8x8x16xf32>
    %c1_16 = arith.constant 1 : index
    %c0_17 = arith.constant 0 : index
    %c0_18 = arith.constant 0 : index
    %38 = vector.load %arg3[%c1_16, %c0_17, %c0_18] : memref<3x3x16xf32, #tpu.memory_space<vmem>>, vector<1x1x16xf32>
    %39 = vector.shape_cast %38 : vector<1x1x16xf32> to vector<16xf32>
    %40 = vector.shape_cast %39 : vector<16xf32> to vector<1x1x16xf32>
    %41 = vector.broadcast %40 : vector<1x1x16xf32> to vector<8x8x16xf32>
    %42 = arith.mulf %37, %41 : vector<8x8x16xf32>
    %43 = arith.addf %34, %42 : vector<8x8x16xf32>
    %c1_19 = arith.constant 1 : index
    %c1_20 = arith.constant 1 : index
    %c0_21 = arith.constant 0 : index
    %44 = vector.load %arg3[%c1_19, %c1_20, %c0_21] : memref<3x3x16xf32, #tpu.memory_space<vmem>>, vector<1x1x16xf32>
    %45 = vector.shape_cast %44 : vector<1x1x16xf32> to vector<16xf32>
    %46 = vector.shape_cast %45 : vector<16xf32> to vector<1x1x16xf32>
    %47 = vector.broadcast %46 : vector<1x1x16xf32> to vector<8x8x16xf32>
    %48 = arith.mulf %2, %47 : vector<8x8x16xf32>
    %49 = arith.addf %43, %48 : vector<8x8x16xf32>
    %cst_22 = arith.constant 0.000000e+00 : f32
    %50 = vector.broadcast %cst_22 : f32 to vector<8x1x16xf32>
    %51 = vector.extract_strided_slice %2 {offsets = [0, 1, 0], sizes = [8, 7, 16], strides = [1, 1, 1]} : vector<8x8x16xf32> to vector<8x7x16xf32>
    %52 = tpu.concatenate %51, %50 in 1 : vector<8x7x16xf32>, vector<8x1x16xf32> -> vector<8x8x16xf32>
    %c1_23 = arith.constant 1 : index
    %c2_24 = arith.constant 2 : index
    %c0_25 = arith.constant 0 : index
    %53 = vector.load %arg3[%c1_23, %c2_24, %c0_25] : memref<3x3x16xf32, #tpu.memory_space<vmem>>, vector<1x1x16xf32>
    %54 = vector.shape_cast %53 : vector<1x1x16xf32> to vector<16xf32>
    %55 = vector.shape_cast %54 : vector<16xf32> to vector<1x1x16xf32>
    %56 = vector.broadcast %55 : vector<1x1x16xf32> to vector<8x8x16xf32>
    %57 = arith.mulf %52, %56 : vector<8x8x16xf32>
    %58 = arith.addf %49, %57 : vector<8x8x16xf32>
    %cst_26 = arith.constant 0.000000e+00 : f32
    %59 = vector.broadcast %cst_26 : f32 to vector<1x8x16xf32>
    %60 = vector.extract_strided_slice %2 {offsets = [1, 0, 0], sizes = [7, 8, 16], strides = [1, 1, 1]} : vector<8x8x16xf32> to vector<7x8x16xf32>
    %61 = tpu.concatenate %60, %59 in 0 : vector<7x8x16xf32>, vector<1x8x16xf32> -> vector<8x8x16xf32>
    %cst_27 = arith.constant 0.000000e+00 : f32
    %62 = vector.broadcast %cst_27 : f32 to vector<8x1x16xf32>
    %63 = vector.extract_strided_slice %61 {offsets = [0, 0, 0], sizes = [8, 7, 16], strides = [1, 1, 1]} : vector<8x8x16xf32> to vector<8x7x16xf32>
    %64 = tpu.concatenate %62, %63 in 1 : vector<8x1x16xf32>, vector<8x7x16xf32> -> vector<8x8x16xf32>
    %c2_28 = arith.constant 2 : index
    %c0_29 = arith.constant 0 : index
    %c0_30 = arith.constant 0 : index
    %65 = vector.load %arg3[%c2_28, %c0_29, %c0_30] : memref<3x3x16xf32, #tpu.memory_space<vmem>>, vector<1x1x16xf32>
    %66 = vector.shape_cast %65 : vector<1x1x16xf32> to vector<16xf32>
    %67 = vector.shape_cast %66 : vector<16xf32> to vector<1x1x16xf32>
    %68 = vector.broadcast %67 : vector<1x1x16xf32> to vector<8x8x16xf32>
    %69 = arith.mulf %64, %68 : vector<8x8x16xf32>
    %70 = arith.addf %58, %69 : vector<8x8x16xf32>
    %c2_31 = arith.constant 2 : index
    %c1_32 = arith.constant 1 : index
    %c0_33 = arith.constant 0 : index
    %71 = vector.load %arg3[%c2_31, %c1_32, %c0_33] : memref<3x3x16xf32, #tpu.memory_space<vmem>>, vector<1x1x16xf32>
    %72 = vector.shape_cast %71 : vector<1x1x16xf32> to vector<16xf32>
    %73 = vector.shape_cast %72 : vector<16xf32> to vector<1x1x16xf32>
    %74 = vector.broadcast %73 : vector<1x1x16xf32> to vector<8x8x16xf32>
    %75 = arith.mulf %61, %74 : vector<8x8x16xf32>
    %76 = arith.addf %70, %75 : vector<8x8x16xf32>
    %cst_34 = arith.constant 0.000000e+00 : f32
    %77 = vector.broadcast %cst_34 : f32 to vector<8x1x16xf32>
    %78 = vector.extract_strided_slice %61 {offsets = [0, 1, 0], sizes = [8, 7, 16], strides = [1, 1, 1]} : vector<8x8x16xf32> to vector<8x7x16xf32>
    %79 = tpu.concatenate %78, %77 in 1 : vector<8x7x16xf32>, vector<8x1x16xf32> -> vector<8x8x16xf32>
    %c2_35 = arith.constant 2 : index
    %c2_36 = arith.constant 2 : index
    %c0_37 = arith.constant 0 : index
    %80 = vector.load %arg3[%c2_35, %c2_36, %c0_37] : memref<3x3x16xf32, #tpu.memory_space<vmem>>, vector<1x1x16xf32>
    %81 = vector.shape_cast %80 : vector<1x1x16xf32> to vector<16xf32>
    %82 = vector.shape_cast %81 : vector<16xf32> to vector<1x1x16xf32>
    %83 = vector.broadcast %82 : vector<1x1x16xf32> to vector<8x8x16xf32>
    %84 = arith.mulf %79, %83 : vector<8x8x16xf32>
    %85 = arith.addf %76, %84 : vector<8x8x16xf32>
    %86 = arith.truncf %85 : vector<8x8x16xf32> to vector<8x8x16xbf16>
    %c0_38 = arith.constant 0 : index
    %c0_39 = arith.constant 0 : index
    %c0_40 = arith.constant 0 : index
    %c0_41 = arith.constant 0 : index
    %87 = vector.load %arg5[%c0_38, %c0_39, %c0_40, %c0_41] : memref<1x8x8x16xbf16, #tpu.memory_space<vmem>>, vector<1x8x8x16xbf16>
    %88 = vector.shape_cast %87 : vector<1x8x8x16xbf16> to vector<8x8x16xbf16>
    %89 = vector.shape_cast %86 : vector<8x8x16xbf16> to vector<1x8x8x16xbf16>
    tpu.vector_store %arg5[%c0_38, %c0_39, %c0_40, %c0_41], %89 {strides = array<i32>} : memref<1x8x8x16xbf16, #tpu.memory_space<vmem>>, vector<1x8x8x16xbf16>,
    %cst_42 = arith.constant dense<0.000000e+00> : vector<16xf32>
    %90 = vector.multi_reduction <add>, %85, %cst_42 [0, 1] : vector<8x8x16xf32> to vector<16xf32>
    %cst_43 = arith.constant 6.400000e+01 : f32
    %91 = vector.broadcast %cst_43 : f32 to vector<16xf32>
    %92 = arith.divf %90, %91 : vector<16xf32>
    %93 = vector.shape_cast %92 : vector<16xf32> to vector<1x1x16xf32>
    %c0_44 = arith.constant 0 : index
    %c0_45 = arith.constant 0 : index
    %c0_46 = arith.constant 0 : index
    %94 = vector.load %arg6[%c0_44, %c0_45, %c0_46] : memref<1x1x16xf32, #tpu.memory_space<vmem>>, vector<1x1x16xf32>
    tpu.vector_store %arg6[%c0_44, %c0_45, %c0_46], %93 {strides = array<i32>} : memref<1x1x16xf32, #tpu.memory_space<vmem>>, vector<1x1x16xf32>,
    return
  }
  func.func @transform_0(%arg0: i32, %arg1: i32) -> (i32, i32, i32, i32) {
    %c0_i32 = arith.constant 0 : i32
    %c0_i32_0 = arith.constant 0 : i32
    %c0_i32_1 = arith.constant 0 : i32
    return %arg0, %c0_i32, %c0_i32_0, %arg1 : i32, i32, i32, i32
  }
  func.func @transform_1(%arg0: i32, %arg1: i32) -> (i32, i32, i32) {
    %c0_i32 = arith.constant 0 : i32
    %c0_i32_0 = arith.constant 0 : i32
    %c0_i32_1 = arith.constant 0 : i32
    return %c0_i32, %c0_i32_0, %arg1 : i32, i32, i32
  }
  func.func @transform_2(%arg0: i32, %arg1: i32) -> (i32, i32) {
    %c0_i32 = arith.constant 0 : i32
    %c0_i32_0 = arith.constant 0 : i32
    return %c0_i32, %arg1 : i32, i32
  }
  func.func @transform_3(%arg0: i32, %arg1: i32) -> (i32, i32, i32, i32) {
    %c0_i32 = arith.constant 0 : i32
    %c0_i32_0 = arith.constant 0 : i32
    %c0_i32_1 = arith.constant 0 : i32
    return %arg0, %c0_i32, %c0_i32_0, %arg1 : i32, i32, i32, i32
  }
  func.func @transform_4(%arg0: i32, %arg1: i32) -> (i32, i32, i32) {
    %c0_i32 = arith.constant 0 : i32
    %c0_i32_0 = arith.constant 0 : i32
    return %arg0, %c0_i32, %arg1 : i32, i32, i32
  }
}

module attributes {stable_mosaic.version = 11 : i64} {
  func.func @_linear_kernel(%arg0: i32, %arg1: memref<128x16xf32, #tpu.memory_space<vmem>>, %arg2: memref<16x16xbf16, #tpu.memory_space<vmem>>, %arg3: memref<1x16xf32, #tpu.memory_space<vmem>>, %arg4: memref<1x16xf32, #tpu.memory_space<vmem>>, %arg5: memref<1x16xf32, #tpu.memory_space<vmem>>, %arg6: memref<128x16xbf16, #tpu.memory_space<vmem>>) attributes {dimension_semantics = [#tpu.dimension_semantics<parallel>], iteration_bounds = array<i64: 1>, scalar_prefetch = 0 : i64, scratch_operands = 0 : i64, tpu.core_type = #tpu.core_type<tc>, window_params = [{transform_indices = @transform_0, window_bounds = array<i64: 128, 16>}, {pipeline_mode = #tpu.pipeline_mode<synchronous>, transform_indices = @transform_1, window_bounds = array<i64: 16, 16>}, {pipeline_mode = #tpu.pipeline_mode<synchronous>, transform_indices = @transform_2, window_bounds = array<i64: 1, 16>}, {pipeline_mode = #tpu.pipeline_mode<synchronous>, transform_indices = @transform_3, window_bounds = array<i64: 1, 16>}, {pipeline_mode = #tpu.pipeline_mode<synchronous>, transform_indices = @transform_4, window_bounds = array<i64: 1, 16>}, {transform_indices = @transform_5, window_bounds = array<i64: 128, 16>}]} {
    %c0 = arith.constant 0 : index
    %c0_0 = arith.constant 0 : index
    %0 = vector.load %arg1[%c0, %c0_0] : memref<128x16xf32, #tpu.memory_space<vmem>>, vector<128x16xf32>
    %1 = arith.truncf %0 : vector<128x16xf32> to vector<128x16xbf16>
    %c0_1 = arith.constant 0 : index
    %c0_2 = arith.constant 0 : index
    %2 = vector.load %arg2[%c0_1, %c0_2] : memref<16x16xbf16, #tpu.memory_space<vmem>>, vector<16x16xbf16>
    %cst = arith.constant dense<0.000000e+00> : vector<128x16xf32>
    %3 = tpu.matmul %1, %2, %cst {dimension_numbers = #tpu.dot_dimension_numbers<[1], [0], [0], [1], [0, 0, 1, 1], [], []>} : vector<128x16xbf16>, vector<16x16xbf16>, vector<128x16xf32> -> vector<128x16xf32>
    %c0_3 = arith.constant 0 : index
    %c0_4 = arith.constant 0 : index
    %4 = vector.load %arg3[%c0_3, %c0_4] : memref<1x16xf32, #tpu.memory_space<vmem>>, vector<1x16xf32>
    %5 = vector.broadcast %4 : vector<1x16xf32> to vector<128x16xf32>
    %6 = arith.addf %3, %5 : vector<128x16xf32>
    %c0_5 = arith.constant 0 : index
    %c0_6 = arith.constant 0 : index
    %7 = vector.load %arg4[%c0_5, %c0_6] : memref<1x16xf32, #tpu.memory_space<vmem>>, vector<1x16xf32>
    %8 = vector.broadcast %7 : vector<1x16xf32> to vector<128x16xf32>
    %9 = arith.mulf %6, %8 : vector<128x16xf32>
    %c0_7 = arith.constant 0 : index
    %c0_8 = arith.constant 0 : index
    %10 = vector.load %arg5[%c0_7, %c0_8] : memref<1x16xf32, #tpu.memory_space<vmem>>, vector<1x16xf32>
    %11 = vector.broadcast %10 : vector<1x16xf32> to vector<128x16xf32>
    %12 = arith.addf %9, %11 : vector<128x16xf32>
    %13 = arith.negf %12 : vector<128x16xf32>
    %14 = math.exp %13 : vector<128x16xf32>
    %cst_9 = arith.constant 1.000000e+00 : f32
    %15 = vector.broadcast %cst_9 : f32 to vector<128x16xf32>
    %16 = arith.addf %15, %14 : vector<128x16xf32>
    %17 = arith.divf %15, %16 : vector<128x16xf32>
    %18 = arith.mulf %12, %17 : vector<128x16xf32>
    %19 = arith.truncf %18 : vector<128x16xf32> to vector<128x16xbf16>
    %c0_10 = arith.constant 0 : index
    %c0_11 = arith.constant 0 : index
    %20 = vector.load %arg6[%c0_10, %c0_11] : memref<128x16xbf16, #tpu.memory_space<vmem>>, vector<128x16xbf16>
    tpu.vector_store %arg6[%c0_10, %c0_11], %19 {strides = array<i32>} : memref<128x16xbf16, #tpu.memory_space<vmem>>, vector<128x16xbf16>,
    return
  }
  func.func @transform_0(%arg0: i32) -> (i32, i32) {
    %c0_i32 = arith.constant 0 : i32
    %c0_i32_0 = arith.constant 0 : i32
    return %arg0, %c0_i32 : i32, i32
  }
  func.func @transform_1(%arg0: i32) -> (i32, i32) {
    %c0_i32 = arith.constant 0 : i32
    %c0_i32_0 = arith.constant 0 : i32
    %c0_i32_1 = arith.constant 0 : i32
    return %c0_i32, %c0_i32_0 : i32, i32
  }
  func.func @transform_2(%arg0: i32) -> (i32, i32) {
    %c0_i32 = arith.constant 0 : i32
    %c0_i32_0 = arith.constant 0 : i32
    %c0_i32_1 = arith.constant 0 : i32
    return %c0_i32, %c0_i32_0 : i32, i32
  }
  func.func @transform_3(%arg0: i32) -> (i32, i32) {
    %c0_i32 = arith.constant 0 : i32
    %c0_i32_0 = arith.constant 0 : i32
    %c0_i32_1 = arith.constant 0 : i32
    return %c0_i32, %c0_i32_0 : i32, i32
  }
  func.func @transform_4(%arg0: i32) -> (i32, i32) {
    %c0_i32 = arith.constant 0 : i32
    %c0_i32_0 = arith.constant 0 : i32
    %c0_i32_1 = arith.constant 0 : i32
    return %c0_i32, %c0_i32_0 : i32, i32
  }
  func.func @transform_5(%arg0: i32) -> (i32, i32) {
    %c0_i32 = arith.constant 0 : i32
    %c0_i32_0 = arith.constant 0 : i32
    return %arg0, %c0_i32 : i32, i32
  }
}

module attributes {stable_mosaic.version = 11 : i64} {
  func.func @_gated_conv2_kernel(%arg0: i32, %arg1: i32, %arg2: memref<1x64x16xbf16, #tpu.memory_space<vmem>>, %arg3: memref<1x1x16xf32, #tpu.memory_space<vmem>>, %arg4: memref<16x16xbf16, #tpu.memory_space<vmem>>, %arg5: memref<1x16xf32, #tpu.memory_space<vmem>>, %arg6: memref<1x16xf32, #tpu.memory_space<vmem>>, %arg7: memref<1x16xf32, #tpu.memory_space<vmem>>, %arg8: memref<1x64x16xf32, #tpu.memory_space<vmem>>, %arg9: memref<1x64x16xf32, #tpu.memory_space<vmem>>) attributes {dimension_semantics = [#tpu.dimension_semantics<parallel>, #tpu.dimension_semantics<parallel>], iteration_bounds = array<i64: 2, 1>, scalar_prefetch = 0 : i64, scratch_operands = 0 : i64, tpu.core_type = #tpu.core_type<tc>, window_params = [{transform_indices = @transform_0, window_bounds = array<i64: 1, 64, 16>}, {transform_indices = @transform_1, window_bounds = array<i64: 1, 1, 16>}, {pipeline_mode = #tpu.pipeline_mode<synchronous>, transform_indices = @transform_2, window_bounds = array<i64: 16, 16>}, {pipeline_mode = #tpu.pipeline_mode<synchronous>, transform_indices = @transform_3, window_bounds = array<i64: 1, 16>}, {pipeline_mode = #tpu.pipeline_mode<synchronous>, transform_indices = @transform_4, window_bounds = array<i64: 1, 16>}, {pipeline_mode = #tpu.pipeline_mode<synchronous>, transform_indices = @transform_5, window_bounds = array<i64: 1, 16>}, {transform_indices = @transform_6, window_bounds = array<i64: 1, 64, 16>}, {transform_indices = @transform_7, window_bounds = array<i64: 1, 64, 16>}]} {
    %c0 = arith.constant 0 : index
    %c0_0 = arith.constant 0 : index
    %c0_1 = arith.constant 0 : index
    %0 = vector.load %arg2[%c0, %c0_0, %c0_1] : memref<1x64x16xbf16, #tpu.memory_space<vmem>>, vector<1x64x16xbf16>
    %1 = vector.shape_cast %0 : vector<1x64x16xbf16> to vector<64x16xbf16>
    %c0_2 = arith.constant 0 : index
    %c0_3 = arith.constant 0 : index
    %c0_4 = arith.constant 0 : index
    %2 = vector.load %arg3[%c0_2, %c0_3, %c0_4] : memref<1x1x16xf32, #tpu.memory_space<vmem>>, vector<1x1x16xf32>
    %3 = vector.shape_cast %2 : vector<1x1x16xf32> to vector<1x16xf32>
    %4 = arith.extf %1 : vector<64x16xbf16> to vector<64x16xf32>
    %5 = vector.broadcast %3 : vector<1x16xf32> to vector<64x16xf32>
    %6 = arith.mulf %4, %5 : vector<64x16xf32>
    %7 = arith.truncf %6 : vector<64x16xf32> to vector<64x16xbf16>
    %c0_5 = arith.constant 0 : index
    %c0_6 = arith.constant 0 : index
    %8 = vector.load %arg4[%c0_5, %c0_6] : memref<16x16xbf16, #tpu.memory_space<vmem>>, vector<16x16xbf16>
    %cst = arith.constant dense<0.000000e+00> : vector<64x16xf32>
    %9 = tpu.matmul %7, %8, %cst {dimension_numbers = #tpu.dot_dimension_numbers<[1], [0], [0], [1], [0, 0, 1, 1], [], []>} : vector<64x16xbf16>, vector<16x16xbf16>, vector<64x16xf32> -> vector<64x16xf32>
    %c0_7 = arith.constant 0 : index
    %c0_8 = arith.constant 0 : index
    %10 = vector.load %arg5[%c0_7, %c0_8] : memref<1x16xf32, #tpu.memory_space<vmem>>, vector<1x16xf32>
    %11 = vector.broadcast %10 : vector<1x16xf32> to vector<64x16xf32>
    %12 = arith.addf %9, %11 : vector<64x16xf32>
    %c0_9 = arith.constant 0 : index
    %c0_10 = arith.constant 0 : index
    %13 = vector.load %arg6[%c0_9, %c0_10] : memref<1x16xf32, #tpu.memory_space<vmem>>, vector<1x16xf32>
    %14 = vector.broadcast %13 : vector<1x16xf32> to vector<64x16xf32>
    %15 = arith.mulf %12, %14 : vector<64x16xf32>
    %c0_11 = arith.constant 0 : index
    %c0_12 = arith.constant 0 : index
    %16 = vector.load %arg7[%c0_11, %c0_12] : memref<1x16xf32, #tpu.memory_space<vmem>>, vector<1x16xf32>
    %17 = vector.broadcast %16 : vector<1x16xf32> to vector<64x16xf32>
    %18 = arith.addf %15, %17 : vector<64x16xf32>
    %c0_13 = arith.constant 0 : index
    %c0_14 = arith.constant 0 : index
    %c0_15 = arith.constant 0 : index
    %19 = vector.load %arg8[%c0_13, %c0_14, %c0_15] : memref<1x64x16xf32, #tpu.memory_space<vmem>>, vector<1x64x16xf32>
    %20 = vector.shape_cast %19 : vector<1x64x16xf32> to vector<64x16xf32>
    %21 = arith.addf %18, %20 : vector<64x16xf32>
    %c0_16 = arith.constant 0 : index
    %c0_17 = arith.constant 0 : index
    %c0_18 = arith.constant 0 : index
    %22 = vector.load %arg9[%c0_16, %c0_17, %c0_18] : memref<1x64x16xf32, #tpu.memory_space<vmem>>, vector<1x64x16xf32>
    %23 = vector.shape_cast %22 : vector<1x64x16xf32> to vector<64x16xf32>
    %24 = vector.shape_cast %21 : vector<64x16xf32> to vector<1x64x16xf32>
    tpu.vector_store %arg9[%c0_16, %c0_17, %c0_18], %24 {strides = array<i32>} : memref<1x64x16xf32, #tpu.memory_space<vmem>>, vector<1x64x16xf32>,
    return
  }
  func.func @transform_0(%arg0: i32, %arg1: i32) -> (i32, i32, i32) {
    %c0_i32 = arith.constant 0 : i32
    %c0_i32_0 = arith.constant 0 : i32
    return %arg0, %arg1, %c0_i32 : i32, i32, i32
  }
  func.func @transform_1(%arg0: i32, %arg1: i32) -> (i32, i32, i32) {
    %c0_i32 = arith.constant 0 : i32
    %c0_i32_0 = arith.constant 0 : i32
    %c0_i32_1 = arith.constant 0 : i32
    return %arg0, %c0_i32, %c0_i32_0 : i32, i32, i32
  }
  func.func @transform_2(%arg0: i32, %arg1: i32) -> (i32, i32) {
    %c0_i32 = arith.constant 0 : i32
    %c0_i32_0 = arith.constant 0 : i32
    %c0_i32_1 = arith.constant 0 : i32
    return %c0_i32, %c0_i32_0 : i32, i32
  }
  func.func @transform_3(%arg0: i32, %arg1: i32) -> (i32, i32) {
    %c0_i32 = arith.constant 0 : i32
    %c0_i32_0 = arith.constant 0 : i32
    %c0_i32_1 = arith.constant 0 : i32
    return %c0_i32, %c0_i32_0 : i32, i32
  }
  func.func @transform_4(%arg0: i32, %arg1: i32) -> (i32, i32) {
    %c0_i32 = arith.constant 0 : i32
    %c0_i32_0 = arith.constant 0 : i32
    %c0_i32_1 = arith.constant 0 : i32
    return %c0_i32, %c0_i32_0 : i32, i32
  }
  func.func @transform_5(%arg0: i32, %arg1: i32) -> (i32, i32) {
    %c0_i32 = arith.constant 0 : i32
    %c0_i32_0 = arith.constant 0 : i32
    %c0_i32_1 = arith.constant 0 : i32
    return %c0_i32, %c0_i32_0 : i32, i32
  }
  func.func @transform_6(%arg0: i32, %arg1: i32) -> (i32, i32, i32) {
    %c0_i32 = arith.constant 0 : i32
    %c0_i32_0 = arith.constant 0 : i32
    return %arg0, %arg1, %c0_i32 : i32, i32, i32
  }
  func.func @transform_7(%arg0: i32, %arg1: i32) -> (i32, i32, i32) {
    %c0_i32 = arith.constant 0 : i32
    %c0_i32_0 = arith.constant 0 : i32
    return %arg0, %arg1, %c0_i32 : i32, i32, i32
  }
}

</mosaic_0001>

<llo_original>
// kernel: _lambda_.15
$region0: #{_lambda_.15}
  #allocation0 [shape = 'u32[]', space=smem, size = 0x4, offset = 0x4, fixed_abs, tag = 'smem constant byte address 0x4 - core index']
  #allocation1 [shape = 'u32[72,128]{1,0:T(1,128)}', space=vmem, size = 0x9000, scoped, tag = 'internal scratch']
  %s0 = inlined_call_operand.hbm [shape: f32[128,16], index: 0, kind: input, shape index: {}]
  %s1 = inlined_call_operand.vmem [shape: bf16[16,20], index: 1, kind: input, shape index: {}]
  %s2 = inlined_call_operand.vmem [shape: f32[1,20], index: 2, kind: input, shape index: {}]
  %s3 = inlined_call_operand.vmem [shape: f32[1,20], index: 3, kind: input, shape index: {}]
  %s4 = inlined_call_operand.vmem [shape: f32[1,20], index: 4, kind: input, shape index: {}]
  %s5 = inlined_call_operand.vmem [shape: bf16[128,20], index: 5, kind: output, shape index: {}]
  %s6 = sld [smem:[#allocation0]]
  $region34: #{_lambda_.15} parent=0
    _
  %s8 = ssub.s32 1, %s6
  %s9 = scalar_select 0, %s8, %s6
  $region1: #{_lambda_.15} parent=0
    #allocation2 [shape = 'u8[65536]{0}', space=vmem, size = 0x10000, scoped, tag = 'input window, operand 0, single buffered']
    #allocation3 [shape = 's32[1]{0}', space=sflag, size = 0x4, scoped, tag = 'scoped memory for _lambda_.15']
    %10 = vsyncpa [#allocation3], 0
    // Predicated region
    $region2: #{_lambda_.15} parent=1 // pred_check
      _
    $region3: #{_lambda_.15} parent=1 // pred_check_branch
      %12 = sbr.rel (0) target = $region5
    $region4: #{_lambda_.15} parent=1 // pred_region
      %14 = vsyncadd [#allocation3], 0
      %s15 = sshll.u32 %s0, 4
      %s16 = int_to_ptr.hbm [resolvable:$true] %s15
      %s17 = sshll.u32 [#allocation2], 4
      %s18 = int_to_ptr.vmem [resolvable:$true] %s17
      %23 = dma.hbm_to_vmem [thread:$0]  %s16, 2048, %s18, [#allocation3], 128, 128, 8
    $region5: #{_lambda_.15} parent=1 // pred_fallthru
      _
    // Predicated region
    $region6: #{_lambda_.15} parent=1 // pred_check
      _
    $region7: #{_lambda_.15} parent=1 // pred_check_branch
      %25 = sbr.rel (0) target = $region9
    $region8: #{_lambda_.15} parent=1 // pred_region
      _
    $region9: #{_lambda_.15} parent=1 // pred_fallthru
      _
    // Predicated region
    $region10: #{_lambda_.15} parent=1 // pred_check
      _
    $region11: #{_lambda_.15} parent=1 // pred_check_branch
      %27 = sbr.rel (0) target = $region13
    $region12: #{_lambda_.15} parent=1 // pred_region
      _
    $region13: #{_lambda_.15} parent=1 // pred_fallthru
      _
    // Predicated region
    $region14: #{_lambda_.15} parent=1 // pred_check
      _
    $region15: #{_lambda_.15} parent=1 // pred_check_branch
      %29 = sbr.rel (0) target = $region17
    $region16: #{_lambda_.15} parent=1 // pred_region
      _
    $region17: #{_lambda_.15} parent=1 // pred_fallthru
      _
    // Predicated region
    $region18: #{_lambda_.15} parent=1 // pred_check
      _
    $region19: #{_lambda_.15} parent=1 // pred_check_branch
      %31 = sbr.rel (0) target = $region21
    $region20: #{_lambda_.15} parent=1 // pred_region
      _
    $region21: #{_lambda_.15} parent=1 // pred_fallthru
      _
    // Predicated region
    $region22: #{_lambda_.15} parent=1 // pred_check
      _
    $region23: #{_lambda_.15} parent=1 // pred_check_branch
      %33 = sbr.rel (0) target = $region25
    $region24: #{_lambda_.15} parent=1 // pred_region
      %35 = dma.done [#allocation3], 2048
    $region25: #{_lambda_.15} parent=1 // pred_fallthru
      _
    %v37 = vld [vmem:[#allocation2] sm:$0xff]
    %v38 = vld [vmem:[#allocation2 + $0x8] sm:$0xff]
    %v39 = vld [vmem:[#allocation2 + $0x10] sm:$0xff]
    %v40 = vld [vmem:[#allocation2 + $0x18] sm:$0xff]
    %v41 = vld [vmem:[#allocation2 + $0x20] sm:$0xff]
    %v42 = vld [vmem:[#allocation2 + $0x28] sm:$0xff]
    %v43 = vld [vmem:[#allocation2 + $0x30] sm:$0xff]
    %v44 = vld [vmem:[#allocation2 + $0x38] sm:$0xff]
    %v45 = vld [vmem:[#allocation2 + $0x40] sm:$0xff]
    %v46 = vld [vmem:[#allocation2 + $0x48] sm:$0xff]
    %v47 = vld [vmem:[#allocation2 + $0x50] sm:$0xff]
    %v48 = vld [vmem:[#allocation2 + $0x58] sm:$0xff]
    %v49 = vld [vmem:[#allocation2 + $0x60] sm:$0xff]
    %v50 = vld [vmem:[#allocation2 + $0x68] sm:$0xff]
    %v51 = vld [vmem:[#allocation2 + $0x70] sm:$0xff]
    %v52 = vld [vmem:[#allocation2 + $0x78] sm:$0xff]
    %v53 = vpack.c.bf16 %v38, %v37
    %v54 = vpack.c.bf16 %v40, %v39
    %v55 = vpack.c.bf16 %v42, %v41
    %v56 = vpack.c.bf16 %v44, %v43
    %v57 = vpack.c.bf16 %v46, %v45
    %v58 = vpack.c.bf16 %v48, %v47
    %v59 = vpack.c.bf16 %v50, %v49
    %v60 = vpack.c.bf16 %v52, %v51
    %v61 = vld [vmem:[%s1] sm:$0xf]
    %v62 = vld [vmem:[%s1 + $0x4] sm:$0xf]
    %v63 = vld [vmem:[%s2] sm:$0x1]
    %v65 = vperm.slane %v63, 0
    %v69 = vunpack.c.l.b16 %v61
    %v70 = vunpack.c.l.b16 %v62
    %v71 = vpack.c.b16 %v70, %v69
    %vm73 = vcmask 130048
    %v75 = vsel %vm73, %v53, 0
    %v78 = vsel %vm73, %v54, 0
    %v81 = vsel %vm73, %v55, 0
    %v84 = vsel %vm73, %v56, 0
    %v87 = vsel %vm73, %v57, 0
    %v90 = vsel %vm73, %v58, 0
    %v93 = vsel %vm73, %v59, 0
    %v96 = vsel %vm73, %v60, 0
    %98 = vmatpush.bf16.msra.mxu0 0
    %99 = vmatpush.bf16.msra.mxu0 0
    %100 = vmatpush.bf16.msra.mxu0 0
    %101 = vmatpush.bf16.msra.mxu0 0
    %102 = vmatpush.bf16.msra.mxu0 0
    %103 = vmatpush.bf16.msra.mxu0 0
    %104 = vmatpush.bf16.msra.mxu0 0
    %105 = vmatpush.bf16.msra.mxu0 %v71
    %106 = vmatmul.bf16.gmra.mxu0 %v75
    %v107 = vpop.f32.mrf.mxu0
    %v108 = vadd.f32 %v65, %v107
    %v109 = vpop.f32.mrf.mxu0
    %v110 = vadd.f32 %v65, %v109
    %111 = vmatmul.bf16.gmra.mxu0 %v78
    %v112 = vpop.f32.mrf.mxu0
    %v113 = vadd.f32 %v65, %v112
    %v114 = vpop.f32.mrf.mxu0
    %v115 = vadd.f32 %v65, %v114
    %116 = vmatmul.bf16.gmra.mxu0 %v81
    %v117 = vpop.f32.mrf.mxu0
    %v118 = vadd.f32 %v65, %v117
    %v119 = vpop.f32.mrf.mxu0
    %v120 = vadd.f32 %v65, %v119
    %121 = vmatmul.bf16.gmra.mxu0 %v84
    %v122 = vpop.f32.mrf.mxu0
    %v123 = vadd.f32 %v65, %v122
    %v124 = vpop.f32.mrf.mxu0
    %v125 = vadd.f32 %v65, %v124
    %126 = vmatmul.bf16.gmra.mxu0 %v87
    %v127 = vpop.f32.mrf.mxu0
    %v128 = vadd.f32 %v65, %v127
    %v129 = vpop.f32.mrf.mxu0
    %v130 = vadd.f32 %v65, %v129
    %131 = vmatmul.bf16.gmra.mxu0 %v90
    %v132 = vpop.f32.mrf.mxu0
    %v133 = vadd.f32 %v65, %v132
    %v134 = vpop.f32.mrf.mxu0
    %v135 = vadd.f32 %v65, %v134
    %136 = vmatmul.bf16.gmra.mxu0 %v93
    %v137 = vpop.f32.mrf.mxu0
    %v138 = vadd.f32 %v65, %v137
    %v139 = vpop.f32.mrf.mxu0
    %v140 = vadd.f32 %v65, %v139
    %141 = vmatmul.bf16.gmra.mxu0 %v96
    %v142 = vpop.f32.mrf.mxu0
    %v143 = vadd.f32 %v65, %v142
    %v144 = vpop.f32.mrf.mxu0
    %v145 = vadd.f32 %v65, %v144
    %146 = vdwg.mxu0
    %v147 = vld [vmem:[%s3] sm:$0x1]
    %v149 = vperm.slane %v147, 0
    %v151 = vmul.f32 %v108, %v149
    %v152 = vmul.f32 %v110, %v149
    %v153 = vmul.f32 %v113, %v149
    %v154 = vmul.f32 %v115, %v149
    %v155 = vmul.f32 %v118, %v149
    %v156 = vmul.f32 %v120, %v149
    %v157 = vmul.f32 %v123, %v149
    %v158 = vmul.f32 %v125, %v149
    %v159 = vmul.f32 %v128, %v149
    %v160 = vmul.f32 %v130, %v149
    %v161 = vmul.f32 %v133, %v149
    %v162 = vmul.f32 %v135, %v149
    %v163 = vmul.f32 %v138, %v149
    %v164 = vmul.f32 %v140, %v149
    %v165 = vmul.f32 %v143, %v149
    %v166 = vmul.f32 %v145, %v149
    %v167 = vld [vmem:[%s4] sm:$0x1]
    %v169 = vperm.slane %v167, 0
    %v171 = vadd.f32 %v151, %v169
    %v172 = vadd.f32 %v152, %v169
    %v173 = vadd.f32 %v153, %v169
    %v174 = vadd.f32 %v154, %v169
    %v175 = vadd.f32 %v155, %v169
    %v176 = vadd.f32 %v156, %v169
    %v177 = vadd.f32 %v157, %v169
    %v178 = vadd.f32 %v158, %v169
    %v179 = vadd.f32 %v159, %v169
    %v180 = vadd.f32 %v160, %v169
    %v181 = vadd.f32 %v161, %v169
    %v182 = vadd.f32 %v162, %v169
    %v183 = vadd.f32 %v163, %v169
    %v184 = vadd.f32 %v164, %v169
    %v185 = vadd.f32 %v165, %v169
    %v186 = vadd.f32 %v166, %v169
    %v187 = vpack.c.bf16 %v171, %v171
    %v188 = vpack.c.bf16 %v172, %v172
    %v189 = vpack.c.bf16 %v173, %v173
    %v190 = vpack.c.bf16 %v174, %v174
    %v191 = vpack.c.bf16 %v175, %v175
    %v192 = vpack.c.bf16 %v176, %v176
    %v193 = vpack.c.bf16 %v177, %v177
    %v194 = vpack.c.bf16 %v178, %v178
    %v195 = vpack.c.bf16 %v179, %v179
    %v196 = vpack.c.bf16 %v180, %v180
    %v197 = vpack.c.bf16 %v181, %v181
    %v198 = vpack.c.bf16 %v182, %v182
    %v199 = vpack.c.bf16 %v183, %v183
    %v200 = vpack.c.bf16 %v184, %v184
    %v201 = vpack.c.bf16 %v185, %v185
    %v202 = vpack.c.bf16 %v186, %v186
    %vm203 = vcmask 158720
    %204 = vst.msk [vmem:[%s5] sm:$0xf] %vm203, %v187
    %205 = vst.msk [vmem:[%s5 + $0x4] sm:$0xf] %vm203, %v188
    %206 = vst.msk [vmem:[%s5 + $0x8] sm:$0xf] %vm203, %v189
    %207 = vst.msk [vmem:[%s5 + $0xc] sm:$0xf] %vm203, %v190
    %208 = vst.msk [vmem:[%s5 + $0x10] sm:$0xf] %vm203, %v191
    %209 = vst.msk [vmem:[%s5 + $0x14] sm:$0xf] %vm203, %v192
    %210 = vst.msk [vmem:[%s5 + $0x18] sm:$0xf] %vm203, %v193
    %211 = vst.msk [vmem:[%s5 + $0x1c] sm:$0xf] %vm203, %v194
    %212 = vst.msk [vmem:[%s5 + $0x20] sm:$0xf] %vm203, %v195
    %213 = vst.msk [vmem:[%s5 + $0x24] sm:$0xf] %vm203, %v196
    %214 = vst.msk [vmem:[%s5 + $0x28] sm:$0xf] %vm203, %v197
    %215 = vst.msk [vmem:[%s5 + $0x2c] sm:$0xf] %vm203, %v198
    %216 = vst.msk [vmem:[%s5 + $0x30] sm:$0xf] %vm203, %v199
    %217 = vst.msk [vmem:[%s5 + $0x34] sm:$0xf] %vm203, %v200
    %218 = vst.msk [vmem:[%s5 + $0x38] sm:$0xf] %vm203, %v201
    %219 = vst.msk [vmem:[%s5 + $0x3c] sm:$0xf] %vm203, %v202
    // Predicated region
    $region26: #{_lambda_.15} parent=1 // pred_check
      _
    $region27: #{_lambda_.15} parent=1 // pred_check_branch
      %221 = sbr.rel (0) target = $region29
    $region28: #{_lambda_.15} parent=1 // pred_region
      _
    $region29: #{_lambda_.15} parent=1 // pred_fallthru
      _
    // Predicated region
    $region30: #{_lambda_.15} parent=1 // pred_check
      _
    $region31: #{_lambda_.15} parent=1 // pred_check_branch
      %223 = sbr.rel (0) target = $region33
    $region32: #{_lambda_.15} parent=1 // pred_region
      _
    $region33: #{_lambda_.15} parent=1 // pred_fallthru
      _
    %224 = vsyncpa [#allocation3], 1

// kernel: _lambda_.17
$region0: #{_lambda_.17}
  #allocation0 [shape = 'u32[]', space=smem, size = 0x4, offset = 0x4, fixed_abs, tag = 'smem constant byte address 0x4 - core index']
  #allocation1 [shape = 'u32[72,128]{1,0:T(1,128)}', space=vmem, size = 0x9000, scoped, tag = 'internal scratch']
  %s0 = inlined_call_operand.vmem [shape: f32[128,16], index: 0, kind: input, shape index: {}]
  %s1 = inlined_call_operand.vmem [shape: bf16[16,20], index: 1, kind: input, shape index: {}]
  %s2 = inlined_call_operand.vmem [shape: f32[1,20], index: 2, kind: input, shape index: {}]
  %s3 = inlined_call_operand.vmem [shape: f32[1,20], index: 3, kind: input, shape index: {}]
  %s4 = inlined_call_operand.vmem [shape: f32[1,20], index: 4, kind: input, shape index: {}]
  %s5 = inlined_call_operand.vmem [shape: bf16[128,20], index: 5, kind: output, shape index: {}]
  %s6 = sld [smem:[#allocation0]]
  $region30: #{_lambda_.17} parent=0
    _
  %s8 = ssub.s32 1, %s6
  %s9 = scalar_select 0, %s8, %s6
  // Predicated region
  $region2: #{_lambda_.17} parent=0 // pred_check
    _
  $region3: #{_lambda_.17} parent=0 // pred_check_branch
    %11 = sbr.rel (0) target = $region5
  $region4: #{_lambda_.17} parent=0 // pred_region
    _
  $region5: #{_lambda_.17} parent=0 // pred_fallthru
    _
  // Predicated region
  $region6: #{_lambda_.17} parent=0 // pred_check
    _
  $region7: #{_lambda_.17} parent=0 // pred_check_branch
    %13 = sbr.rel (0) target = $region9
  $region8: #{_lambda_.17} parent=0 // pred_region
    _
  $region9: #{_lambda_.17} parent=0 // pred_fallthru
    _
  // Predicated region
  $region10: #{_lambda_.17} parent=0 // pred_check
    _
  $region11: #{_lambda_.17} parent=0 // pred_check_branch
    %15 = sbr.rel (0) target = $region13
  $region12: #{_lambda_.17} parent=0 // pred_region
    _
  $region13: #{_lambda_.17} parent=0 // pred_fallthru
    _
  // Predicated region
  $region14: #{_lambda_.17} parent=0 // pred_check
    _
  $region15: #{_lambda_.17} parent=0 // pred_check_branch
    %17 = sbr.rel (0) target = $region17
  $region16: #{_lambda_.17} parent=0 // pred_region
    _
  $region17: #{_lambda_.17} parent=0 // pred_fallthru
    _
  // Predicated region
  $region18: #{_lambda_.17} parent=0 // pred_check
    _
  $region19: #{_lambda_.17} parent=0 // pred_check_branch
    %19 = sbr.rel (0) target = $region21
  $region20: #{_lambda_.17} parent=0 // pred_region
    _
  $region21: #{_lambda_.17} parent=0 // pred_fallthru
    _
  %v21 = vld [vmem:[%s0] sm:$0xff]
  %v22 = vld [vmem:[%s0 + $0x8] sm:$0xff]
  %v23 = vld [vmem:[%s0 + $0x10] sm:$0xff]
  %v24 = vld [vmem:[%s0 + $0x18] sm:$0xff]
  %v25 = vld [vmem:[%s0 + $0x20] sm:$0xff]
  %v26 = vld [vmem:[%s0 + $0x28] sm:$0xff]
  %v27 = vld [vmem:[%s0 + $0x30] sm:$0xff]
  %v28 = vld [vmem:[%s0 + $0x38] sm:$0xff]
  %v29 = vld [vmem:[%s0 + $0x40] sm:$0xff]
  %v30 = vld [vmem:[%s0 + $0x48] sm:$0xff]
  %v31 = vld [vmem:[%s0 + $0x50] sm:$0xff]
  %v32 = vld [vmem:[%s0 + $0x58] sm:$0xff]
  %v33 = vld [vmem:[%s0 + $0x60] sm:$0xff]
  %v34 = vld [vmem:[%s0 + $0x68] sm:$0xff]
  %v35 = vld [vmem:[%s0 + $0x70] sm:$0xff]
  %v36 = vld [vmem:[%s0 + $0x78] sm:$0xff]
  %v37 = vpack.c.bf16 %v22, %v21
  %v38 = vpack.c.bf16 %v24, %v23
  %v39 = vpack.c.bf16 %v26, %v25
  %v40 = vpack.c.bf16 %v28, %v27
  %v41 = vpack.c.bf16 %v30, %v29
  %v42 = vpack.c.bf16 %v32, %v31
  %v43 = vpack.c.bf16 %v34, %v33
  %v44 = vpack.c.bf16 %v36, %v35
  %v45 = vld [vmem:[%s1] sm:$0xf]
  %v46 = vld [vmem:[%s1 + $0x4] sm:$0xf]
  %v47 = vld [vmem:[%s2] sm:$0x1]
  %v49 = vperm.slane %v47, 0
  %v53 = vunpack.c.l.b16 %v45
  %v54 = vunpack.c.l.b16 %v46
  %v55 = vpack.c.b16 %v54, %v53
  %vm57 = vcmask 130048
  %v59 = vsel %vm57, %v37, 0
  %v62 = vsel %vm57, %v38, 0
  %v65 = vsel %vm57, %v39, 0
  %v68 = vsel %vm57, %v40, 0
  %v71 = vsel %vm57, %v41, 0
  %v74 = vsel %vm57, %v42, 0
  %v77 = vsel %vm57, %v43, 0
  %v80 = vsel %vm57, %v44, 0
  %82 = vmatpush.bf16.msra.mxu0 0
  %83 = vmatpush.bf16.msra.mxu0 0
  %84 = vmatpush.bf16.msra.mxu0 0
  %85 = vmatpush.bf16.msra.mxu0 0
  %86 = vmatpush.bf16.msra.mxu0 0
  %87 = vmatpush.bf16.msra.mxu0 0
  %88 = vmatpush.bf16.msra.mxu0 0
  %89 = vmatpush.bf16.msra.mxu0 %v55
  %90 = vmatmul.bf16.gmra.mxu0 %v59
  %v91 = vpop.f32.mrf.mxu0
  %v92 = vadd.f32 %v49, %v91
  %v93 = vpop.f32.mrf.mxu0
  %v94 = vadd.f32 %v49, %v93
  %95 = vmatmul.bf16.gmra.mxu0 %v62
  %v96 = vpop.f32.mrf.mxu0
  %v97 = vadd.f32 %v49, %v96
  %v98 = vpop.f32.mrf.mxu0
  %v99 = vadd.f32 %v49, %v98
  %100 = vmatmul.bf16.gmra.mxu0 %v65
  %v101 = vpop.f32.mrf.mxu0
  %v102 = vadd.f32 %v49, %v101
  %v103 = vpop.f32.mrf.mxu0
  %v104 = vadd.f32 %v49, %v103
  %105 = vmatmul.bf16.gmra.mxu0 %v68
  %v106 = vpop.f32.mrf.mxu0
  %v107 = vadd.f32 %v49, %v106
  %v108 = vpop.f32.mrf.mxu0
  %v109 = vadd.f32 %v49, %v108
  %110 = vmatmul.bf16.gmra.mxu0 %v71
  %v111 = vpop.f32.mrf.mxu0
  %v112 = vadd.f32 %v49, %v111
  %v113 = vpop.f32.mrf.mxu0
  %v114 = vadd.f32 %v49, %v113
  %115 = vmatmul.bf16.gmra.mxu0 %v74
  %v116 = vpop.f32.mrf.mxu0
  %v117 = vadd.f32 %v49, %v116
  %v118 = vpop.f32.mrf.mxu0
  %v119 = vadd.f32 %v49, %v118
  %120 = vmatmul.bf16.gmra.mxu0 %v77
  %v121 = vpop.f32.mrf.mxu0
  %v122 = vadd.f32 %v49, %v121
  %v123 = vpop.f32.mrf.mxu0
  %v124 = vadd.f32 %v49, %v123
  %125 = vmatmul.bf16.gmra.mxu0 %v80
  %v126 = vpop.f32.mrf.mxu0
  %v127 = vadd.f32 %v49, %v126
  %v128 = vpop.f32.mrf.mxu0
  %v129 = vadd.f32 %v49, %v128
  %130 = vdwg.mxu0
  %v131 = vld [vmem:[%s3] sm:$0x1]
  %v133 = vperm.slane %v131, 0
  %v135 = vmul.f32 %v92, %v133
  %v136 = vmul.f32 %v94, %v133
  %v137 = vmul.f32 %v97, %v133
  %v138 = vmul.f32 %v99, %v133
  %v139 = vmul.f32 %v102, %v133
  %v140 = vmul.f32 %v104, %v133
  %v141 = vmul.f32 %v107, %v133
  %v142 = vmul.f32 %v109, %v133
  %v143 = vmul.f32 %v112, %v133
  %v144 = vmul.f32 %v114, %v133
  %v145 = vmul.f32 %v117, %v133
  %v146 = vmul.f32 %v119, %v133
  %v147 = vmul.f32 %v122, %v133
  %v148 = vmul.f32 %v124, %v133
  %v149 = vmul.f32 %v127, %v133
  %v150 = vmul.f32 %v129, %v133
  %v151 = vld [vmem:[%s4] sm:$0x1]
  %v153 = vperm.slane %v151, 0
  %v155 = vadd.f32 %v135, %v153
  %v156 = vadd.f32 %v136, %v153
  %v157 = vadd.f32 %v137, %v153
  %v158 = vadd.f32 %v138, %v153
  %v159 = vadd.f32 %v139, %v153
  %v160 = vadd.f32 %v140, %v153
  %v161 = vadd.f32 %v141, %v153
  %v162 = vadd.f32 %v142, %v153
  %v163 = vadd.f32 %v143, %v153
  %v164 = vadd.f32 %v144, %v153
  %v165 = vadd.f32 %v145, %v153
  %v166 = vadd.f32 %v146, %v153
  %v167 = vadd.f32 %v147, %v153
  %v168 = vadd.f32 %v148, %v153
  %v169 = vadd.f32 %v149, %v153
  %v170 = vadd.f32 %v150, %v153
  %v171 = vpack.c.bf16 %v155, %v155
  %v172 = vpack.c.bf16 %v156, %v156
  %v173 = vpack.c.bf16 %v157, %v157
  %v174 = vpack.c.bf16 %v158, %v158
  %v175 = vpack.c.bf16 %v159, %v159
  %v176 = vpack.c.bf16 %v160, %v160
  %v177 = vpack.c.bf16 %v161, %v161
  %v178 = vpack.c.bf16 %v162, %v162
  %v179 = vpack.c.bf16 %v163, %v163
  %v180 = vpack.c.bf16 %v164, %v164
  %v181 = vpack.c.bf16 %v165, %v165
  %v182 = vpack.c.bf16 %v166, %v166
  %v183 = vpack.c.bf16 %v167, %v167
  %v184 = vpack.c.bf16 %v168, %v168
  %v185 = vpack.c.bf16 %v169, %v169
  %v186 = vpack.c.bf16 %v170, %v170
  %vm187 = vcmask 158720
  %188 = vst.msk [vmem:[%s5] sm:$0xf] %vm187, %v171
  %189 = vst.msk [vmem:[%s5 + $0x4] sm:$0xf] %vm187, %v172
  %190 = vst.msk [vmem:[%s5 + $0x8] sm:$0xf] %vm187, %v173
  %191 = vst.msk [vmem:[%s5 + $0xc] sm:$0xf] %vm187, %v174
  %192 = vst.msk [vmem:[%s5 + $0x10] sm:$0xf] %vm187, %v175
  %193 = vst.msk [vmem:[%s5 + $0x14] sm:$0xf] %vm187, %v176
  %194 = vst.msk [vmem:[%s5 + $0x18] sm:$0xf] %vm187, %v177
  %195 = vst.msk [vmem:[%s5 + $0x1c] sm:$0xf] %vm187, %v178
  %196 = vst.msk [vmem:[%s5 + $0x20] sm:$0xf] %vm187, %v179
  %197 = vst.msk [vmem:[%s5 + $0x24] sm:$0xf] %vm187, %v180
  %198 = vst.msk [vmem:[%s5 + $0x28] sm:$0xf] %vm187, %v181
  %199 = vst.msk [vmem:[%s5 + $0x2c] sm:$0xf] %vm187, %v182
  %200 = vst.msk [vmem:[%s5 + $0x30] sm:$0xf] %vm187, %v183
  %201 = vst.msk [vmem:[%s5 + $0x34] sm:$0xf] %vm187, %v184
  %202 = vst.msk [vmem:[%s5 + $0x38] sm:$0xf] %vm187, %v185
  %203 = vst.msk [vmem:[%s5 + $0x3c] sm:$0xf] %vm187, %v186
  // Predicated region
  $region22: #{_lambda_.17} parent=0 // pred_check
    _
  $region23: #{_lambda_.17} parent=0 // pred_check_branch
    %205 = sbr.rel (0) target = $region25
  $region24: #{_lambda_.17} parent=0 // pred_region
    _
  $region25: #{_lambda_.17} parent=0 // pred_fallthru
    _
  // Predicated region
  $region26: #{_lambda_.17} parent=0 // pred_check
    _
  $region27: #{_lambda_.17} parent=0 // pred_check_branch
    %207 = sbr.rel (0) target = $region29
  $region28: #{_lambda_.17} parent=0 // pred_region
    _
  $region29: #{_lambda_.17} parent=0 // pred_fallthru
    _

// kernel: _lambda_.19
$region0: #{_lambda_.19}
  #allocation0 [shape = 'u32[]', space=smem, size = 0x4, offset = 0x4, fixed_abs, tag = 'smem constant byte address 0x4 - core index']
  #allocation1 [shape = 'u32[72,128]{1,0:T(1,128)}', space=vmem, size = 0x9000, scoped, tag = 'internal scratch']
  %s0 = inlined_call_operand.vmem [shape: f32[128,16], index: 0, kind: input, shape index: {}]
  %s1 = inlined_call_operand.vmem [shape: bf16[16,64], index: 1, kind: input, shape index: {}]
  %s2 = inlined_call_operand.vmem [shape: f32[1,64], index: 2, kind: input, shape index: {}]
  %s3 = inlined_call_operand.vmem [shape: f32[1,64], index: 3, kind: input, shape index: {}]
  %s4 = inlined_call_operand.vmem [shape: f32[1,64], index: 4, kind: input, shape index: {}]
  %s5 = inlined_call_operand.vmem [shape: bf16[128,64], index: 5, kind: output, shape index: {}]
  %s6 = sld [smem:[#allocation0]]
  $region30: #{_lambda_.19} parent=0
    _
  %s8 = ssub.s32 1, %s6
  %s9 = scalar_select 0, %s8, %s6
  // Predicated region
  $region2: #{_lambda_.19} parent=0 // pred_check
    _
  $region3: #{_lambda_.19} parent=0 // pred_check_branch
    %11 = sbr.rel (0) target = $region5
  $region4: #{_lambda_.19} parent=0 // pred_region
    _
  $region5: #{_lambda_.19} parent=0 // pred_fallthru
    _
  // Predicated region
  $region6: #{_lambda_.19} parent=0 // pred_check
    _
  $region7: #{_lambda_.19} parent=0 // pred_check_branch
    %13 = sbr.rel (0) target = $region9
  $region8: #{_lambda_.19} parent=0 // pred_region
    _
  $region9: #{_lambda_.19} parent=0 // pred_fallthru
    _
  // Predicated region
  $region10: #{_lambda_.19} parent=0 // pred_check
    _
  $region11: #{_lambda_.19} parent=0 // pred_check_branch
    %15 = sbr.rel (0) target = $region13
  $region12: #{_lambda_.19} parent=0 // pred_region
    _
  $region13: #{_lambda_.19} parent=0 // pred_fallthru
    _
  // Predicated region
  $region14: #{_lambda_.19} parent=0 // pred_check
    _
  $region15: #{_lambda_.19} parent=0 // pred_check_branch
    %17 = sbr.rel (0) target = $region17
  $region16: #{_lambda_.19} parent=0 // pred_region
    _
  $region17: #{_lambda_.19} parent=0 // pred_fallthru
    _
  // Predicated region
  $region18: #{_lambda_.19} parent=0 // pred_check
    _
  $region19: #{_lambda_.19} parent=0 // pred_check_branch
    %19 = sbr.rel (0) target = $region21
  $region20: #{_lambda_.19} parent=0 // pred_region
    _
  $region21: #{_lambda_.19} parent=0 // pred_fallthru
    _
  %v21 = vld [vmem:[%s0] sm:$0xff]
  %v22 = vld [vmem:[%s0 + $0x8] sm:$0xff]
  %v23 = vld [vmem:[%s0 + $0x10] sm:$0xff]
  %v24 = vld [vmem:[%s0 + $0x18] sm:$0xff]
  %v25 = vld [vmem:[%s0 + $0x20] sm:$0xff]
  %v26 = vld [vmem:[%s0 + $0x28] sm:$0xff]
  %v27 = vld [vmem:[%s0 + $0x30] sm:$0xff]
  %v28 = vld [vmem:[%s0 + $0x38] sm:$0xff]
  %v29 = vld [vmem:[%s0 + $0x40] sm:$0xff]
  %v30 = vld [vmem:[%s0 + $0x48] sm:$0xff]
  %v31 = vld [vmem:[%s0 + $0x50] sm:$0xff]
  %v32 = vld [vmem:[%s0 + $0x58] sm:$0xff]
  %v33 = vld [vmem:[%s0 + $0x60] sm:$0xff]
  %v34 = vld [vmem:[%s0 + $0x68] sm:$0xff]
  %v35 = vld [vmem:[%s0 + $0x70] sm:$0xff]
  %v36 = vld [vmem:[%s0 + $0x78] sm:$0xff]
  %v37 = vpack.c.bf16 %v22, %v21
  %v38 = vpack.c.bf16 %v24, %v23
  %v39 = vpack.c.bf16 %v26, %v25
  %v40 = vpack.c.bf16 %v28, %v27
  %v41 = vpack.c.bf16 %v30, %v29
  %v42 = vpack.c.bf16 %v32, %v31
  %v43 = vpack.c.bf16 %v34, %v33
  %v44 = vpack.c.bf16 %v36, %v35
  %v45 = vld [vmem:[%s1] sm:$0xf]
  %v46 = vld [vmem:[%s1 + $0x4] sm:$0xf]
  %v47 = vld [vmem:[%s2] sm:$0x1]
  %v49 = vperm.slane %v47, 0
  %v53 = vunpack.c.l.b16 %v45
  %v54 = vunpack.c.l.b16 %v46
  %v55 = vpack.c.b16 %v54, %v53
  %vm57 = vcmask 130048
  %v59 = vsel %vm57, %v37, 0
  %v62 = vsel %vm57, %v38, 0
  %v65 = vsel %vm57, %v39, 0
  %v68 = vsel %vm57, %v40, 0
  %v71 = vsel %vm57, %v41, 0
  %v74 = vsel %vm57, %v42, 0
  %v77 = vsel %vm57, %v43, 0
  %v80 = vsel %vm57, %v44, 0
  %82 = vmatpush.bf16.msra.mxu0 0
  %83 = vmatpush.bf16.msra.mxu0 0
  %84 = vmatpush.bf16.msra.mxu0 0
  %85 = vmatpush.bf16.msra.mxu0 0
  %86 = vmatpush.bf16.msra.mxu0 0
  %87 = vmatpush.bf16.msra.mxu0 0
  %88 = vmatpush.bf16.msra.mxu0 0
  %89 = vmatpush.bf16.msra.mxu0 %v55
  %90 = vmatmul.bf16.gmra.mxu0 %v59
  %v91 = vpop.f32.mrf.mxu0
  %v92 = vadd.f32 %v49, %v91
  %v93 = vpop.f32.mrf.mxu0
  %v94 = vadd.f32 %v49, %v93
  %95 = vmatmul.bf16.gmra.mxu0 %v62
  %v96 = vpop.f32.mrf.mxu0
  %v97 = vadd.f32 %v49, %v96
  %v98 = vpop.f32.mrf.mxu0
  %v99 = vadd.f32 %v49, %v98
  %100 = vmatmul.bf16.gmra.mxu0 %v65
  %v101 = vpop.f32.mrf.mxu0
  %v102 = vadd.f32 %v49, %v101
  %v103 = vpop.f32.mrf.mxu0
  %v104 = vadd.f32 %v49, %v103
  %105 = vmatmul.bf16.gmra.mxu0 %v68
  %v106 = vpop.f32.mrf.mxu0
  %v107 = vadd.f32 %v49, %v106
  %v108 = vpop.f32.mrf.mxu0
  %v109 = vadd.f32 %v49, %v108
  %110 = vmatmul.bf16.gmra.mxu0 %v71
  %v111 = vpop.f32.mrf.mxu0
  %v112 = vadd.f32 %v49, %v111
  %v113 = vpop.f32.mrf.mxu0
  %v114 = vadd.f32 %v49, %v113
  %115 = vmatmul.bf16.gmra.mxu0 %v74
  %v116 = vpop.f32.mrf.mxu0
  %v117 = vadd.f32 %v49, %v116
  %v118 = vpop.f32.mrf.mxu0
  %v119 = vadd.f32 %v49, %v118
  %120 = vmatmul.bf16.gmra.mxu0 %v77
  %v121 = vpop.f32.mrf.mxu0
  %v122 = vadd.f32 %v49, %v121
  %v123 = vpop.f32.mrf.mxu0
  %v124 = vadd.f32 %v49, %v123
  %125 = vmatmul.bf16.gmra.mxu0 %v80
  %v126 = vpop.f32.mrf.mxu0
  %v127 = vadd.f32 %v49, %v126
  %v128 = vpop.f32.mrf.mxu0
  %v129 = vadd.f32 %v49, %v128
  %130 = vdwg.mxu0
  %v131 = vld [vmem:[%s3] sm:$0x1]
  %v133 = vperm.slane %v131, 0
  %v135 = vmul.f32 %v92, %v133
  %v136 = vmul.f32 %v94, %v133
  %v137 = vmul.f32 %v97, %v133
  %v138 = vmul.f32 %v99, %v133
  %v139 = vmul.f32 %v102, %v133
  %v140 = vmul.f32 %v104, %v133
  %v141 = vmul.f32 %v107, %v133
  %v142 = vmul.f32 %v109, %v133
  %v143 = vmul.f32 %v112, %v133
  %v144 = vmul.f32 %v114, %v133
  %v145 = vmul.f32 %v117, %v133
  %v146 = vmul.f32 %v119, %v133
  %v147 = vmul.f32 %v122, %v133
  %v148 = vmul.f32 %v124, %v133
  %v149 = vmul.f32 %v127, %v133
  %v150 = vmul.f32 %v129, %v133
  %v151 = vld [vmem:[%s4] sm:$0x1]
  %v153 = vperm.slane %v151, 0
  %v155 = vadd.f32 %v135, %v153
  %v156 = vadd.f32 %v136, %v153
  %v157 = vadd.f32 %v137, %v153
  %v158 = vadd.f32 %v138, %v153
  %v159 = vadd.f32 %v139, %v153
  %v160 = vadd.f32 %v140, %v153
  %v161 = vadd.f32 %v141, %v153
  %v162 = vadd.f32 %v142, %v153
  %v163 = vadd.f32 %v143, %v153
  %v164 = vadd.f32 %v144, %v153
  %v165 = vadd.f32 %v145, %v153
  %v166 = vadd.f32 %v146, %v153
  %v167 = vadd.f32 %v147, %v153
  %v168 = vadd.f32 %v148, %v153
  %v169 = vadd.f32 %v149, %v153
  %v170 = vadd.f32 %v150, %v153
  %v171 = vmul.f32 %v155, 0.5
  %v172 = vmul.f32 %v156, 0.5
  %v173 = vmul.f32 %v157, 0.5
  %v174 = vmul.f32 %v158, 0.5
  %v175 = vmul.f32 %v159, 0.5
  %v176 = vmul.f32 %v160, 0.5
  %v177 = vmul.f32 %v161, 0.5
  %v178 = vmul.f32 %v162, 0.5
  %v179 = vmul.f32 %v163, 0.5
  %v180 = vmul.f32 %v164, 0.5
  %v181 = vmul.f32 %v165, 0.5
  %v182 = vmul.f32 %v166, 0.5
  %v183 = vmul.f32 %v167, 0.5
  %v184 = vmul.f32 %v168, 0.5
  %v185 = vmul.f32 %v169, 0.5
  %v186 = vmul.f32 %v170, 0.5
  %v187 = vmul.f32 %v155, 0.044715
  %v188 = vmul.f32 %v156, 0.044715
  %v189 = vmul.f32 %v157, 0.044715
  %v190 = vmul.f32 %v158, 0.044715
  %v191 = vmul.f32 %v159, 0.044715
  %v192 = vmul.f32 %v160, 0.044715
  %v193 = vmul.f32 %v161, 0.044715
  %v194 = vmul.f32 %v162, 0.044715
  %v195 = vmul.f32 %v163, 0.044715
  %v196 = vmul.f32 %v164, 0.044715
  %v197 = vmul.f32 %v165, 0.044715
  %v198 = vmul.f32 %v166, 0.044715
  %v199 = vmul.f32 %v167, 0.044715
  %v200 = vmul.f32 %v168, 0.044715
  %v201 = vmul.f32 %v169, 0.044715
  %v202 = vmul.f32 %v170, 0.044715
  %v203 = vmul.f32 %v187, %v155
  %v204 = vmul.f32 %v188, %v156
  %v205 = vmul.f32 %v189, %v157
  %v206 = vmul.f32 %v190, %v158
  %v207 = vmul.f32 %v191, %v159
  %v208 = vmul.f32 %v192, %v160
  %v209 = vmul.f32 %v193, %v161
  %v210 = vmul.f32 %v194, %v162
  %v211 = vmul.f32 %v195, %v163
  %v212 = vmul.f32 %v196, %v164
  %v213 = vmul.f32 %v197, %v165
  %v214 = vmul.f32 %v198, %v166
  %v215 = vmul.f32 %v199, %v167
  %v216 = vmul.f32 %v200, %v168
  %v217 = vmul.f32 %v201, %v169
  %v218 = vmul.f32 %v202, %v170
  %v219 = vmul.f32 %v203, %v155
  %v220 = vmul.f32 %v204, %v156
  %v221 = vmul.f32 %v205, %v157
  %v222 = vmul.f32 %v206, %v158
  %v223 = vmul.f32 %v207, %v159
  %v224 = vmul.f32 %v208, %v160
  %v225 = vmul.f32 %v209, %v161
  %v226 = vmul.f32 %v210, %v162
  %v227 = vmul.f32 %v211, %v163
  %v228 = vmul.f32 %v212, %v164
  %v229 = vmul.f32 %v213, %v165
  %v230 = vmul.f32 %v214, %v166
  %v231 = vmul.f32 %v215, %v167
  %v232 = vmul.f32 %v216, %v168
  %v233 = vmul.f32 %v217, %v169
  %v234 = vmul.f32 %v218, %v170
  %v235 = vadd.f32 %v155, %v219
  %v236 = vadd.f32 %v156, %v220
  %v237 = vadd.f32 %v157, %v221
  %v238 = vadd.f32 %v158, %v222
  %v239 = vadd.f32 %v159, %v223
  %v240 = vadd.f32 %v160, %v224
  %v241 = vadd.f32 %v161, %v225
  %v242 = vadd.f32 %v162, %v226
  %v243 = vadd.f32 %v163, %v227
  %v244 = vadd.f32 %v164, %v228
  %v245 = vadd.f32 %v165, %v229
  %v246 = vadd.f32 %v166, %v230
  %v247 = vadd.f32 %v167, %v231
  %v248 = vadd.f32 %v168, %v232
  %v249 = vadd.f32 %v169, %v233
  %v250 = vadd.f32 %v170, %v234
  %v251 = vmul.f32 %v235, 0.7978846
  %v252 = vmul.f32 %v236, 0.7978846
  %v253 = vmul.f32 %v237, 0.7978846
  %v254 = vmul.f32 %v238, 0.7978846
  %v255 = vmul.f32 %v239, 0.7978846
  %v256 = vmul.f32 %v240, 0.7978846
  %v257 = vmul.f32 %v241, 0.7978846
  %v258 = vmul.f32 %v242, 0.7978846
  %v259 = vmul.f32 %v243, 0.7978846
  %v260 = vmul.f32 %v244, 0.7978846
  %v261 = vmul.f32 %v245, 0.7978846
  %v262 = vmul.f32 %v246, 0.7978846
  %v263 = vmul.f32 %v247, 0.7978846
  %v264 = vmul.f32 %v248, 0.7978846
  %v265 = vmul.f32 %v249, 0.7978846
  %v266 = vmul.f32 %v250, 0.7978846
  %v267 = vtanh.pop %v251
  %v268 = vtanh.pop %v252
  %v269 = vtanh.pop %v253
  %v270 = vtanh.pop %v254
  %v271 = vtanh.pop %v255
  %v272 = vtanh.pop %v256
  %v273 = vtanh.pop %v257
  %v274 = vtanh.pop %v258
  %v275 = vtanh.pop %v259
  %v276 = vtanh.pop %v260
  %v277 = vtanh.pop %v261
  %v278 = vtanh.pop %v262
  %v279 = vtanh.pop %v263
  %v280 = vtanh.pop %v264
  %v281 = vtanh.pop %v265
  %v282 = vtanh.pop %v266
  %v283 = vadd.f32 %v267, 1.0
  %v284 = vadd.f32 %v268, 1.0
  %v285 = vadd.f32 %v269, 1.0
  %v286 = vadd.f32 %v270, 1.0
  %v287 = vadd.f32 %v271, 1.0
  %v288 = vadd.f32 %v272, 1.0
  %v289 = vadd.f32 %v273, 1.0
  %v290 = vadd.f32 %v274, 1.0
  %v291 = vadd.f32 %v275, 1.0
  %v292 = vadd.f32 %v276, 1.0
  %v293 = vadd.f32 %v277, 1.0
  %v294 = vadd.f32 %v278, 1.0
  %v295 = vadd.f32 %v279, 1.0
  %v296 = vadd.f32 %v280, 1.0
  %v297 = vadd.f32 %v281, 1.0
  %v298 = vadd.f32 %v282, 1.0
  %v299 = vmul.f32 %v171, %v283
  %v300 = vmul.f32 %v172, %v284
  %v301 = vmul.f32 %v173, %v285
  %v302 = vmul.f32 %v174, %v286
  %v303 = vmul.f32 %v175, %v287
  %v304 = vmul.f32 %v176, %v288
  %v305 = vmul.f32 %v177, %v289
  %v306 = vmul.f32 %v178, %v290
  %v307 = vmul.f32 %v179, %v291
  %v308 = vmul.f32 %v180, %v292
  %v309 = vmul.f32 %v181, %v293
  %v310 = vmul.f32 %v182, %v294
  %v311 = vmul.f32 %v183, %v295
  %v312 = vmul.f32 %v184, %v296
  %v313 = vmul.f32 %v185, %v297
  %v314 = vmul.f32 %v186, %v298
  %v315 = vpack.c.bf16 %v299, %v299
  %v316 = vpack.c.bf16 %v300, %v300
  %v317 = vpack.c.bf16 %v301, %v301
  %v318 = vpack.c.bf16 %v302, %v302
  %v319 = vpack.c.bf16 %v303, %v303
  %v320 = vpack.c.bf16 %v304, %v304
  %v321 = vpack.c.bf16 %v305, %v305
  %v322 = vpack.c.bf16 %v306, %v306
  %v323 = vpack.c.bf16 %v307, %v307
  %v324 = vpack.c.bf16 %v308, %v308
  %v325 = vpack.c.bf16 %v309, %v309
  %v326 = vpack.c.bf16 %v310, %v310
  %v327 = vpack.c.bf16 %v311, %v311
  %v328 = vpack.c.bf16 %v312, %v312
  %v329 = vpack.c.bf16 %v313, %v313
  %v330 = vpack.c.bf16 %v314, %v314
  %vm331 = vcmask 519168
  %332 = vst.msk [vmem:[%s5] sm:$0xf] %vm331, %v315
  %333 = vst.msk [vmem:[%s5 + $0x4] sm:$0xf] %vm331, %v316
  %334 = vst.msk [vmem:[%s5 + $0x8] sm:$0xf] %vm331, %v317
  %335 = vst.msk [vmem:[%s5 + $0xc] sm:$0xf] %vm331, %v318
  %336 = vst.msk [vmem:[%s5 + $0x10] sm:$0xf] %vm331, %v319
  %337 = vst.msk [vmem:[%s5 + $0x14] sm:$0xf] %vm331, %v320
  %338 = vst.msk [vmem:[%s5 + $0x18] sm:$0xf] %vm331, %v321
  %339 = vst.msk [vmem:[%s5 + $0x1c] sm:$0xf] %vm331, %v322
  %340 = vst.msk [vmem:[%s5 + $0x20] sm:$0xf] %vm331, %v323
  %341 = vst.msk [vmem:[%s5 + $0x24] sm:$0xf] %vm331, %v324
  %342 = vst.msk [vmem:[%s5 + $0x28] sm:$0xf] %vm331, %v325
  %343 = vst.msk [vmem:[%s5 + $0x2c] sm:$0xf] %vm331, %v326
  %344 = vst.msk [vmem:[%s5 + $0x30] sm:$0xf] %vm331, %v327
  %345 = vst.msk [vmem:[%s5 + $0x34] sm:$0xf] %vm331, %v328
  %346 = vst.msk [vmem:[%s5 + $0x38] sm:$0xf] %vm331, %v329
  %347 = vst.msk [vmem:[%s5 + $0x3c] sm:$0xf] %vm331, %v330
  // Predicated region
  $region22: #{_lambda_.19} parent=0 // pred_check
    _
  $region23: #{_lambda_.19} parent=0 // pred_check_branch
    %349 = sbr.rel (0) target = $region25
  $region24: #{_lambda_.19} parent=0 // pred_region
    _
  $region25: #{_lambda_.19} parent=0 // pred_fallthru
    _
  // Predicated region
  $region26: #{_lambda_.19} parent=0 // pred_check
    _
  $region27: #{_lambda_.19} parent=0 // pred_check_branch
    %351 = sbr.rel (0) target = $region29
  $region28: #{_lambda_.19} parent=0 // pred_region
    _
  $region29: #{_lambda_.19} parent=0 // pred_fallthru
    _

// kernel: _lambda_.20
$region0: #{_lambda_.20}
  #allocation0 [shape = 'u32[]', space=smem, size = 0x4, offset = 0x4, fixed_abs, tag = 'smem constant byte address 0x4 - core index']
  #allocation1 [shape = 'u32[72,128]{1,0:T(1,128)}', space=vmem, size = 0x9000, scoped, tag = 'internal scratch']
  %s0 = inlined_call_operand.vmem [shape: bf16[128,64], index: 0, kind: input, shape index: {}]
  %s1 = inlined_call_operand.vmem [shape: bf16[64,16], index: 1, kind: input, shape index: {}]
  %s2 = inlined_call_operand.vmem [shape: f32[1,16], index: 2, kind: input, shape index: {}]
  %s3 = inlined_call_operand.vmem [shape: f32[1,16], index: 3, kind: input, shape index: {}]
  %s4 = inlined_call_operand.vmem [shape: f32[1,16], index: 4, kind: input, shape index: {}]
  %s5 = inlined_call_operand.vmem [shape: f32[128,16], index: 5, kind: output, shape index: {}]
  %s6 = sld [smem:[#allocation0]]
  $region30: #{_lambda_.20} parent=0
    _
  %s8 = ssub.s32 1, %s6
  %s9 = scalar_select 0, %s8, %s6
  // Predicated region
  $region2: #{_lambda_.20} parent=0 // pred_check
    _
  $region3: #{_lambda_.20} parent=0 // pred_check_branch
    %11 = sbr.rel (0) target = $region5
  $region4: #{_lambda_.20} parent=0 // pred_region
    _
  $region5: #{_lambda_.20} parent=0 // pred_fallthru
    _
  // Predicated region
  $region6: #{_lambda_.20} parent=0 // pred_check
    _
  $region7: #{_lambda_.20} parent=0 // pred_check_branch
    %13 = sbr.rel (0) target = $region9
  $region8: #{_lambda_.20} parent=0 // pred_region
    _
  $region9: #{_lambda_.20} parent=0 // pred_fallthru
    _
  // Predicated region
  $region10: #{_lambda_.20} parent=0 // pred_check
    _
  $region11: #{_lambda_.20} parent=0 // pred_check_branch
    %15 = sbr.rel (0) target = $region13
  $region12: #{_lambda_.20} parent=0 // pred_region
    _
  $region13: #{_lambda_.20} parent=0 // pred_fallthru
    _
  // Predicated region
  $region14: #{_lambda_.20} parent=0 // pred_check
    _
  $region15: #{_lambda_.20} parent=0 // pred_check_branch
    %17 = sbr.rel (0) target = $region17
  $region16: #{_lambda_.20} parent=0 // pred_region
    _
  $region17: #{_lambda_.20} parent=0 // pred_fallthru
    _
  // Predicated region
  $region18: #{_lambda_.20} parent=0 // pred_check
    _
  $region19: #{_lambda_.20} parent=0 // pred_check_branch
    %19 = sbr.rel (0) target = $region21
  $region20: #{_lambda_.20} parent=0 // pred_region
    _
  $region21: #{_lambda_.20} parent=0 // pred_fallthru
    _
  %v21 = vld [vmem:[%s0] sm:$0xf]
  %v22 = vld [vmem:[%s0 + $0x4] sm:$0xf]
  %v23 = vld [vmem:[%s0 + $0x8] sm:$0xf]
  %v24 = vld [vmem:[%s0 + $0xc] sm:$0xf]
  %v25 = vld [vmem:[%s0 + $0x10] sm:$0xf]
  %v26 = vld [vmem:[%s0 + $0x14] sm:$0xf]
  %v27 = vld [vmem:[%s0 + $0x18] sm:$0xf]
  %v28 = vld [vmem:[%s0 + $0x1c] sm:$0xf]
  %v29 = vld [vmem:[%s0 + $0x20] sm:$0xf]
  %v30 = vld [vmem:[%s0 + $0x24] sm:$0xf]
  %v31 = vld [vmem:[%s0 + $0x28] sm:$0xf]
  %v32 = vld [vmem:[%s0 + $0x2c] sm:$0xf]
  %v33 = vld [vmem:[%s0 + $0x30] sm:$0xf]
  %v34 = vld [vmem:[%s0 + $0x34] sm:$0xf]
  %v35 = vld [vmem:[%s0 + $0x38] sm:$0xf]
  %v36 = vld [vmem:[%s0 + $0x3c] sm:$0xf]
  %v37 = vld [vmem:[%s1] sm:$0xf]
  %v38 = vld [vmem:[%s1 + $0x4] sm:$0xf]
  %v39 = vld [vmem:[%s1 + $0x8] sm:$0xf]
  %v40 = vld [vmem:[%s1 + $0xc] sm:$0xf]
  %v41 = vld [vmem:[%s1 + $0x10] sm:$0xf]
  %v42 = vld [vmem:[%s1 + $0x14] sm:$0xf]
  %v43 = vld [vmem:[%s1 + $0x18] sm:$0xf]
  %v44 = vld [vmem:[%s1 + $0x1c] sm:$0xf]
  %v45 = vld [vmem:[%s2] sm:$0x1]
  %v47 = vperm.slane %v45, 0
  %v65 = vunpack.c.l.b16 %v21
  %v66 = vunpack.c.l.b16 %v22
  %v67 = vunpack.c.l.b16 %v23
  %v68 = vunpack.c.l.b16 %v24
  %v69 = vunpack.c.l.b16 %v25
  %v70 = vunpack.c.l.b16 %v26
  %v71 = vunpack.c.l.b16 %v27
  %v72 = vunpack.c.l.b16 %v28
  %v73 = vunpack.c.l.b16 %v29
  %v74 = vunpack.c.l.b16 %v30
  %v75 = vunpack.c.l.b16 %v31
  %v76 = vunpack.c.l.b16 %v32
  %v77 = vunpack.c.l.b16 %v33
  %v78 = vunpack.c.l.b16 %v34
  %v79 = vunpack.c.l.b16 %v35
  %v80 = vunpack.c.l.b16 %v36
  %v81 = vpack.c.b16 %v66, %v65
  %v82 = vpack.c.b16 %v68, %v67
  %v83 = vpack.c.b16 %v70, %v69
  %v84 = vpack.c.b16 %v72, %v71
  %v85 = vpack.c.b16 %v74, %v73
  %v86 = vpack.c.b16 %v76, %v75
  %v87 = vpack.c.b16 %v78, %v77
  %v88 = vpack.c.b16 %v80, %v79
  %v97 = vunpack.c.l.b16 %v37
  %v98 = vunpack.c.l.b16 %v38
  %v99 = vunpack.c.l.b16 %v39
  %v100 = vunpack.c.l.b16 %v40
  %v101 = vunpack.c.l.b16 %v41
  %v102 = vunpack.c.l.b16 %v42
  %v103 = vunpack.c.l.b16 %v43
  %v104 = vunpack.c.l.b16 %v44
  %v105 = vpack.c.b16 %v98, %v97
  %v106 = vpack.c.b16 %v100, %v99
  %v107 = vpack.c.b16 %v102, %v101
  %v108 = vpack.c.b16 %v104, %v103
  %vm113 = vcmask 523264
  %v115 = vsel %vm113, %v81, 0
  %v118 = vsel %vm113, %v82, 0
  %v121 = vsel %vm113, %v83, 0
  %v124 = vsel %vm113, %v84, 0
  %v127 = vsel %vm113, %v85, 0
  %v130 = vsel %vm113, %v86, 0
  %v133 = vsel %vm113, %v87, 0
  %v136 = vsel %vm113, %v88, 0
  %138 = vmatpush.bf16.msra.mxu0 0
  %139 = vmatpush.bf16.msra.mxu0 0
  %140 = vmatpush.bf16.msra.mxu0 0
  %141 = vmatpush.bf16.msra.mxu0 0
  %142 = vmatpush.bf16.msra.mxu0 %v108
  %143 = vmatpush.bf16.msra.mxu0 %v107
  %144 = vmatpush.bf16.msra.mxu0 %v106
  %145 = vmatpush.bf16.msra.mxu0 %v105
  %146 = vmatmul.bf16.gmra.mxu0 %v115
  %v147 = vpop.f32.mrf.mxu0
  %v148 = vadd.f32 %v47, %v147
  %v149 = vpop.f32.mrf.mxu0
  %v150 = vadd.f32 %v47, %v149
  %151 = vmatmul.bf16.gmra.mxu0 %v118
  %v152 = vpop.f32.mrf.mxu0
  %v153 = vadd.f32 %v47, %v152
  %v154 = vpop.f32.mrf.mxu0
  %v155 = vadd.f32 %v47, %v154
  %156 = vmatmul.bf16.gmra.mxu0 %v121
  %v157 = vpop.f32.mrf.mxu0
  %v158 = vadd.f32 %v47, %v157
  %v159 = vpop.f32.mrf.mxu0
  %v160 = vadd.f32 %v47, %v159
  %161 = vmatmul.bf16.gmra.mxu0 %v124
  %v162 = vpop.f32.mrf.mxu0
  %v163 = vadd.f32 %v47, %v162
  %v164 = vpop.f32.mrf.mxu0
  %v165 = vadd.f32 %v47, %v164
  %166 = vmatmul.bf16.gmra.mxu0 %v127
  %v167 = vpop.f32.mrf.mxu0
  %v168 = vadd.f32 %v47, %v167
  %v169 = vpop.f32.mrf.mxu0
  %v170 = vadd.f32 %v47, %v169
  %171 = vmatmul.bf16.gmra.mxu0 %v130
  %v172 = vpop.f32.mrf.mxu0
  %v173 = vadd.f32 %v47, %v172
  %v174 = vpop.f32.mrf.mxu0
  %v175 = vadd.f32 %v47, %v174
  %176 = vmatmul.bf16.gmra.mxu0 %v133
  %v177 = vpop.f32.mrf.mxu0
  %v178 = vadd.f32 %v47, %v177
  %v179 = vpop.f32.mrf.mxu0
  %v180 = vadd.f32 %v47, %v179
  %181 = vmatmul.bf16.gmra.mxu0 %v136
  %v182 = vpop.f32.mrf.mxu0
  %v183 = vadd.f32 %v47, %v182
  %v184 = vpop.f32.mrf.mxu0
  %v185 = vadd.f32 %v47, %v184
  %186 = vdwg.mxu0
  %v187 = vld [vmem:[%s3] sm:$0x1]
  %v189 = vperm.slane %v187, 0
  %v191 = vmul.f32 %v148, %v189
  %v192 = vmul.f32 %v150, %v189
  %v193 = vmul.f32 %v153, %v189
  %v194 = vmul.f32 %v155, %v189
  %v195 = vmul.f32 %v158, %v189
  %v196 = vmul.f32 %v160, %v189
  %v197 = vmul.f32 %v163, %v189
  %v198 = vmul.f32 %v165, %v189
  %v199 = vmul.f32 %v168, %v189
  %v200 = vmul.f32 %v170, %v189
  %v201 = vmul.f32 %v173, %v189
  %v202 = vmul.f32 %v175, %v189
  %v203 = vmul.f32 %v178, %v189
  %v204 = vmul.f32 %v180, %v189
  %v205 = vmul.f32 %v183, %v189
  %v206 = vmul.f32 %v185, %v189
  %v207 = vld [vmem:[%s4] sm:$0x1]
  %v209 = vperm.slane %v207, 0
  %v211 = vadd.f32 %v191, %v209
  %v212 = vadd.f32 %v192, %v209
  %v213 = vadd.f32 %v193, %v209
  %v214 = vadd.f32 %v194, %v209
  %v215 = vadd.f32 %v195, %v209
  %v216 = vadd.f32 %v196, %v209
  %v217 = vadd.f32 %v197, %v209
  %v218 = vadd.f32 %v198, %v209
  %v219 = vadd.f32 %v199, %v209
  %v220 = vadd.f32 %v200, %v209
  %v221 = vadd.f32 %v201, %v209
  %v222 = vadd.f32 %v202, %v209
  %v223 = vadd.f32 %v203, %v209
  %v224 = vadd.f32 %v204, %v209
  %v225 = vadd.f32 %v205, %v209
  %v226 = vadd.f32 %v206, %v209
  %vm227 = vcmask 130048
  %228 = vst.msk [vmem:[%s5] sm:$0xff] %vm227, %v211
  %229 = vst.msk [vmem:[%s5 + $0x8] sm:$0xff] %vm227, %v212
  %230 = vst.msk [vmem:[%s5 + $0x10] sm:$0xff] %vm227, %v213
  %231 = vst.msk [vmem:[%s5 + $0x18] sm:$0xff] %vm227, %v214
  %232 = vst.msk [vmem:[%s5 + $0x20] sm:$0xff] %vm227, %v215
  %233 = vst.msk [vmem:[%s5 + $0x28] sm:$0xff] %vm227, %v216
  %234 = vst.msk [vmem:[%s5 + $0x30] sm:$0xff] %vm227, %v217
  %235 = vst.msk [vmem:[%s5 + $0x38] sm:$0xff] %vm227, %v218
  %236 = vst.msk [vmem:[%s5 + $0x40] sm:$0xff] %vm227, %v219
  %237 = vst.msk [vmem:[%s5 + $0x48] sm:$0xff] %vm227, %v220
  %238 = vst.msk [vmem:[%s5 + $0x50] sm:$0xff] %vm227, %v221
  %239 = vst.msk [vmem:[%s5 + $0x58] sm:$0xff] %vm227, %v222
  %240 = vst.msk [vmem:[%s5 + $0x60] sm:$0xff] %vm227, %v223
  %241 = vst.msk [vmem:[%s5 + $0x68] sm:$0xff] %vm227, %v224
  %242 = vst.msk [vmem:[%s5 + $0x70] sm:$0xff] %vm227, %v225
  %243 = vst.msk [vmem:[%s5 + $0x78] sm:$0xff] %vm227, %v226
  // Predicated region
  $region22: #{_lambda_.20} parent=0 // pred_check
    _
  $region23: #{_lambda_.20} parent=0 // pred_check_branch
    %245 = sbr.rel (0) target = $region25
  $region24: #{_lambda_.20} parent=0 // pred_region
    _
  $region25: #{_lambda_.20} parent=0 // pred_fallthru
    _
  // Predicated region
  $region26: #{_lambda_.20} parent=0 // pred_check
    _
  $region27: #{_lambda_.20} parent=0 // pred_check_branch
    %247 = sbr.rel (0) target = $region29
  $region28: #{_lambda_.20} parent=0 // pred_region
    _
  $region29: #{_lambda_.20} parent=0 // pred_fallthru
    _

// kernel: _lambda_.16
$region0: #{_lambda_.16}
  #allocation0 [shape = 'u32[]', space=smem, size = 0x4, offset = 0x4, fixed_abs, tag = 'smem constant byte address 0x4 - core index']
  #allocation1 [shape = 'u32[72,128]{1,0:T(1,128)}', space=vmem, size = 0x9000, scoped, tag = 'internal scratch']
  %s0 = inlined_call_operand.vmem [shape: bf16[2,8,8,2], index: 0, kind: input, shape index: {}]
  %s1 = inlined_call_operand.vmem [shape: bf16[2,8,8,2], index: 1, kind: input, shape index: {}]
  %s2 = inlined_call_operand.vmem [shape: bf16[2,8,8,16], index: 2, kind: input, shape index: {}]
  %s3 = inlined_call_operand.vmem [shape: bf16[2,8,8,2], index: 3, kind: input, shape index: {}]
  %s4 = inlined_call_operand.vmem [shape: bf16[2,8,8,2], index: 4, kind: input, shape index: {}]
  %s5 = inlined_call_operand.vmem [shape: bf16[2,8,8,16], index: 5, kind: input, shape index: {}]
  %s6 = inlined_call_operand.vmem [shape: f32[2,8,8,16], index: 6, kind: input, shape index: {}]
  %s7 = inlined_call_operand.vmem [shape: f32[1,16], index: 7, kind: input, shape index: {}]
  %s8 = inlined_call_operand.vmem [shape: f32[1,16], index: 8, kind: input, shape index: {}]
  %s9 = inlined_call_operand.vmem [shape: f32[1,16], index: 9, kind: input, shape index: {}]
  %s10 = inlined_call_operand.vmem [shape: f32[2,8,8,16], index: 10, kind: output, shape index: {}]
  %s11 = sld [smem:[#allocation0]]
  $region73: #{_lambda_.16} parent=0
    _
  %s13 = ssub.s32 1, %s11
  %s14 = scalar_select 0, %s13, %s11
  loop: start=0, step=1, limit=4
  $region2: #{_lambda_.16} parent=0 // loop_pre_header
    _
  $region3: #{_lambda_.16} parent=0 // loop_header
    %s16 = sphi 0, %s20
    %p17 = scmp.ge.s32.totalorder %s16, 4
    %s23 = sphi 0, %s35
    %s24 = sphi 0, %s31
    %s25 = sphi 0, %s23
    %s26 = sphi 0, %s24
    %s27 = sphi 0, %s25
    %s28 = sphi 0, %s26
    %s40 = sphi 0, %s42
    %s43 = sphi 0, %s40
    %s44 = sphi 0, %s43
    %s60 = sphi 0, %s44
    %s68 = sphi 0, %s70
    %s71 = sphi 0, %s68
    %s72 = sphi 0, %s71
    %s88 = sphi 0, %s72
    %s96 = sphi 0, %s98
    %s99 = sphi 0, %s96
    %s100 = sphi 0, %s99
    %s116 = sphi 0, %s100
    %s124 = sphi 0, %s126
    %s127 = sphi 0, %s124
    %s128 = sphi 0, %s127
    %s144 = sphi 0, %s128
    %s150 = sphi 0, %s152
    %s153 = sphi 0, %s150
    %s154 = sphi 0, %s153
    %s170 = sphi 0, %s154
    %s176 = sphi 0, %s178
    %s179 = sphi 0, %s176
    %s180 = sphi 0, %s179
    %s196 = sphi 0, %s180
    %s204 = sphi 0, %s206
    %s207 = sphi 0, %s204
    %s208 = sphi 0, %s207
    %s224 = sphi 0, %s208
    %s228 = sphi 0, %s228
    %s230 = sphi 0, %s228
    %s231 = sphi 0, %s230
    %s245 = sphi 0, %s231
    %s249 = sphi 0, %s249
    %s251 = sphi 0, %s249
    %s252 = sphi 0, %s251
    %s266 = sphi 0, %s252
    %s270 = sphi 0, %s270
    %s272 = sphi 0, %s270
    %s273 = sphi 0, %s272
    %s287 = sphi 0, %s273
    %s295 = sphi 0, %s297
    %s298 = sphi 0, %s295
    %s299 = sphi 0, %s298
    %s315 = sphi 0, %s299
  $region4: #{_lambda_.16} parent=0 // loop_header_branch
    %19 = sbr.rel (%p17) target = $region8
  $region5: #{_lambda_.16} parent=0 // loop_body
    %s21 = ssub.s32 %s16, 1
    %s22 = ssub.s32 %s16, 2
    %s29 = sadd.s32 1, %s24
    %p30 = scmp.ge.s32.totalorder %s29, 1
    %s31 = scalar_select %p30, 0, %s29
    %s32 = sadd.s32 1, %s23
    %s33 = scalar_select %p30, %s32, %s23
    %p34 = scmp.ge.s32.totalorder %s33, 2
    %s35 = scalar_select %p34, 0, %s33
    %s36 = ssub.s32 %s23, %s35
    %s37 = ssub.s32 %s24, %s31
    %s38 = sor.u32 %s36, %s37
    %p39 = scmp.eq.s32.totalorder %s38, 0
    %s41 = sadd.s32 %s40, 1
    %s42 = scalar_select %p39, %s40, %s41
    %p45 = pneg %p39
    %p46 = scmp.eq.s32.totalorder %s16, 1
    %p47 = por %p45, %p46
    %p48 = scmp.ne.s32.totalorder %s40, %s43
    %p49 = scmp.eq.s32.totalorder %s16, 0
    %p50 = por %p48, %p49
    %p51 = scmp.ne.s32.totalorder %s40, %s43
    %p52 = scmp.eq.s32.totalorder %s21, 1
    %p53 = por %p51, %p52
    %p54 = scmp.ne.s32.totalorder %s43, %s44
    %p55 = scmp.eq.s32.totalorder %s21, 0
    %p56 = por %p54, %p55
    %p57 = scmp.ne.s32.totalorder %s43, %s44
    %p58 = scmp.eq.s32.totalorder %s22, 1
    %p59 = por %p57, %p58
    %p61 = scmp.ne.s32.totalorder %s44, %s60
    %p62 = scmp.eq.s32.totalorder %s22, 0
    %p63 = por %p61, %p62
    %s64 = ssub.s32 %s23, %s35
    %s65 = ssub.s32 %s24, %s31
    %s66 = sor.u32 %s64, %s65
    %p67 = scmp.eq.s32.totalorder %s66, 0
    %s69 = sadd.s32 %s68, 1
    %s70 = scalar_select %p67, %s68, %s69
    %p73 = pneg %p67
    %p74 = scmp.eq.s32.totalorder %s16, 1
    %p75 = por %p73, %p74
    %p76 = scmp.ne.s32.totalorder %s68, %s71
    %p77 = scmp.eq.s32.totalorder %s16, 0
    %p78 = por %p76, %p77
    %p79 = scmp.ne.s32.totalorder %s68, %s71
    %p80 = scmp.eq.s32.totalorder %s21, 1
    %p81 = por %p79, %p80
    %p82 = scmp.ne.s32.totalorder %s71, %s72
    %p83 = scmp.eq.s32.totalorder %s21, 0
    %p84 = por %p82, %p83
    %p85 = scmp.ne.s32.totalorder %s71, %s72
    %p86 = scmp.eq.s32.totalorder %s22, 1
    %p87 = por %p85, %p86
    %p89 = scmp.ne.s32.totalorder %s72, %s88
    %p90 = scmp.eq.s32.totalorder %s22, 0
    %p91 = por %p89, %p90
    %s92 = ssub.s32 %s23, %s35
    %s93 = ssub.s32 %s24, %s31
    %s94 = sor.u32 %s92, %s93
    %p95 = scmp.eq.s32.totalorder %s94, 0
    %s97 = sadd.s32 %s96, 1
    %s98 = scalar_select %p95, %s96, %s97
    %p101 = pneg %p95
    %p102 = scmp.eq.s32.totalorder %s16, 1
    %p103 = por %p101, %p102
    %p104 = scmp.ne.s32.totalorder %s96, %s99
    %p105 = scmp.eq.s32.totalorder %s16, 0
    %p106 = por %p104, %p105
    %p107 = scmp.ne.s32.totalorder %s96, %s99
    %p108 = scmp.eq.s32.totalorder %s21, 1
    %p109 = por %p107, %p108
    %p110 = scmp.ne.s32.totalorder %s99, %s100
    %p111 = scmp.eq.s32.totalorder %s21, 0
    %p112 = por %p110, %p111
    %p113 = scmp.ne.s32.totalorder %s99, %s100
    %p114 = scmp.eq.s32.totalorder %s22, 1
    %p115 = por %p113, %p114
    %p117 = scmp.ne.s32.totalorder %s100, %s116
    %p118 = scmp.eq.s32.totalorder %s22, 0
    %p119 = por %p117, %p118
    %s120 = ssub.s32 %s23, %s35
    %s121 = ssub.s32 %s24, %s31
    %s122 = sor.u32 %s120, %s121
    %p123 = scmp.eq.s32.totalorder %s122, 0
    %s125 = sadd.s32 %s124, 1
    %s126 = scalar_select %p123, %s124, %s125
    %p129 = pneg %p123
    %p130 = scmp.eq.s32.totalorder %s16, 1
    %p131 = por %p129, %p130
    %p132 = scmp.ne.s32.totalorder %s124, %s127
    %p133 = scmp.eq.s32.totalorder %s16, 0
    %p134 = por %p132, %p133
    %p135 = scmp.ne.s32.totalorder %s124, %s127
    %p136 = scmp.eq.s32.totalorder %s21, 1
    %p137 = por %p135, %p136
    %p138 = scmp.ne.s32.totalorder %s127, %s128
    %p139 = scmp.eq.s32.totalorder %s21, 0
    %p140 = por %p138, %p139
    %p141 = scmp.ne.s32.totalorder %s127, %s128
    %p142 = scmp.eq.s32.totalorder %s22, 1
    %p143 = por %p141, %p142
    %p145 = scmp.ne.s32.totalorder %s128, %s144
    %p146 = scmp.eq.s32.totalorder %s22, 0
    %p147 = por %p145, %p146
    %s148 = ssub.s32 %s23, %s35
    %p149 = scmp.eq.s32.totalorder %s148, 0
    %s151 = sadd.s32 %s150, 1
    %s152 = scalar_select %p149, %s150, %s151
    %p155 = pneg %p149
    %p156 = scmp.eq.s32.totalorder %s16, 1
    %p157 = por %p155, %p156
    %p158 = scmp.ne.s32.totalorder %s150, %s153
    %p159 = scmp.eq.s32.totalorder %s16, 0
    %p160 = por %p158, %p159
    %p161 = scmp.ne.s32.totalorder %s150, %s153
    %p162 = scmp.eq.s32.totalorder %s21, 1
    %p163 = por %p161, %p162
    %p164 = scmp.ne.s32.totalorder %s153, %s154
    %p165 = scmp.eq.s32.totalorder %s21, 0
    %p166 = por %p164, %p165
    %p167 = scmp.ne.s32.totalorder %s153, %s154
    %p168 = scmp.eq.s32.totalorder %s22, 1
    %p169 = por %p167, %p168
    %p171 = scmp.ne.s32.totalorder %s154, %s170
    %p172 = scmp.eq.s32.totalorder %s22, 0
    %p173 = por %p171, %p172
    %s174 = ssub.s32 %s23, %s35
    %p175 = scmp.eq.s32.totalorder %s174, 0
    %s177 = sadd.s32 %s176, 1
    %s178 = scalar_select %p175, %s176, %s177
    %p181 = pneg %p175
    %p182 = scmp.eq.s32.totalorder %s16, 1
    %p183 = por %p181, %p182
    %p184 = scmp.ne.s32.totalorder %s176, %s179
    %p185 = scmp.eq.s32.totalorder %s16, 0
    %p186 = por %p184, %p185
    %p187 = scmp.ne.s32.totalorder %s176, %s179
    %p188 = scmp.eq.s32.totalorder %s21, 1
    %p189 = por %p187, %p188
    %p190 = scmp.ne.s32.totalorder %s179, %s180
    %p191 = scmp.eq.s32.totalorder %s21, 0
    %p192 = por %p190, %p191
    %p193 = scmp.ne.s32.totalorder %s179, %s180
    %p194 = scmp.eq.s32.totalorder %s22, 1
    %p195 = por %p193, %p194
    %p197 = scmp.ne.s32.totalorder %s180, %s196
    %p198 = scmp.eq.s32.totalorder %s22, 0
    %p199 = por %p197, %p198
    %s200 = ssub.s32 %s23, %s35
    %s201 = ssub.s32 %s24, %s31
    %s202 = sor.u32 %s200, %s201
    %p203 = scmp.eq.s32.totalorder %s202, 0
    %s205 = sadd.s32 %s204, 1
    %s206 = scalar_select %p203, %s204, %s205
    %p209 = pneg %p203
    %p210 = scmp.eq.s32.totalorder %s16, 1
    %p211 = por %p209, %p210
    %p212 = scmp.ne.s32.totalorder %s204, %s207
    %p213 = scmp.eq.s32.totalorder %s16, 0
    %p214 = por %p212, %p213
    %p215 = scmp.ne.s32.totalorder %s204, %s207
    %p216 = scmp.eq.s32.totalorder %s21, 1
    %p217 = por %p215, %p216
    %p218 = scmp.ne.s32.totalorder %s207, %s208
    %p219 = scmp.eq.s32.totalorder %s21, 0
    %p220 = por %p218, %p219
    %p221 = scmp.ne.s32.totalorder %s207, %s208
    %p222 = scmp.eq.s32.totalorder %s22, 1
    %p223 = por %p221, %p222
    %p225 = scmp.ne.s32.totalorder %s208, %s224
    %p226 = scmp.eq.s32.totalorder %s22, 0
    %p227 = por %p225, %p226
    %s229 = sadd.s32 %s228, 1
    %p232 = scmp.eq.s32.totalorder %s16, 1
    %p233 = scmp.ne.s32.totalorder %s228, %s230
    %p234 = scmp.eq.s32.totalorder %s16, 0
    %p235 = por %p233, %p234
    %p236 = scmp.ne.s32.totalorder %s228, %s230
    %p237 = scmp.eq.s32.totalorder %s21, 1
    %p238 = por %p236, %p237
    %p239 = scmp.ne.s32.totalorder %s230, %s231
    %p240 = scmp.eq.s32.totalorder %s21, 0
    %p241 = por %p239, %p240
    %p242 = scmp.ne.s32.totalorder %s230, %s231
    %p243 = scmp.eq.s32.totalorder %s22, 1
    %p244 = por %p242, %p243
    %p246 = scmp.ne.s32.totalorder %s231, %s245
    %p247 = scmp.eq.s32.totalorder %s22, 0
    %p248 = por %p246, %p247
    %s250 = sadd.s32 %s249, 1
    %p253 = scmp.eq.s32.totalorder %s16, 1
    %p254 = scmp.ne.s32.totalorder %s249, %s251
    %p255 = scmp.eq.s32.totalorder %s16, 0
    %p256 = por %p254, %p255
    %p257 = scmp.ne.s32.totalorder %s249, %s251
    %p258 = scmp.eq.s32.totalorder %s21, 1
    %p259 = por %p257, %p258
    %p260 = scmp.ne.s32.totalorder %s251, %s252
    %p261 = scmp.eq.s32.totalorder %s21, 0
    %p262 = por %p260, %p261
    %p263 = scmp.ne.s32.totalorder %s251, %s252
    %p264 = scmp.eq.s32.totalorder %s22, 1
    %p265 = por %p263, %p264
    %p267 = scmp.ne.s32.totalorder %s252, %s266
    %p268 = scmp.eq.s32.totalorder %s22, 0
    %p269 = por %p267, %p268
    %s271 = sadd.s32 %s270, 1
    %p274 = scmp.eq.s32.totalorder %s16, 1
    %p275 = scmp.ne.s32.totalorder %s270, %s272
    %p276 = scmp.eq.s32.totalorder %s16, 0
    %p277 = por %p275, %p276
    %p278 = scmp.ne.s32.totalorder %s270, %s272
    %p279 = scmp.eq.s32.totalorder %s21, 1
    %p280 = por %p278, %p279
    %p281 = scmp.ne.s32.totalorder %s272, %s273
    %p282 = scmp.eq.s32.totalorder %s21, 0
    %p283 = por %p281, %p282
    %p284 = scmp.ne.s32.totalorder %s272, %s273
    %p285 = scmp.eq.s32.totalorder %s22, 1
    %p286 = por %p284, %p285
    %p288 = scmp.ne.s32.totalorder %s273, %s287
    %p289 = scmp.eq.s32.totalorder %s22, 0
    %p290 = por %p288, %p289
    %s291 = ssub.s32 %s23, %s35
    %s292 = ssub.s32 %s24, %s31
    %s293 = sor.u32 %s291, %s292
    %p294 = scmp.eq.s32.totalorder %s293, 0
    %s296 = sadd.s32 %s295, 1
    %s297 = scalar_select %p294, %s295, %s296
    %p300 = pneg %p294
    %p301 = scmp.eq.s32.totalorder %s16, 1
    %p302 = por %p300, %p301
    %p303 = scmp.ne.s32.totalorder %s295, %s298
    %p304 = scmp.eq.s32.totalorder %s16, 0
    %p305 = por %p303, %p304
    %p306 = scmp.ne.s32.totalorder %s295, %s298
    %p307 = scmp.eq.s32.totalorder %s21, 1
    %p308 = por %p306, %p307
    %p309 = scmp.ne.s32.totalorder %s298, %s299
    %p310 = scmp.eq.s32.totalorder %s21, 0
    %p311 = por %p309, %p310
    %p312 = scmp.ne.s32.totalorder %s298, %s299
    %p313 = scmp.eq.s32.totalorder %s22, 1
    %p314 = por %p312, %p313
    %p316 = scmp.ne.s32.totalorder %s299, %s315
    %p317 = scmp.eq.s32.totalorder %s22, 0
    %p318 = por %p316, %p317
    %p319 = scmp.le.s32.totalorder 1, %s16
    %p320 = scmp.lt.s32.totalorder %s16, 3
    %p321 = pnand %p319, %p320
    %p322 = pneg %p321
    // Predicated region
    $region9: #{_lambda_.16} parent=5 // pred_check
      _
    $region10: #{_lambda_.16} parent=5 // pred_check_branch
      %324 = sbr.rel (%p321) target = $region12
    $region11: #{_lambda_.16} parent=5 // pred_region
      %s325 = ssub.s32 %s16, 1
      // Predicated region
      $region13: #{_lambda_.16} parent=11 // pred_check
        %p326 = pneg %p241
      $region14: #{_lambda_.16} parent=11 // pred_check_branch
        %328 = sbr.rel (%p326) target = $region16
      $region15: #{_lambda_.16} parent=11 // pred_region
        _
      $region16: #{_lambda_.16} parent=11 // pred_fallthru
        _
      // Predicated region
      $region17: #{_lambda_.16} parent=11 // pred_check
        %p329 = pneg %p262
      $region18: #{_lambda_.16} parent=11 // pred_check_branch
        %331 = sbr.rel (%p329) target = $region20
      $region19: #{_lambda_.16} parent=11 // pred_region
        _
      $region20: #{_lambda_.16} parent=11 // pred_fallthru
        _
      // Predicated region
      $region21: #{_lambda_.16} parent=11 // pred_check
        %p332 = pneg %p283
      $region22: #{_lambda_.16} parent=11 // pred_check_branch
        %334 = sbr.rel (%p332) target = $region24
      $region23: #{_lambda_.16} parent=11 // pred_region
        _
      $region24: #{_lambda_.16} parent=11 // pred_fallthru
        _
    $region12: #{_lambda_.16} parent=5 // pred_fallthru
      _
    %p335 = scmp.lt.s32.totalorder %s16, 2
    // Predicated region
    $region25: #{_lambda_.16} parent=5 // pred_check
      %p336 = pneg %p335
    $region26: #{_lambda_.16} parent=5 // pred_check_branch
      %338 = sbr.rel (%p336) target = $region28
    $region27: #{_lambda_.16} parent=5 // pred_region
      // Predicated region
      $region29: #{_lambda_.16} parent=27 // pred_check
        %p339 = pneg %p50
      $region30: #{_lambda_.16} parent=27 // pred_check_branch
        %341 = sbr.rel (%p339) target = $region32
      $region31: #{_lambda_.16} parent=27 // pred_region
        %s342 = smul.u32 8, %s24
        %p343 = scmp.lt.s32.totalorder %s23, 1
        %s344 = scalar_select %p343, %s23, 1
        %p345 = scmp.lt.s32.totalorder %s342, 7
        %s346 = scalar_select %p345, %s342, 7
        %s347 = smul.addr %s344, 8
        %s348 = sadd.s32 %s346, %s347
        %s349 = smul.addr %s348, 4
        %s350 = scalar_lea.vmem %s0, %s349
        %s351 = smul.u32 8, %s24
      $region32: #{_lambda_.16} parent=27 // pred_fallthru
        _
      // Predicated region
      $region33: #{_lambda_.16} parent=27 // pred_check
        %p352 = pneg %p78
      $region34: #{_lambda_.16} parent=27 // pred_check_branch
        %354 = sbr.rel (%p352) target = $region36
      $region35: #{_lambda_.16} parent=27 // pred_region
        %s355 = smul.u32 8, %s24
        %p356 = scmp.lt.s32.totalorder %s23, 1
        %s357 = scalar_select %p356, %s23, 1
        %p358 = scmp.lt.s32.totalorder %s355, 7
        %s359 = scalar_select %p358, %s355, 7
        %s360 = smul.addr %s357, 8
        %s361 = sadd.s32 %s359, %s360
        %s362 = smul.addr %s361, 4
        %s363 = scalar_lea.vmem %s1, %s362
        %s364 = smul.u32 8, %s24
      $region36: #{_lambda_.16} parent=27 // pred_fallthru
        _
      // Predicated region
      $region37: #{_lambda_.16} parent=27 // pred_check
        %p365 = pneg %p106
      $region38: #{_lambda_.16} parent=27 // pred_check_branch
        %367 = sbr.rel (%p365) target = $region40
      $region39: #{_lambda_.16} parent=27 // pred_region
        %s368 = smul.u32 8, %s24
        %p369 = scmp.lt.s32.totalorder %s23, 1
        %s370 = scalar_select %p369, %s23, 1
        %p371 = scmp.lt.s32.totalorder %s368, 7
        %s372 = scalar_select %p371, %s368, 7
        %s373 = smul.addr %s370, 8
        %s374 = sadd.s32 %s372, %s373
        %s375 = smul.addr %s374, 4
        %s376 = scalar_lea.vmem %s2, %s375
        %s377 = smul.u32 8, %s24
      $region40: #{_lambda_.16} parent=27 // pred_fallthru
        _
      // Predicated region
      $region41: #{_lambda_.16} parent=27 // pred_check
        %p378 = pneg %p134
      $region42: #{_lambda_.16} parent=27 // pred_check_branch
        %380 = sbr.rel (%p378) target = $region44
      $region43: #{_lambda_.16} parent=27 // pred_region
        %p381 = scmp.lt.s32.totalorder %s23, 1
        %s382 = scalar_select %p381, %s23, 1
        %p383 = scmp.lt.s32.totalorder %s24, 0
        %s384 = scalar_select %p383, %s24, 0
        %s385 = smul.addr %s382, 8
        %s386 = sadd.s32 %s384, %s385
        %s387 = smul.addr %s386, 4
        %s388 = scalar_lea.vmem %s3, %s387
      $region44: #{_lambda_.16} parent=27 // pred_fallthru
        _
      // Predicated region
      $region45: #{_lambda_.16} parent=27 // pred_check
        %p389 = pneg %p160
      $region46: #{_lambda_.16} parent=27 // pred_check_branch
        %391 = sbr.rel (%p389) target = $region48
      $region47: #{_lambda_.16} parent=27 // pred_region
        %p392 = scmp.lt.s32.totalorder %s23, 1
        %s393 = scalar_select %p392, %s23, 1
        %s394 = smul.addr %s393, 8
        %s395 = smul.addr %s394, 4
        %s396 = scalar_lea.vmem %s4, %s395
      $region48: #{_lambda_.16} parent=27 // pred_fallthru
        _
      // Predicated region
      $region49: #{_lambda_.16} parent=27 // pred_check
        %p397 = pneg %p186
      $region50: #{_lambda_.16} parent=27 // pred_check_branch
        %399 = sbr.rel (%p397) target = $region52
      $region51: #{_lambda_.16} parent=27 // pred_region
        %p400 = scmp.lt.s32.totalorder %s23, 1
        %s401 = scalar_select %p400, %s23, 1
        %s402 = smul.addr %s401, 8
        %s403 = smul.addr %s402, 4
        %s404 = scalar_lea.vmem %s5, %s403
      $region52: #{_lambda_.16} parent=27 // pred_fallthru
        _
      // Predicated region
      $region53: #{_lambda_.16} parent=27 // pred_check
        %p405 = pneg %p214
      $region54: #{_lambda_.16} parent=27 // pred_check_branch
        %407 = sbr.rel (%p405) target = $region56
      $region55: #{_lambda_.16} parent=27 // pred_region
        %s408 = smul.u32 8, %s24
        %p409 = scmp.lt.s32.totalorder %s23, 1
        %s410 = scalar_select %p409, %s23, 1
        %p411 = scmp.lt.s32.totalorder %s408, 7
        %s412 = scalar_select %p411, %s408, 7
        %s413 = smul.addr %s410, 8
        %s414 = sadd.s32 %s412, %s413
        %s415 = smul.addr %s414, 8
        %s416 = scalar_lea.vmem %s6, %s415
        %s417 = smul.u32 8, %s24
      $region56: #{_lambda_.16} parent=27 // pred_fallthru
        _
    $region28: #{_lambda_.16} parent=5 // pred_fallthru
      _
    %p418 = scmp.le.s32.totalorder 1, %s16
    %p419 = scmp.lt.s32.totalorder %s16, 3
    %p420 = pnand %p418, %p419
    %p421 = pneg %p420
    // Predicated region
    $region57: #{_lambda_.16} parent=5 // pred_check
      _
    $region58: #{_lambda_.16} parent=5 // pred_check_branch
      %423 = sbr.rel (%p420) target = $region60
    $region59: #{_lambda_.16} parent=5 // pred_region
      %s424 = ssub.s32 %s16, 1
      %s425 = smul.u32 8, %s26
      %p426 = scmp.lt.s32.totalorder %s25, 1
      %s427 = scalar_select %p426, %s25, 1
      %p428 = scmp.lt.s32.totalorder %s425, 7
      %s429 = scalar_select %p428, %s425, 7
      %s430 = smul.addr %s427, 8
      %s431 = sadd.s32 %s429, %s430
      %s432 = smul.addr %s431, 4
      %s433 = scalar_lea.vmem %s0, %s432
      %p434 = pneg %p56
      %p435 = pneg %p53
      %s436 = smul.u32 8, %s26
      %p437 = scmp.lt.s32.totalorder %s25, 1
      %s438 = scalar_select %p437, %s25, 1
      %p439 = scmp.lt.s32.totalorder %s436, 7
      %s440 = scalar_select %p439, %s436, 7
      %s441 = smul.addr %s438, 8
      %s442 = sadd.s32 %s440, %s441
      %s443 = smul.addr %s442, 4
      %s444 = scalar_lea.vmem %s1, %s443
      %p445 = pneg %p84
      %p446 = pneg %p81
      %s447 = smul.u32 8, %s26
      %p448 = scmp.lt.s32.totalorder %s25, 1
      %s449 = scalar_select %p448, %s25, 1
      %p450 = scmp.lt.s32.totalorder %s447, 7
      %s451 = scalar_select %p450, %s447, 7
      %s452 = smul.addr %s449, 8
      %s453 = sadd.s32 %s451, %s452
      %s454 = smul.addr %s453, 4
      %s455 = scalar_lea.vmem %s2, %s454
      %p456 = pneg %p112
      %p457 = pneg %p109
      %p458 = scmp.lt.s32.totalorder %s25, 1
      %s459 = scalar_select %p458, %s25, 1
      %p460 = scmp.lt.s32.totalorder %s26, 0
      %s461 = scalar_select %p460, %s26, 0
      %s462 = smul.addr %s459, 8
      %s463 = sadd.s32 %s461, %s462
      %s464 = smul.addr %s463, 4
      %s465 = scalar_lea.vmem %s3, %s464
      %p466 = pneg %p140
      %p467 = pneg %p137
      %p468 = scmp.lt.s32.totalorder %s25, 1
      %s469 = scalar_select %p468, %s25, 1
      %s470 = smul.addr %s469, 8
      %s471 = smul.addr %s470, 4
      %s472 = scalar_lea.vmem %s4, %s471
      %p473 = pneg %p166
      %p474 = pneg %p163
      %p475 = scmp.lt.s32.totalorder %s25, 1
      %s476 = scalar_select %p475, %s25, 1
      %s477 = smul.addr %s476, 8
      %s478 = smul.addr %s477, 4
      %s479 = scalar_lea.vmem %s5, %s478
      %p480 = pneg %p192
      %p481 = pneg %p189
      %s482 = smul.u32 8, %s26
      %p483 = scmp.lt.s32.totalorder %s25, 1
      %s484 = scalar_select %p483, %s25, 1
      %p485 = scmp.lt.s32.totalorder %s482, 7
      %s486 = scalar_select %p485, %s482, 7
      %s487 = smul.addr %s484, 8
      %s488 = sadd.s32 %s486, %s487
      %s489 = smul.addr %s488, 8
      %s490 = scalar_lea.vmem %s6, %s489
      %p491 = pneg %p220
      %p492 = pneg %p217
      %p493 = pneg %p241
      %p494 = pneg %p238
      %p495 = pneg %p262
      %p496 = pneg %p259
      %p497 = pneg %p283
      %p498 = pneg %p280
      %p499 = pneg %p311
      %p500 = pneg %p308
      %s501 = smul.u32 8, %s26
      %p502 = scmp.lt.s32.totalorder %s25, 1
      %s503 = scalar_select %p502, %s25, 1
      %p504 = scmp.lt.s32.totalorder %s501, 7
      %s505 = scalar_select %p504, %s501, 7
      %s506 = smul.addr %s503, 8
      %s507 = sadd.s32 %s505, %s506
      %s508 = smul.addr %s507, 8
      %s509 = scalar_lea.vmem %s10, %s508
      %s510 = smul.u32 8, %s26
      %p511 = scmp.lt.s32.totalorder %s25, 1
      %s512 = scalar_select %p511, %s25, 1
      %p513 = scmp.lt.s32.totalorder %s510, 7
      %s514 = scalar_select %p513, %s510, 7
      %s515 = smul.addr %s512, 8
      %s516 = sadd.s32 %s514, %s515
      %s517 = smul.addr %s516, 4
      %s518 = scalar_lea.vmem %s0, %s517
      %s519 = smul.u32 8, %s26
      %s520 = smul.u32 8, %s26
      %p521 = scmp.lt.s32.totalorder %s25, 1
      %s522 = scalar_select %p521, %s25, 1
      %p523 = scmp.lt.s32.totalorder %s520, 7
      %s524 = scalar_select %p523, %s520, 7
      %s525 = smul.addr %s522, 8
      %s526 = sadd.s32 %s524, %s525
      %s527 = smul.addr %s526, 4
      %s528 = scalar_lea.vmem %s1, %s527
      %s529 = smul.u32 8, %s26
      %s530 = smul.u32 8, %s26
      %p531 = scmp.lt.s32.totalorder %s25, 1
      %s532 = scalar_select %p531, %s25, 1
      %p533 = scmp.lt.s32.totalorder %s530, 7
      %s534 = scalar_select %p533, %s530, 7
      %s535 = smul.addr %s532, 8
      %s536 = sadd.s32 %s534, %s535
      %s537 = smul.addr %s536, 4
      %s538 = scalar_lea.vmem %s2, %s537
      %s539 = smul.u32 8, %s26
      %p540 = scmp.lt.s32.totalorder %s25, 1
      %s541 = scalar_select %p540, %s25, 1
      %p542 = scmp.lt.s32.totalorder %s26, 0
      %s543 = scalar_select %p542, %s26, 0
      %s544 = smul.addr %s541, 8
      %s545 = sadd.s32 %s543, %s544
      %s546 = smul.addr %s545, 4
      %s547 = scalar_lea.vmem %s3, %s546
      %p548 = scmp.lt.s32.totalorder %s25, 1
      %s549 = scalar_select %p548, %s25, 1
      %s550 = smul.addr %s549, 8
      %s551 = smul.addr %s550, 4
      %s552 = scalar_lea.vmem %s4, %s551
      %p553 = scmp.lt.s32.totalorder %s25, 1
      %s554 = scalar_select %p553, %s25, 1
      %s555 = smul.addr %s554, 8
      %s556 = smul.addr %s555, 4
      %s557 = scalar_lea.vmem %s5, %s556
      %s558 = smul.u32 8, %s26
      %p559 = scmp.lt.s32.totalorder %s25, 1
      %s560 = scalar_select %p559, %s25, 1
      %p561 = scmp.lt.s32.totalorder %s558, 7
      %s562 = scalar_select %p561, %s558, 7
      %s563 = smul.addr %s560, 8
      %s564 = sadd.s32 %s562, %s563
      %s565 = smul.addr %s564, 8
      %s566 = scalar_lea.vmem %s6, %s565
      %s567 = smul.u32 8, %s26
      %s568 = smul.u32 8, %s26
      %p569 = scmp.lt.s32.totalorder %s25, 1
      %s570 = scalar_select %p569, %s25, 1
      %p571 = scmp.lt.s32.totalorder %s568, 7
      %s572 = scalar_select %p571, %s568, 7
      %s573 = smul.addr %s570, 8
      %s574 = sadd.s32 %s572, %s573
      %s575 = smul.addr %s574, 8
      %s576 = scalar_lea.vmem %s10, %s575
      %s577 = smul.u32 8, %s26
      %s579 = smul.u32 %s26, 8
      %v580 = vld [vmem:[%s518] sm:$0xf]
      %v581 = vld [vmem:[%s518 + $0x4] sm:$0xf]
      %v582 = vld [vmem:[%s518 + $0x8] sm:$0xf]
      %v583 = vld [vmem:[%s518 + $0xc] sm:$0xf]
      %v584 = vld [vmem:[%s518 + $0x10] sm:$0xf]
      %v585 = vld [vmem:[%s518 + $0x14] sm:$0xf]
      %v586 = vld [vmem:[%s518 + $0x18] sm:$0xf]
      %v587 = vld [vmem:[%s518 + $0x1c] sm:$0xf]
      %v588 = vld [vmem:[%s528] sm:$0xf]
      %v589 = vld [vmem:[%s528 + $0x4] sm:$0xf]
      %v590 = vld [vmem:[%s528 + $0x8] sm:$0xf]
      %v591 = vld [vmem:[%s528 + $0xc] sm:$0xf]
      %v592 = vld [vmem:[%s528 + $0x10] sm:$0xf]
      %v593 = vld [vmem:[%s528 + $0x14] sm:$0xf]
      %v594 = vld [vmem:[%s528 + $0x18] sm:$0xf]
      %v595 = vld [vmem:[%s528 + $0x1c] sm:$0xf]
      %v596 = vld [vmem:[%s538] sm:$0xf]
      %v597 = vld [vmem:[%s538 + $0x4] sm:$0xf]
      %v598 = vld [vmem:[%s538 + $0x8] sm:$0xf]
      %v599 = vld [vmem:[%s538 + $0xc] sm:$0xf]
      %v600 = vld [vmem:[%s538 + $0x10] sm:$0xf]
      %v601 = vld [vmem:[%s538 + $0x14] sm:$0xf]
      %v602 = vld [vmem:[%s538 + $0x18] sm:$0xf]
      %v603 = vld [vmem:[%s538 + $0x1c] sm:$0xf]
      %v604 = vld [vmem:[%s547] sm:$0xf]
      %v605 = vld [vmem:[%s547 + $0x4] sm:$0xf]
      %v606 = vld [vmem:[%s547 + $0x8] sm:$0xf]
      %v607 = vld [vmem:[%s547 + $0xc] sm:$0xf]
      %v608 = vld [vmem:[%s547 + $0x10] sm:$0xf]
      %v609 = vld [vmem:[%s547 + $0x14] sm:$0xf]
      %v610 = vld [vmem:[%s547 + $0x18] sm:$0xf]
      %v611 = vld [vmem:[%s547 + $0x1c] sm:$0xf]
      %v612 = vld [vmem:[%s552] sm:$0xf]
      %v613 = vld [vmem:[%s552 + $0x4] sm:$0xf]
      %v614 = vld [vmem:[%s552 + $0x8] sm:$0xf]
      %v615 = vld [vmem:[%s552 + $0xc] sm:$0xf]
      %v616 = vld [vmem:[%s552 + $0x10] sm:$0xf]
      %v617 = vld [vmem:[%s552 + $0x14] sm:$0xf]
      %v618 = vld [vmem:[%s552 + $0x18] sm:$0xf]
      %v619 = vld [vmem:[%s552 + $0x1c] sm:$0xf]
      %v620 = vld [vmem:[%s557] sm:$0xf]
      %v621 = vld [vmem:[%s557 + $0x4] sm:$0xf]
      %v622 = vld [vmem:[%s557 + $0x8] sm:$0xf]
      %v623 = vld [vmem:[%s557 + $0xc] sm:$0xf]
      %v624 = vld [vmem:[%s557 + $0x10] sm:$0xf]
      %v625 = vld [vmem:[%s557 + $0x14] sm:$0xf]
      %v626 = vld [vmem:[%s557 + $0x18] sm:$0xf]
      %v627 = vld [vmem:[%s557 + $0x1c] sm:$0xf]
      %v628 = vld [vmem:[%s566] sm:$0xff]
      %v629 = vld [vmem:[%s566 + $0x8] sm:$0xff]
      %v630 = vld [vmem:[%s566 + $0x10] sm:$0xff]
      %v631 = vld [vmem:[%s566 + $0x18] sm:$0xff]
      %v632 = vld [vmem:[%s566 + $0x20] sm:$0xff]
      %v633 = vld [vmem:[%s566 + $0x28] sm:$0xff]
      %v634 = vld [vmem:[%s566 + $0x30] sm:$0xff]
      %v635 = vld [vmem:[%s566 + $0x38] sm:$0xff]
      %v636 = vld [vmem:[%s7] sm:$0x1]
      %v637 = vld [vmem:[%s8] sm:$0x1]
      %v638 = vld [vmem:[%s9] sm:$0x1]
      %vm639 = vcmask 15360
      %v641 = vsel %vm639, %v580, 0
      %v644 = vsel %vm639, %v588, 0
      %646 = vmatpush.bf16.xpose.msra.mxu0 0
      %647 = vmatpush.bf16.xpose.msra.mxu0 0
      %648 = vmatpush.bf16.xpose.msra.mxu0 0
      %649 = vmatpush.bf16.xpose.msra.mxu0 0
      %650 = vmatpush.bf16.xpose.msra.mxu0 0
      %651 = vmatpush.bf16.xpose.msra.mxu0 0
      %652 = vmatpush.bf16.xpose.msra.mxu0 0
      %653 = vmatpush.bf16.xpose.msra.mxu0 %v644
      %654 = vmatmul.bf16.gmra.mxu0 %v641
      %v655 = vpop.f32.mrf.mxu0
      %v656 = vadd.f32 0.0, %v655
      %v657 = vpop.f32.mrf.mxu0
      %658 = vdwg.mxu0
      %v660 = vsel %vm639, %v581, 0
      %v663 = vsel %vm639, %v589, 0
      %665 = vmatpush.bf16.xpose.msra.mxu0 0
      %666 = vmatpush.bf16.xpose.msra.mxu0 0
      %667 = vmatpush.bf16.xpose.msra.mxu0 0
      %668 = vmatpush.bf16.xpose.msra.mxu0 0
      %669 = vmatpush.bf16.xpose.msra.mxu0 0
      %670 = vmatpush.bf16.xpose.msra.mxu0 0
      %671 = vmatpush.bf16.xpose.msra.mxu0 0
      %672 = vmatpush.bf16.xpose.msra.mxu0 %v663
      %673 = vmatmul.bf16.gmra.mxu0 %v660
      %v674 = vpop.f32.mrf.mxu0
      %v675 = vadd.f32 0.0, %v674
      %v676 = vpop.f32.mrf.mxu0
      %677 = vdwg.mxu0
      %v679 = vsel %vm639, %v582, 0
      %v682 = vsel %vm639, %v590, 0
      %684 = vmatpush.bf16.xpose.msra.mxu0 0
      %685 = vmatpush.bf16.xpose.msra.mxu0 0
      %686 = vmatpush.bf16.xpose.msra.mxu0 0
      %687 = vmatpush.bf16.xpose.msra.mxu0 0
      %688 = vmatpush.bf16.xpose.msra.mxu0 0
      %689 = vmatpush.bf16.xpose.msra.mxu0 0
      %690 = vmatpush.bf16.xpose.msra.mxu0 0
      %691 = vmatpush.bf16.xpose.msra.mxu0 %v682
      %692 = vmatmul.bf16.gmra.mxu0 %v679
      %v693 = vpop.f32.mrf.mxu0
      %v694 = vadd.f32 0.0, %v693
      %v695 = vpop.f32.mrf.mxu0
      %696 = vdwg.mxu0
      %v698 = vsel %vm639, %v583, 0
      %v701 = vsel %vm639, %v591, 0
      %703 = vmatpush.bf16.xpose.msra.mxu0 0
      %704 = vmatpush.bf16.xpose.msra.mxu0 0
      %705 = vmatpush.bf16.xpose.msra.mxu0 0
      %706 = vmatpush.bf16.xpose.msra.mxu0 0
      %707 = vmatpush.bf16.xpose.msra.mxu0 0
      %708 = vmatpush.bf16.xpose.msra.mxu0 0
      %709 = vmatpush.bf16.xpose.msra.mxu0 0
      %710 = vmatpush.bf16.xpose.msra.mxu0 %v701
      %711 = vmatmul.bf16.gmra.mxu0 %v698
      %v712 = vpop.f32.mrf.mxu0
      %v713 = vadd.f32 0.0, %v712
      %v714 = vpop.f32.mrf.mxu0
      %715 = vdwg.mxu0
      %v717 = vsel %vm639, %v584, 0
      %v720 = vsel %vm639, %v592, 0
      %722 = vmatpush.bf16.xpose.msra.mxu0 0
      %723 = vmatpush.bf16.xpose.msra.mxu0 0
      %724 = vmatpush.bf16.xpose.msra.mxu0 0
      %725 = vmatpush.bf16.xpose.msra.mxu0 0
      %726 = vmatpush.bf16.xpose.msra.mxu0 0
      %727 = vmatpush.bf16.xpose.msra.mxu0 0
      %728 = vmatpush.bf16.xpose.msra.mxu0 0
      %729 = vmatpush.bf16.xpose.msra.mxu0 %v720
      %730 = vmatmul.bf16.gmra.mxu0 %v717
      %v731 = vpop.f32.mrf.mxu0
      %v732 = vadd.f32 0.0, %v731
      %v733 = vpop.f32.mrf.mxu0
      %734 = vdwg.mxu0
      %v736 = vsel %vm639, %v585, 0
      %v739 = vsel %vm639, %v593, 0
      %741 = vmatpush.bf16.xpose.msra.mxu0 0
      %742 = vmatpush.bf16.xpose.msra.mxu0 0
      %743 = vmatpush.bf16.xpose.msra.mxu0 0
      %744 = vmatpush.bf16.xpose.msra.mxu0 0
      %745 = vmatpush.bf16.xpose.msra.mxu0 0
      %746 = vmatpush.bf16.xpose.msra.mxu0 0
      %747 = vmatpush.bf16.xpose.msra.mxu0 0
      %748 = vmatpush.bf16.xpose.msra.mxu0 %v739
      %749 = vmatmul.bf16.gmra.mxu0 %v736
      %v750 = vpop.f32.mrf.mxu0
      %v751 = vadd.f32 0.0, %v750
      %v752 = vpop.f32.mrf.mxu0
      %753 = vdwg.mxu0
      %v755 = vsel %vm639, %v586, 0
      %v758 = vsel %vm639, %v594, 0
      %760 = vmatpush.bf16.xpose.msra.mxu0 0
      %761 = vmatpush.bf16.xpose.msra.mxu0 0
      %762 = vmatpush.bf16.xpose.msra.mxu0 0
      %763 = vmatpush.bf16.xpose.msra.mxu0 0
      %764 = vmatpush.bf16.xpose.msra.mxu0 0
      %765 = vmatpush.bf16.xpose.msra.mxu0 0
      %766 = vmatpush.bf16.xpose.msra.mxu0 0
      %767 = vmatpush.bf16.xpose.msra.mxu0 %v758
      %768 = vmatmul.bf16.gmra.mxu0 %v755
      %v769 = vpop.f32.mrf.mxu0
      %v770 = vadd.f32 0.0, %v769
      %v771 = vpop.f32.mrf.mxu0
      %772 = vdwg.mxu0
      %v774 = vsel %vm639, %v587, 0
      %v777 = vsel %vm639, %v595, 0
      %779 = vmatpush.bf16.xpose.msra.mxu0 0
      %780 = vmatpush.bf16.xpose.msra.mxu0 0
      %781 = vmatpush.bf16.xpose.msra.mxu0 0
      %782 = vmatpush.bf16.xpose.msra.mxu0 0
      %783 = vmatpush.bf16.xpose.msra.mxu0 0
      %784 = vmatpush.bf16.xpose.msra.mxu0 0
      %785 = vmatpush.bf16.xpose.msra.mxu0 0
      %786 = vmatpush.bf16.xpose.msra.mxu0 %v777
      %787 = vmatmul.bf16.gmra.mxu0 %v774
      %v788 = vpop.f32.mrf.mxu0
      %v789 = vadd.f32 0.0, %v788
      %v790 = vpop.f32.mrf.mxu0
      %791 = vdwg.mxu0
      %v793 = vsel %vm639, %v604, 0
      %v796 = vsel %vm639, %v612, 0
      %798 = vmatpush.bf16.xpose.msra.mxu0 0
      %799 = vmatpush.bf16.xpose.msra.mxu0 0
      %800 = vmatpush.bf16.xpose.msra.mxu0 0
      %801 = vmatpush.bf16.xpose.msra.mxu0 0
      %802 = vmatpush.bf16.xpose.msra.mxu0 0
      %803 = vmatpush.bf16.xpose.msra.mxu0 0
      %804 = vmatpush.bf16.xpose.msra.mxu0 0
      %805 = vmatpush.bf16.xpose.msra.mxu0 %v796
      %806 = vmatmul.bf16.gmra.mxu0 %v793
      %v807 = vpop.f32.mrf.mxu0
      %v808 = vadd.f32 0.0, %v807
      %v809 = vpop.f32.mrf.mxu0
      %810 = vdwg.mxu0
      %v812 = vsel %vm639, %v605, 0
      %v815 = vsel %vm639, %v613, 0
      %817 = vmatpush.bf16.xpose.msra.mxu0 0
      %818 = vmatpush.bf16.xpose.msra.mxu0 0
      %819 = vmatpush.bf16.xpose.msra.mxu0 0
      %820 = vmatpush.bf16.xpose.msra.mxu0 0
      %821 = vmatpush.bf16.xpose.msra.mxu0 0
      %822 = vmatpush.bf16.xpose.msra.mxu0 0
      %823 = vmatpush.bf16.xpose.msra.mxu0 0
      %824 = vmatpush.bf16.xpose.msra.mxu0 %v815
      %825 = vmatmul.bf16.gmra.mxu0 %v812
      %v826 = vpop.f32.mrf.mxu0
      %v827 = vadd.f32 0.0, %v826
      %v828 = vpop.f32.mrf.mxu0
      %829 = vdwg.mxu0
      %v831 = vsel %vm639, %v606, 0
      %v834 = vsel %vm639, %v614, 0
      %836 = vmatpush.bf16.xpose.msra.mxu0 0
      %837 = vmatpush.bf16.xpose.msra.mxu0 0
      %838 = vmatpush.bf16.xpose.msra.mxu0 0
      %839 = vmatpush.bf16.xpose.msra.mxu0 0
      %840 = vmatpush.bf16.xpose.msra.mxu0 0
      %841 = vmatpush.bf16.xpose.msra.mxu0 0
      %842 = vmatpush.bf16.xpose.msra.mxu0 0
      %843 = vmatpush.bf16.xpose.msra.mxu0 %v834
      %844 = vmatmul.bf16.gmra.mxu0 %v831
      %v845 = vpop.f32.mrf.mxu0
      %v846 = vadd.f32 0.0, %v845
      %v847 = vpop.f32.mrf.mxu0
      %848 = vdwg.mxu0
      %v850 = vsel %vm639, %v607, 0
      %v853 = vsel %vm639, %v615, 0
      %855 = vmatpush.bf16.xpose.msra.mxu0 0
      %856 = vmatpush.bf16.xpose.msra.mxu0 0
      %857 = vmatpush.bf16.xpose.msra.mxu0 0
      %858 = vmatpush.bf16.xpose.msra.mxu0 0
      %859 = vmatpush.bf16.xpose.msra.mxu0 0
      %860 = vmatpush.bf16.xpose.msra.mxu0 0
      %861 = vmatpush.bf16.xpose.msra.mxu0 0
      %862 = vmatpush.bf16.xpose.msra.mxu0 %v853
      %863 = vmatmul.bf16.gmra.mxu0 %v850
      %v864 = vpop.f32.mrf.mxu0
      %v865 = vadd.f32 0.0, %v864
      %v866 = vpop.f32.mrf.mxu0
      %867 = vdwg.mxu0
      %v869 = vsel %vm639, %v608, 0
      %v872 = vsel %vm639, %v616, 0
      %874 = vmatpush.bf16.xpose.msra.mxu0 0
      %875 = vmatpush.bf16.xpose.msra.mxu0 0
      %876 = vmatpush.bf16.xpose.msra.mxu0 0
      %877 = vmatpush.bf16.xpose.msra.mxu0 0
      %878 = vmatpush.bf16.xpose.msra.mxu0 0
      %879 = vmatpush.bf16.xpose.msra.mxu0 0
      %880 = vmatpush.bf16.xpose.msra.mxu0 0
      %881 = vmatpush.bf16.xpose.msra.mxu0 %v872
      %882 = vmatmul.bf16.gmra.mxu0 %v869
      %v883 = vpop.f32.mrf.mxu0
      %v884 = vadd.f32 0.0, %v883
      %v885 = vpop.f32.mrf.mxu0
      %886 = vdwg.mxu0
      %v888 = vsel %vm639, %v609, 0
      %v891 = vsel %vm639, %v617, 0
      %893 = vmatpush.bf16.xpose.msra.mxu0 0
      %894 = vmatpush.bf16.xpose.msra.mxu0 0
      %895 = vmatpush.bf16.xpose.msra.mxu0 0
      %896 = vmatpush.bf16.xpose.msra.mxu0 0
      %897 = vmatpush.bf16.xpose.msra.mxu0 0
      %898 = vmatpush.bf16.xpose.msra.mxu0 0
      %899 = vmatpush.bf16.xpose.msra.mxu0 0
      %900 = vmatpush.bf16.xpose.msra.mxu0 %v891
      %901 = vmatmul.bf16.gmra.mxu0 %v888
      %v902 = vpop.f32.mrf.mxu0
      %v903 = vadd.f32 0.0, %v902
      %v904 = vpop.f32.mrf.mxu0
      %905 = vdwg.mxu0
      %v907 = vsel %vm639, %v610, 0
      %v910 = vsel %vm639, %v618, 0
      %912 = vmatpush.bf16.xpose.msra.mxu0 0
      %913 = vmatpush.bf16.xpose.msra.mxu0 0
      %914 = vmatpush.bf16.xpose.msra.mxu0 0
      %915 = vmatpush.bf16.xpose.msra.mxu0 0
      %916 = vmatpush.bf16.xpose.msra.mxu0 0
      %917 = vmatpush.bf16.xpose.msra.mxu0 0
      %918 = vmatpush.bf16.xpose.msra.mxu0 0
      %919 = vmatpush.bf16.xpose.msra.mxu0 %v910
      %920 = vmatmul.bf16.gmra.mxu0 %v907
      %v921 = vpop.f32.mrf.mxu0
      %v922 = vadd.f32 0.0, %v921
      %v923 = vpop.f32.mrf.mxu0
      %924 = vdwg.mxu0
      %v926 = vsel %vm639, %v611, 0
      %v929 = vsel %vm639, %v619, 0
      %931 = vmatpush.bf16.xpose.msra.mxu0 0
      %932 = vmatpush.bf16.xpose.msra.mxu0 0
      %933 = vmatpush.bf16.xpose.msra.mxu0 0
      %934 = vmatpush.bf16.xpose.msra.mxu0 0
      %935 = vmatpush.bf16.xpose.msra.mxu0 0
      %936 = vmatpush.bf16.xpose.msra.mxu0 0
      %937 = vmatpush.bf16.xpose.msra.mxu0 0
      %938 = vmatpush.bf16.xpose.msra.mxu0 %v929
      %939 = vmatmul.bf16.gmra.mxu0 %v926
      %v940 = vpop.f32.mrf.mxu0
      %v941 = vadd.f32 0.0, %v940
      %v942 = vpop.f32.mrf.mxu0
      %943 = vdwg.mxu0
      %v944 = vlaneseq
      %v945 = vshrl.u32 %v944, 7
      %v946 = vlaneseq
      %v947 = vand.u32 %v946, 127
      %v948 = vstv %s579
      %v949 = vadd.s32 %v945, %v948
      %vm950 = vcmp.eq.s32.totalorder %v947, %v949
      %v951 = vsel %vm950, -inf, %v808
      %v952 = vsel %vm950, -inf, %v827
      %v953 = vsel %vm950, -inf, %v846
      %v954 = vsel %vm950, -inf, %v865
      %v955 = vsel %vm950, -inf, %v884
      %v956 = vsel %vm950, -inf, %v903
      %v957 = vsel %vm950, -inf, %v922
      %v958 = vsel %vm950, -inf, %v941
      %vm959 = vcmask 64512
      %v960 = vsel %vm959, %v656, -inf
      %961 = vmax.xlane.f32.xlu0 %v960
      %v962 = vpop.xlane.xlu0 %961
      %v963 = vsel %vm959, %v675, -inf
      %964 = vmax.xlane.f32.xlu0 %v963
      %v965 = vpop.xlane.xlu0 %964
      %v966 = vsel %vm959, %v694, -inf
      %967 = vmax.xlane.f32.xlu0 %v966
      %v968 = vpop.xlane.xlu0 %967
      %v969 = vsel %vm959, %v713, -inf
      %970 = vmax.xlane.f32.xlu0 %v969
      %v971 = vpop.xlane.xlu0 %970
      %v972 = vsel %vm959, %v732, -inf
      %973 = vmax.xlane.f32.xlu0 %v972
      %v974 = vpop.xlane.xlu0 %973
      %v975 = vsel %vm959, %v751, -inf
      %976 = vmax.xlane.f32.xlu0 %v975
      %v977 = vpop.xlane.xlu0 %976
      %v978 = vsel %vm959, %v770, -inf
      %979 = vmax.xlane.f32.xlu0 %v978
      %v980 = vpop.xlane.xlu0 %979
      %v981 = vsel %vm959, %v789, -inf
      %982 = vmax.xlane.f32.xlu0 %v981
      %v983 = vpop.xlane.xlu0 %982
      %v984 = vsel %vm959, %v951, -inf
      %985 = vmax.xlane.f32.xlu0 %v984
      %v986 = vpop.xlane.xlu0 %985
      %v987 = vsel %vm959, %v952, -inf
      %988 = vmax.xlane.f32.xlu0 %v987
      %v989 = vpop.xlane.xlu0 %988
      %v990 = vsel %vm959, %v953, -inf
      %991 = vmax.xlane.f32.xlu0 %v990
      %v992 = vpop.xlane.xlu0 %991
      %v993 = vsel %vm959, %v954, -inf
      %994 = vmax.xlane.f32.xlu0 %v993
      %v995 = vpop.xlane.xlu0 %994
      %v996 = vsel %vm959, %v955, -inf
      %997 = vmax.xlane.f32.xlu0 %v996
      %v998 = vpop.xlane.xlu0 %997
      %v999 = vsel %vm959, %v956, -inf
      %1000 = vmax.xlane.f32.xlu0 %v999
      %v1001 = vpop.xlane.xlu0 %1000
      %v1002 = vsel %vm959, %v957, -inf
      %1003 = vmax.xlane.f32.xlu0 %v1002
      %v1004 = vpop.xlane.xlu0 %1003
      %v1005 = vsel %vm959, %v958, -inf
      %1006 = vmax.xlane.f32.xlu0 %v1005
      %v1007 = vpop.xlane.xlu0 %1006
      %v1016 = vperm.slane %v986, %v947
      %v1017 = vperm.slane %v989, %v947
      %v1018 = vperm.slane %v992, %v947
      %v1019 = vperm.slane %v995, %v947
      %v1020 = vperm.slane %v998, %v947
      %v1021 = vperm.slane %v1001, %v947
      %v1022 = vperm.slane %v1004, %v947
      %v1023 = vperm.slane %v1007, %v947
      %vm1024 = vcmask 1041409
      %v1025 = vsel %vm1024, %v1017, %v1016
      %vm1026 = vcmask 1042434
      %v1027 = vsel %vm1026, %v1018, %v1025
      %vm1028 = vcmask 1043459
      %v1029 = vsel %vm1028, %v1019, %v1027
      %vm1030 = vcmask 1044484
      %v1031 = vsel %vm1030, %v1020, %v1029
      %vm1032 = vcmask 1045509
      %v1033 = vsel %vm1032, %v1021, %v1031
      %vm1034 = vcmask 1046534
      %v1035 = vsel %vm1034, %v1022, %v1033
      %vm1036 = vcmask 1047559
      %v1037 = vsel %vm1036, %v1023, %v1035
      %1039 = vxpose.xlu0.b32.start [1/16] %v1037, 128
      %1040 = vxpose.xlu0.b32.cont [2/16] 0.0, 128
      %1041 = vxpose.xlu0.b32.cont [3/16] 0.0, 128
      %1042 = vxpose.xlu0.b32.cont [4/16] 0.0, 128
      %1043 = vxpose.xlu0.b32.cont [5/16] 0.0, 128
      %1044 = vxpose.xlu0.b32.cont [6/16] 0.0, 128
      %1045 = vxpose.xlu0.b32.cont [7/16] 0.0, 128
      %1046 = vxpose.xlu0.b32.cont [8/16] 0.0, 128
      %1047 = vxpose.xlu0.b32.cont [9/16] 0.0, 128
      %1048 = vxpose.xlu0.b32.cont [10/16] 0.0, 128
      %1049 = vxpose.xlu0.b32.cont [11/16] 0.0, 128
      %1050 = vxpose.xlu0.b32.cont [12/16] 0.0, 128
      %1051 = vxpose.xlu0.b32.cont [13/16] 0.0, 128
      %1052 = vxpose.xlu0.b32.cont [14/16] 0.0, 128
      %1053 = vxpose.xlu0.b32.cont [15/16] 0.0, 128
      %1054 = vxpose.xlu0.b32.end [16/16] 0.0, 128
      %v1055 = vpop.trf.xlu0
      %v1056 = vpop.trf.xlu0
      %v1057 = vpop.trf.xlu0
      %v1058 = vpop.trf.xlu0
      %v1059 = vpop.trf.xlu0
      %v1060 = vpop.trf.xlu0
      %v1061 = vpop.trf.xlu0
      %v1062 = vpop.trf.xlu0
      %v1063 = vpop.trf.xlu0
      %v1064 = vpop.trf.xlu0
      %v1065 = vpop.trf.xlu0
      %v1066 = vpop.trf.xlu0
      %v1067 = vpop.trf.xlu0
      %v1068 = vpop.trf.xlu0
      %v1069 = vpop.trf.xlu0
      %v1070 = vpop.trf.xlu0
      %v1072 = vperm.slane %v1055, 0
      %v1073 = vlaneseq
      %v1074 = vshrl.u32 %v1073, 7
      %1076 = vset.pattern.permute.xlu0 %v1074
      %1077 = vperm.xlu0 %1076, %v1072
      %v1078 = vpop.permute.xlu0 %1077
      %v1079 = vperm.slane %v1055, 1
      %v1080 = vlaneseq
      %v1081 = vshrl.u32 %v1080, 7
      %1083 = vset.pattern.permute.xlu0 %v1081
      %1084 = vperm.xlu0 %1083, %v1079
      %v1085 = vpop.permute.xlu0 %1084
      %v1086 = vperm.slane %v1055, 2
      %v1087 = vlaneseq
      %v1088 = vshrl.u32 %v1087, 7
      %1090 = vset.pattern.permute.xlu0 %v1088
      %1091 = vperm.xlu0 %1090, %v1086
      %v1092 = vpop.permute.xlu0 %1091
      %v1093 = vperm.slane %v1055, 3
      %v1094 = vlaneseq
      %v1095 = vshrl.u32 %v1094, 7
      %1097 = vset.pattern.permute.xlu0 %v1095
      %1098 = vperm.xlu0 %1097, %v1093
      %v1099 = vpop.permute.xlu0 %1098
      %v1100 = vperm.slane %v1055, 4
      %v1101 = vlaneseq
      %v1102 = vshrl.u32 %v1101, 7
      %1104 = vset.pattern.permute.xlu0 %v1102
      %1105 = vperm.xlu0 %1104, %v1100
      %v1106 = vpop.permute.xlu0 %1105
      %v1107 = vperm.slane %v1055, 5
      %v1108 = vlaneseq
      %v1109 = vshrl.u32 %v1108, 7
      %1111 = vset.pattern.permute.xlu0 %v1109
      %1112 = vperm.xlu0 %1111, %v1107
      %v1113 = vpop.permute.xlu0 %1112
      %v1114 = vperm.slane %v1055, 6
      %v1115 = vlaneseq
      %v1116 = vshrl.u32 %v1115, 7
      %1118 = vset.pattern.permute.xlu0 %v1116
      %1119 = vperm.xlu0 %1118, %v1114
      %v1120 = vpop.permute.xlu0 %1119
      %v1121 = vperm.slane %v1055, 7
      %v1122 = vlaneseq
      %v1123 = vshrl.u32 %v1122, 7
      %1125 = vset.pattern.permute.xlu0 %v1123
      %1126 = vperm.xlu0 %1125, %v1121
      %v1127 = vpop.permute.xlu0 %1126
      %v1136 = vmax.f32 %v962, %v1078
      %v1137 = vmax.f32 %v965, %v1085
      %v1138 = vmax.f32 %v968, %v1092
      %v1139 = vmax.f32 %v971, %v1099
      %v1140 = vmax.f32 %v974, %v1106
      %v1141 = vmax.f32 %v977, %v1113
      %v1142 = vmax.f32 %v980, %v1120
      %v1143 = vmax.f32 %v983, %v1127
      %1152 = vset.pattern.permute.xlu0 0
      %1153 = vperm.xlu0 %1152, %v1136
      %v1154 = vpop.permute.xlu0 %1153
      %1155 = vset.pattern.permute.xlu0 0
      %1156 = vperm.xlu0 %1155, %v1137
      %v1157 = vpop.permute.xlu0 %1156
      %1158 = vset.pattern.permute.xlu0 0
      %1159 = vperm.xlu0 %1158, %v1138
      %v1160 = vpop.permute.xlu0 %1159
      %1161 = vset.pattern.permute.xlu0 0
      %1162 = vperm.xlu0 %1161, %v1139
      %v1163 = vpop.permute.xlu0 %1162
      %1164 = vset.pattern.permute.xlu0 0
      %1165 = vperm.xlu0 %1164, %v1140
      %v1166 = vpop.permute.xlu0 %1165
      %1167 = vset.pattern.permute.xlu0 0
      %1168 = vperm.xlu0 %1167, %v1141
      %v1169 = vpop.permute.xlu0 %1168
      %1170 = vset.pattern.permute.xlu0 0
      %1171 = vperm.xlu0 %1170, %v1142
      %v1172 = vpop.permute.xlu0 %1171
      %1173 = vset.pattern.permute.xlu0 0
      %1174 = vperm.xlu0 %1173, %v1143
      %v1175 = vpop.permute.xlu0 %1174
      %v1176 = vperm.slane %v1154, %v947
      %v1177 = vperm.slane %v1157, %v947
      %v1178 = vperm.slane %v1160, %v947
      %v1179 = vperm.slane %v1163, %v947
      %v1180 = vperm.slane %v1166, %v947
      %v1181 = vperm.slane %v1169, %v947
      %v1182 = vperm.slane %v1172, %v947
      %v1183 = vperm.slane %v1175, %v947
      %v1184 = vsel %vm1024, %v1177, %v1176
      %v1185 = vsel %vm1026, %v1178, %v1184
      %v1186 = vsel %vm1028, %v1179, %v1185
      %v1187 = vsel %vm1030, %v1180, %v1186
      %v1188 = vsel %vm1032, %v1181, %v1187
      %v1189 = vsel %vm1034, %v1182, %v1188
      %v1190 = vsel %vm1036, %v1183, %v1189
      %1192 = vxpose.xlu0.b32.start [1/16] %v1190, 128
      %1193 = vxpose.xlu0.b32.cont [2/16] 0.0, 128
      %1194 = vxpose.xlu0.b32.cont [3/16] 0.0, 128
      %1195 = vxpose.xlu0.b32.cont [4/16] 0.0, 128
      %1196 = vxpose.xlu0.b32.cont [5/16] 0.0, 128
      %1197 = vxpose.xlu0.b32.cont [6/16] 0.0, 128
      %1198 = vxpose.xlu0.b32.cont [7/16] 0.0, 128
      %1199 = vxpose.xlu0.b32.cont [8/16] 0.0, 128
      %1200 = vxpose.xlu0.b32.cont [9/16] 0.0, 128
      %1201 = vxpose.xlu0.b32.cont [10/16] 0.0, 128
      %1202 = vxpose.xlu0.b32.cont [11/16] 0.0, 128
      %1203 = vxpose.xlu0.b32.cont [12/16] 0.0, 128
      %1204 = vxpose.xlu0.b32.cont [13/16] 0.0, 128
      %1205 = vxpose.xlu0.b32.cont [14/16] 0.0, 128
      %1206 = vxpose.xlu0.b32.cont [15/16] 0.0, 128
      %1207 = vxpose.xlu0.b32.end [16/16] 0.0, 128
      %v1208 = vpop.trf.xlu0
      %v1209 = vpop.trf.xlu0
      %v1210 = vpop.trf.xlu0
      %v1211 = vpop.trf.xlu0
      %v1212 = vpop.trf.xlu0
      %v1213 = vpop.trf.xlu0
      %v1214 = vpop.trf.xlu0
      %v1215 = vpop.trf.xlu0
      %v1216 = vpop.trf.xlu0
      %v1217 = vpop.trf.xlu0
      %v1218 = vpop.trf.xlu0
      %v1219 = vpop.trf.xlu0
      %v1220 = vpop.trf.xlu0
      %v1221 = vpop.trf.xlu0
      %v1222 = vpop.trf.xlu0
      %v1223 = vpop.trf.xlu0
      %v1232 = vsub.f32 %v656, %v1154
      %v1233 = vsub.f32 %v675, %v1157
      %v1234 = vsub.f32 %v694, %v1160
      %v1235 = vsub.f32 %v713, %v1163
      %v1236 = vsub.f32 %v732, %v1166
      %v1237 = vsub.f32 %v751, %v1169
      %v1238 = vsub.f32 %v770, %v1172
      %v1239 = vsub.f32 %v789, %v1175
      %v1240 = vmul.f32 %v1232, 1.442695
      %v1241 = vpow.pop %v1240
      %v1242 = vmul.f32 %v1233, 1.442695
      %v1243 = vpow.pop %v1242
      %v1244 = vmul.f32 %v1234, 1.442695
      %v1245 = vpow.pop %v1244
      %v1246 = vmul.f32 %v1235, 1.442695
      %v1247 = vpow.pop %v1246
      %v1248 = vmul.f32 %v1236, 1.442695
      %v1249 = vpow.pop %v1248
      %v1250 = vmul.f32 %v1237, 1.442695
      %v1251 = vpow.pop %v1250
      %v1252 = vmul.f32 %v1238, 1.442695
      %v1253 = vpow.pop %v1252
      %v1254 = vmul.f32 %v1239, 1.442695
      %v1255 = vpow.pop %v1254
      %v1256 = vperm.slane %v1208, 0
      %v1257 = vlaneseq
      %v1258 = vshrl.u32 %v1257, 7
      %1260 = vset.pattern.permute.xlu0 %v1258
      %1261 = vperm.xlu0 %1260, %v1256
      %v1262 = vpop.permute.xlu0 %1261
      %v1263 = vperm.slane %v1208, 1
      %v1264 = vlaneseq
      %v1265 = vshrl.u32 %v1264, 7
      %1267 = vset.pattern.permute.xlu0 %v1265
      %1268 = vperm.xlu0 %1267, %v1263
      %v1269 = vpop.permute.xlu0 %1268
      %v1270 = vperm.slane %v1208, 2
      %v1271 = vlaneseq
      %v1272 = vshrl.u32 %v1271, 7
      %1274 = vset.pattern.permute.xlu0 %v1272
      %1275 = vperm.xlu0 %1274, %v1270
      %v1276 = vpop.permute.xlu0 %1275
      %v1277 = vperm.slane %v1208, 3
      %v1278 = vlaneseq
      %v1279 = vshrl.u32 %v1278, 7
      %1281 = vset.pattern.permute.xlu0 %v1279
      %1282 = vperm.xlu0 %1281, %v1277
      %v1283 = vpop.permute.xlu0 %1282
      %v1284 = vperm.slane %v1208, 4
      %v1285 = vlaneseq
      %v1286 = vshrl.u32 %v1285, 7
      %1288 = vset.pattern.permute.xlu0 %v1286
      %1289 = vperm.xlu0 %1288, %v1284
      %v1290 = vpop.permute.xlu0 %1289
      %v1291 = vperm.slane %v1208, 5
      %v1292 = vlaneseq
      %v1293 = vshrl.u32 %v1292, 7
      %1295 = vset.pattern.permute.xlu0 %v1293
      %1296 = vperm.xlu0 %1295, %v1291
      %v1297 = vpop.permute.xlu0 %1296
      %v1298 = vperm.slane %v1208, 6
      %v1299 = vlaneseq
      %v1300 = vshrl.u32 %v1299, 7
      %1302 = vset.pattern.permute.xlu0 %v1300
      %1303 = vperm.xlu0 %1302, %v1298
      %v1304 = vpop.permute.xlu0 %1303
      %v1305 = vperm.slane %v1208, 7
      %v1306 = vlaneseq
      %v1307 = vshrl.u32 %v1306, 7
      %1309 = vset.pattern.permute.xlu0 %v1307
      %1310 = vperm.xlu0 %1309, %v1305
      %v1311 = vpop.permute.xlu0 %1310
      %v1312 = vsub.f32 %v951, %v1262
      %v1313 = vsub.f32 %v952, %v1269
      %v1314 = vsub.f32 %v953, %v1276
      %v1315 = vsub.f32 %v954, %v1283
      %v1316 = vsub.f32 %v955, %v1290
      %v1317 = vsub.f32 %v956, %v1297
      %v1318 = vsub.f32 %v957, %v1304
      %v1319 = vsub.f32 %v958, %v1311
      %v1320 = vmul.f32 %v1312, 1.442695
      %v1321 = vpow.pop %v1320
      %v1322 = vmul.f32 %v1313, 1.442695
      %v1323 = vpow.pop %v1322
      %v1324 = vmul.f32 %v1314, 1.442695
      %v1325 = vpow.pop %v1324
      %v1326 = vmul.f32 %v1315, 1.442695
      %v1327 = vpow.pop %v1326
      %v1328 = vmul.f32 %v1316, 1.442695
      %v1329 = vpow.pop %v1328
      %v1330 = vmul.f32 %v1317, 1.442695
      %v1331 = vpow.pop %v1330
      %v1332 = vmul.f32 %v1318, 1.442695
      %v1333 = vpow.pop %v1332
      %v1334 = vmul.f32 %v1319, 1.442695
      %v1335 = vpow.pop %v1334
      %v1336 = vsel %vm959, %v1241, 0.0
      %1337 = vadd.xlane.f32.xlu0 %v1336
      %v1338 = vpop.xlane.xlu0 %1337
      %v1339 = vsel %vm959, %v1243, 0.0
      %1340 = vadd.xlane.f32.xlu0 %v1339
      %v1341 = vpop.xlane.xlu0 %1340
      %v1342 = vsel %vm959, %v1245, 0.0
      %1343 = vadd.xlane.f32.xlu0 %v1342
      %v1344 = vpop.xlane.xlu0 %1343
      %v1345 = vsel %vm959, %v1247, 0.0
      %1346 = vadd.xlane.f32.xlu0 %v1345
      %v1347 = vpop.xlane.xlu0 %1346
      %v1348 = vsel %vm959, %v1249, 0.0
      %1349 = vadd.xlane.f32.xlu0 %v1348
      %v1350 = vpop.xlane.xlu0 %1349
      %v1351 = vsel %vm959, %v1251, 0.0
      %1352 = vadd.xlane.f32.xlu0 %v1351
      %v1353 = vpop.xlane.xlu0 %1352
      %v1354 = vsel %vm959, %v1253, 0.0
      %1355 = vadd.xlane.f32.xlu0 %v1354
      %v1356 = vpop.xlane.xlu0 %1355
      %v1357 = vsel %vm959, %v1255, 0.0
      %1358 = vadd.xlane.f32.xlu0 %v1357
      %v1359 = vpop.xlane.xlu0 %1358
      %v1360 = vsel %vm959, %v1321, 0.0
      %1361 = vadd.xlane.f32.xlu0 %v1360
      %v1362 = vpop.xlane.xlu0 %1361
      %v1363 = vsel %vm959, %v1323, 0.0
      %1364 = vadd.xlane.f32.xlu0 %v1363
      %v1365 = vpop.xlane.xlu0 %1364
      %v1366 = vsel %vm959, %v1325, 0.0
      %1367 = vadd.xlane.f32.xlu0 %v1366
      %v1368 = vpop.xlane.xlu0 %1367
      %v1369 = vsel %vm959, %v1327, 0.0
      %1370 = vadd.xlane.f32.xlu0 %v1369
      %v1371 = vpop.xlane.xlu0 %1370
      %v1372 = vsel %vm959, %v1329, 0.0
      %1373 = vadd.xlane.f32.xlu0 %v1372
      %v1374 = vpop.xlane.xlu0 %1373
      %v1375 = vsel %vm959, %v1331, 0.0
      %1376 = vadd.xlane.f32.xlu0 %v1375
      %v1377 = vpop.xlane.xlu0 %1376
      %v1378 = vsel %vm959, %v1333, 0.0
      %1379 = vadd.xlane.f32.xlu0 %v1378
      %v1380 = vpop.xlane.xlu0 %1379
      %v1381 = vsel %vm959, %v1335, 0.0
      %1382 = vadd.xlane.f32.xlu0 %v1381
      %v1383 = vpop.xlane.xlu0 %1382
      %v1392 = vperm.slane %v1362, %v947
      %v1393 = vperm.slane %v1365, %v947
      %v1394 = vperm.slane %v1368, %v947
      %v1395 = vperm.slane %v1371, %v947
      %v1396 = vperm.slane %v1374, %v947
      %v1397 = vperm.slane %v1377, %v947
      %v1398 = vperm.slane %v1380, %v947
      %v1399 = vperm.slane %v1383, %v947
      %v1400 = vsel %vm1024, %v1393, %v1392
      %v1401 = vsel %vm1026, %v1394, %v1400
      %v1402 = vsel %vm1028, %v1395, %v1401
      %v1403 = vsel %vm1030, %v1396, %v1402
      %v1404 = vsel %vm1032, %v1397, %v1403
      %v1405 = vsel %vm1034, %v1398, %v1404
      %v1406 = vsel %vm1036, %v1399, %v1405
      %1408 = vxpose.xlu0.b32.start [1/16] %v1406, 128
      %1409 = vxpose.xlu0.b32.cont [2/16] 0.0, 128
      %1410 = vxpose.xlu0.b32.cont [3/16] 0.0, 128
      %1411 = vxpose.xlu0.b32.cont [4/16] 0.0, 128
      %1412 = vxpose.xlu0.b32.cont [5/16] 0.0, 128
      %1413 = vxpose.xlu0.b32.cont [6/16] 0.0, 128
      %1414 = vxpose.xlu0.b32.cont [7/16] 0.0, 128
      %1415 = vxpose.xlu0.b32.cont [8/16] 0.0, 128
      %1416 = vxpose.xlu0.b32.cont [9/16] 0.0, 128
      %1417 = vxpose.xlu0.b32.cont [10/16] 0.0, 128
      %1418 = vxpose.xlu0.b32.cont [11/16] 0.0, 128
      %1419 = vxpose.xlu0.b32.cont [12/16] 0.0, 128
      %1420 = vxpose.xlu0.b32.cont [13/16] 0.0, 128
      %1421 = vxpose.xlu0.b32.cont [14/16] 0.0, 128
      %1422 = vxpose.xlu0.b32.cont [15/16] 0.0, 128
      %1423 = vxpose.xlu0.b32.end [16/16] 0.0, 128
      %v1424 = vpop.trf.xlu0
      %v1425 = vpop.trf.xlu0
      %v1426 = vpop.trf.xlu0
      %v1427 = vpop.trf.xlu0
      %v1428 = vpop.trf.xlu0
      %v1429 = vpop.trf.xlu0
      %v1430 = vpop.trf.xlu0
      %v1431 = vpop.trf.xlu0
      %v1432 = vpop.trf.xlu0
      %v1433 = vpop.trf.xlu0
      %v1434 = vpop.trf.xlu0
      %v1435 = vpop.trf.xlu0
      %v1436 = vpop.trf.xlu0
      %v1437 = vpop.trf.xlu0
      %v1438 = vpop.trf.xlu0
      %v1439 = vpop.trf.xlu0
      %v1441 = vperm.slane %v1424, 0
      %v1442 = vlaneseq
      %v1443 = vshrl.u32 %v1442, 7
      %1445 = vset.pattern.permute.xlu0 %v1443
      %1446 = vperm.xlu0 %1445, %v1441
      %v1447 = vpop.permute.xlu0 %1446
      %v1448 = vperm.slane %v1424, 1
      %v1449 = vlaneseq
      %v1450 = vshrl.u32 %v1449, 7
      %1452 = vset.pattern.permute.xlu0 %v1450
      %1453 = vperm.xlu0 %1452, %v1448
      %v1454 = vpop.permute.xlu0 %1453
      %v1455 = vperm.slane %v1424, 2
      %v1456 = vlaneseq
      %v1457 = vshrl.u32 %v1456, 7
      %1459 = vset.pattern.permute.xlu0 %v1457
      %1460 = vperm.xlu0 %1459, %v1455
      %v1461 = vpop.permute.xlu0 %1460
      %v1462 = vperm.slane %v1424, 3
      %v1463 = vlaneseq
      %v1464 = vshrl.u32 %v1463, 7
      %1466 = vset.pattern.permute.xlu0 %v1464
      %1467 = vperm.xlu0 %1466, %v1462
      %v1468 = vpop.permute.xlu0 %1467
      %v1469 = vperm.slane %v1424, 4
      %v1470 = vlaneseq
      %v1471 = vshrl.u32 %v1470, 7
      %1473 = vset.pattern.permute.xlu0 %v1471
      %1474 = vperm.xlu0 %1473, %v1469
      %v1475 = vpop.permute.xlu0 %1474
      %v1476 = vperm.slane %v1424, 5
      %v1477 = vlaneseq
      %v1478 = vshrl.u32 %v1477, 7
      %1480 = vset.pattern.permute.xlu0 %v1478
      %1481 = vperm.xlu0 %1480, %v1476
      %v1482 = vpop.permute.xlu0 %1481
      %v1483 = vperm.slane %v1424, 6
      %v1484 = vlaneseq
      %v1485 = vshrl.u32 %v1484, 7
      %1487 = vset.pattern.permute.xlu0 %v1485
      %1488 = vperm.xlu0 %1487, %v1483
      %v1489 = vpop.permute.xlu0 %1488
      %v1490 = vperm.slane %v1424, 7
      %v1491 = vlaneseq
      %v1492 = vshrl.u32 %v1491, 7
      %1494 = vset.pattern.permute.xlu0 %v1492
      %1495 = vperm.xlu0 %1494, %v1490
      %v1496 = vpop.permute.xlu0 %1495
      %v1505 = vadd.f32 %v1338, %v1447
      %v1506 = vadd.f32 %v1341, %v1454
      %v1507 = vadd.f32 %v1344, %v1461
      %v1508 = vadd.f32 %v1347, %v1468
      %v1509 = vadd.f32 %v1350, %v1475
      %v1510 = vadd.f32 %v1353, %v1482
      %v1511 = vadd.f32 %v1356, %v1489
      %v1512 = vadd.f32 %v1359, %v1496
      %v1513 = vrcp.pop %v1505
      %v1514 = vrcp.pop %v1506
      %v1515 = vrcp.pop %v1507
      %v1516 = vrcp.pop %v1508
      %v1517 = vrcp.pop %v1509
      %v1518 = vrcp.pop %v1510
      %v1519 = vrcp.pop %v1511
      %v1520 = vrcp.pop %v1512
      %1522 = vset.pattern.permute.xlu0 0
      %1523 = vperm.xlu0 %1522, %v1513
      %v1524 = vpop.permute.xlu0 %1523
      %1527 = vset.pattern.permute.xlu0 0
      %1528 = vperm.xlu0 %1527, %v1514
      %v1529 = vpop.permute.xlu0 %1528
      %1532 = vset.pattern.permute.xlu0 0
      %1533 = vperm.xlu0 %1532, %v1515
      %v1534 = vpop.permute.xlu0 %1533
      %1537 = vset.pattern.permute.xlu0 0
      %1538 = vperm.xlu0 %1537, %v1516
      %v1539 = vpop.permute.xlu0 %1538
      %1542 = vset.pattern.permute.xlu0 0
      %1543 = vperm.xlu0 %1542, %v1517
      %v1544 = vpop.permute.xlu0 %1543
      %1547 = vset.pattern.permute.xlu0 0
      %1548 = vperm.xlu0 %1547, %v1518
      %v1549 = vpop.permute.xlu0 %1548
      %1552 = vset.pattern.permute.xlu0 0
      %1553 = vperm.xlu0 %1552, %v1519
      %v1554 = vpop.permute.xlu0 %1553
      %1557 = vset.pattern.permute.xlu0 0
      %1558 = vperm.xlu0 %1557, %v1520
      %v1559 = vpop.permute.xlu0 %1558
      %v1561 = vmul.f32 %v1241, %v1524
      %v1562 = vmul.f32 %v1243, %v1529
      %v1563 = vmul.f32 %v1245, %v1534
      %v1564 = vmul.f32 %v1247, %v1539
      %v1565 = vmul.f32 %v1249, %v1544
      %v1566 = vmul.f32 %v1251, %v1549
      %v1567 = vmul.f32 %v1253, %v1554
      %v1568 = vmul.f32 %v1255, %v1559
      %v1569 = vpack.c.bf16 %v1561, %v1561
      %v1570 = vpack.c.bf16 %v1562, %v1562
      %v1571 = vpack.c.bf16 %v1563, %v1563
      %v1572 = vpack.c.bf16 %v1564, %v1564
      %v1573 = vpack.c.bf16 %v1565, %v1565
      %v1574 = vpack.c.bf16 %v1566, %v1566
      %v1575 = vpack.c.bf16 %v1567, %v1567
      %v1576 = vpack.c.bf16 %v1568, %v1568
      %v1577 = vperm.slane %v1524, %v947
      %v1578 = vperm.slane %v1529, %v947
      %v1579 = vperm.slane %v1534, %v947
      %v1580 = vperm.slane %v1539, %v947
      %v1581 = vperm.slane %v1544, %v947
      %v1582 = vperm.slane %v1549, %v947
      %v1583 = vperm.slane %v1554, %v947
      %v1584 = vperm.slane %v1559, %v947
      %v1585 = vsel %vm1024, %v1578, %v1577
      %v1586 = vsel %vm1026, %v1579, %v1585
      %v1587 = vsel %vm1028, %v1580, %v1586
      %v1588 = vsel %vm1030, %v1581, %v1587
      %v1589 = vsel %vm1032, %v1582, %v1588
      %v1590 = vsel %vm1034, %v1583, %v1589
      %v1591 = vsel %vm1036, %v1584, %v1590
      %1593 = vxpose.xlu0.b32.start [1/16] %v1591, 128
      %1594 = vxpose.xlu0.b32.cont [2/16] 0.0, 128
      %1595 = vxpose.xlu0.b32.cont [3/16] 0.0, 128
      %1596 = vxpose.xlu0.b32.cont [4/16] 0.0, 128
      %1597 = vxpose.xlu0.b32.cont [5/16] 0.0, 128
      %1598 = vxpose.xlu0.b32.cont [6/16] 0.0, 128
      %1599 = vxpose.xlu0.b32.cont [7/16] 0.0, 128
      %1600 = vxpose.xlu0.b32.cont [8/16] 0.0, 128
      %1601 = vxpose.xlu0.b32.cont [9/16] 0.0, 128
      %1602 = vxpose.xlu0.b32.cont [10/16] 0.0, 128
      %1603 = vxpose.xlu0.b32.cont [11/16] 0.0, 128
      %1604 = vxpose.xlu0.b32.cont [12/16] 0.0, 128
      %1605 = vxpose.xlu0.b32.cont [13/16] 0.0, 128
      %1606 = vxpose.xlu0.b32.cont [14/16] 0.0, 128
      %1607 = vxpose.xlu0.b32.cont [15/16] 0.0, 128
      %1608 = vxpose.xlu0.b32.end [16/16] 0.0, 128
      %v1609 = vpop.trf.xlu0
      %v1610 = vpop.trf.xlu0
      %v1611 = vpop.trf.xlu0
      %v1612 = vpop.trf.xlu0
      %v1613 = vpop.trf.xlu0
      %v1614 = vpop.trf.xlu0
      %v1615 = vpop.trf.xlu0
      %v1616 = vpop.trf.xlu0
      %v1617 = vpop.trf.xlu0
      %v1618 = vpop.trf.xlu0
      %v1619 = vpop.trf.xlu0
      %v1620 = vpop.trf.xlu0
      %v1621 = vpop.trf.xlu0
      %v1622 = vpop.trf.xlu0
      %v1623 = vpop.trf.xlu0
      %v1624 = vpop.trf.xlu0
      %v1625 = vperm.slane %v1609, 0
      %v1626 = vlaneseq
      %v1627 = vshrl.u32 %v1626, 7
      %1629 = vset.pattern.permute.xlu0 %v1627
      %1630 = vperm.xlu0 %1629, %v1625
      %v1631 = vpop.permute.xlu0 %1630
      %v1632 = vperm.slane %v1609, 1
      %v1633 = vlaneseq
      %v1634 = vshrl.u32 %v1633, 7
      %1636 = vset.pattern.permute.xlu0 %v1634
      %1637 = vperm.xlu0 %1636, %v1632
      %v1638 = vpop.permute.xlu0 %1637
      %v1639 = vperm.slane %v1609, 2
      %v1640 = vlaneseq
      %v1641 = vshrl.u32 %v1640, 7
      %1643 = vset.pattern.permute.xlu0 %v1641
      %1644 = vperm.xlu0 %1643, %v1639
      %v1645 = vpop.permute.xlu0 %1644
      %v1646 = vperm.slane %v1609, 3
      %v1647 = vlaneseq
      %v1648 = vshrl.u32 %v1647, 7
      %1650 = vset.pattern.permute.xlu0 %v1648
      %1651 = vperm.xlu0 %1650, %v1646
      %v1652 = vpop.permute.xlu0 %1651
      %v1653 = vperm.slane %v1609, 4
      %v1654 = vlaneseq
      %v1655 = vshrl.u32 %v1654, 7
      %1657 = vset.pattern.permute.xlu0 %v1655
      %1658 = vperm.xlu0 %1657, %v1653
      %v1659 = vpop.permute.xlu0 %1658
      %v1660 = vperm.slane %v1609, 5
      %v1661 = vlaneseq
      %v1662 = vshrl.u32 %v1661, 7
      %1664 = vset.pattern.permute.xlu0 %v1662
      %1665 = vperm.xlu0 %1664, %v1660
      %v1666 = vpop.permute.xlu0 %1665
      %v1667 = vperm.slane %v1609, 6
      %v1668 = vlaneseq
      %v1669 = vshrl.u32 %v1668, 7
      %1671 = vset.pattern.permute.xlu0 %v1669
      %1672 = vperm.xlu0 %1671, %v1667
      %v1673 = vpop.permute.xlu0 %1672
      %v1674 = vperm.slane %v1609, 7
      %v1675 = vlaneseq
      %v1676 = vshrl.u32 %v1675, 7
      %1678 = vset.pattern.permute.xlu0 %v1676
      %1679 = vperm.xlu0 %1678, %v1674
      %v1680 = vpop.permute.xlu0 %1679
      %v1681 = vmul.f32 %v1321, %v1631
      %v1682 = vmul.f32 %v1323, %v1638
      %v1683 = vmul.f32 %v1325, %v1645
      %v1684 = vmul.f32 %v1327, %v1652
      %v1685 = vmul.f32 %v1329, %v1659
      %v1686 = vmul.f32 %v1331, %v1666
      %v1687 = vmul.f32 %v1333, %v1673
      %v1688 = vmul.f32 %v1335, %v1680
      %v1689 = vpack.c.bf16 %v1681, %v1681
      %v1690 = vpack.c.bf16 %v1682, %v1682
      %v1691 = vpack.c.bf16 %v1683, %v1683
      %v1692 = vpack.c.bf16 %v1684, %v1684
      %v1693 = vpack.c.bf16 %v1685, %v1685
      %v1694 = vpack.c.bf16 %v1686, %v1686
      %v1695 = vpack.c.bf16 %v1687, %v1687
      %v1696 = vpack.c.bf16 %v1688, %v1688
      %v1698 = vsel %vm959, %v1689, 0
      %vm1700 = vcmask 1043456
      %v1702 = vsel %vm1700, %v620, 0
      %1704 = vmatpush.bf16.msra.mxu0 0
      %1705 = vmatpush.bf16.msra.mxu0 0
      %1706 = vmatpush.bf16.msra.mxu0 0
      %1707 = vmatpush.bf16.msra.mxu0 0
      %1708 = vmatpush.bf16.msra.mxu0 0
      %1709 = vmatpush.bf16.msra.mxu0 0
      %1710 = vmatpush.bf16.msra.mxu0 0
      %1711 = vmatpush.bf16.msra.mxu0 %v1702
      %1712 = vmatmul.bf16.gmra.mxu0 %v1698
      %v1713 = vpop.f32.mrf.mxu0
      %v1714 = vadd.f32 0.0, %v1713
      %v1715 = vpop.f32.mrf.mxu0
      %1716 = vdwg.mxu0
      %v1718 = vsel %vm959, %v1690, 0
      %v1721 = vsel %vm1700, %v621, 0
      %1723 = vmatpush.bf16.msra.mxu0 0
      %1724 = vmatpush.bf16.msra.mxu0 0
      %1725 = vmatpush.bf16.msra.mxu0 0
      %1726 = vmatpush.bf16.msra.mxu0 0
      %1727 = vmatpush.bf16.msra.mxu0 0
      %1728 = vmatpush.bf16.msra.mxu0 0
      %1729 = vmatpush.bf16.msra.mxu0 0
      %1730 = vmatpush.bf16.msra.mxu0 %v1721
      %1731 = vmatmul.bf16.gmra.mxu0 %v1718
      %v1732 = vpop.f32.mrf.mxu0
      %v1733 = vadd.f32 0.0, %v1732
      %v1734 = vpop.f32.mrf.mxu0
      %1735 = vdwg.mxu0
      %v1737 = vsel %vm959, %v1691, 0
      %v1740 = vsel %vm1700, %v622, 0
      %1742 = vmatpush.bf16.msra.mxu0 0
      %1743 = vmatpush.bf16.msra.mxu0 0
      %1744 = vmatpush.bf16.msra.mxu0 0
      %1745 = vmatpush.bf16.msra.mxu0 0
      %1746 = vmatpush.bf16.msra.mxu0 0
      %1747 = vmatpush.bf16.msra.mxu0 0
      %1748 = vmatpush.bf16.msra.mxu0 0
      %1749 = vmatpush.bf16.msra.mxu0 %v1740
      %1750 = vmatmul.bf16.gmra.mxu0 %v1737
      %v1751 = vpop.f32.mrf.mxu0
      %v1752 = vadd.f32 0.0, %v1751
      %v1753 = vpop.f32.mrf.mxu0
      %1754 = vdwg.mxu0
      %v1756 = vsel %vm959, %v1692, 0
      %v1759 = vsel %vm1700, %v623, 0
      %1761 = vmatpush.bf16.msra.mxu0 0
      %1762 = vmatpush.bf16.msra.mxu0 0
      %1763 = vmatpush.bf16.msra.mxu0 0
      %1764 = vmatpush.bf16.msra.mxu0 0
      %1765 = vmatpush.bf16.msra.mxu0 0
      %1766 = vmatpush.bf16.msra.mxu0 0
      %1767 = vmatpush.bf16.msra.mxu0 0
      %1768 = vmatpush.bf16.msra.mxu0 %v1759
      %1769 = vmatmul.bf16.gmra.mxu0 %v1756
      %v1770 = vpop.f32.mrf.mxu0
      %v1771 = vadd.f32 0.0, %v1770
      %v1772 = vpop.f32.mrf.mxu0
      %1773 = vdwg.mxu0
      %v1775 = vsel %vm959, %v1693, 0
      %v1778 = vsel %vm1700, %v624, 0
      %1780 = vmatpush.bf16.msra.mxu0 0
      %1781 = vmatpush.bf16.msra.mxu0 0
      %1782 = vmatpush.bf16.msra.mxu0 0
      %1783 = vmatpush.bf16.msra.mxu0 0
      %1784 = vmatpush.bf16.msra.mxu0 0
      %1785 = vmatpush.bf16.msra.mxu0 0
      %1786 = vmatpush.bf16.msra.mxu0 0
      %1787 = vmatpush.bf16.msra.mxu0 %v1778
      %1788 = vmatmul.bf16.gmra.mxu0 %v1775
      %v1789 = vpop.f32.mrf.mxu0
      %v1790 = vadd.f32 0.0, %v1789
      %v1791 = vpop.f32.mrf.mxu0
      %1792 = vdwg.mxu0
      %v1794 = vsel %vm959, %v1694, 0
      %v1797 = vsel %vm1700, %v625, 0
      %1799 = vmatpush.bf16.msra.mxu0 0
      %1800 = vmatpush.bf16.msra.mxu0 0
      %1801 = vmatpush.bf16.msra.mxu0 0
      %1802 = vmatpush.bf16.msra.mxu0 0
      %1803 = vmatpush.bf16.msra.mxu0 0
      %1804 = vmatpush.bf16.msra.mxu0 0
      %1805 = vmatpush.bf16.msra.mxu0 0
      %1806 = vmatpush.bf16.msra.mxu0 %v1797
      %1807 = vmatmul.bf16.gmra.mxu0 %v1794
      %v1808 = vpop.f32.mrf.mxu0
      %v1809 = vadd.f32 0.0, %v1808
      %v1810 = vpop.f32.mrf.mxu0
      %1811 = vdwg.mxu0
      %v1813 = vsel %vm959, %v1695, 0
      %v1816 = vsel %vm1700, %v626, 0
      %1818 = vmatpush.bf16.msra.mxu0 0
      %1819 = vmatpush.bf16.msra.mxu0 0
      %1820 = vmatpush.bf16.msra.mxu0 0
      %1821 = vmatpush.bf16.msra.mxu0 0
      %1822 = vmatpush.bf16.msra.mxu0 0
      %1823 = vmatpush.bf16.msra.mxu0 0
      %1824 = vmatpush.bf16.msra.mxu0 0
      %1825 = vmatpush.bf16.msra.mxu0 %v1816
      %1826 = vmatmul.bf16.gmra.mxu0 %v1813
      %v1827 = vpop.f32.mrf.mxu0
      %v1828 = vadd.f32 0.0, %v1827
      %v1829 = vpop.f32.mrf.mxu0
      %1830 = vdwg.mxu0
      %v1832 = vsel %vm959, %v1696, 0
      %v1835 = vsel %vm1700, %v627, 0
      %1837 = vmatpush.bf16.msra.mxu0 0
      %1838 = vmatpush.bf16.msra.mxu0 0
      %1839 = vmatpush.bf16.msra.mxu0 0
      %1840 = vmatpush.bf16.msra.mxu0 0
      %1841 = vmatpush.bf16.msra.mxu0 0
      %1842 = vmatpush.bf16.msra.mxu0 0
      %1843 = vmatpush.bf16.msra.mxu0 0
      %1844 = vmatpush.bf16.msra.mxu0 %v1835
      %1845 = vmatmul.bf16.gmra.mxu0 %v1832
      %v1846 = vpop.f32.mrf.mxu0
      %v1847 = vadd.f32 0.0, %v1846
      %v1848 = vpop.f32.mrf.mxu0
      %1849 = vdwg.mxu0
      %v1858 = vrot.slane %v1714, 1
      %v1859 = vrot.slane %v1733, 1
      %v1860 = vrot.slane %v1752, 1
      %v1861 = vrot.slane %v1771, 1
      %v1862 = vrot.slane %v1790, 1
      %v1863 = vrot.slane %v1809, 1
      %v1864 = vrot.slane %v1828, 1
      %v1865 = vrot.slane %v1847, 1
      %v1866 = vrot.slane %v1714, 2
      %v1867 = vrot.slane %v1733, 2
      %v1868 = vrot.slane %v1752, 2
      %v1869 = vrot.slane %v1771, 2
      %v1870 = vrot.slane %v1790, 2
      %v1871 = vrot.slane %v1809, 2
      %v1872 = vrot.slane %v1828, 2
      %v1873 = vrot.slane %v1847, 2
      %v1874 = vrot.slane %v1714, 3
      %v1875 = vrot.slane %v1733, 3
      %v1876 = vrot.slane %v1752, 3
      %v1877 = vrot.slane %v1771, 3
      %v1878 = vrot.slane %v1790, 3
      %v1879 = vrot.slane %v1809, 3
      %v1880 = vrot.slane %v1828, 3
      %v1881 = vrot.slane %v1847, 3
      %v1882 = vrot.slane %v1714, 4
      %v1883 = vrot.slane %v1733, 4
      %v1884 = vrot.slane %v1752, 4
      %v1885 = vrot.slane %v1771, 4
      %v1886 = vrot.slane %v1790, 4
      %v1887 = vrot.slane %v1809, 4
      %v1888 = vrot.slane %v1828, 4
      %v1889 = vrot.slane %v1847, 4
      %v1890 = vrot.slane %v1714, 5
      %v1891 = vrot.slane %v1733, 5
      %v1892 = vrot.slane %v1752, 5
      %v1893 = vrot.slane %v1771, 5
      %v1894 = vrot.slane %v1790, 5
      %v1895 = vrot.slane %v1809, 5
      %v1896 = vrot.slane %v1828, 5
      %v1897 = vrot.slane %v1847, 5
      %v1898 = vrot.slane %v1714, 6
      %v1899 = vrot.slane %v1733, 6
      %v1900 = vrot.slane %v1752, 6
      %v1901 = vrot.slane %v1771, 6
      %v1902 = vrot.slane %v1790, 6
      %v1903 = vrot.slane %v1809, 6
      %v1904 = vrot.slane %v1828, 6
      %v1905 = vrot.slane %v1847, 6
      %v1906 = vrot.slane %v1714, 7
      %v1907 = vrot.slane %v1733, 7
      %v1908 = vrot.slane %v1752, 7
      %v1909 = vrot.slane %v1771, 7
      %v1910 = vrot.slane %v1790, 7
      %v1911 = vrot.slane %v1809, 7
      %v1912 = vrot.slane %v1828, 7
      %v1913 = vrot.slane %v1847, 7
      %v1914 = vsel %vm1024, %v1907, %v1714
      %v1915 = vsel %vm1026, %v1900, %v1914
      %v1916 = vsel %vm1028, %v1893, %v1915
      %v1917 = vsel %vm1030, %v1886, %v1916
      %v1918 = vsel %vm1032, %v1879, %v1917
      %v1919 = vsel %vm1034, %v1872, %v1918
      %v1920 = vsel %vm1036, %v1865, %v1919
      %v1923 = vsel %vm959, %v1569, 0
      %v1926 = vsel %vm1700, %v596, 0
      %1928 = vmatpush.bf16.msra.mxu0 0
      %1929 = vmatpush.bf16.msra.mxu0 0
      %1930 = vmatpush.bf16.msra.mxu0 0
      %1931 = vmatpush.bf16.msra.mxu0 0
      %1932 = vmatpush.bf16.msra.mxu0 0
      %1933 = vmatpush.bf16.msra.mxu0 0
      %1934 = vmatpush.bf16.msra.mxu0 0
      %1935 = vmatpush.bf16.msra.mxu0 %v1926
      %1936 = vmatmul.bf16.gmra.mxu0 %v1923
      %v1937 = vpop.f32.mrf.mxu0
      %v1938 = vadd.f32 %v1920, %v1937
      %v1939 = vpop.f32.mrf.mxu0
      %1940 = vdwg.mxu0
      %v1941 = vrot.slane %v1859, 7
      %v1942 = vsel %vm1024, %v1941, %v1858
      %v1943 = vrot.slane %v1860, 6
      %v1944 = vsel %vm1026, %v1943, %v1942
      %v1945 = vrot.slane %v1861, 5
      %v1946 = vsel %vm1028, %v1945, %v1944
      %v1947 = vrot.slane %v1862, 4
      %v1948 = vsel %vm1030, %v1947, %v1946
      %v1949 = vrot.slane %v1863, 3
      %v1950 = vsel %vm1032, %v1949, %v1948
      %v1951 = vrot.slane %v1864, 2
      %v1952 = vsel %vm1034, %v1951, %v1950
      %v1953 = vrot.slane %v1865, 1
      %v1954 = vsel %vm1036, %v1953, %v1952
      %v1957 = vsel %vm959, %v1570, 0
      %v1960 = vsel %vm1700, %v597, 0
      %1962 = vmatpush.bf16.msra.mxu0 0
      %1963 = vmatpush.bf16.msra.mxu0 0
      %1964 = vmatpush.bf16.msra.mxu0 0
      %1965 = vmatpush.bf16.msra.mxu0 0
      %1966 = vmatpush.bf16.msra.mxu0 0
      %1967 = vmatpush.bf16.msra.mxu0 0
      %1968 = vmatpush.bf16.msra.mxu0 0
      %1969 = vmatpush.bf16.msra.mxu0 %v1960
      %1970 = vmatmul.bf16.gmra.mxu0 %v1957
      %v1971 = vpop.f32.mrf.mxu0
      %v1972 = vadd.f32 %v1954, %v1971
      %v1973 = vpop.f32.mrf.mxu0
      %1974 = vdwg.mxu0
      %v1975 = vrot.slane %v1867, 7
      %v1976 = vsel %vm1024, %v1975, %v1866
      %v1977 = vrot.slane %v1868, 6
      %v1978 = vsel %vm1026, %v1977, %v1976
      %v1979 = vrot.slane %v1869, 5
      %v1980 = vsel %vm1028, %v1979, %v1978
      %v1981 = vrot.slane %v1870, 4
      %v1982 = vsel %vm1030, %v1981, %v1980
      %v1983 = vrot.slane %v1871, 3
      %v1984 = vsel %vm1032, %v1983, %v1982
      %v1985 = vrot.slane %v1872, 2
      %v1986 = vsel %vm1034, %v1985, %v1984
      %v1987 = vrot.slane %v1873, 1
      %v1988 = vsel %vm1036, %v1987, %v1986
      %v1991 = vsel %vm959, %v1571, 0
      %v1994 = vsel %vm1700, %v598, 0
      %1996 = vmatpush.bf16.msra.mxu0 0
      %1997 = vmatpush.bf16.msra.mxu0 0
      %1998 = vmatpush.bf16.msra.mxu0 0
      %1999 = vmatpush.bf16.msra.mxu0 0
      %2000 = vmatpush.bf16.msra.mxu0 0
      %2001 = vmatpush.bf16.msra.mxu0 0
      %2002 = vmatpush.bf16.msra.mxu0 0
      %2003 = vmatpush.bf16.msra.mxu0 %v1994
      %2004 = vmatmul.bf16.gmra.mxu0 %v1991
      %v2005 = vpop.f32.mrf.mxu0
      %v2006 = vadd.f32 %v1988, %v2005
      %v2007 = vpop.f32.mrf.mxu0
      %2008 = vdwg.mxu0
      %v2009 = vrot.slane %v1875, 7
      %v2010 = vsel %vm1024, %v2009, %v1874
      %v2011 = vrot.slane %v1876, 6
      %v2012 = vsel %vm1026, %v2011, %v2010
      %v2013 = vrot.slane %v1877, 5
      %v2014 = vsel %vm1028, %v2013, %v2012
      %v2015 = vrot.slane %v1878, 4
      %v2016 = vsel %vm1030, %v2015, %v2014
      %v2017 = vrot.slane %v1879, 3
      %v2018 = vsel %vm1032, %v2017, %v2016
      %v2019 = vrot.slane %v1880, 2
      %v2020 = vsel %vm1034, %v2019, %v2018
      %v2021 = vrot.slane %v1881, 1
      %v2022 = vsel %vm1036, %v2021, %v2020
      %v2025 = vsel %vm959, %v1572, 0
      %v2028 = vsel %vm1700, %v599, 0
      %2030 = vmatpush.bf16.msra.mxu0 0
      %2031 = vmatpush.bf16.msra.mxu0 0
      %2032 = vmatpush.bf16.msra.mxu0 0
      %2033 = vmatpush.bf16.msra.mxu0 0
      %2034 = vmatpush.bf16.msra.mxu0 0
      %2035 = vmatpush.bf16.msra.mxu0 0
      %2036 = vmatpush.bf16.msra.mxu0 0
      %2037 = vmatpush.bf16.msra.mxu0 %v2028
      %2038 = vmatmul.bf16.gmra.mxu0 %v2025
      %v2039 = vpop.f32.mrf.mxu0
      %v2040 = vadd.f32 %v2022, %v2039
      %v2041 = vpop.f32.mrf.mxu0
      %2042 = vdwg.mxu0
      %v2043 = vrot.slane %v1883, 7
      %v2044 = vsel %vm1024, %v2043, %v1882
      %v2045 = vrot.slane %v1884, 6
      %v2046 = vsel %vm1026, %v2045, %v2044
      %v2047 = vrot.slane %v1885, 5
      %v2048 = vsel %vm1028, %v2047, %v2046
      %v2049 = vrot.slane %v1886, 4
      %v2050 = vsel %vm1030, %v2049, %v2048
      %v2051 = vrot.slane %v1887, 3
      %v2052 = vsel %vm1032, %v2051, %v2050
      %v2053 = vrot.slane %v1888, 2
      %v2054 = vsel %vm1034, %v2053, %v2052
      %v2055 = vrot.slane %v1889, 1
      %v2056 = vsel %vm1036, %v2055, %v2054
      %v2059 = vsel %vm959, %v1573, 0
      %v2062 = vsel %vm1700, %v600, 0
      %2064 = vmatpush.bf16.msra.mxu0 0
      %2065 = vmatpush.bf16.msra.mxu0 0
      %2066 = vmatpush.bf16.msra.mxu0 0
      %2067 = vmatpush.bf16.msra.mxu0 0
      %2068 = vmatpush.bf16.msra.mxu0 0
      %2069 = vmatpush.bf16.msra.mxu0 0
      %2070 = vmatpush.bf16.msra.mxu0 0
      %2071 = vmatpush.bf16.msra.mxu0 %v2062
      %2072 = vmatmul.bf16.gmra.mxu0 %v2059
      %v2073 = vpop.f32.mrf.mxu0
      %v2074 = vadd.f32 %v2056, %v2073
      %v2075 = vpop.f32.mrf.mxu0
      %2076 = vdwg.mxu0
      %v2077 = vrot.slane %v1891, 7
      %v2078 = vsel %vm1024, %v2077, %v1890
      %v2079 = vrot.slane %v1892, 6
      %v2080 = vsel %vm1026, %v2079, %v2078
      %v2081 = vrot.slane %v1893, 5
      %v2082 = vsel %vm1028, %v2081, %v2080
      %v2083 = vrot.slane %v1894, 4
      %v2084 = vsel %vm1030, %v2083, %v2082
      %v2085 = vrot.slane %v1895, 3
      %v2086 = vsel %vm1032, %v2085, %v2084
      %v2087 = vrot.slane %v1896, 2
      %v2088 = vsel %vm1034, %v2087, %v2086
      %v2089 = vrot.slane %v1897, 1
      %v2090 = vsel %vm1036, %v2089, %v2088
      %v2093 = vsel %vm959, %v1574, 0
      %v2096 = vsel %vm1700, %v601, 0
      %2098 = vmatpush.bf16.msra.mxu0 0
      %2099 = vmatpush.bf16.msra.mxu0 0
      %2100 = vmatpush.bf16.msra.mxu0 0
      %2101 = vmatpush.bf16.msra.mxu0 0
      %2102 = vmatpush.bf16.msra.mxu0 0
      %2103 = vmatpush.bf16.msra.mxu0 0
      %2104 = vmatpush.bf16.msra.mxu0 0
      %2105 = vmatpush.bf16.msra.mxu0 %v2096
      %2106 = vmatmul.bf16.gmra.mxu0 %v2093
      %v2107 = vpop.f32.mrf.mxu0
      %v2108 = vadd.f32 %v2090, %v2107
      %v2109 = vpop.f32.mrf.mxu0
      %2110 = vdwg.mxu0
      %v2111 = vrot.slane %v1899, 7
      %v2112 = vsel %vm1024, %v2111, %v1898
      %v2113 = vrot.slane %v1900, 6
      %v2114 = vsel %vm1026, %v2113, %v2112
      %v2115 = vrot.slane %v1901, 5
      %v2116 = vsel %vm1028, %v2115, %v2114
      %v2117 = vrot.slane %v1902, 4
      %v2118 = vsel %vm1030, %v2117, %v2116
      %v2119 = vrot.slane %v1903, 3
      %v2120 = vsel %vm1032, %v2119, %v2118
      %v2121 = vrot.slane %v1904, 2
      %v2122 = vsel %vm1034, %v2121, %v2120
      %v2123 = vrot.slane %v1905, 1
      %v2124 = vsel %vm1036, %v2123, %v2122
      %v2127 = vsel %vm959, %v1575, 0
      %v2130 = vsel %vm1700, %v602, 0
      %2132 = vmatpush.bf16.msra.mxu0 0
      %2133 = vmatpush.bf16.msra.mxu0 0
      %2134 = vmatpush.bf16.msra.mxu0 0
      %2135 = vmatpush.bf16.msra.mxu0 0
      %2136 = vmatpush.bf16.msra.mxu0 0
      %2137 = vmatpush.bf16.msra.mxu0 0
      %2138 = vmatpush.bf16.msra.mxu0 0
      %2139 = vmatpush.bf16.msra.mxu0 %v2130
      %2140 = vmatmul.bf16.gmra.mxu0 %v2127
      %v2141 = vpop.f32.mrf.mxu0
      %v2142 = vadd.f32 %v2124, %v2141
      %v2143 = vpop.f32.mrf.mxu0
      %2144 = vdwg.mxu0
      %v2145 = vrot.slane %v1907, 7
      %v2146 = vsel %vm1024, %v2145, %v1906
      %v2147 = vrot.slane %v1908, 6
      %v2148 = vsel %vm1026, %v2147, %v2146
      %v2149 = vrot.slane %v1909, 5
      %v2150 = vsel %vm1028, %v2149, %v2148
      %v2151 = vrot.slane %v1910, 4
      %v2152 = vsel %vm1030, %v2151, %v2150
      %v2153 = vrot.slane %v1911, 3
      %v2154 = vsel %vm1032, %v2153, %v2152
      %v2155 = vrot.slane %v1912, 2
      %v2156 = vsel %vm1034, %v2155, %v2154
      %v2157 = vrot.slane %v1913, 1
      %v2158 = vsel %vm1036, %v2157, %v2156
      %v2161 = vsel %vm959, %v1576, 0
      %v2164 = vsel %vm1700, %v603, 0
      %2166 = vmatpush.bf16.msra.mxu0 0
      %2167 = vmatpush.bf16.msra.mxu0 0
      %2168 = vmatpush.bf16.msra.mxu0 0
      %2169 = vmatpush.bf16.msra.mxu0 0
      %2170 = vmatpush.bf16.msra.mxu0 0
      %2171 = vmatpush.bf16.msra.mxu0 0
      %2172 = vmatpush.bf16.msra.mxu0 0
      %2173 = vmatpush.bf16.msra.mxu0 %v2164
      %2174 = vmatmul.bf16.gmra.mxu0 %v2161
      %v2175 = vpop.f32.mrf.mxu0
      %v2176 = vadd.f32 %v2158, %v2175
      %v2177 = vpop.f32.mrf.mxu0
      %2178 = vdwg.mxu0
      %v2180 = vperm.slane %v636, 0
      %v2182 = vmul.f32 %v1938, %v2180
      %v2183 = vmul.f32 %v1972, %v2180
      %v2184 = vmul.f32 %v2006, %v2180
      %v2185 = vmul.f32 %v2040, %v2180
      %v2186 = vmul.f32 %v2074, %v2180
      %v2187 = vmul.f32 %v2108, %v2180
      %v2188 = vmul.f32 %v2142, %v2180
      %v2189 = vmul.f32 %v2176, %v2180
      %v2191 = vperm.slane %v637, 0
      %v2193 = vmul.f32 %v628, %v2191
      %v2194 = vmul.f32 %v629, %v2191
      %v2195 = vmul.f32 %v630, %v2191
      %v2196 = vmul.f32 %v631, %v2191
      %v2197 = vmul.f32 %v632, %v2191
      %v2198 = vmul.f32 %v633, %v2191
      %v2199 = vmul.f32 %v634, %v2191
      %v2200 = vmul.f32 %v635, %v2191
      %v2201 = vadd.f32 %v2182, %v2193
      %v2202 = vadd.f32 %v2183, %v2194
      %v2203 = vadd.f32 %v2184, %v2195
      %v2204 = vadd.f32 %v2185, %v2196
      %v2205 = vadd.f32 %v2186, %v2197
      %v2206 = vadd.f32 %v2187, %v2198
      %v2207 = vadd.f32 %v2188, %v2199
      %v2208 = vadd.f32 %v2189, %v2200
      %v2210 = vperm.slane %v638, 0
      %v2212 = vadd.f32 %v2201, %v2210
      %v2213 = vadd.f32 %v2202, %v2210
      %v2214 = vadd.f32 %v2203, %v2210
      %v2215 = vadd.f32 %v2204, %v2210
      %v2216 = vadd.f32 %v2205, %v2210
      %v2217 = vadd.f32 %v2206, %v2210
      %v2218 = vadd.f32 %v2207, %v2210
      %v2219 = vadd.f32 %v2208, %v2210
      %vm2220 = vcmask 130048
      %2221 = vst.msk [vmem:[%s576] sm:$0xff] %vm2220, %v2212
      %2222 = vst.msk [vmem:[%s576 + $0x8] sm:$0xff] %vm2220, %v2213
      %2223 = vst.msk [vmem:[%s576 + $0x10] sm:$0xff] %vm2220, %v2214
      %2224 = vst.msk [vmem:[%s576 + $0x18] sm:$0xff] %vm2220, %v2215
      %2225 = vst.msk [vmem:[%s576 + $0x20] sm:$0xff] %vm2220, %v2216
      %2226 = vst.msk [vmem:[%s576 + $0x28] sm:$0xff] %vm2220, %v2217
      %2227 = vst.msk [vmem:[%s576 + $0x30] sm:$0xff] %vm2220, %v2218
      %2228 = vst.msk [vmem:[%s576 + $0x38] sm:$0xff] %vm2220, %v2219
      %s2229 = smul.u32 8, %s26
      %p2230 = scmp.lt.s32.totalorder %s25, 1
      %s2231 = scalar_select %p2230, %s25, 1
      %p2232 = scmp.lt.s32.totalorder %s2229, 7
      %s2233 = scalar_select %p2232, %s2229, 7
      %s2234 = smul.addr %s2231, 8
      %s2235 = sadd.s32 %s2233, %s2234
      %s2236 = smul.addr %s2235, 8
      %s2237 = scalar_lea.vmem %s10, %s2236
      // Predicated region
      $region61: #{_lambda_.16} parent=59 // pred_check
        %p2238 = pneg %p308
      $region62: #{_lambda_.16} parent=59 // pred_check_branch
        %2240 = sbr.rel (%p2238) target = $region64
      $region63: #{_lambda_.16} parent=59 // pred_region
        %s2241 = smul.u32 8, %s26
      $region64: #{_lambda_.16} parent=59 // pred_fallthru
        _
    $region60: #{_lambda_.16} parent=5 // pred_fallthru
      _
    %p2242 = scmp.le.s32.totalorder 2, %s16
    // Predicated region
    $region65: #{_lambda_.16} parent=5 // pred_check
      %p2243 = pneg %p2242
    $region66: #{_lambda_.16} parent=5 // pred_check_branch
      %2245 = sbr.rel (%p2243) target = $region68
    $region67: #{_lambda_.16} parent=5 // pred_region
      %s2246 = ssub.s32 %s16, 2
      // Predicated region
      $region69: #{_lambda_.16} parent=67 // pred_check
        %p2247 = pneg %p314
      $region70: #{_lambda_.16} parent=67 // pred_check_branch
        %2249 = sbr.rel (%p2247) target = $region72
      $region71: #{_lambda_.16} parent=67 // pred_region
        %s2250 = smul.u32 8, %s28
        %p2251 = scmp.lt.s32.totalorder %s27, 1
        %s2252 = scalar_select %p2251, %s27, 1
        %p2253 = scmp.lt.s32.totalorder %s2250, 7
        %s2254 = scalar_select %p2253, %s2250, 7
        %s2255 = smul.addr %s2252, 8
        %s2256 = sadd.s32 %s2254, %s2255
        %s2257 = smul.addr %s2256, 8
        %s2258 = scalar_lea.vmem %s10, %s2257
      $region72: #{_lambda_.16} parent=67 // pred_fallthru
        _
    $region68: #{_lambda_.16} parent=5 // pred_fallthru
      _
  $region6: #{_lambda_.16} parent=0 // loop_footer
    %s20 = sadd.s32 1, %s16
  $region7: #{_lambda_.16} parent=0 // loop_footer_branch
    %15 = sbr.rel target = $region3
  $region8: #{_lambda_.16} parent=0 // loop_exit
    _

// kernel: _lambda_.21
$region0: #{_lambda_.21}
  #allocation0 [shape = 'u32[]', space=smem, size = 0x4, offset = 0x4, fixed_abs, tag = 'smem constant byte address 0x4 - core index']
  #allocation1 [shape = 'u32[72,128]{1,0:T(1,128)}', space=vmem, size = 0x9000, scoped, tag = 'internal scratch']
  %s0 = inlined_call_operand.vmem [shape: f32[8,16,16], index: 0, kind: input, shape index: {}]
  %s1 = inlined_call_operand.vmem [shape: bf16[16,48], index: 1, kind: input, shape index: {}]
  %s2 = inlined_call_operand.vmem [shape: f32[2,16,16], index: 2, kind: input, shape index: {}]
  %s3 = inlined_call_operand.vmem [shape: bf16[16,16], index: 3, kind: input, shape index: {}]
  %s4 = inlined_call_operand.vmem [shape: f32[1,16], index: 4, kind: input, shape index: {}]
  %s5 = inlined_call_operand.vmem [shape: f32[1,16], index: 5, kind: input, shape index: {}]
  %s6 = inlined_call_operand.vmem [shape: bf16[8,16,16], index: 6, kind: output, shape index: {}]
  %s7 = sld [smem:[#allocation0]]
  $region57: #{_lambda_.21} parent=0
    _
  %s9 = ssub.s32 1, %s7
  %s10 = scalar_select 0, %s9, %s7
  loop: start=0, step=1, limit=4
  $region2: #{_lambda_.21} parent=0 // loop_pre_header
    _
  $region3: #{_lambda_.21} parent=0 // loop_header
    %s12 = sphi 0, %s16
    %p13 = scmp.ge.s32.totalorder %s12, 4
    %s22 = sphi 0, %s24
    %s25 = sphi 0, %s22
    %s26 = sphi 0, %s25
    %s42 = sphi 0, %s26
    %s46 = sphi 0, %s46
    %s48 = sphi 0, %s46
    %s49 = sphi 0, %s48
    %s63 = sphi 0, %s49
    %s67 = sphi 0, %s67
    %s69 = sphi 0, %s67
    %s70 = sphi 0, %s69
    %s84 = sphi 0, %s70
    %s88 = sphi 0, %s88
    %s90 = sphi 0, %s88
    %s91 = sphi 0, %s90
    %s105 = sphi 0, %s91
    %s109 = sphi 0, %s109
    %s111 = sphi 0, %s109
    %s112 = sphi 0, %s111
    %s126 = sphi 0, %s112
    %s130 = sphi 0, %s130
    %s132 = sphi 0, %s130
    %s133 = sphi 0, %s132
    %s147 = sphi 0, %s133
    %s153 = sphi 0, %s155
    %s156 = sphi 0, %s153
    %s157 = sphi 0, %s156
    %s173 = sphi 0, %s157
  $region4: #{_lambda_.21} parent=0 // loop_header_branch
    %15 = sbr.rel (%p13) target = $region8
  $region5: #{_lambda_.21} parent=0 // loop_body
    %s17 = ssub.s32 %s12, 1
    %s18 = ssub.s32 %s12, 2
    %s19 = sadd.s32 %s12, 1
    %s20 = ssub.s32 %s12, %s19
    %p21 = scmp.eq.s32.totalorder %s20, 0
    %s23 = sadd.s32 %s22, 1
    %s24 = scalar_select %p21, %s22, %s23
    %p27 = pneg %p21
    %p28 = scmp.eq.s32.totalorder %s12, 1
    %p29 = por %p27, %p28
    %p30 = scmp.ne.s32.totalorder %s22, %s25
    %p31 = scmp.eq.s32.totalorder %s12, 0
    %p32 = por %p30, %p31
    %p33 = scmp.ne.s32.totalorder %s22, %s25
    %p34 = scmp.eq.s32.totalorder %s17, 1
    %p35 = por %p33, %p34
    %p36 = scmp.ne.s32.totalorder %s25, %s26
    %p37 = scmp.eq.s32.totalorder %s17, 0
    %p38 = por %p36, %p37
    %p39 = scmp.ne.s32.totalorder %s25, %s26
    %p40 = scmp.eq.s32.totalorder %s18, 1
    %p41 = por %p39, %p40
    %p43 = scmp.ne.s32.totalorder %s26, %s42
    %p44 = scmp.eq.s32.totalorder %s18, 0
    %p45 = por %p43, %p44
    %s47 = sadd.s32 %s46, 1
    %p50 = scmp.eq.s32.totalorder %s12, 1
    %p51 = scmp.ne.s32.totalorder %s46, %s48
    %p52 = scmp.eq.s32.totalorder %s12, 0
    %p53 = por %p51, %p52
    %p54 = scmp.ne.s32.totalorder %s46, %s48
    %p55 = scmp.eq.s32.totalorder %s17, 1
    %p56 = por %p54, %p55
    %p57 = scmp.ne.s32.totalorder %s48, %s49
    %p58 = scmp.eq.s32.totalorder %s17, 0
    %p59 = por %p57, %p58
    %p60 = scmp.ne.s32.totalorder %s48, %s49
    %p61 = scmp.eq.s32.totalorder %s18, 1
    %p62 = por %p60, %p61
    %p64 = scmp.ne.s32.totalorder %s49, %s63
    %p65 = scmp.eq.s32.totalorder %s18, 0
    %p66 = por %p64, %p65
    %s68 = sadd.s32 %s67, 1
    %p71 = scmp.eq.s32.totalorder %s12, 1
    %p72 = scmp.ne.s32.totalorder %s67, %s69
    %p73 = scmp.eq.s32.totalorder %s12, 0
    %p74 = por %p72, %p73
    %p75 = scmp.ne.s32.totalorder %s67, %s69
    %p76 = scmp.eq.s32.totalorder %s17, 1
    %p77 = por %p75, %p76
    %p78 = scmp.ne.s32.totalorder %s69, %s70
    %p79 = scmp.eq.s32.totalorder %s17, 0
    %p80 = por %p78, %p79
    %p81 = scmp.ne.s32.totalorder %s69, %s70
    %p82 = scmp.eq.s32.totalorder %s18, 1
    %p83 = por %p81, %p82
    %p85 = scmp.ne.s32.totalorder %s70, %s84
    %p86 = scmp.eq.s32.totalorder %s18, 0
    %p87 = por %p85, %p86
    %s89 = sadd.s32 %s88, 1
    %p92 = scmp.eq.s32.totalorder %s12, 1
    %p93 = scmp.ne.s32.totalorder %s88, %s90
    %p94 = scmp.eq.s32.totalorder %s12, 0
    %p95 = por %p93, %p94
    %p96 = scmp.ne.s32.totalorder %s88, %s90
    %p97 = scmp.eq.s32.totalorder %s17, 1
    %p98 = por %p96, %p97
    %p99 = scmp.ne.s32.totalorder %s90, %s91
    %p100 = scmp.eq.s32.totalorder %s17, 0
    %p101 = por %p99, %p100
    %p102 = scmp.ne.s32.totalorder %s90, %s91
    %p103 = scmp.eq.s32.totalorder %s18, 1
    %p104 = por %p102, %p103
    %p106 = scmp.ne.s32.totalorder %s91, %s105
    %p107 = scmp.eq.s32.totalorder %s18, 0
    %p108 = por %p106, %p107
    %s110 = sadd.s32 %s109, 1
    %p113 = scmp.eq.s32.totalorder %s12, 1
    %p114 = scmp.ne.s32.totalorder %s109, %s111
    %p115 = scmp.eq.s32.totalorder %s12, 0
    %p116 = por %p114, %p115
    %p117 = scmp.ne.s32.totalorder %s109, %s111
    %p118 = scmp.eq.s32.totalorder %s17, 1
    %p119 = por %p117, %p118
    %p120 = scmp.ne.s32.totalorder %s111, %s112
    %p121 = scmp.eq.s32.totalorder %s17, 0
    %p122 = por %p120, %p121
    %p123 = scmp.ne.s32.totalorder %s111, %s112
    %p124 = scmp.eq.s32.totalorder %s18, 1
    %p125 = por %p123, %p124
    %p127 = scmp.ne.s32.totalorder %s112, %s126
    %p128 = scmp.eq.s32.totalorder %s18, 0
    %p129 = por %p127, %p128
    %s131 = sadd.s32 %s130, 1
    %p134 = scmp.eq.s32.totalorder %s12, 1
    %p135 = scmp.ne.s32.totalorder %s130, %s132
    %p136 = scmp.eq.s32.totalorder %s12, 0
    %p137 = por %p135, %p136
    %p138 = scmp.ne.s32.totalorder %s130, %s132
    %p139 = scmp.eq.s32.totalorder %s17, 1
    %p140 = por %p138, %p139
    %p141 = scmp.ne.s32.totalorder %s132, %s133
    %p142 = scmp.eq.s32.totalorder %s17, 0
    %p143 = por %p141, %p142
    %p144 = scmp.ne.s32.totalorder %s132, %s133
    %p145 = scmp.eq.s32.totalorder %s18, 1
    %p146 = por %p144, %p145
    %p148 = scmp.ne.s32.totalorder %s133, %s147
    %p149 = scmp.eq.s32.totalorder %s18, 0
    %p150 = por %p148, %p149
    %s151 = ssub.s32 %s12, %s19
    %p152 = scmp.eq.s32.totalorder %s151, 0
    %s154 = sadd.s32 %s153, 1
    %s155 = scalar_select %p152, %s153, %s154
    %p158 = pneg %p152
    %p159 = scmp.eq.s32.totalorder %s12, 1
    %p160 = por %p158, %p159
    %p161 = scmp.ne.s32.totalorder %s153, %s156
    %p162 = scmp.eq.s32.totalorder %s12, 0
    %p163 = por %p161, %p162
    %p164 = scmp.ne.s32.totalorder %s153, %s156
    %p165 = scmp.eq.s32.totalorder %s17, 1
    %p166 = por %p164, %p165
    %p167 = scmp.ne.s32.totalorder %s156, %s157
    %p168 = scmp.eq.s32.totalorder %s17, 0
    %p169 = por %p167, %p168
    %p170 = scmp.ne.s32.totalorder %s156, %s157
    %p171 = scmp.eq.s32.totalorder %s18, 1
    %p172 = por %p170, %p171
    %p174 = scmp.ne.s32.totalorder %s157, %s173
    %p175 = scmp.eq.s32.totalorder %s18, 0
    %p176 = por %p174, %p175
    %p177 = scmp.le.s32.totalorder 1, %s12
    %p178 = scmp.lt.s32.totalorder %s12, 3
    %p179 = pnand %p177, %p178
    %p180 = pneg %p179
    // Predicated region
    $region9: #{_lambda_.21} parent=5 // pred_check
      _
    $region10: #{_lambda_.21} parent=5 // pred_check_branch
      %182 = sbr.rel (%p179) target = $region12
    $region11: #{_lambda_.21} parent=5 // pred_region
      %s183 = ssub.s32 %s12, 1
      // Predicated region
      $region13: #{_lambda_.21} parent=11 // pred_check
        %p184 = pneg %p59
      $region14: #{_lambda_.21} parent=11 // pred_check_branch
        %186 = sbr.rel (%p184) target = $region16
      $region15: #{_lambda_.21} parent=11 // pred_region
        _
      $region16: #{_lambda_.21} parent=11 // pred_fallthru
        _
      // Predicated region
      $region17: #{_lambda_.21} parent=11 // pred_check
        %p187 = pneg %p80
      $region18: #{_lambda_.21} parent=11 // pred_check_branch
        %189 = sbr.rel (%p187) target = $region20
      $region19: #{_lambda_.21} parent=11 // pred_region
        _
      $region20: #{_lambda_.21} parent=11 // pred_fallthru
        _
      // Predicated region
      $region21: #{_lambda_.21} parent=11 // pred_check
        %p190 = pneg %p101
      $region22: #{_lambda_.21} parent=11 // pred_check_branch
        %192 = sbr.rel (%p190) target = $region24
      $region23: #{_lambda_.21} parent=11 // pred_region
        _
      $region24: #{_lambda_.21} parent=11 // pred_fallthru
        _
      // Predicated region
      $region25: #{_lambda_.21} parent=11 // pred_check
        %p193 = pneg %p122
      $region26: #{_lambda_.21} parent=11 // pred_check_branch
        %195 = sbr.rel (%p193) target = $region28
      $region27: #{_lambda_.21} parent=11 // pred_region
        _
      $region28: #{_lambda_.21} parent=11 // pred_fallthru
        _
      // Predicated region
      $region29: #{_lambda_.21} parent=11 // pred_check
        %p196 = pneg %p143
      $region30: #{_lambda_.21} parent=11 // pred_check_branch
        %198 = sbr.rel (%p196) target = $region32
      $region31: #{_lambda_.21} parent=11 // pred_region
        _
      $region32: #{_lambda_.21} parent=11 // pred_fallthru
        _
    $region12: #{_lambda_.21} parent=5 // pred_fallthru
      _
    %p199 = scmp.lt.s32.totalorder %s12, 2
    // Predicated region
    $region33: #{_lambda_.21} parent=5 // pred_check
      %p200 = pneg %p199
    $region34: #{_lambda_.21} parent=5 // pred_check_branch
      %202 = sbr.rel (%p200) target = $region36
    $region35: #{_lambda_.21} parent=5 // pred_region
      // Predicated region
      $region37: #{_lambda_.21} parent=35 // pred_check
        %p203 = pneg %p32
      $region38: #{_lambda_.21} parent=35 // pred_check_branch
        %205 = sbr.rel (%p203) target = $region40
      $region39: #{_lambda_.21} parent=35 // pred_region
        %s206 = smul.u32 4, %s12
        %p207 = scmp.lt.s32.totalorder %s206, 7
        %s208 = scalar_select %p207, %s206, 7
        %s209 = smul.addr %s208, 2
        %s210 = smul.addr %s209, 8
        %s211 = scalar_lea.vmem %s0, %s210
        %s212 = smul.u32 4, %s12
      $region40: #{_lambda_.21} parent=35 // pred_fallthru
        _
    $region36: #{_lambda_.21} parent=5 // pred_fallthru
      _
    %p213 = scmp.le.s32.totalorder 1, %s12
    %p214 = scmp.lt.s32.totalorder %s12, 3
    %p215 = pnand %p213, %p214
    %p216 = pneg %p215
    // Predicated region
    $region41: #{_lambda_.21} parent=5 // pred_check
      _
    $region42: #{_lambda_.21} parent=5 // pred_check_branch
      %218 = sbr.rel (%p215) target = $region44
    $region43: #{_lambda_.21} parent=5 // pred_region
      %s219 = ssub.s32 %s12, 1
      %s220 = smul.u32 4, %s17
      %p221 = scmp.lt.s32.totalorder %s220, 7
      %s222 = scalar_select %p221, %s220, 7
      %s223 = smul.addr %s222, 2
      %s224 = smul.addr %s223, 8
      %s225 = scalar_lea.vmem %s0, %s224
      %p226 = pneg %p38
      %p227 = pneg %p35
      %p228 = pneg %p59
      %p229 = pneg %p56
      %p230 = pneg %p80
      %p231 = pneg %p77
      %p232 = pneg %p101
      %p233 = pneg %p98
      %p234 = pneg %p122
      %p235 = pneg %p119
      %p236 = pneg %p143
      %p237 = pneg %p140
      %p238 = pneg %p169
      %p239 = pneg %p166
      %s240 = smul.u32 4, %s17
      %p241 = scmp.lt.s32.totalorder %s240, 7
      %s242 = scalar_select %p241, %s240, 7
      %s243 = smul.addr %s242, 2
      %s244 = smul.addr %s243, 4
      %s245 = scalar_lea.vmem %s6, %s244
      %s246 = smul.u32 4, %s17
      %p247 = scmp.lt.s32.totalorder %s246, 7
      %s248 = scalar_select %p247, %s246, 7
      %s249 = smul.addr %s248, 2
      %s250 = smul.addr %s249, 8
      %s251 = scalar_lea.vmem %s0, %s250
      %s252 = smul.u32 4, %s17
      %s253 = smul.u32 4, %s17
      %p254 = scmp.lt.s32.totalorder %s253, 7
      %s255 = scalar_select %p254, %s253, 7
      %s256 = smul.addr %s255, 2
      %s257 = smul.addr %s256, 4
      %s258 = scalar_lea.vmem %s6, %s257
      %s259 = smul.u32 4, %s17
      %v261 = vld [vmem:[%s251] sm:$0xff]
      %v262 = vld [vmem:[%s251 + $0x8] sm:$0xff]
      %v263 = vld [vmem:[%s251 + $0x10] sm:$0xff]
      %v264 = vld [vmem:[%s251 + $0x18] sm:$0xff]
      %v265 = vld [vmem:[%s251 + $0x20] sm:$0xff]
      %v266 = vld [vmem:[%s251 + $0x28] sm:$0xff]
      %v267 = vld [vmem:[%s251 + $0x30] sm:$0xff]
      %v268 = vld [vmem:[%s251 + $0x38] sm:$0xff]
      %v269 = vpack.c.bf16 %v262, %v261
      %v270 = vpack.c.bf16 %v264, %v263
      %v271 = vpack.c.bf16 %v266, %v265
      %v272 = vpack.c.bf16 %v268, %v267
      %v273 = vld [vmem:[%s1] sm:$0xf]
      %v274 = vld [vmem:[%s1 + $0x4] sm:$0xf]
      %v277 = vunpack.c.l.b16 %v273
      %v278 = vunpack.c.l.b16 %v274
      %v279 = vpack.c.b16 %v278, %v277
      %vm281 = vcmask 130048
      %v283 = vsel %vm281, %v269, 0
      %v286 = vsel %vm281, %v270, 0
      %v289 = vsel %vm281, %v271, 0
      %v292 = vsel %vm281, %v272, 0
      %294 = vmatpush.bf16.msra.mxu0 0
      %295 = vmatpush.bf16.msra.mxu0 0
      %296 = vmatpush.bf16.msra.mxu0 0
      %297 = vmatpush.bf16.msra.mxu0 0
      %298 = vmatpush.bf16.msra.mxu0 0
      %299 = vmatpush.bf16.msra.mxu0 0
      %300 = vmatpush.bf16.msra.mxu0 0
      %301 = vmatpush.bf16.msra.mxu0 %v279
      %302 = vmatmul.bf16.gmra.mxu0 %v283
      %v303 = vpop.f32.mrf.mxu0
      %v304 = vadd.f32 0.0, %v303
      %v305 = vpop.f32.mrf.mxu0
      %v306 = vadd.f32 0.0, %v305
      %307 = vmatmul.bf16.gmra.mxu0 %v286
      %v308 = vpop.f32.mrf.mxu0
      %v309 = vadd.f32 0.0, %v308
      %v310 = vpop.f32.mrf.mxu0
      %v311 = vadd.f32 0.0, %v310
      %312 = vmatmul.bf16.gmra.mxu0 %v289
      %v313 = vpop.f32.mrf.mxu0
      %v314 = vadd.f32 0.0, %v313
      %v315 = vpop.f32.mrf.mxu0
      %v316 = vadd.f32 0.0, %v315
      %317 = vmatmul.bf16.gmra.mxu0 %v292
      %v318 = vpop.f32.mrf.mxu0
      %v319 = vadd.f32 0.0, %v318
      %v320 = vpop.f32.mrf.mxu0
      %v321 = vadd.f32 0.0, %v320
      %322 = vdwg.mxu0
      %v323 = vmul.f32 %v304, 0.35355338
      %v324 = vmul.f32 %v306, 0.35355338
      %v325 = vmul.f32 %v309, 0.35355338
      %v326 = vmul.f32 %v311, 0.35355338
      %v327 = vmul.f32 %v314, 0.35355338
      %v328 = vmul.f32 %v316, 0.35355338
      %v329 = vmul.f32 %v319, 0.35355338
      %v330 = vmul.f32 %v321, 0.35355338
      %v331 = vpack.c.bf16 %v323, %v323
      %v332 = vpack.c.bf16 %v324, %v324
      %v333 = vpack.c.bf16 %v325, %v325
      %v334 = vpack.c.bf16 %v326, %v326
      %v335 = vpack.c.bf16 %v327, %v327
      %v336 = vpack.c.bf16 %v328, %v328
      %v337 = vpack.c.bf16 %v329, %v329
      %v338 = vpack.c.bf16 %v330, %v330
      %v339 = vpack.c.bf16 %v304, %v304
      %v340 = vpack.c.bf16 %v306, %v306
      %v341 = vpack.c.bf16 %v309, %v309
      %v342 = vpack.c.bf16 %v311, %v311
      %v343 = vpack.c.bf16 %v314, %v314
      %v344 = vpack.c.bf16 %v316, %v316
      %v345 = vpack.c.bf16 %v319, %v319
      %v346 = vpack.c.bf16 %v321, %v321
      %v347 = vld [vmem:[%s2] sm:$0xff]
      %v348 = vld [vmem:[%s2 + $0x8] sm:$0xff]
      %v351 = vunpack.c.l.b16 %v331
      %v352 = vunpack.c.l.b16 %v332
      %v353 = vpack.c.b16 %v352, %v351
      %v356 = vunpack.c.l.b16 %v339
      %v357 = vunpack.c.l.b16 %v340
      %v358 = vpack.c.b16 %v357, %v356
      %359 = vrot.lane.b32.xlu0 %v358, 112
      %v360 = vpop.permute.xlu0 %359
      %vm361 = vcmask 64512
      %v363 = vsel %vm361, %v353, 0
      %v366 = vsel %vm361, %v360, 0
      %368 = vmatpush.bf16.xpose.msra.mxu0 0
      %369 = vmatpush.bf16.xpose.msra.mxu0 0
      %370 = vmatpush.bf16.xpose.msra.mxu0 0
      %371 = vmatpush.bf16.xpose.msra.mxu0 0
      %372 = vmatpush.bf16.xpose.msra.mxu0 0
      %373 = vmatpush.bf16.xpose.msra.mxu0 0
      %374 = vmatpush.bf16.xpose.msra.mxu0 0
      %375 = vmatpush.bf16.xpose.msra.mxu0 %v366
      %376 = vmatmul.bf16.gmra.mxu0 %v363
      %v377 = vpop.f32.mrf.mxu0
      %v378 = vadd.f32 %v347, %v377
      %v379 = vpop.f32.mrf.mxu0
      %v380 = vadd.f32 %v348, %v379
      %381 = vdwg.mxu0
      %v384 = vunpack.c.l.b16 %v333
      %v385 = vunpack.c.l.b16 %v334
      %v386 = vpack.c.b16 %v385, %v384
      %v389 = vunpack.c.l.b16 %v341
      %v390 = vunpack.c.l.b16 %v342
      %v391 = vpack.c.b16 %v390, %v389
      %392 = vrot.lane.b32.xlu0 %v391, 112
      %v393 = vpop.permute.xlu0 %392
      %v395 = vsel %vm361, %v386, 0
      %v398 = vsel %vm361, %v393, 0
      %400 = vmatpush.bf16.xpose.msra.mxu0 0
      %401 = vmatpush.bf16.xpose.msra.mxu0 0
      %402 = vmatpush.bf16.xpose.msra.mxu0 0
      %403 = vmatpush.bf16.xpose.msra.mxu0 0
      %404 = vmatpush.bf16.xpose.msra.mxu0 0
      %405 = vmatpush.bf16.xpose.msra.mxu0 0
      %406 = vmatpush.bf16.xpose.msra.mxu0 0
      %407 = vmatpush.bf16.xpose.msra.mxu0 %v398
      %408 = vmatmul.bf16.gmra.mxu0 %v395
      %v409 = vpop.f32.mrf.mxu0
      %v410 = vadd.f32 %v347, %v409
      %v411 = vpop.f32.mrf.mxu0
      %v412 = vadd.f32 %v348, %v411
      %413 = vdwg.mxu0
      %v416 = vunpack.c.l.b16 %v335
      %v417 = vunpack.c.l.b16 %v336
      %v418 = vpack.c.b16 %v417, %v416
      %v421 = vunpack.c.l.b16 %v343
      %v422 = vunpack.c.l.b16 %v344
      %v423 = vpack.c.b16 %v422, %v421
      %424 = vrot.lane.b32.xlu0 %v423, 112
      %v425 = vpop.permute.xlu0 %424
      %v427 = vsel %vm361, %v418, 0
      %v430 = vsel %vm361, %v425, 0
      %432 = vmatpush.bf16.xpose.msra.mxu0 0
      %433 = vmatpush.bf16.xpose.msra.mxu0 0
      %434 = vmatpush.bf16.xpose.msra.mxu0 0
      %435 = vmatpush.bf16.xpose.msra.mxu0 0
      %436 = vmatpush.bf16.xpose.msra.mxu0 0
      %437 = vmatpush.bf16.xpose.msra.mxu0 0
      %438 = vmatpush.bf16.xpose.msra.mxu0 0
      %439 = vmatpush.bf16.xpose.msra.mxu0 %v430
      %440 = vmatmul.bf16.gmra.mxu0 %v427
      %v441 = vpop.f32.mrf.mxu0
      %v442 = vadd.f32 %v347, %v441
      %v443 = vpop.f32.mrf.mxu0
      %v444 = vadd.f32 %v348, %v443
      %445 = vdwg.mxu0
      %v448 = vunpack.c.l.b16 %v337
      %v449 = vunpack.c.l.b16 %v338
      %v450 = vpack.c.b16 %v449, %v448
      %v453 = vunpack.c.l.b16 %v345
      %v454 = vunpack.c.l.b16 %v346
      %v455 = vpack.c.b16 %v454, %v453
      %456 = vrot.lane.b32.xlu0 %v455, 112
      %v457 = vpop.permute.xlu0 %456
      %v459 = vsel %vm361, %v450, 0
      %v462 = vsel %vm361, %v457, 0
      %464 = vmatpush.bf16.xpose.msra.mxu0 0
      %465 = vmatpush.bf16.xpose.msra.mxu0 0
      %466 = vmatpush.bf16.xpose.msra.mxu0 0
      %467 = vmatpush.bf16.xpose.msra.mxu0 0
      %468 = vmatpush.bf16.xpose.msra.mxu0 0
      %469 = vmatpush.bf16.xpose.msra.mxu0 0
      %470 = vmatpush.bf16.xpose.msra.mxu0 0
      %471 = vmatpush.bf16.xpose.msra.mxu0 %v462
      %472 = vmatmul.bf16.gmra.mxu0 %v459
      %v473 = vpop.f32.mrf.mxu0
      %v474 = vadd.f32 %v347, %v473
      %v475 = vpop.f32.mrf.mxu0
      %v476 = vadd.f32 %v348, %v475
      %477 = vdwg.mxu0
      %v478 = vsel %vm281, %v378, -inf
      %479 = vmax.xlane.f32.xlu0 %v478
      %v480 = vpop.xlane.xlu0 %479
      %v481 = vsel %vm281, %v380, -inf
      %482 = vmax.xlane.f32.xlu0 %v481
      %v483 = vpop.xlane.xlu0 %482
      %v484 = vsel %vm281, %v410, -inf
      %485 = vmax.xlane.f32.xlu0 %v484
      %v486 = vpop.xlane.xlu0 %485
      %v487 = vsel %vm281, %v412, -inf
      %488 = vmax.xlane.f32.xlu0 %v487
      %v489 = vpop.xlane.xlu0 %488
      %v490 = vsel %vm281, %v442, -inf
      %491 = vmax.xlane.f32.xlu0 %v490
      %v492 = vpop.xlane.xlu0 %491
      %v493 = vsel %vm281, %v444, -inf
      %494 = vmax.xlane.f32.xlu0 %v493
      %v495 = vpop.xlane.xlu0 %494
      %v496 = vsel %vm281, %v474, -inf
      %497 = vmax.xlane.f32.xlu0 %v496
      %v498 = vpop.xlane.xlu0 %497
      %v499 = vsel %vm281, %v476, -inf
      %500 = vmax.xlane.f32.xlu0 %v499
      %v501 = vpop.xlane.xlu0 %500
      %v502 = vsub.f32 %v378, %v480
      %v503 = vsub.f32 %v380, %v483
      %v504 = vsub.f32 %v410, %v486
      %v505 = vsub.f32 %v412, %v489
      %v506 = vsub.f32 %v442, %v492
      %v507 = vsub.f32 %v444, %v495
      %v508 = vsub.f32 %v474, %v498
      %v509 = vsub.f32 %v476, %v501
      %v510 = vmul.f32 %v502, 1.442695
      %v511 = vpow.pop %v510
      %v512 = vmul.f32 %v503, 1.442695
      %v513 = vpow.pop %v512
      %v514 = vmul.f32 %v504, 1.442695
      %v515 = vpow.pop %v514
      %v516 = vmul.f32 %v505, 1.442695
      %v517 = vpow.pop %v516
      %v518 = vmul.f32 %v506, 1.442695
      %v519 = vpow.pop %v518
      %v520 = vmul.f32 %v507, 1.442695
      %v521 = vpow.pop %v520
      %v522 = vmul.f32 %v508, 1.442695
      %v523 = vpow.pop %v522
      %v524 = vmul.f32 %v509, 1.442695
      %v525 = vpow.pop %v524
      %v526 = vsel %vm281, %v511, 0.0
      %527 = vadd.xlane.f32.xlu0 %v526
      %v528 = vpop.xlane.xlu0 %527
      %v529 = vsel %vm281, %v513, 0.0
      %530 = vadd.xlane.f32.xlu0 %v529
      %v531 = vpop.xlane.xlu0 %530
      %v532 = vsel %vm281, %v515, 0.0
      %533 = vadd.xlane.f32.xlu0 %v532
      %v534 = vpop.xlane.xlu0 %533
      %v535 = vsel %vm281, %v517, 0.0
      %536 = vadd.xlane.f32.xlu0 %v535
      %v537 = vpop.xlane.xlu0 %536
      %v538 = vsel %vm281, %v519, 0.0
      %539 = vadd.xlane.f32.xlu0 %v538
      %v540 = vpop.xlane.xlu0 %539
      %v541 = vsel %vm281, %v521, 0.0
      %542 = vadd.xlane.f32.xlu0 %v541
      %v543 = vpop.xlane.xlu0 %542
      %v544 = vsel %vm281, %v523, 0.0
      %545 = vadd.xlane.f32.xlu0 %v544
      %v546 = vpop.xlane.xlu0 %545
      %v547 = vsel %vm281, %v525, 0.0
      %548 = vadd.xlane.f32.xlu0 %v547
      %v549 = vpop.xlane.xlu0 %548
      %v550 = vrcp.pop %v528
      %v551 = vrcp.pop %v531
      %v552 = vrcp.pop %v534
      %v553 = vrcp.pop %v537
      %v554 = vrcp.pop %v540
      %v555 = vrcp.pop %v543
      %v556 = vrcp.pop %v546
      %v557 = vrcp.pop %v549
      %v558 = vmul.f32 %v511, %v550
      %v559 = vmul.f32 %v513, %v551
      %v560 = vmul.f32 %v515, %v552
      %v561 = vmul.f32 %v517, %v553
      %v562 = vmul.f32 %v519, %v554
      %v563 = vmul.f32 %v521, %v555
      %v564 = vmul.f32 %v523, %v556
      %v565 = vmul.f32 %v525, %v557
      %v566 = vpack.c.bf16 %v558, %v558
      %v567 = vpack.c.bf16 %v559, %v559
      %v568 = vpack.c.bf16 %v560, %v560
      %v569 = vpack.c.bf16 %v561, %v561
      %v570 = vpack.c.bf16 %v562, %v562
      %v571 = vpack.c.bf16 %v563, %v563
      %v572 = vpack.c.bf16 %v564, %v564
      %v573 = vpack.c.bf16 %v565, %v565
      %v576 = vunpack.c.l.b16 %v566
      %v577 = vunpack.c.l.b16 %v567
      %v578 = vpack.c.b16 %v577, %v576
      %579 = vrot.lane.b32.xlu0 %v358, 96
      %v580 = vpop.permute.xlu0 %579
      %v583 = vsel %vm281, %v578, 0
      %585 = vmatpush.bf16.msra.mxu0 0
      %586 = vmatpush.bf16.msra.mxu0 0
      %587 = vmatpush.bf16.msra.mxu0 0
      %588 = vmatpush.bf16.msra.mxu0 0
      %589 = vmatpush.bf16.msra.mxu0 0
      %590 = vmatpush.bf16.msra.mxu0 0
      %591 = vmatpush.bf16.msra.mxu0 0
      %592 = vmatpush.bf16.msra.mxu0 %v580
      %593 = vmatmul.bf16.gmra.mxu0 %v583
      %v594 = vpop.f32.mrf.mxu0
      %v595 = vadd.f32 0.0, %v594
      %v596 = vpop.f32.mrf.mxu0
      %v597 = vadd.f32 0.0, %v596
      %598 = vdwg.mxu0
      %v601 = vunpack.c.l.b16 %v568
      %v602 = vunpack.c.l.b16 %v569
      %v603 = vpack.c.b16 %v602, %v601
      %604 = vrot.lane.b32.xlu0 %v391, 96
      %v605 = vpop.permute.xlu0 %604
      %v608 = vsel %vm281, %v603, 0
      %610 = vmatpush.bf16.msra.mxu0 0
      %611 = vmatpush.bf16.msra.mxu0 0
      %612 = vmatpush.bf16.msra.mxu0 0
      %613 = vmatpush.bf16.msra.mxu0 0
      %614 = vmatpush.bf16.msra.mxu0 0
      %615 = vmatpush.bf16.msra.mxu0 0
      %616 = vmatpush.bf16.msra.mxu0 0
      %617 = vmatpush.bf16.msra.mxu0 %v605
      %618 = vmatmul.bf16.gmra.mxu0 %v608
      %v619 = vpop.f32.mrf.mxu0
      %v620 = vadd.f32 0.0, %v619
      %v621 = vpop.f32.mrf.mxu0
      %v622 = vadd.f32 0.0, %v621
      %623 = vdwg.mxu0
      %v626 = vunpack.c.l.b16 %v570
      %v627 = vunpack.c.l.b16 %v571
      %v628 = vpack.c.b16 %v627, %v626
      %629 = vrot.lane.b32.xlu0 %v423, 96
      %v630 = vpop.permute.xlu0 %629
      %v633 = vsel %vm281, %v628, 0
      %635 = vmatpush.bf16.msra.mxu0 0
      %636 = vmatpush.bf16.msra.mxu0 0
      %637 = vmatpush.bf16.msra.mxu0 0
      %638 = vmatpush.bf16.msra.mxu0 0
      %639 = vmatpush.bf16.msra.mxu0 0
      %640 = vmatpush.bf16.msra.mxu0 0
      %641 = vmatpush.bf16.msra.mxu0 0
      %642 = vmatpush.bf16.msra.mxu0 %v630
      %643 = vmatmul.bf16.gmra.mxu0 %v633
      %v644 = vpop.f32.mrf.mxu0
      %v645 = vadd.f32 0.0, %v644
      %v646 = vpop.f32.mrf.mxu0
      %v647 = vadd.f32 0.0, %v646
      %648 = vdwg.mxu0
      %v651 = vunpack.c.l.b16 %v572
      %v652 = vunpack.c.l.b16 %v573
      %v653 = vpack.c.b16 %v652, %v651
      %654 = vrot.lane.b32.xlu0 %v455, 96
      %v655 = vpop.permute.xlu0 %654
      %v658 = vsel %vm281, %v653, 0
      %660 = vmatpush.bf16.msra.mxu0 0
      %661 = vmatpush.bf16.msra.mxu0 0
      %662 = vmatpush.bf16.msra.mxu0 0
      %663 = vmatpush.bf16.msra.mxu0 0
      %664 = vmatpush.bf16.msra.mxu0 0
      %665 = vmatpush.bf16.msra.mxu0 0
      %666 = vmatpush.bf16.msra.mxu0 0
      %667 = vmatpush.bf16.msra.mxu0 %v655
      %668 = vmatmul.bf16.gmra.mxu0 %v658
      %v669 = vpop.f32.mrf.mxu0
      %v670 = vadd.f32 0.0, %v669
      %v671 = vpop.f32.mrf.mxu0
      %v672 = vadd.f32 0.0, %v671
      %673 = vdwg.mxu0
      %v674 = vpack.c.bf16 %v597, %v595
      %v675 = vpack.c.bf16 %v622, %v620
      %v676 = vpack.c.bf16 %v647, %v645
      %v677 = vpack.c.bf16 %v672, %v670
      %v678 = vld [vmem:[%s3] sm:$0xf]
      %s679 = scalar_lea.vmem %s2, 16
      %v680 = vld [vmem:[%s679] sm:$0xff]
      %v681 = vld [vmem:[%s679 + $0x8] sm:$0xff]
      %682 = vrot.lane.b32.xlu0 %v353, 120
      %v683 = vpop.permute.xlu0 %682
      %684 = vrot.lane.b32.xlu0 %v358, 104
      %v685 = vpop.permute.xlu0 %684
      %v687 = vsel %vm361, %v683, 0
      %v690 = vsel %vm361, %v685, 0
      %692 = vmatpush.bf16.xpose.msra.mxu0 0
      %693 = vmatpush.bf16.xpose.msra.mxu0 0
      %694 = vmatpush.bf16.xpose.msra.mxu0 0
      %695 = vmatpush.bf16.xpose.msra.mxu0 0
      %696 = vmatpush.bf16.xpose.msra.mxu0 0
      %697 = vmatpush.bf16.xpose.msra.mxu0 0
      %698 = vmatpush.bf16.xpose.msra.mxu0 0
      %699 = vmatpush.bf16.xpose.msra.mxu0 %v690
      %700 = vmatmul.bf16.gmra.mxu0 %v687
      %v701 = vpop.f32.mrf.mxu0
      %v702 = vadd.f32 %v680, %v701
      %v703 = vpop.f32.mrf.mxu0
      %v704 = vadd.f32 %v681, %v703
      %705 = vdwg.mxu0
      %706 = vrot.lane.b32.xlu0 %v386, 120
      %v707 = vpop.permute.xlu0 %706
      %708 = vrot.lane.b32.xlu0 %v391, 104
      %v709 = vpop.permute.xlu0 %708
      %v711 = vsel %vm361, %v707, 0
      %v714 = vsel %vm361, %v709, 0
      %716 = vmatpush.bf16.xpose.msra.mxu0 0
      %717 = vmatpush.bf16.xpose.msra.mxu0 0
      %718 = vmatpush.bf16.xpose.msra.mxu0 0
      %719 = vmatpush.bf16.xpose.msra.mxu0 0
      %720 = vmatpush.bf16.xpose.msra.mxu0 0
      %721 = vmatpush.bf16.xpose.msra.mxu0 0
      %722 = vmatpush.bf16.xpose.msra.mxu0 0
      %723 = vmatpush.bf16.xpose.msra.mxu0 %v714
      %724 = vmatmul.bf16.gmra.mxu0 %v711
      %v725 = vpop.f32.mrf.mxu0
      %v726 = vadd.f32 %v680, %v725
      %v727 = vpop.f32.mrf.mxu0
      %v728 = vadd.f32 %v681, %v727
      %729 = vdwg.mxu0
      %730 = vrot.lane.b32.xlu0 %v418, 120
      %v731 = vpop.permute.xlu0 %730
      %732 = vrot.lane.b32.xlu0 %v423, 104
      %v733 = vpop.permute.xlu0 %732
      %v735 = vsel %vm361, %v731, 0
      %v738 = vsel %vm361, %v733, 0
      %740 = vmatpush.bf16.xpose.msra.mxu0 0
      %741 = vmatpush.bf16.xpose.msra.mxu0 0
      %742 = vmatpush.bf16.xpose.msra.mxu0 0
      %743 = vmatpush.bf16.xpose.msra.mxu0 0
      %744 = vmatpush.bf16.xpose.msra.mxu0 0
      %745 = vmatpush.bf16.xpose.msra.mxu0 0
      %746 = vmatpush.bf16.xpose.msra.mxu0 0
      %747 = vmatpush.bf16.xpose.msra.mxu0 %v738
      %748 = vmatmul.bf16.gmra.mxu0 %v735
      %v749 = vpop.f32.mrf.mxu0
      %v750 = vadd.f32 %v680, %v749
      %v751 = vpop.f32.mrf.mxu0
      %v752 = vadd.f32 %v681, %v751
      %753 = vdwg.mxu0
      %754 = vrot.lane.b32.xlu0 %v450, 120
      %v755 = vpop.permute.xlu0 %754
      %756 = vrot.lane.b32.xlu0 %v455, 104
      %v757 = vpop.permute.xlu0 %756
      %v759 = vsel %vm361, %v755, 0
      %v762 = vsel %vm361, %v757, 0
      %764 = vmatpush.bf16.xpose.msra.mxu0 0
      %765 = vmatpush.bf16.xpose.msra.mxu0 0
      %766 = vmatpush.bf16.xpose.msra.mxu0 0
      %767 = vmatpush.bf16.xpose.msra.mxu0 0
      %768 = vmatpush.bf16.xpose.msra.mxu0 0
      %769 = vmatpush.bf16.xpose.msra.mxu0 0
      %770 = vmatpush.bf16.xpose.msra.mxu0 0
      %771 = vmatpush.bf16.xpose.msra.mxu0 %v762
      %772 = vmatmul.bf16.gmra.mxu0 %v759
      %v773 = vpop.f32.mrf.mxu0
      %v774 = vadd.f32 %v680, %v773
      %v775 = vpop.f32.mrf.mxu0
      %v776 = vadd.f32 %v681, %v775
      %777 = vdwg.mxu0
      %v778 = vsel %vm281, %v702, -inf
      %779 = vmax.xlane.f32.xlu0 %v778
      %v780 = vpop.xlane.xlu0 %779
      %v781 = vsel %vm281, %v704, -inf
      %782 = vmax.xlane.f32.xlu0 %v781
      %v783 = vpop.xlane.xlu0 %782
      %v784 = vsel %vm281, %v726, -inf
      %785 = vmax.xlane.f32.xlu0 %v784
      %v786 = vpop.xlane.xlu0 %785
      %v787 = vsel %vm281, %v728, -inf
      %788 = vmax.xlane.f32.xlu0 %v787
      %v789 = vpop.xlane.xlu0 %788
      %v790 = vsel %vm281, %v750, -inf
      %791 = vmax.xlane.f32.xlu0 %v790
      %v792 = vpop.xlane.xlu0 %791
      %v793 = vsel %vm281, %v752, -inf
      %794 = vmax.xlane.f32.xlu0 %v793
      %v795 = vpop.xlane.xlu0 %794
      %v796 = vsel %vm281, %v774, -inf
      %797 = vmax.xlane.f32.xlu0 %v796
      %v798 = vpop.xlane.xlu0 %797
      %v799 = vsel %vm281, %v776, -inf
      %800 = vmax.xlane.f32.xlu0 %v799
      %v801 = vpop.xlane.xlu0 %800
      %v802 = vsub.f32 %v702, %v780
      %v803 = vsub.f32 %v704, %v783
      %v804 = vsub.f32 %v726, %v786
      %v805 = vsub.f32 %v728, %v789
      %v806 = vsub.f32 %v750, %v792
      %v807 = vsub.f32 %v752, %v795
      %v808 = vsub.f32 %v774, %v798
      %v809 = vsub.f32 %v776, %v801
      %v810 = vmul.f32 %v802, 1.442695
      %v811 = vpow.pop %v810
      %v812 = vmul.f32 %v803, 1.442695
      %v813 = vpow.pop %v812
      %v814 = vmul.f32 %v804, 1.442695
      %v815 = vpow.pop %v814
      %v816 = vmul.f32 %v805, 1.442695
      %v817 = vpow.pop %v816
      %v818 = vmul.f32 %v806, 1.442695
      %v819 = vpow.pop %v818
      %v820 = vmul.f32 %v807, 1.442695
      %v821 = vpow.pop %v820
      %v822 = vmul.f32 %v808, 1.442695
      %v823 = vpow.pop %v822
      %v824 = vmul.f32 %v809, 1.442695
      %v825 = vpow.pop %v824
      %v826 = vsel %vm281, %v811, 0.0
      %827 = vadd.xlane.f32.xlu0 %v826
      %v828 = vpop.xlane.xlu0 %827
      %v829 = vsel %vm281, %v813, 0.0
      %830 = vadd.xlane.f32.xlu0 %v829
      %v831 = vpop.xlane.xlu0 %830
      %v832 = vsel %vm281, %v815, 0.0
      %833 = vadd.xlane.f32.xlu0 %v832
      %v834 = vpop.xlane.xlu0 %833
      %v835 = vsel %vm281, %v817, 0.0
      %836 = vadd.xlane.f32.xlu0 %v835
      %v837 = vpop.xlane.xlu0 %836
      %v838 = vsel %vm281, %v819, 0.0
      %839 = vadd.xlane.f32.xlu0 %v838
      %v840 = vpop.xlane.xlu0 %839
      %v841 = vsel %vm281, %v821, 0.0
      %842 = vadd.xlane.f32.xlu0 %v841
      %v843 = vpop.xlane.xlu0 %842
      %v844 = vsel %vm281, %v823, 0.0
      %845 = vadd.xlane.f32.xlu0 %v844
      %v846 = vpop.xlane.xlu0 %845
      %v847 = vsel %vm281, %v825, 0.0
      %848 = vadd.xlane.f32.xlu0 %v847
      %v849 = vpop.xlane.xlu0 %848
      %v850 = vrcp.pop %v828
      %v851 = vrcp.pop %v831
      %v852 = vrcp.pop %v834
      %v853 = vrcp.pop %v837
      %v854 = vrcp.pop %v840
      %v855 = vrcp.pop %v843
      %v856 = vrcp.pop %v846
      %v857 = vrcp.pop %v849
      %v858 = vmul.f32 %v811, %v850
      %v859 = vmul.f32 %v813, %v851
      %v860 = vmul.f32 %v815, %v852
      %v861 = vmul.f32 %v817, %v853
      %v862 = vmul.f32 %v819, %v854
      %v863 = vmul.f32 %v821, %v855
      %v864 = vmul.f32 %v823, %v856
      %v865 = vmul.f32 %v825, %v857
      %v866 = vpack.c.bf16 %v858, %v858
      %v867 = vpack.c.bf16 %v859, %v859
      %v868 = vpack.c.bf16 %v860, %v860
      %v869 = vpack.c.bf16 %v861, %v861
      %v870 = vpack.c.bf16 %v862, %v862
      %v871 = vpack.c.bf16 %v863, %v863
      %v872 = vpack.c.bf16 %v864, %v864
      %v873 = vpack.c.bf16 %v865, %v865
      %v876 = vunpack.c.l.b16 %v866
      %v877 = vunpack.c.l.b16 %v867
      %v878 = vpack.c.b16 %v877, %v876
      %879 = vrot.lane.b32.xlu0 %v358, 88
      %v880 = vpop.permute.xlu0 %879
      %v883 = vsel %vm281, %v878, 0
      %885 = vmatpush.bf16.msra.mxu0 0
      %886 = vmatpush.bf16.msra.mxu0 0
      %887 = vmatpush.bf16.msra.mxu0 0
      %888 = vmatpush.bf16.msra.mxu0 0
      %889 = vmatpush.bf16.msra.mxu0 0
      %890 = vmatpush.bf16.msra.mxu0 0
      %891 = vmatpush.bf16.msra.mxu0 0
      %892 = vmatpush.bf16.msra.mxu0 %v880
      %893 = vmatmul.bf16.gmra.mxu0 %v883
      %v894 = vpop.f32.mrf.mxu0
      %v895 = vadd.f32 0.0, %v894
      %v896 = vpop.f32.mrf.mxu0
      %v897 = vadd.f32 0.0, %v896
      %898 = vdwg.mxu0
      %v901 = vunpack.c.l.b16 %v868
      %v902 = vunpack.c.l.b16 %v869
      %v903 = vpack.c.b16 %v902, %v901
      %904 = vrot.lane.b32.xlu0 %v391, 88
      %v905 = vpop.permute.xlu0 %904
      %v908 = vsel %vm281, %v903, 0
      %910 = vmatpush.bf16.msra.mxu0 0
      %911 = vmatpush.bf16.msra.mxu0 0
      %912 = vmatpush.bf16.msra.mxu0 0
      %913 = vmatpush.bf16.msra.mxu0 0
      %914 = vmatpush.bf16.msra.mxu0 0
      %915 = vmatpush.bf16.msra.mxu0 0
      %916 = vmatpush.bf16.msra.mxu0 0
      %917 = vmatpush.bf16.msra.mxu0 %v905
      %918 = vmatmul.bf16.gmra.mxu0 %v908
      %v919 = vpop.f32.mrf.mxu0
      %v920 = vadd.f32 0.0, %v919
      %v921 = vpop.f32.mrf.mxu0
      %v922 = vadd.f32 0.0, %v921
      %923 = vdwg.mxu0
      %v926 = vunpack.c.l.b16 %v870
      %v927 = vunpack.c.l.b16 %v871
      %v928 = vpack.c.b16 %v927, %v926
      %929 = vrot.lane.b32.xlu0 %v423, 88
      %v930 = vpop.permute.xlu0 %929
      %v933 = vsel %vm281, %v928, 0
      %935 = vmatpush.bf16.msra.mxu0 0
      %936 = vmatpush.bf16.msra.mxu0 0
      %937 = vmatpush.bf16.msra.mxu0 0
      %938 = vmatpush.bf16.msra.mxu0 0
      %939 = vmatpush.bf16.msra.mxu0 0
      %940 = vmatpush.bf16.msra.mxu0 0
      %941 = vmatpush.bf16.msra.mxu0 0
      %942 = vmatpush.bf16.msra.mxu0 %v930
      %943 = vmatmul.bf16.gmra.mxu0 %v933
      %v944 = vpop.f32.mrf.mxu0
      %v945 = vadd.f32 0.0, %v944
      %v946 = vpop.f32.mrf.mxu0
      %v947 = vadd.f32 0.0, %v946
      %948 = vdwg.mxu0
      %v951 = vunpack.c.l.b16 %v872
      %v952 = vunpack.c.l.b16 %v873
      %v953 = vpack.c.b16 %v952, %v951
      %954 = vrot.lane.b32.xlu0 %v455, 88
      %v955 = vpop.permute.xlu0 %954
      %v958 = vsel %vm281, %v953, 0
      %960 = vmatpush.bf16.msra.mxu0 0
      %961 = vmatpush.bf16.msra.mxu0 0
      %962 = vmatpush.bf16.msra.mxu0 0
      %963 = vmatpush.bf16.msra.mxu0 0
      %964 = vmatpush.bf16.msra.mxu0 0
      %965 = vmatpush.bf16.msra.mxu0 0
      %966 = vmatpush.bf16.msra.mxu0 0
      %967 = vmatpush.bf16.msra.mxu0 %v955
      %968 = vmatmul.bf16.gmra.mxu0 %v958
      %v969 = vpop.f32.mrf.mxu0
      %v970 = vadd.f32 0.0, %v969
      %v971 = vpop.f32.mrf.mxu0
      %v972 = vadd.f32 0.0, %v971
      %973 = vdwg.mxu0
      %v974 = vpack.c.bf16 %v897, %v895
      %v975 = vpack.c.bf16 %v922, %v920
      %v976 = vpack.c.bf16 %v947, %v945
      %v977 = vpack.c.bf16 %v972, %v970
      %v978 = vld [vmem:[%s3 + $0x4] sm:$0xf]
      %v980 = vsel %vm361, %v974, 0
      %v983 = vsel %vm361, %v975, 0
      %v986 = vsel %vm361, %v976, 0
      %v989 = vsel %vm361, %v977, 0
      %vm991 = vcmask 1043456
      %v993 = vsel %vm991, %v978, 0
      %995 = vmatpush.bf16.msra.mxu0 0
      %996 = vmatpush.bf16.msra.mxu0 0
      %997 = vmatpush.bf16.msra.mxu0 0
      %998 = vmatpush.bf16.msra.mxu0 0
      %999 = vmatpush.bf16.msra.mxu0 0
      %1000 = vmatpush.bf16.msra.mxu0 0
      %1001 = vmatpush.bf16.msra.mxu0 0
      %1002 = vmatpush.bf16.msra.mxu0 %v993
      %1003 = vmatmul.bf16.gmra.mxu0 %v980
      %v1004 = vpop.f32.mrf.mxu0
      %v1005 = vadd.f32 0.0, %v1004
      %v1006 = vpop.f32.mrf.mxu0
      %v1007 = vadd.f32 0.0, %v1006
      %1008 = vmatmul.bf16.gmra.mxu0 %v983
      %v1009 = vpop.f32.mrf.mxu0
      %v1010 = vadd.f32 0.0, %v1009
      %v1011 = vpop.f32.mrf.mxu0
      %v1012 = vadd.f32 0.0, %v1011
      %1013 = vmatmul.bf16.gmra.mxu0 %v986
      %v1014 = vpop.f32.mrf.mxu0
      %v1015 = vadd.f32 0.0, %v1014
      %v1016 = vpop.f32.mrf.mxu0
      %v1017 = vadd.f32 0.0, %v1016
      %1018 = vmatmul.bf16.gmra.mxu0 %v989
      %v1019 = vpop.f32.mrf.mxu0
      %v1020 = vadd.f32 0.0, %v1019
      %v1021 = vpop.f32.mrf.mxu0
      %v1022 = vadd.f32 0.0, %v1021
      %1023 = vdwg.mxu0
      %v1025 = vsel %vm361, %v674, 0
      %v1028 = vsel %vm361, %v675, 0
      %v1031 = vsel %vm361, %v676, 0
      %v1034 = vsel %vm361, %v677, 0
      %v1037 = vsel %vm991, %v678, 0
      %1039 = vmatpush.bf16.msra.mxu0 0
      %1040 = vmatpush.bf16.msra.mxu0 0
      %1041 = vmatpush.bf16.msra.mxu0 0
      %1042 = vmatpush.bf16.msra.mxu0 0
      %1043 = vmatpush.bf16.msra.mxu0 0
      %1044 = vmatpush.bf16.msra.mxu0 0
      %1045 = vmatpush.bf16.msra.mxu0 0
      %1046 = vmatpush.bf16.msra.mxu0 %v1037
      %1047 = vmatmul.bf16.gmra.mxu0 %v1025
      %v1048 = vpop.f32.mrf.mxu0
      %v1049 = vadd.f32 %v1005, %v1048
      %v1050 = vpop.f32.mrf.mxu0
      %v1051 = vadd.f32 %v1007, %v1050
      %1052 = vmatmul.bf16.gmra.mxu0 %v1028
      %v1053 = vpop.f32.mrf.mxu0
      %v1054 = vadd.f32 %v1010, %v1053
      %v1055 = vpop.f32.mrf.mxu0
      %v1056 = vadd.f32 %v1012, %v1055
      %1057 = vmatmul.bf16.gmra.mxu0 %v1031
      %v1058 = vpop.f32.mrf.mxu0
      %v1059 = vadd.f32 %v1015, %v1058
      %v1060 = vpop.f32.mrf.mxu0
      %v1061 = vadd.f32 %v1017, %v1060
      %1062 = vmatmul.bf16.gmra.mxu0 %v1034
      %v1063 = vpop.f32.mrf.mxu0
      %v1064 = vadd.f32 %v1020, %v1063
      %v1065 = vpop.f32.mrf.mxu0
      %v1066 = vadd.f32 %v1022, %v1065
      %1067 = vdwg.mxu0
      %v1068 = vld [vmem:[%s4] sm:$0x1]
      %v1070 = vperm.slane %v1068, 0
      %v1072 = vmul.f32 %v1049, %v1070
      %v1073 = vmul.f32 %v1051, %v1070
      %v1074 = vmul.f32 %v1054, %v1070
      %v1075 = vmul.f32 %v1056, %v1070
      %v1076 = vmul.f32 %v1059, %v1070
      %v1077 = vmul.f32 %v1061, %v1070
      %v1078 = vmul.f32 %v1064, %v1070
      %v1079 = vmul.f32 %v1066, %v1070
      %v1080 = vld [vmem:[%s5] sm:$0x1]
      %v1082 = vperm.slane %v1080, 0
      %v1084 = vadd.f32 %v1072, %v1082
      %v1085 = vadd.f32 %v1073, %v1082
      %v1086 = vadd.f32 %v1074, %v1082
      %v1087 = vadd.f32 %v1075, %v1082
      %v1088 = vadd.f32 %v1076, %v1082
      %v1089 = vadd.f32 %v1077, %v1082
      %v1090 = vadd.f32 %v1078, %v1082
      %v1091 = vadd.f32 %v1079, %v1082
      %v1092 = vpack.c.bf16 %v1084, %v1084
      %v1093 = vpack.c.bf16 %v1085, %v1085
      %v1094 = vpack.c.bf16 %v1086, %v1086
      %v1095 = vpack.c.bf16 %v1087, %v1087
      %v1096 = vpack.c.bf16 %v1088, %v1088
      %v1097 = vpack.c.bf16 %v1089, %v1089
      %v1098 = vpack.c.bf16 %v1090, %v1090
      %v1099 = vpack.c.bf16 %v1091, %v1091
      %vm1100 = vcmask 125952
      %1101 = vst.msk [vmem:[%s258] sm:$0xf] %vm1100, %v1092
      %1102 = vst.msk [vmem:[%s258 + $0x4] sm:$0xf] %vm1100, %v1093
      %1103 = vst.msk [vmem:[%s258 + $0x8] sm:$0xf] %vm1100, %v1094
      %1104 = vst.msk [vmem:[%s258 + $0xc] sm:$0xf] %vm1100, %v1095
      %1105 = vst.msk [vmem:[%s258 + $0x10] sm:$0xf] %vm1100, %v1096
      %1106 = vst.msk [vmem:[%s258 + $0x14] sm:$0xf] %vm1100, %v1097
      %1107 = vst.msk [vmem:[%s258 + $0x18] sm:$0xf] %vm1100, %v1098
      %1108 = vst.msk [vmem:[%s258 + $0x1c] sm:$0xf] %vm1100, %v1099
      %s1109 = smul.u32 4, %s17
      %p1110 = scmp.lt.s32.totalorder %s1109, 7
      %s1111 = scalar_select %p1110, %s1109, 7
      %s1112 = smul.addr %s1111, 2
      %s1113 = smul.addr %s1112, 4
      %s1114 = scalar_lea.vmem %s6, %s1113
      // Predicated region
      $region45: #{_lambda_.21} parent=43 // pred_check
        %p1115 = pneg %p166
      $region46: #{_lambda_.21} parent=43 // pred_check_branch
        %1117 = sbr.rel (%p1115) target = $region48
      $region47: #{_lambda_.21} parent=43 // pred_region
        %s1118 = smul.u32 4, %s17
      $region48: #{_lambda_.21} parent=43 // pred_fallthru
        _
    $region44: #{_lambda_.21} parent=5 // pred_fallthru
      _
    %p1119 = scmp.le.s32.totalorder 2, %s12
    // Predicated region
    $region49: #{_lambda_.21} parent=5 // pred_check
      %p1120 = pneg %p1119
    $region50: #{_lambda_.21} parent=5 // pred_check_branch
      %1122 = sbr.rel (%p1120) target = $region52
    $region51: #{_lambda_.21} parent=5 // pred_region
      %s1123 = ssub.s32 %s12, 2
      // Predicated region
      $region53: #{_lambda_.21} parent=51 // pred_check
        %p1124 = pneg %p172
      $region54: #{_lambda_.21} parent=51 // pred_check_branch
        %1126 = sbr.rel (%p1124) target = $region56
      $region55: #{_lambda_.21} parent=51 // pred_region
        %s1127 = smul.u32 4, %s18
        %p1128 = scmp.lt.s32.totalorder %s1127, 7
        %s1129 = scalar_select %p1128, %s1127, 7
        %s1130 = smul.addr %s1129, 2
        %s1131 = smul.addr %s1130, 4
        %s1132 = scalar_lea.vmem %s6, %s1131
      $region56: #{_lambda_.21} parent=51 // pred_fallthru
        _
    $region52: #{_lambda_.21} parent=5 // pred_fallthru
      _
  $region6: #{_lambda_.21} parent=0 // loop_footer
    %s16 = sadd.s32 1, %s12
  $region7: #{_lambda_.21} parent=0 // loop_footer_branch
    %11 = sbr.rel target = $region3
  $region8: #{_lambda_.21} parent=0 // loop_exit
    _

// kernel: _lambda_.22
$region0: #{_lambda_.22}
  #allocation0 [shape = 'u32[]', space=smem, size = 0x4, offset = 0x4, fixed_abs, tag = 'smem constant byte address 0x4 - core index']
  #allocation1 [shape = 'u32[72,128]{1,0:T(1,128)}', space=vmem, size = 0x9000, scoped, tag = 'internal scratch']
  %s0 = inlined_call_operand.vmem [shape: bf16[128,16], index: 0, kind: input, shape index: {}]
  %s1 = inlined_call_operand.vmem [shape: bf16[16,64], index: 1, kind: input, shape index: {}]
  %s2 = inlined_call_operand.vmem [shape: f32[1,64], index: 2, kind: input, shape index: {}]
  %s3 = inlined_call_operand.vmem [shape: f32[1,64], index: 3, kind: input, shape index: {}]
  %s4 = inlined_call_operand.vmem [shape: f32[1,64], index: 4, kind: input, shape index: {}]
  %s5 = inlined_call_operand.vmem [shape: bf16[128,64], index: 5, kind: output, shape index: {}]
  %s6 = sld [smem:[#allocation0]]
  $region30: #{_lambda_.22} parent=0
    _
  %s8 = ssub.s32 1, %s6
  %s9 = scalar_select 0, %s8, %s6
  // Predicated region
  $region2: #{_lambda_.22} parent=0 // pred_check
    _
  $region3: #{_lambda_.22} parent=0 // pred_check_branch
    %11 = sbr.rel (0) target = $region5
  $region4: #{_lambda_.22} parent=0 // pred_region
    _
  $region5: #{_lambda_.22} parent=0 // pred_fallthru
    _
  // Predicated region
  $region6: #{_lambda_.22} parent=0 // pred_check
    _
  $region7: #{_lambda_.22} parent=0 // pred_check_branch
    %13 = sbr.rel (0) target = $region9
  $region8: #{_lambda_.22} parent=0 // pred_region
    _
  $region9: #{_lambda_.22} parent=0 // pred_fallthru
    _
  // Predicated region
  $region10: #{_lambda_.22} parent=0 // pred_check
    _
  $region11: #{_lambda_.22} parent=0 // pred_check_branch
    %15 = sbr.rel (0) target = $region13
  $region12: #{_lambda_.22} parent=0 // pred_region
    _
  $region13: #{_lambda_.22} parent=0 // pred_fallthru
    _
  // Predicated region
  $region14: #{_lambda_.22} parent=0 // pred_check
    _
  $region15: #{_lambda_.22} parent=0 // pred_check_branch
    %17 = sbr.rel (0) target = $region17
  $region16: #{_lambda_.22} parent=0 // pred_region
    _
  $region17: #{_lambda_.22} parent=0 // pred_fallthru
    _
  // Predicated region
  $region18: #{_lambda_.22} parent=0 // pred_check
    _
  $region19: #{_lambda_.22} parent=0 // pred_check_branch
    %19 = sbr.rel (0) target = $region21
  $region20: #{_lambda_.22} parent=0 // pred_region
    _
  $region21: #{_lambda_.22} parent=0 // pred_fallthru
    _
  %v21 = vld [vmem:[%s0] sm:$0xf]
  %v22 = vld [vmem:[%s0 + $0x4] sm:$0xf]
  %v23 = vld [vmem:[%s0 + $0x8] sm:$0xf]
  %v24 = vld [vmem:[%s0 + $0xc] sm:$0xf]
  %v25 = vld [vmem:[%s0 + $0x10] sm:$0xf]
  %v26 = vld [vmem:[%s0 + $0x14] sm:$0xf]
  %v27 = vld [vmem:[%s0 + $0x18] sm:$0xf]
  %v28 = vld [vmem:[%s0 + $0x1c] sm:$0xf]
  %v29 = vld [vmem:[%s0 + $0x20] sm:$0xf]
  %v30 = vld [vmem:[%s0 + $0x24] sm:$0xf]
  %v31 = vld [vmem:[%s0 + $0x28] sm:$0xf]
  %v32 = vld [vmem:[%s0 + $0x2c] sm:$0xf]
  %v33 = vld [vmem:[%s0 + $0x30] sm:$0xf]
  %v34 = vld [vmem:[%s0 + $0x34] sm:$0xf]
  %v35 = vld [vmem:[%s0 + $0x38] sm:$0xf]
  %v36 = vld [vmem:[%s0 + $0x3c] sm:$0xf]
  %v37 = vld [vmem:[%s1] sm:$0xf]
  %v38 = vld [vmem:[%s1 + $0x4] sm:$0xf]
  %v39 = vld [vmem:[%s2] sm:$0x1]
  %v41 = vperm.slane %v39, 0
  %v59 = vunpack.c.l.b16 %v21
  %v60 = vunpack.c.l.b16 %v22
  %v61 = vunpack.c.l.b16 %v23
  %v62 = vunpack.c.l.b16 %v24
  %v63 = vunpack.c.l.b16 %v25
  %v64 = vunpack.c.l.b16 %v26
  %v65 = vunpack.c.l.b16 %v27
  %v66 = vunpack.c.l.b16 %v28
  %v67 = vunpack.c.l.b16 %v29
  %v68 = vunpack.c.l.b16 %v30
  %v69 = vunpack.c.l.b16 %v31
  %v70 = vunpack.c.l.b16 %v32
  %v71 = vunpack.c.l.b16 %v33
  %v72 = vunpack.c.l.b16 %v34
  %v73 = vunpack.c.l.b16 %v35
  %v74 = vunpack.c.l.b16 %v36
  %v75 = vpack.c.b16 %v60, %v59
  %v76 = vpack.c.b16 %v62, %v61
  %v77 = vpack.c.b16 %v64, %v63
  %v78 = vpack.c.b16 %v66, %v65
  %v79 = vpack.c.b16 %v68, %v67
  %v80 = vpack.c.b16 %v70, %v69
  %v81 = vpack.c.b16 %v72, %v71
  %v82 = vpack.c.b16 %v74, %v73
  %v85 = vunpack.c.l.b16 %v37
  %v86 = vunpack.c.l.b16 %v38
  %v87 = vpack.c.b16 %v86, %v85
  %vm89 = vcmask 130048
  %v91 = vsel %vm89, %v75, 0
  %v94 = vsel %vm89, %v76, 0
  %v97 = vsel %vm89, %v77, 0
  %v100 = vsel %vm89, %v78, 0
  %v103 = vsel %vm89, %v79, 0
  %v106 = vsel %vm89, %v80, 0
  %v109 = vsel %vm89, %v81, 0
  %v112 = vsel %vm89, %v82, 0
  %114 = vmatpush.bf16.msra.mxu0 0
  %115 = vmatpush.bf16.msra.mxu0 0
  %116 = vmatpush.bf16.msra.mxu0 0
  %117 = vmatpush.bf16.msra.mxu0 0
  %118 = vmatpush.bf16.msra.mxu0 0
  %119 = vmatpush.bf16.msra.mxu0 0
  %120 = vmatpush.bf16.msra.mxu0 0
  %121 = vmatpush.bf16.msra.mxu0 %v87
  %122 = vmatmul.bf16.gmra.mxu0 %v91
  %v123 = vpop.f32.mrf.mxu0
  %v124 = vadd.f32 %v41, %v123
  %v125 = vpop.f32.mrf.mxu0
  %v126 = vadd.f32 %v41, %v125
  %127 = vmatmul.bf16.gmra.mxu0 %v94
  %v128 = vpop.f32.mrf.mxu0
  %v129 = vadd.f32 %v41, %v128
  %v130 = vpop.f32.mrf.mxu0
  %v131 = vadd.f32 %v41, %v130
  %132 = vmatmul.bf16.gmra.mxu0 %v97
  %v133 = vpop.f32.mrf.mxu0
  %v134 = vadd.f32 %v41, %v133
  %v135 = vpop.f32.mrf.mxu0
  %v136 = vadd.f32 %v41, %v135
  %137 = vmatmul.bf16.gmra.mxu0 %v100
  %v138 = vpop.f32.mrf.mxu0
  %v139 = vadd.f32 %v41, %v138
  %v140 = vpop.f32.mrf.mxu0
  %v141 = vadd.f32 %v41, %v140
  %142 = vmatmul.bf16.gmra.mxu0 %v103
  %v143 = vpop.f32.mrf.mxu0
  %v144 = vadd.f32 %v41, %v143
  %v145 = vpop.f32.mrf.mxu0
  %v146 = vadd.f32 %v41, %v145
  %147 = vmatmul.bf16.gmra.mxu0 %v106
  %v148 = vpop.f32.mrf.mxu0
  %v149 = vadd.f32 %v41, %v148
  %v150 = vpop.f32.mrf.mxu0
  %v151 = vadd.f32 %v41, %v150
  %152 = vmatmul.bf16.gmra.mxu0 %v109
  %v153 = vpop.f32.mrf.mxu0
  %v154 = vadd.f32 %v41, %v153
  %v155 = vpop.f32.mrf.mxu0
  %v156 = vadd.f32 %v41, %v155
  %157 = vmatmul.bf16.gmra.mxu0 %v112
  %v158 = vpop.f32.mrf.mxu0
  %v159 = vadd.f32 %v41, %v158
  %v160 = vpop.f32.mrf.mxu0
  %v161 = vadd.f32 %v41, %v160
  %162 = vdwg.mxu0
  %v163 = vld [vmem:[%s3] sm:$0x1]
  %v165 = vperm.slane %v163, 0
  %v167 = vmul.f32 %v124, %v165
  %v168 = vmul.f32 %v126, %v165
  %v169 = vmul.f32 %v129, %v165
  %v170 = vmul.f32 %v131, %v165
  %v171 = vmul.f32 %v134, %v165
  %v172 = vmul.f32 %v136, %v165
  %v173 = vmul.f32 %v139, %v165
  %v174 = vmul.f32 %v141, %v165
  %v175 = vmul.f32 %v144, %v165
  %v176 = vmul.f32 %v146, %v165
  %v177 = vmul.f32 %v149, %v165
  %v178 = vmul.f32 %v151, %v165
  %v179 = vmul.f32 %v154, %v165
  %v180 = vmul.f32 %v156, %v165
  %v181 = vmul.f32 %v159, %v165
  %v182 = vmul.f32 %v161, %v165
  %v183 = vld [vmem:[%s4] sm:$0x1]
  %v185 = vperm.slane %v183, 0
  %v187 = vadd.f32 %v167, %v185
  %v188 = vadd.f32 %v168, %v185
  %v189 = vadd.f32 %v169, %v185
  %v190 = vadd.f32 %v170, %v185
  %v191 = vadd.f32 %v171, %v185
  %v192 = vadd.f32 %v172, %v185
  %v193 = vadd.f32 %v173, %v185
  %v194 = vadd.f32 %v174, %v185
  %v195 = vadd.f32 %v175, %v185
  %v196 = vadd.f32 %v176, %v185
  %v197 = vadd.f32 %v177, %v185
  %v198 = vadd.f32 %v178, %v185
  %v199 = vadd.f32 %v179, %v185
  %v200 = vadd.f32 %v180, %v185
  %v201 = vadd.f32 %v181, %v185
  %v202 = vadd.f32 %v182, %v185
  %v203 = vmul.f32 %v187, 0.5
  %v204 = vmul.f32 %v188, 0.5
  %v205 = vmul.f32 %v189, 0.5
  %v206 = vmul.f32 %v190, 0.5
  %v207 = vmul.f32 %v191, 0.5
  %v208 = vmul.f32 %v192, 0.5
  %v209 = vmul.f32 %v193, 0.5
  %v210 = vmul.f32 %v194, 0.5
  %v211 = vmul.f32 %v195, 0.5
  %v212 = vmul.f32 %v196, 0.5
  %v213 = vmul.f32 %v197, 0.5
  %v214 = vmul.f32 %v198, 0.5
  %v215 = vmul.f32 %v199, 0.5
  %v216 = vmul.f32 %v200, 0.5
  %v217 = vmul.f32 %v201, 0.5
  %v218 = vmul.f32 %v202, 0.5
  %v219 = vmul.f32 %v187, 0.044715
  %v220 = vmul.f32 %v188, 0.044715
  %v221 = vmul.f32 %v189, 0.044715
  %v222 = vmul.f32 %v190, 0.044715
  %v223 = vmul.f32 %v191, 0.044715
  %v224 = vmul.f32 %v192, 0.044715
  %v225 = vmul.f32 %v193, 0.044715
  %v226 = vmul.f32 %v194, 0.044715
  %v227 = vmul.f32 %v195, 0.044715
  %v228 = vmul.f32 %v196, 0.044715
  %v229 = vmul.f32 %v197, 0.044715
  %v230 = vmul.f32 %v198, 0.044715
  %v231 = vmul.f32 %v199, 0.044715
  %v232 = vmul.f32 %v200, 0.044715
  %v233 = vmul.f32 %v201, 0.044715
  %v234 = vmul.f32 %v202, 0.044715
  %v235 = vmul.f32 %v219, %v187
  %v236 = vmul.f32 %v220, %v188
  %v237 = vmul.f32 %v221, %v189
  %v238 = vmul.f32 %v222, %v190
  %v239 = vmul.f32 %v223, %v191
  %v240 = vmul.f32 %v224, %v192
  %v241 = vmul.f32 %v225, %v193
  %v242 = vmul.f32 %v226, %v194
  %v243 = vmul.f32 %v227, %v195
  %v244 = vmul.f32 %v228, %v196
  %v245 = vmul.f32 %v229, %v197
  %v246 = vmul.f32 %v230, %v198
  %v247 = vmul.f32 %v231, %v199
  %v248 = vmul.f32 %v232, %v200
  %v249 = vmul.f32 %v233, %v201
  %v250 = vmul.f32 %v234, %v202
  %v251 = vmul.f32 %v235, %v187
  %v252 = vmul.f32 %v236, %v188
  %v253 = vmul.f32 %v237, %v189
  %v254 = vmul.f32 %v238, %v190
  %v255 = vmul.f32 %v239, %v191
  %v256 = vmul.f32 %v240, %v192
  %v257 = vmul.f32 %v241, %v193
  %v258 = vmul.f32 %v242, %v194
  %v259 = vmul.f32 %v243, %v195
  %v260 = vmul.f32 %v244, %v196
  %v261 = vmul.f32 %v245, %v197
  %v262 = vmul.f32 %v246, %v198
  %v263 = vmul.f32 %v247, %v199
  %v264 = vmul.f32 %v248, %v200
  %v265 = vmul.f32 %v249, %v201
  %v266 = vmul.f32 %v250, %v202
  %v267 = vadd.f32 %v187, %v251
  %v268 = vadd.f32 %v188, %v252
  %v269 = vadd.f32 %v189, %v253
  %v270 = vadd.f32 %v190, %v254
  %v271 = vadd.f32 %v191, %v255
  %v272 = vadd.f32 %v192, %v256
  %v273 = vadd.f32 %v193, %v257
  %v274 = vadd.f32 %v194, %v258
  %v275 = vadd.f32 %v195, %v259
  %v276 = vadd.f32 %v196, %v260
  %v277 = vadd.f32 %v197, %v261
  %v278 = vadd.f32 %v198, %v262
  %v279 = vadd.f32 %v199, %v263
  %v280 = vadd.f32 %v200, %v264
  %v281 = vadd.f32 %v201, %v265
  %v282 = vadd.f32 %v202, %v266
  %v283 = vmul.f32 %v267, 0.7978846
  %v284 = vmul.f32 %v268, 0.7978846
  %v285 = vmul.f32 %v269, 0.7978846
  %v286 = vmul.f32 %v270, 0.7978846
  %v287 = vmul.f32 %v271, 0.7978846
  %v288 = vmul.f32 %v272, 0.7978846
  %v289 = vmul.f32 %v273, 0.7978846
  %v290 = vmul.f32 %v274, 0.7978846
  %v291 = vmul.f32 %v275, 0.7978846
  %v292 = vmul.f32 %v276, 0.7978846
  %v293 = vmul.f32 %v277, 0.7978846
  %v294 = vmul.f32 %v278, 0.7978846
  %v295 = vmul.f32 %v279, 0.7978846
  %v296 = vmul.f32 %v280, 0.7978846
  %v297 = vmul.f32 %v281, 0.7978846
  %v298 = vmul.f32 %v282, 0.7978846
  %v299 = vtanh.pop %v283
  %v300 = vtanh.pop %v284
  %v301 = vtanh.pop %v285
  %v302 = vtanh.pop %v286
  %v303 = vtanh.pop %v287
  %v304 = vtanh.pop %v288
  %v305 = vtanh.pop %v289
  %v306 = vtanh.pop %v290
  %v307 = vtanh.pop %v291
  %v308 = vtanh.pop %v292
  %v309 = vtanh.pop %v293
  %v310 = vtanh.pop %v294
  %v311 = vtanh.pop %v295
  %v312 = vtanh.pop %v296
  %v313 = vtanh.pop %v297
  %v314 = vtanh.pop %v298
  %v315 = vadd.f32 %v299, 1.0
  %v316 = vadd.f32 %v300, 1.0
  %v317 = vadd.f32 %v301, 1.0
  %v318 = vadd.f32 %v302, 1.0
  %v319 = vadd.f32 %v303, 1.0
  %v320 = vadd.f32 %v304, 1.0
  %v321 = vadd.f32 %v305, 1.0
  %v322 = vadd.f32 %v306, 1.0
  %v323 = vadd.f32 %v307, 1.0
  %v324 = vadd.f32 %v308, 1.0
  %v325 = vadd.f32 %v309, 1.0
  %v326 = vadd.f32 %v310, 1.0
  %v327 = vadd.f32 %v311, 1.0
  %v328 = vadd.f32 %v312, 1.0
  %v329 = vadd.f32 %v313, 1.0
  %v330 = vadd.f32 %v314, 1.0
  %v331 = vmul.f32 %v203, %v315
  %v332 = vmul.f32 %v204, %v316
  %v333 = vmul.f32 %v205, %v317
  %v334 = vmul.f32 %v206, %v318
  %v335 = vmul.f32 %v207, %v319
  %v336 = vmul.f32 %v208, %v320
  %v337 = vmul.f32 %v209, %v321
  %v338 = vmul.f32 %v210, %v322
  %v339 = vmul.f32 %v211, %v323
  %v340 = vmul.f32 %v212, %v324
  %v341 = vmul.f32 %v213, %v325
  %v342 = vmul.f32 %v214, %v326
  %v343 = vmul.f32 %v215, %v327
  %v344 = vmul.f32 %v216, %v328
  %v345 = vmul.f32 %v217, %v329
  %v346 = vmul.f32 %v218, %v330
  %v347 = vpack.c.bf16 %v331, %v331
  %v348 = vpack.c.bf16 %v332, %v332
  %v349 = vpack.c.bf16 %v333, %v333
  %v350 = vpack.c.bf16 %v334, %v334
  %v351 = vpack.c.bf16 %v335, %v335
  %v352 = vpack.c.bf16 %v336, %v336
  %v353 = vpack.c.bf16 %v337, %v337
  %v354 = vpack.c.bf16 %v338, %v338
  %v355 = vpack.c.bf16 %v339, %v339
  %v356 = vpack.c.bf16 %v340, %v340
  %v357 = vpack.c.bf16 %v341, %v341
  %v358 = vpack.c.bf16 %v342, %v342
  %v359 = vpack.c.bf16 %v343, %v343
  %v360 = vpack.c.bf16 %v344, %v344
  %v361 = vpack.c.bf16 %v345, %v345
  %v362 = vpack.c.bf16 %v346, %v346
  %vm363 = vcmask 519168
  %364 = vst.msk [vmem:[%s5] sm:$0xf] %vm363, %v347
  %365 = vst.msk [vmem:[%s5 + $0x4] sm:$0xf] %vm363, %v348
  %366 = vst.msk [vmem:[%s5 + $0x8] sm:$0xf] %vm363, %v349
  %367 = vst.msk [vmem:[%s5 + $0xc] sm:$0xf] %vm363, %v350
  %368 = vst.msk [vmem:[%s5 + $0x10] sm:$0xf] %vm363, %v351
  %369 = vst.msk [vmem:[%s5 + $0x14] sm:$0xf] %vm363, %v352
  %370 = vst.msk [vmem:[%s5 + $0x18] sm:$0xf] %vm363, %v353
  %371 = vst.msk [vmem:[%s5 + $0x1c] sm:$0xf] %vm363, %v354
  %372 = vst.msk [vmem:[%s5 + $0x20] sm:$0xf] %vm363, %v355
  %373 = vst.msk [vmem:[%s5 + $0x24] sm:$0xf] %vm363, %v356
  %374 = vst.msk [vmem:[%s5 + $0x28] sm:$0xf] %vm363, %v357
  %375 = vst.msk [vmem:[%s5 + $0x2c] sm:$0xf] %vm363, %v358
  %376 = vst.msk [vmem:[%s5 + $0x30] sm:$0xf] %vm363, %v359
  %377 = vst.msk [vmem:[%s5 + $0x34] sm:$0xf] %vm363, %v360
  %378 = vst.msk [vmem:[%s5 + $0x38] sm:$0xf] %vm363, %v361
  %379 = vst.msk [vmem:[%s5 + $0x3c] sm:$0xf] %vm363, %v362
  // Predicated region
  $region22: #{_lambda_.22} parent=0 // pred_check
    _
  $region23: #{_lambda_.22} parent=0 // pred_check_branch
    %381 = sbr.rel (0) target = $region25
  $region24: #{_lambda_.22} parent=0 // pred_region
    _
  $region25: #{_lambda_.22} parent=0 // pred_fallthru
    _
  // Predicated region
  $region26: #{_lambda_.22} parent=0 // pred_check
    _
  $region27: #{_lambda_.22} parent=0 // pred_check_branch
    %383 = sbr.rel (0) target = $region29
  $region28: #{_lambda_.22} parent=0 // pred_region
    _
  $region29: #{_lambda_.22} parent=0 // pred_fallthru
    _

// kernel: _lambda_.29
$region0: #{_lambda_.29}
  #allocation0 [shape = 'u32[]', space=smem, size = 0x4, offset = 0x4, fixed_abs, tag = 'smem constant byte address 0x4 - core index']
  #allocation1 [shape = 'u32[72,128]{1,0:T(1,128)}', space=vmem, size = 0x9000, scoped, tag = 'internal scratch']
  %s0 = inlined_call_operand.vmem [shape: bf16[2,64,16], index: 0, kind: input, shape index: {}]
  %s1 = inlined_call_operand.vmem [shape: f32[2,1,16], index: 1, kind: input, shape index: {}]
  %s2 = inlined_call_operand.vmem [shape: bf16[16,16], index: 2, kind: input, shape index: {}]
  %s3 = inlined_call_operand.vmem [shape: f32[1,16], index: 3, kind: input, shape index: {}]
  %s4 = inlined_call_operand.vmem [shape: f32[1,16], index: 4, kind: input, shape index: {}]
  %s5 = inlined_call_operand.vmem [shape: f32[1,16], index: 5, kind: input, shape index: {}]
  %s6 = inlined_call_operand.vmem [shape: f32[2,64,16], index: 6, kind: input, shape index: {}]
  %s7 = inlined_call_operand.vmem [shape: f32[2,64,16], index: 7, kind: output, shape index: {}]
  %s8 = sld [smem:[#allocation0]]
  $region61: #{_lambda_.29} parent=0
    _
  %s10 = ssub.s32 1, %s8
  %s11 = scalar_select 0, %s10, %s8
  loop: start=0, step=1, limit=4
  $region2: #{_lambda_.29} parent=0 // loop_pre_header
    _
  $region3: #{_lambda_.29} parent=0 // loop_header
    %s13 = sphi 0, %s17
    %p14 = scmp.ge.s32.totalorder %s13, 4
    %s20 = sphi 0, %s32
    %s21 = sphi 0, %s28
    %s22 = sphi 0, %s20
    %s23 = sphi 0, %s21
    %s24 = sphi 0, %s22
    %s25 = sphi 0, %s23
    %s37 = sphi 0, %s39
    %s40 = sphi 0, %s37
    %s41 = sphi 0, %s40
    %s57 = sphi 0, %s41
    %s63 = sphi 0, %s65
    %s66 = sphi 0, %s63
    %s67 = sphi 0, %s66
    %s83 = sphi 0, %s67
    %s87 = sphi 0, %s87
    %s89 = sphi 0, %s87
    %s90 = sphi 0, %s89
    %s104 = sphi 0, %s90
    %s108 = sphi 0, %s108
    %s110 = sphi 0, %s108
    %s111 = sphi 0, %s110
    %s125 = sphi 0, %s111
    %s129 = sphi 0, %s129
    %s131 = sphi 0, %s129
    %s132 = sphi 0, %s131
    %s146 = sphi 0, %s132
    %s150 = sphi 0, %s150
    %s152 = sphi 0, %s150
    %s153 = sphi 0, %s152
    %s167 = sphi 0, %s153
    %s175 = sphi 0, %s177
    %s178 = sphi 0, %s175
    %s179 = sphi 0, %s178
    %s195 = sphi 0, %s179
    %s203 = sphi 0, %s205
    %s206 = sphi 0, %s203
    %s207 = sphi 0, %s206
    %s223 = sphi 0, %s207
  $region4: #{_lambda_.29} parent=0 // loop_header_branch
    %16 = sbr.rel (%p14) target = $region8
  $region5: #{_lambda_.29} parent=0 // loop_body
    %s18 = ssub.s32 %s13, 1
    %s19 = ssub.s32 %s13, 2
    %s26 = sadd.s32 1, %s21
    %p27 = scmp.ge.s32.totalorder %s26, 1
    %s28 = scalar_select %p27, 0, %s26
    %s29 = sadd.s32 1, %s20
    %s30 = scalar_select %p27, %s29, %s20
    %p31 = scmp.ge.s32.totalorder %s30, 2
    %s32 = scalar_select %p31, 0, %s30
    %s33 = ssub.s32 %s20, %s32
    %s34 = ssub.s32 %s21, %s28
    %s35 = sor.u32 %s33, %s34
    %p36 = scmp.eq.s32.totalorder %s35, 0
    %s38 = sadd.s32 %s37, 1
    %s39 = scalar_select %p36, %s37, %s38
    %p42 = pneg %p36
    %p43 = scmp.eq.s32.totalorder %s13, 1
    %p44 = por %p42, %p43
    %p45 = scmp.ne.s32.totalorder %s37, %s40
    %p46 = scmp.eq.s32.totalorder %s13, 0
    %p47 = por %p45, %p46
    %p48 = scmp.ne.s32.totalorder %s37, %s40
    %p49 = scmp.eq.s32.totalorder %s18, 1
    %p50 = por %p48, %p49
    %p51 = scmp.ne.s32.totalorder %s40, %s41
    %p52 = scmp.eq.s32.totalorder %s18, 0
    %p53 = por %p51, %p52
    %p54 = scmp.ne.s32.totalorder %s40, %s41
    %p55 = scmp.eq.s32.totalorder %s19, 1
    %p56 = por %p54, %p55
    %p58 = scmp.ne.s32.totalorder %s41, %s57
    %p59 = scmp.eq.s32.totalorder %s19, 0
    %p60 = por %p58, %p59
    %s61 = ssub.s32 %s20, %s32
    %p62 = scmp.eq.s32.totalorder %s61, 0
    %s64 = sadd.s32 %s63, 1
    %s65 = scalar_select %p62, %s63, %s64
    %p68 = pneg %p62
    %p69 = scmp.eq.s32.totalorder %s13, 1
    %p70 = por %p68, %p69
    %p71 = scmp.ne.s32.totalorder %s63, %s66
    %p72 = scmp.eq.s32.totalorder %s13, 0
    %p73 = por %p71, %p72
    %p74 = scmp.ne.s32.totalorder %s63, %s66
    %p75 = scmp.eq.s32.totalorder %s18, 1
    %p76 = por %p74, %p75
    %p77 = scmp.ne.s32.totalorder %s66, %s67
    %p78 = scmp.eq.s32.totalorder %s18, 0
    %p79 = por %p77, %p78
    %p80 = scmp.ne.s32.totalorder %s66, %s67
    %p81 = scmp.eq.s32.totalorder %s19, 1
    %p82 = por %p80, %p81
    %p84 = scmp.ne.s32.totalorder %s67, %s83
    %p85 = scmp.eq.s32.totalorder %s19, 0
    %p86 = por %p84, %p85
    %s88 = sadd.s32 %s87, 1
    %p91 = scmp.eq.s32.totalorder %s13, 1
    %p92 = scmp.ne.s32.totalorder %s87, %s89
    %p93 = scmp.eq.s32.totalorder %s13, 0
    %p94 = por %p92, %p93
    %p95 = scmp.ne.s32.totalorder %s87, %s89
    %p96 = scmp.eq.s32.totalorder %s18, 1
    %p97 = por %p95, %p96
    %p98 = scmp.ne.s32.totalorder %s89, %s90
    %p99 = scmp.eq.s32.totalorder %s18, 0
    %p100 = por %p98, %p99
    %p101 = scmp.ne.s32.totalorder %s89, %s90
    %p102 = scmp.eq.s32.totalorder %s19, 1
    %p103 = por %p101, %p102
    %p105 = scmp.ne.s32.totalorder %s90, %s104
    %p106 = scmp.eq.s32.totalorder %s19, 0
    %p107 = por %p105, %p106
    %s109 = sadd.s32 %s108, 1
    %p112 = scmp.eq.s32.totalorder %s13, 1
    %p113 = scmp.ne.s32.totalorder %s108, %s110
    %p114 = scmp.eq.s32.totalorder %s13, 0
    %p115 = por %p113, %p114
    %p116 = scmp.ne.s32.totalorder %s108, %s110
    %p117 = scmp.eq.s32.totalorder %s18, 1
    %p118 = por %p116, %p117
    %p119 = scmp.ne.s32.totalorder %s110, %s111
    %p120 = scmp.eq.s32.totalorder %s18, 0
    %p121 = por %p119, %p120
    %p122 = scmp.ne.s32.totalorder %s110, %s111
    %p123 = scmp.eq.s32.totalorder %s19, 1
    %p124 = por %p122, %p123
    %p126 = scmp.ne.s32.totalorder %s111, %s125
    %p127 = scmp.eq.s32.totalorder %s19, 0
    %p128 = por %p126, %p127
    %s130 = sadd.s32 %s129, 1
    %p133 = scmp.eq.s32.totalorder %s13, 1
    %p134 = scmp.ne.s32.totalorder %s129, %s131
    %p135 = scmp.eq.s32.totalorder %s13, 0
    %p136 = por %p134, %p135
    %p137 = scmp.ne.s32.totalorder %s129, %s131
    %p138 = scmp.eq.s32.totalorder %s18, 1
    %p139 = por %p137, %p138
    %p140 = scmp.ne.s32.totalorder %s131, %s132
    %p141 = scmp.eq.s32.totalorder %s18, 0
    %p142 = por %p140, %p141
    %p143 = scmp.ne.s32.totalorder %s131, %s132
    %p144 = scmp.eq.s32.totalorder %s19, 1
    %p145 = por %p143, %p144
    %p147 = scmp.ne.s32.totalorder %s132, %s146
    %p148 = scmp.eq.s32.totalorder %s19, 0
    %p149 = por %p147, %p148
    %s151 = sadd.s32 %s150, 1
    %p154 = scmp.eq.s32.totalorder %s13, 1
    %p155 = scmp.ne.s32.totalorder %s150, %s152
    %p156 = scmp.eq.s32.totalorder %s13, 0
    %p157 = por %p155, %p156
    %p158 = scmp.ne.s32.totalorder %s150, %s152
    %p159 = scmp.eq.s32.totalorder %s18, 1
    %p160 = por %p158, %p159
    %p161 = scmp.ne.s32.totalorder %s152, %s153
    %p162 = scmp.eq.s32.totalorder %s18, 0
    %p163 = por %p161, %p162
    %p164 = scmp.ne.s32.totalorder %s152, %s153
    %p165 = scmp.eq.s32.totalorder %s19, 1
    %p166 = por %p164, %p165
    %p168 = scmp.ne.s32.totalorder %s153, %s167
    %p169 = scmp.eq.s32.totalorder %s19, 0
    %p170 = por %p168, %p169
    %s171 = ssub.s32 %s20, %s32
    %s172 = ssub.s32 %s21, %s28
    %s173 = sor.u32 %s171, %s172
    %p174 = scmp.eq.s32.totalorder %s173, 0
    %s176 = sadd.s32 %s175, 1
    %s177 = scalar_select %p174, %s175, %s176
    %p180 = pneg %p174
    %p181 = scmp.eq.s32.totalorder %s13, 1
    %p182 = por %p180, %p181
    %p183 = scmp.ne.s32.totalorder %s175, %s178
    %p184 = scmp.eq.s32.totalorder %s13, 0
    %p185 = por %p183, %p184
    %p186 = scmp.ne.s32.totalorder %s175, %s178
    %p187 = scmp.eq.s32.totalorder %s18, 1
    %p188 = por %p186, %p187
    %p189 = scmp.ne.s32.totalorder %s178, %s179
    %p190 = scmp.eq.s32.totalorder %s18, 0
    %p191 = por %p189, %p190
    %p192 = scmp.ne.s32.totalorder %s178, %s179
    %p193 = scmp.eq.s32.totalorder %s19, 1
    %p194 = por %p192, %p193
    %p196 = scmp.ne.s32.totalorder %s179, %s195
    %p197 = scmp.eq.s32.totalorder %s19, 0
    %p198 = por %p196, %p197
    %s199 = ssub.s32 %s20, %s32
    %s200 = ssub.s32 %s21, %s28
    %s201 = sor.u32 %s199, %s200
    %p202 = scmp.eq.s32.totalorder %s201, 0
    %s204 = sadd.s32 %s203, 1
    %s205 = scalar_select %p202, %s203, %s204
    %p208 = pneg %p202
    %p209 = scmp.eq.s32.totalorder %s13, 1
    %p210 = por %p208, %p209
    %p211 = scmp.ne.s32.totalorder %s203, %s206
    %p212 = scmp.eq.s32.totalorder %s13, 0
    %p213 = por %p211, %p212
    %p214 = scmp.ne.s32.totalorder %s203, %s206
    %p215 = scmp.eq.s32.totalorder %s18, 1
    %p216 = por %p214, %p215
    %p217 = scmp.ne.s32.totalorder %s206, %s207
    %p218 = scmp.eq.s32.totalorder %s18, 0
    %p219 = por %p217, %p218
    %p220 = scmp.ne.s32.totalorder %s206, %s207
    %p221 = scmp.eq.s32.totalorder %s19, 1
    %p222 = por %p220, %p221
    %p224 = scmp.ne.s32.totalorder %s207, %s223
    %p225 = scmp.eq.s32.totalorder %s19, 0
    %p226 = por %p224, %p225
    %p227 = scmp.le.s32.totalorder 1, %s13
    %p228 = scmp.lt.s32.totalorder %s13, 3
    %p229 = pnand %p227, %p228
    %p230 = pneg %p229
    // Predicated region
    $region9: #{_lambda_.29} parent=5 // pred_check
      _
    $region10: #{_lambda_.29} parent=5 // pred_check_branch
      %232 = sbr.rel (%p229) target = $region12
    $region11: #{_lambda_.29} parent=5 // pred_region
      %s233 = ssub.s32 %s13, 1
      // Predicated region
      $region13: #{_lambda_.29} parent=11 // pred_check
        %p234 = pneg %p100
      $region14: #{_lambda_.29} parent=11 // pred_check_branch
        %236 = sbr.rel (%p234) target = $region16
      $region15: #{_lambda_.29} parent=11 // pred_region
        _
      $region16: #{_lambda_.29} parent=11 // pred_fallthru
        _
      // Predicated region
      $region17: #{_lambda_.29} parent=11 // pred_check
        %p237 = pneg %p121
      $region18: #{_lambda_.29} parent=11 // pred_check_branch
        %239 = sbr.rel (%p237) target = $region20
      $region19: #{_lambda_.29} parent=11 // pred_region
        _
      $region20: #{_lambda_.29} parent=11 // pred_fallthru
        _
      // Predicated region
      $region21: #{_lambda_.29} parent=11 // pred_check
        %p240 = pneg %p142
      $region22: #{_lambda_.29} parent=11 // pred_check_branch
        %242 = sbr.rel (%p240) target = $region24
      $region23: #{_lambda_.29} parent=11 // pred_region
        _
      $region24: #{_lambda_.29} parent=11 // pred_fallthru
        _
      // Predicated region
      $region25: #{_lambda_.29} parent=11 // pred_check
        %p243 = pneg %p163
      $region26: #{_lambda_.29} parent=11 // pred_check_branch
        %245 = sbr.rel (%p243) target = $region28
      $region27: #{_lambda_.29} parent=11 // pred_region
        _
      $region28: #{_lambda_.29} parent=11 // pred_fallthru
        _
    $region12: #{_lambda_.29} parent=5 // pred_fallthru
      _
    %p246 = scmp.lt.s32.totalorder %s13, 2
    // Predicated region
    $region29: #{_lambda_.29} parent=5 // pred_check
      %p247 = pneg %p246
    $region30: #{_lambda_.29} parent=5 // pred_check_branch
      %249 = sbr.rel (%p247) target = $region32
    $region31: #{_lambda_.29} parent=5 // pred_region
      // Predicated region
      $region33: #{_lambda_.29} parent=31 // pred_check
        %p250 = pneg %p47
      $region34: #{_lambda_.29} parent=31 // pred_check_branch
        %252 = sbr.rel (%p250) target = $region36
      $region35: #{_lambda_.29} parent=31 // pred_region
        %s253 = smul.u32 8, %s21
        %p254 = scmp.lt.s32.totalorder %s20, 1
        %s255 = scalar_select %p254, %s20, 1
        %p256 = scmp.lt.s32.totalorder %s253, 7
        %s257 = scalar_select %p256, %s253, 7
        %s258 = smul.addr %s255, 8
        %s259 = sadd.s32 %s257, %s258
        %s260 = smul.addr %s259, 4
        %s261 = scalar_lea.vmem %s0, %s260
        %s262 = smul.u32 8, %s21
      $region36: #{_lambda_.29} parent=31 // pred_fallthru
        _
      // Predicated region
      $region37: #{_lambda_.29} parent=31 // pred_check
        %p263 = pneg %p73
      $region38: #{_lambda_.29} parent=31 // pred_check_branch
        %265 = sbr.rel (%p263) target = $region40
      $region39: #{_lambda_.29} parent=31 // pred_region
        %p266 = scmp.lt.s32.totalorder %s20, 1
        %s267 = scalar_select %p266, %s20, 1
        %s268 = scalar_lea.vmem %s1, %s267
      $region40: #{_lambda_.29} parent=31 // pred_fallthru
        _
      // Predicated region
      $region41: #{_lambda_.29} parent=31 // pred_check
        %p269 = pneg %p185
      $region42: #{_lambda_.29} parent=31 // pred_check_branch
        %271 = sbr.rel (%p269) target = $region44
      $region43: #{_lambda_.29} parent=31 // pred_region
        %s272 = smul.u32 8, %s21
        %p273 = scmp.lt.s32.totalorder %s20, 1
        %s274 = scalar_select %p273, %s20, 1
        %p275 = scmp.lt.s32.totalorder %s272, 7
        %s276 = scalar_select %p275, %s272, 7
        %s277 = smul.addr %s274, 8
        %s278 = sadd.s32 %s276, %s277
        %s279 = smul.addr %s278, 8
        %s280 = scalar_lea.vmem %s6, %s279
        %s281 = smul.u32 8, %s21
      $region44: #{_lambda_.29} parent=31 // pred_fallthru
        _
    $region32: #{_lambda_.29} parent=5 // pred_fallthru
      _
    %p282 = scmp.le.s32.totalorder 1, %s13
    %p283 = scmp.lt.s32.totalorder %s13, 3
    %p284 = pnand %p282, %p283
    %p285 = pneg %p284
    // Predicated region
    $region45: #{_lambda_.29} parent=5 // pred_check
      _
    $region46: #{_lambda_.29} parent=5 // pred_check_branch
      %287 = sbr.rel (%p284) target = $region48
    $region47: #{_lambda_.29} parent=5 // pred_region
      %s288 = ssub.s32 %s13, 1
      %s289 = smul.u32 8, %s23
      %p290 = scmp.lt.s32.totalorder %s22, 1
      %s291 = scalar_select %p290, %s22, 1
      %p292 = scmp.lt.s32.totalorder %s289, 7
      %s293 = scalar_select %p292, %s289, 7
      %s294 = smul.addr %s291, 8
      %s295 = sadd.s32 %s293, %s294
      %s296 = smul.addr %s295, 4
      %s297 = scalar_lea.vmem %s0, %s296
      %p298 = pneg %p53
      %p299 = pneg %p50
      %p300 = scmp.lt.s32.totalorder %s22, 1
      %s301 = scalar_select %p300, %s22, 1
      %s302 = scalar_lea.vmem %s1, %s301
      %p303 = pneg %p79
      %p304 = pneg %p76
      %p305 = pneg %p100
      %p306 = pneg %p97
      %p307 = pneg %p121
      %p308 = pneg %p118
      %p309 = pneg %p142
      %p310 = pneg %p139
      %p311 = pneg %p163
      %p312 = pneg %p160
      %s313 = smul.u32 8, %s23
      %p314 = scmp.lt.s32.totalorder %s22, 1
      %s315 = scalar_select %p314, %s22, 1
      %p316 = scmp.lt.s32.totalorder %s313, 7
      %s317 = scalar_select %p316, %s313, 7
      %s318 = smul.addr %s315, 8
      %s319 = sadd.s32 %s317, %s318
      %s320 = smul.addr %s319, 8
      %s321 = scalar_lea.vmem %s6, %s320
      %p322 = pneg %p191
      %p323 = pneg %p188
      %p324 = pneg %p219
      %p325 = pneg %p216
      %s326 = smul.u32 8, %s23
      %p327 = scmp.lt.s32.totalorder %s22, 1
      %s328 = scalar_select %p327, %s22, 1
      %p329 = scmp.lt.s32.totalorder %s326, 7
      %s330 = scalar_select %p329, %s326, 7
      %s331 = smul.addr %s328, 8
      %s332 = sadd.s32 %s330, %s331
      %s333 = smul.addr %s332, 8
      %s334 = scalar_lea.vmem %s7, %s333
      %s335 = smul.u32 8, %s23
      %p336 = scmp.lt.s32.totalorder %s22, 1
      %s337 = scalar_select %p336, %s22, 1
      %p338 = scmp.lt.s32.totalorder %s335, 7
      %s339 = scalar_select %p338, %s335, 7
      %s340 = smul.addr %s337, 8
      %s341 = sadd.s32 %s339, %s340
      %s342 = smul.addr %s341, 4
      %s343 = scalar_lea.vmem %s0, %s342
      %s344 = smul.u32 8, %s23
      %p345 = scmp.lt.s32.totalorder %s22, 1
      %s346 = scalar_select %p345, %s22, 1
      %s347 = scalar_lea.vmem %s1, %s346
      %s348 = smul.u32 8, %s23
      %p349 = scmp.lt.s32.totalorder %s22, 1
      %s350 = scalar_select %p349, %s22, 1
      %p351 = scmp.lt.s32.totalorder %s348, 7
      %s352 = scalar_select %p351, %s348, 7
      %s353 = smul.addr %s350, 8
      %s354 = sadd.s32 %s352, %s353
      %s355 = smul.addr %s354, 8
      %s356 = scalar_lea.vmem %s6, %s355
      %s357 = smul.u32 8, %s23
      %s358 = smul.u32 8, %s23
      %p359 = scmp.lt.s32.totalorder %s22, 1
      %s360 = scalar_select %p359, %s22, 1
      %p361 = scmp.lt.s32.totalorder %s358, 7
      %s362 = scalar_select %p361, %s358, 7
      %s363 = smul.addr %s360, 8
      %s364 = sadd.s32 %s362, %s363
      %s365 = smul.addr %s364, 8
      %s366 = scalar_lea.vmem %s7, %s365
      %s367 = smul.u32 8, %s23
      %v369 = vld [vmem:[%s343] sm:$0xf]
      %v370 = vld [vmem:[%s343 + $0x4] sm:$0xf]
      %v371 = vld [vmem:[%s343 + $0x8] sm:$0xf]
      %v372 = vld [vmem:[%s343 + $0xc] sm:$0xf]
      %v373 = vld [vmem:[%s343 + $0x10] sm:$0xf]
      %v374 = vld [vmem:[%s343 + $0x14] sm:$0xf]
      %v375 = vld [vmem:[%s343 + $0x18] sm:$0xf]
      %v376 = vld [vmem:[%s343 + $0x1c] sm:$0xf]
      %v377 = vld [vmem:[%s347] sm:$0x1]
      %v378 = vunpack.c.l.bf16 %v369
      %v379 = vunpack.c.l.bf16 %v370
      %v380 = vunpack.c.l.bf16 %v371
      %v381 = vunpack.c.l.bf16 %v372
      %v382 = vunpack.c.l.bf16 %v373
      %v383 = vunpack.c.l.bf16 %v374
      %v384 = vunpack.c.l.bf16 %v375
      %v385 = vunpack.c.l.bf16 %v376
      %v387 = vperm.slane %v377, 0
      %v389 = vmul.f32 %v378, %v387
      %v390 = vmul.f32 %v379, %v387
      %v391 = vmul.f32 %v380, %v387
      %v392 = vmul.f32 %v381, %v387
      %v393 = vmul.f32 %v382, %v387
      %v394 = vmul.f32 %v383, %v387
      %v395 = vmul.f32 %v384, %v387
      %v396 = vmul.f32 %v385, %v387
      %v397 = vpack.c.bf16 %v390, %v389
      %v398 = vpack.c.bf16 %v392, %v391
      %v399 = vpack.c.bf16 %v394, %v393
      %v400 = vpack.c.bf16 %v396, %v395
      %v401 = vld [vmem:[%s2] sm:$0xf]
      %v402 = vld [vmem:[%s2 + $0x4] sm:$0xf]
      %v403 = vld [vmem:[%s3] sm:$0x1]
      %v405 = vperm.slane %v403, 0
      %v409 = vunpack.c.l.b16 %v401
      %v410 = vunpack.c.l.b16 %v402
      %v411 = vpack.c.b16 %v410, %v409
      %vm413 = vcmask 130048
      %v415 = vsel %vm413, %v397, 0
      %v418 = vsel %vm413, %v398, 0
      %v421 = vsel %vm413, %v399, 0
      %v424 = vsel %vm413, %v400, 0
      %426 = vmatpush.bf16.msra.mxu0 0
      %427 = vmatpush.bf16.msra.mxu0 0
      %428 = vmatpush.bf16.msra.mxu0 0
      %429 = vmatpush.bf16.msra.mxu0 0
      %430 = vmatpush.bf16.msra.mxu0 0
      %431 = vmatpush.bf16.msra.mxu0 0
      %432 = vmatpush.bf16.msra.mxu0 0
      %433 = vmatpush.bf16.msra.mxu0 %v411
      %434 = vmatmul.bf16.gmra.mxu0 %v415
      %v435 = vpop.f32.mrf.mxu0
      %v436 = vadd.f32 %v405, %v435
      %v437 = vpop.f32.mrf.mxu0
      %v438 = vadd.f32 %v405, %v437
      %439 = vmatmul.bf16.gmra.mxu0 %v418
      %v440 = vpop.f32.mrf.mxu0
      %v441 = vadd.f32 %v405, %v440
      %v442 = vpop.f32.mrf.mxu0
      %v443 = vadd.f32 %v405, %v442
      %444 = vmatmul.bf16.gmra.mxu0 %v421
      %v445 = vpop.f32.mrf.mxu0
      %v446 = vadd.f32 %v405, %v445
      %v447 = vpop.f32.mrf.mxu0
      %v448 = vadd.f32 %v405, %v447
      %449 = vmatmul.bf16.gmra.mxu0 %v424
      %v450 = vpop.f32.mrf.mxu0
      %v451 = vadd.f32 %v405, %v450
      %v452 = vpop.f32.mrf.mxu0
      %v453 = vadd.f32 %v405, %v452
      %454 = vdwg.mxu0
      %v455 = vld [vmem:[%s4] sm:$0x1]
      %v457 = vperm.slane %v455, 0
      %v459 = vmul.f32 %v436, %v457
      %v460 = vmul.f32 %v438, %v457
      %v461 = vmul.f32 %v441, %v457
      %v462 = vmul.f32 %v443, %v457
      %v463 = vmul.f32 %v446, %v457
      %v464 = vmul.f32 %v448, %v457
      %v465 = vmul.f32 %v451, %v457
      %v466 = vmul.f32 %v453, %v457
      %v467 = vld [vmem:[%s5] sm:$0x1]
      %v469 = vperm.slane %v467, 0
      %v471 = vadd.f32 %v459, %v469
      %v472 = vadd.f32 %v460, %v469
      %v473 = vadd.f32 %v461, %v469
      %v474 = vadd.f32 %v462, %v469
      %v475 = vadd.f32 %v463, %v469
      %v476 = vadd.f32 %v464, %v469
      %v477 = vadd.f32 %v465, %v469
      %v478 = vadd.f32 %v466, %v469
      %v479 = vld [vmem:[%s356] sm:$0xff]
      %v480 = vld [vmem:[%s356 + $0x8] sm:$0xff]
      %v481 = vld [vmem:[%s356 + $0x10] sm:$0xff]
      %v482 = vld [vmem:[%s356 + $0x18] sm:$0xff]
      %v483 = vld [vmem:[%s356 + $0x20] sm:$0xff]
      %v484 = vld [vmem:[%s356 + $0x28] sm:$0xff]
      %v485 = vld [vmem:[%s356 + $0x30] sm:$0xff]
      %v486 = vld [vmem:[%s356 + $0x38] sm:$0xff]
      %v487 = vadd.f32 %v471, %v479
      %v488 = vadd.f32 %v472, %v480
      %v489 = vadd.f32 %v473, %v481
      %v490 = vadd.f32 %v474, %v482
      %v491 = vadd.f32 %v475, %v483
      %v492 = vadd.f32 %v476, %v484
      %v493 = vadd.f32 %v477, %v485
      %v494 = vadd.f32 %v478, %v486
      %495 = vst.msk [vmem:[%s366] sm:$0xff] %vm413, %v487
      %496 = vst.msk [vmem:[%s366 + $0x8] sm:$0xff] %vm413, %v488
      %497 = vst.msk [vmem:[%s366 + $0x10] sm:$0xff] %vm413, %v489
      %498 = vst.msk [vmem:[%s366 + $0x18] sm:$0xff] %vm413, %v490
      %499 = vst.msk [vmem:[%s366 + $0x20] sm:$0xff] %vm413, %v491
      %500 = vst.msk [vmem:[%s366 + $0x28] sm:$0xff] %vm413, %v492
      %501 = vst.msk [vmem:[%s366 + $0x30] sm:$0xff] %vm413, %v493
      %502 = vst.msk [vmem:[%s366 + $0x38] sm:$0xff] %vm413, %v494
      %s503 = smul.u32 8, %s23
      %p504 = scmp.lt.s32.totalorder %s22, 1
      %s505 = scalar_select %p504, %s22, 1
      %p506 = scmp.lt.s32.totalorder %s503, 7
      %s507 = scalar_select %p506, %s503, 7
      %s508 = smul.addr %s505, 8
      %s509 = sadd.s32 %s507, %s508
      %s510 = smul.addr %s509, 8
      %s511 = scalar_lea.vmem %s7, %s510
      // Predicated region
      $region49: #{_lambda_.29} parent=47 // pred_check
        %p512 = pneg %p216
      $region50: #{_lambda_.29} parent=47 // pred_check_branch
        %514 = sbr.rel (%p512) target = $region52
      $region51: #{_lambda_.29} parent=47 // pred_region
        %s515 = smul.u32 8, %s23
      $region52: #{_lambda_.29} parent=47 // pred_fallthru
        _
    $region48: #{_lambda_.29} parent=5 // pred_fallthru
      _
    %p516 = scmp.le.s32.totalorder 2, %s13
    // Predicated region
    $region53: #{_lambda_.29} parent=5 // pred_check
      %p517 = pneg %p516
    $region54: #{_lambda_.29} parent=5 // pred_check_branch
      %519 = sbr.rel (%p517) target = $region56
    $region55: #{_lambda_.29} parent=5 // pred_region
      %s520 = ssub.s32 %s13, 2
      // Predicated region
      $region57: #{_lambda_.29} parent=55 // pred_check
        %p521 = pneg %p222
      $region58: #{_lambda_.29} parent=55 // pred_check_branch
        %523 = sbr.rel (%p521) target = $region60
      $region59: #{_lambda_.29} parent=55 // pred_region
        %s524 = smul.u32 8, %s25
        %p525 = scmp.lt.s32.totalorder %s24, 1
        %s526 = scalar_select %p525, %s24, 1
        %p527 = scmp.lt.s32.totalorder %s524, 7
        %s528 = scalar_select %p527, %s524, 7
        %s529 = smul.addr %s526, 8
        %s530 = sadd.s32 %s528, %s529
        %s531 = smul.addr %s530, 8
        %s532 = scalar_lea.vmem %s7, %s531
      $region60: #{_lambda_.29} parent=55 // pred_fallthru
        _
    $region56: #{_lambda_.29} parent=5 // pred_fallthru
      _
  $region6: #{_lambda_.29} parent=0 // loop_footer
    %s17 = sadd.s32 1, %s13
  $region7: #{_lambda_.29} parent=0 // loop_footer_branch
    %12 = sbr.rel target = $region3
  $region8: #{_lambda_.29} parent=0 // loop_exit
    _

// kernel: _lambda_.27
$region0: #{_lambda_.27}
  #allocation0 [shape = 'u32[]', space=smem, size = 0x4, offset = 0x4, fixed_abs, tag = 'smem constant byte address 0x4 - core index']
  #allocation1 [shape = 'u32[72,128]{1,0:T(1,128)}', space=vmem, size = 0x9000, scoped, tag = 'internal scratch']
  %s0 = inlined_call_operand.vmem [shape: f32[128,16], index: 0, kind: input, shape index: {}]
  %s1 = inlined_call_operand.vmem [shape: bf16[16,16], index: 1, kind: input, shape index: {}]
  %s2 = inlined_call_operand.vmem [shape: f32[1,16], index: 2, kind: input, shape index: {}]
  %s3 = inlined_call_operand.vmem [shape: f32[1,16], index: 3, kind: input, shape index: {}]
  %s4 = inlined_call_operand.vmem [shape: f32[1,16], index: 4, kind: input, shape index: {}]
  %s5 = inlined_call_operand.vmem [shape: bf16[128,16], index: 5, kind: output, shape index: {}]
  %s6 = sld [smem:[#allocation0]]
  $region30: #{_lambda_.27} parent=0
    _
  %s8 = ssub.s32 1, %s6
  %s9 = scalar_select 0, %s8, %s6
  // Predicated region
  $region2: #{_lambda_.27} parent=0 // pred_check
    _
  $region3: #{_lambda_.27} parent=0 // pred_check_branch
    %11 = sbr.rel (0) target = $region5
  $region4: #{_lambda_.27} parent=0 // pred_region
    _
  $region5: #{_lambda_.27} parent=0 // pred_fallthru
    _
  // Predicated region
  $region6: #{_lambda_.27} parent=0 // pred_check
    _
  $region7: #{_lambda_.27} parent=0 // pred_check_branch
    %13 = sbr.rel (0) target = $region9
  $region8: #{_lambda_.27} parent=0 // pred_region
    _
  $region9: #{_lambda_.27} parent=0 // pred_fallthru
    _
  // Predicated region
  $region10: #{_lambda_.27} parent=0 // pred_check
    _
  $region11: #{_lambda_.27} parent=0 // pred_check_branch
    %15 = sbr.rel (0) target = $region13
  $region12: #{_lambda_.27} parent=0 // pred_region
    _
  $region13: #{_lambda_.27} parent=0 // pred_fallthru
    _
  // Predicated region
  $region14: #{_lambda_.27} parent=0 // pred_check
    _
  $region15: #{_lambda_.27} parent=0 // pred_check_branch
    %17 = sbr.rel (0) target = $region17
  $region16: #{_lambda_.27} parent=0 // pred_region
    _
  $region17: #{_lambda_.27} parent=0 // pred_fallthru
    _
  // Predicated region
  $region18: #{_lambda_.27} parent=0 // pred_check
    _
  $region19: #{_lambda_.27} parent=0 // pred_check_branch
    %19 = sbr.rel (0) target = $region21
  $region20: #{_lambda_.27} parent=0 // pred_region
    _
  $region21: #{_lambda_.27} parent=0 // pred_fallthru
    _
  %v21 = vld [vmem:[%s0] sm:$0xff]
  %v22 = vld [vmem:[%s0 + $0x8] sm:$0xff]
  %v23 = vld [vmem:[%s0 + $0x10] sm:$0xff]
  %v24 = vld [vmem:[%s0 + $0x18] sm:$0xff]
  %v25 = vld [vmem:[%s0 + $0x20] sm:$0xff]
  %v26 = vld [vmem:[%s0 + $0x28] sm:$0xff]
  %v27 = vld [vmem:[%s0 + $0x30] sm:$0xff]
  %v28 = vld [vmem:[%s0 + $0x38] sm:$0xff]
  %v29 = vld [vmem:[%s0 + $0x40] sm:$0xff]
  %v30 = vld [vmem:[%s0 + $0x48] sm:$0xff]
  %v31 = vld [vmem:[%s0 + $0x50] sm:$0xff]
  %v32 = vld [vmem:[%s0 + $0x58] sm:$0xff]
  %v33 = vld [vmem:[%s0 + $0x60] sm:$0xff]
  %v34 = vld [vmem:[%s0 + $0x68] sm:$0xff]
  %v35 = vld [vmem:[%s0 + $0x70] sm:$0xff]
  %v36 = vld [vmem:[%s0 + $0x78] sm:$0xff]
  %v37 = vpack.c.bf16 %v22, %v21
  %v38 = vpack.c.bf16 %v24, %v23
  %v39 = vpack.c.bf16 %v26, %v25
  %v40 = vpack.c.bf16 %v28, %v27
  %v41 = vpack.c.bf16 %v30, %v29
  %v42 = vpack.c.bf16 %v32, %v31
  %v43 = vpack.c.bf16 %v34, %v33
  %v44 = vpack.c.bf16 %v36, %v35
  %v45 = vld [vmem:[%s1] sm:$0xf]
  %v46 = vld [vmem:[%s1 + $0x4] sm:$0xf]
  %v47 = vld [vmem:[%s2] sm:$0x1]
  %v49 = vperm.slane %v47, 0
  %v53 = vunpack.c.l.b16 %v45
  %v54 = vunpack.c.l.b16 %v46
  %v55 = vpack.c.b16 %v54, %v53
  %vm57 = vcmask 130048
  %v59 = vsel %vm57, %v37, 0
  %v62 = vsel %vm57, %v38, 0
  %v65 = vsel %vm57, %v39, 0
  %v68 = vsel %vm57, %v40, 0
  %v71 = vsel %vm57, %v41, 0
  %v74 = vsel %vm57, %v42, 0
  %v77 = vsel %vm57, %v43, 0
  %v80 = vsel %vm57, %v44, 0
  %82 = vmatpush.bf16.msra.mxu0 0
  %83 = vmatpush.bf16.msra.mxu0 0
  %84 = vmatpush.bf16.msra.mxu0 0
  %85 = vmatpush.bf16.msra.mxu0 0
  %86 = vmatpush.bf16.msra.mxu0 0
  %87 = vmatpush.bf16.msra.mxu0 0
  %88 = vmatpush.bf16.msra.mxu0 0
  %89 = vmatpush.bf16.msra.mxu0 %v55
  %90 = vmatmul.bf16.gmra.mxu0 %v59
  %v91 = vpop.f32.mrf.mxu0
  %v92 = vadd.f32 %v49, %v91
  %v93 = vpop.f32.mrf.mxu0
  %v94 = vadd.f32 %v49, %v93
  %95 = vmatmul.bf16.gmra.mxu0 %v62
  %v96 = vpop.f32.mrf.mxu0
  %v97 = vadd.f32 %v49, %v96
  %v98 = vpop.f32.mrf.mxu0
  %v99 = vadd.f32 %v49, %v98
  %100 = vmatmul.bf16.gmra.mxu0 %v65
  %v101 = vpop.f32.mrf.mxu0
  %v102 = vadd.f32 %v49, %v101
  %v103 = vpop.f32.mrf.mxu0
  %v104 = vadd.f32 %v49, %v103
  %105 = vmatmul.bf16.gmra.mxu0 %v68
  %v106 = vpop.f32.mrf.mxu0
  %v107 = vadd.f32 %v49, %v106
  %v108 = vpop.f32.mrf.mxu0
  %v109 = vadd.f32 %v49, %v108
  %110 = vmatmul.bf16.gmra.mxu0 %v71
  %v111 = vpop.f32.mrf.mxu0
  %v112 = vadd.f32 %v49, %v111
  %v113 = vpop.f32.mrf.mxu0
  %v114 = vadd.f32 %v49, %v113
  %115 = vmatmul.bf16.gmra.mxu0 %v74
  %v116 = vpop.f32.mrf.mxu0
  %v117 = vadd.f32 %v49, %v116
  %v118 = vpop.f32.mrf.mxu0
  %v119 = vadd.f32 %v49, %v118
  %120 = vmatmul.bf16.gmra.mxu0 %v77
  %v121 = vpop.f32.mrf.mxu0
  %v122 = vadd.f32 %v49, %v121
  %v123 = vpop.f32.mrf.mxu0
  %v124 = vadd.f32 %v49, %v123
  %125 = vmatmul.bf16.gmra.mxu0 %v80
  %v126 = vpop.f32.mrf.mxu0
  %v127 = vadd.f32 %v49, %v126
  %v128 = vpop.f32.mrf.mxu0
  %v129 = vadd.f32 %v49, %v128
  %130 = vdwg.mxu0
  %v131 = vld [vmem:[%s3] sm:$0x1]
  %v133 = vperm.slane %v131, 0
  %v135 = vmul.f32 %v92, %v133
  %v136 = vmul.f32 %v94, %v133
  %v137 = vmul.f32 %v97, %v133
  %v138 = vmul.f32 %v99, %v133
  %v139 = vmul.f32 %v102, %v133
  %v140 = vmul.f32 %v104, %v133
  %v141 = vmul.f32 %v107, %v133
  %v142 = vmul.f32 %v109, %v133
  %v143 = vmul.f32 %v112, %v133
  %v144 = vmul.f32 %v114, %v133
  %v145 = vmul.f32 %v117, %v133
  %v146 = vmul.f32 %v119, %v133
  %v147 = vmul.f32 %v122, %v133
  %v148 = vmul.f32 %v124, %v133
  %v149 = vmul.f32 %v127, %v133
  %v150 = vmul.f32 %v129, %v133
  %v151 = vld [vmem:[%s4] sm:$0x1]
  %v153 = vperm.slane %v151, 0
  %v155 = vadd.f32 %v135, %v153
  %v156 = vadd.f32 %v136, %v153
  %v157 = vadd.f32 %v137, %v153
  %v158 = vadd.f32 %v138, %v153
  %v159 = vadd.f32 %v139, %v153
  %v160 = vadd.f32 %v140, %v153
  %v161 = vadd.f32 %v141, %v153
  %v162 = vadd.f32 %v142, %v153
  %v163 = vadd.f32 %v143, %v153
  %v164 = vadd.f32 %v144, %v153
  %v165 = vadd.f32 %v145, %v153
  %v166 = vadd.f32 %v146, %v153
  %v167 = vadd.f32 %v147, %v153
  %v168 = vadd.f32 %v148, %v153
  %v169 = vadd.f32 %v149, %v153
  %v170 = vadd.f32 %v150, %v153
  %v171 = vxor.u32 %v155, 2147483648
  %v172 = vxor.u32 %v156, 2147483648
  %v173 = vxor.u32 %v157, 2147483648
  %v174 = vxor.u32 %v158, 2147483648
  %v175 = vxor.u32 %v159, 2147483648
  %v176 = vxor.u32 %v160, 2147483648
  %v177 = vxor.u32 %v161, 2147483648
  %v178 = vxor.u32 %v162, 2147483648
  %v179 = vxor.u32 %v163, 2147483648
  %v180 = vxor.u32 %v164, 2147483648
  %v181 = vxor.u32 %v165, 2147483648
  %v182 = vxor.u32 %v166, 2147483648
  %v183 = vxor.u32 %v167, 2147483648
  %v184 = vxor.u32 %v168, 2147483648
  %v185 = vxor.u32 %v169, 2147483648
  %v186 = vxor.u32 %v170, 2147483648
  %v187 = vmul.f32 %v171, 1.442695
  %v188 = vpow.pop %v187
  %v189 = vmul.f32 %v172, 1.442695
  %v190 = vpow.pop %v189
  %v191 = vmul.f32 %v173, 1.442695
  %v192 = vpow.pop %v191
  %v193 = vmul.f32 %v174, 1.442695
  %v194 = vpow.pop %v193
  %v195 = vmul.f32 %v175, 1.442695
  %v196 = vpow.pop %v195
  %v197 = vmul.f32 %v176, 1.442695
  %v198 = vpow.pop %v197
  %v199 = vmul.f32 %v177, 1.442695
  %v200 = vpow.pop %v199
  %v201 = vmul.f32 %v178, 1.442695
  %v202 = vpow.pop %v201
  %v203 = vmul.f32 %v179, 1.442695
  %v204 = vpow.pop %v203
  %v205 = vmul.f32 %v180, 1.442695
  %v206 = vpow.pop %v205
  %v207 = vmul.f32 %v181, 1.442695
  %v208 = vpow.pop %v207
  %v209 = vmul.f32 %v182, 1.442695
  %v210 = vpow.pop %v209
  %v211 = vmul.f32 %v183, 1.442695
  %v212 = vpow.pop %v211
  %v213 = vmul.f32 %v184, 1.442695
  %v214 = vpow.pop %v213
  %v215 = vmul.f32 %v185, 1.442695
  %v216 = vpow.pop %v215
  %v217 = vmul.f32 %v186, 1.442695
  %v218 = vpow.pop %v217
  %v219 = vadd.f32 %v188, 1.0
  %v220 = vadd.f32 %v190, 1.0
  %v221 = vadd.f32 %v192, 1.0
  %v222 = vadd.f32 %v194, 1.0
  %v223 = vadd.f32 %v196, 1.0
  %v224 = vadd.f32 %v198, 1.0
  %v225 = vadd.f32 %v200, 1.0
  %v226 = vadd.f32 %v202, 1.0
  %v227 = vadd.f32 %v204, 1.0
  %v228 = vadd.f32 %v206, 1.0
  %v229 = vadd.f32 %v208, 1.0
  %v230 = vadd.f32 %v210, 1.0
  %v231 = vadd.f32 %v212, 1.0
  %v232 = vadd.f32 %v214, 1.0
  %v233 = vadd.f32 %v216, 1.0
  %v234 = vadd.f32 %v218, 1.0
  %v235 = vrcp.pop %v219
  %v236 = vmul.f32 %v219, %v235
  %v237 = vsub.f32 1.0, %v236
  %v238 = vmul.f32 %v235, %v237
  %v239 = vadd.f32 %v235, %v238
  %vm240 = vweird.f32 %v219
  %vm241 = vweird.f32 %v235
  %vm242 = vmor %vm240, %vm241
  %v243 = vsel %vm242, %v235, %v239
  %v244 = vand.u32 2147483647, %v219
  %vm245 = vcmp.eq.f32.partialorder %v244, 8.507059e+37
  %v246 = vand.u32 %v219, 2147483648
  %v247 = vor.u32 1.1754944e-38, %v246
  %v248 = vsel %vm245, %v247, %v243
  %v249 = vmul.f32 1.0, %v248
  %v250 = vrcp.pop %v220
  %v251 = vmul.f32 %v220, %v250
  %v252 = vsub.f32 1.0, %v251
  %v253 = vmul.f32 %v250, %v252
  %v254 = vadd.f32 %v250, %v253
  %vm255 = vweird.f32 %v220
  %vm256 = vweird.f32 %v250
  %vm257 = vmor %vm255, %vm256
  %v258 = vsel %vm257, %v250, %v254
  %v259 = vand.u32 2147483647, %v220
  %vm260 = vcmp.eq.f32.partialorder %v259, 8.507059e+37
  %v261 = vand.u32 %v220, 2147483648
  %v262 = vor.u32 1.1754944e-38, %v261
  %v263 = vsel %vm260, %v262, %v258
  %v264 = vmul.f32 1.0, %v263
  %v265 = vrcp.pop %v221
  %v266 = vmul.f32 %v221, %v265
  %v267 = vsub.f32 1.0, %v266
  %v268 = vmul.f32 %v265, %v267
  %v269 = vadd.f32 %v265, %v268
  %vm270 = vweird.f32 %v221
  %vm271 = vweird.f32 %v265
  %vm272 = vmor %vm270, %vm271
  %v273 = vsel %vm272, %v265, %v269
  %v274 = vand.u32 2147483647, %v221
  %vm275 = vcmp.eq.f32.partialorder %v274, 8.507059e+37
  %v276 = vand.u32 %v221, 2147483648
  %v277 = vor.u32 1.1754944e-38, %v276
  %v278 = vsel %vm275, %v277, %v273
  %v279 = vmul.f32 1.0, %v278
  %v280 = vrcp.pop %v222
  %v281 = vmul.f32 %v222, %v280
  %v282 = vsub.f32 1.0, %v281
  %v283 = vmul.f32 %v280, %v282
  %v284 = vadd.f32 %v280, %v283
  %vm285 = vweird.f32 %v222
  %vm286 = vweird.f32 %v280
  %vm287 = vmor %vm285, %vm286
  %v288 = vsel %vm287, %v280, %v284
  %v289 = vand.u32 2147483647, %v222
  %vm290 = vcmp.eq.f32.partialorder %v289, 8.507059e+37
  %v291 = vand.u32 %v222, 2147483648
  %v292 = vor.u32 1.1754944e-38, %v291
  %v293 = vsel %vm290, %v292, %v288
  %v294 = vmul.f32 1.0, %v293
  %v295 = vrcp.pop %v223
  %v296 = vmul.f32 %v223, %v295
  %v297 = vsub.f32 1.0, %v296
  %v298 = vmul.f32 %v295, %v297
  %v299 = vadd.f32 %v295, %v298
  %vm300 = vweird.f32 %v223
  %vm301 = vweird.f32 %v295
  %vm302 = vmor %vm300, %vm301
  %v303 = vsel %vm302, %v295, %v299
  %v304 = vand.u32 2147483647, %v223
  %vm305 = vcmp.eq.f32.partialorder %v304, 8.507059e+37
  %v306 = vand.u32 %v223, 2147483648
  %v307 = vor.u32 1.1754944e-38, %v306
  %v308 = vsel %vm305, %v307, %v303
  %v309 = vmul.f32 1.0, %v308
  %v310 = vrcp.pop %v224
  %v311 = vmul.f32 %v224, %v310
  %v312 = vsub.f32 1.0, %v311
  %v313 = vmul.f32 %v310, %v312
  %v314 = vadd.f32 %v310, %v313
  %vm315 = vweird.f32 %v224
  %vm316 = vweird.f32 %v310
  %vm317 = vmor %vm315, %vm316
  %v318 = vsel %vm317, %v310, %v314
  %v319 = vand.u32 2147483647, %v224
  %vm320 = vcmp.eq.f32.partialorder %v319, 8.507059e+37
  %v321 = vand.u32 %v224, 2147483648
  %v322 = vor.u32 1.1754944e-38, %v321
  %v323 = vsel %vm320, %v322, %v318
  %v324 = vmul.f32 1.0, %v323
  %v325 = vrcp.pop %v225
  %v326 = vmul.f32 %v225, %v325
  %v327 = vsub.f32 1.0, %v326
  %v328 = vmul.f32 %v325, %v327
  %v329 = vadd.f32 %v325, %v328
  %vm330 = vweird.f32 %v225
  %vm331 = vweird.f32 %v325
  %vm332 = vmor %vm330, %vm331
  %v333 = vsel %vm332, %v325, %v329
  %v334 = vand.u32 2147483647, %v225
  %vm335 = vcmp.eq.f32.partialorder %v334, 8.507059e+37
  %v336 = vand.u32 %v225, 2147483648
  %v337 = vor.u32 1.1754944e-38, %v336
  %v338 = vsel %vm335, %v337, %v333
  %v339 = vmul.f32 1.0, %v338
  %v340 = vrcp.pop %v226
  %v341 = vmul.f32 %v226, %v340
  %v342 = vsub.f32 1.0, %v341
  %v343 = vmul.f32 %v340, %v342
  %v344 = vadd.f32 %v340, %v343
  %vm345 = vweird.f32 %v226
  %vm346 = vweird.f32 %v340
  %vm347 = vmor %vm345, %vm346
  %v348 = vsel %vm347, %v340, %v344
  %v349 = vand.u32 2147483647, %v226
  %vm350 = vcmp.eq.f32.partialorder %v349, 8.507059e+37
  %v351 = vand.u32 %v226, 2147483648
  %v352 = vor.u32 1.1754944e-38, %v351
  %v353 = vsel %vm350, %v352, %v348
  %v354 = vmul.f32 1.0, %v353
  %v355 = vrcp.pop %v227
  %v356 = vmul.f32 %v227, %v355
  %v357 = vsub.f32 1.0, %v356
  %v358 = vmul.f32 %v355, %v357
  %v359 = vadd.f32 %v355, %v358
  %vm360 = vweird.f32 %v227
  %vm361 = vweird.f32 %v355
  %vm362 = vmor %vm360, %vm361
  %v363 = vsel %vm362, %v355, %v359
  %v364 = vand.u32 2147483647, %v227
  %vm365 = vcmp.eq.f32.partialorder %v364, 8.507059e+37
  %v366 = vand.u32 %v227, 2147483648
  %v367 = vor.u32 1.1754944e-38, %v366
  %v368 = vsel %vm365, %v367, %v363
  %v369 = vmul.f32 1.0, %v368
  %v370 = vrcp.pop %v228
  %v371 = vmul.f32 %v228, %v370
  %v372 = vsub.f32 1.0, %v371
  %v373 = vmul.f32 %v370, %v372
  %v374 = vadd.f32 %v370, %v373
  %vm375 = vweird.f32 %v228
  %vm376 = vweird.f32 %v370
  %vm377 = vmor %vm375, %vm376
  %v378 = vsel %vm377, %v370, %v374
  %v379 = vand.u32 2147483647, %v228
  %vm380 = vcmp.eq.f32.partialorder %v379, 8.507059e+37
  %v381 = vand.u32 %v228, 2147483648
  %v382 = vor.u32 1.1754944e-38, %v381
  %v383 = vsel %vm380, %v382, %v378
  %v384 = vmul.f32 1.0, %v383
  %v385 = vrcp.pop %v229
  %v386 = vmul.f32 %v229, %v385
  %v387 = vsub.f32 1.0, %v386
  %v388 = vmul.f32 %v385, %v387
  %v389 = vadd.f32 %v385, %v388
  %vm390 = vweird.f32 %v229
  %vm391 = vweird.f32 %v385
  %vm392 = vmor %vm390, %vm391
  %v393 = vsel %vm392, %v385, %v389
  %v394 = vand.u32 2147483647, %v229
  %vm395 = vcmp.eq.f32.partialorder %v394, 8.507059e+37
  %v396 = vand.u32 %v229, 2147483648
  %v397 = vor.u32 1.1754944e-38, %v396
  %v398 = vsel %vm395, %v397, %v393
  %v399 = vmul.f32 1.0, %v398
  %v400 = vrcp.pop %v230
  %v401 = vmul.f32 %v230, %v400
  %v402 = vsub.f32 1.0, %v401
  %v403 = vmul.f32 %v400, %v402
  %v404 = vadd.f32 %v400, %v403
  %vm405 = vweird.f32 %v230
  %vm406 = vweird.f32 %v400
  %vm407 = vmor %vm405, %vm406
  %v408 = vsel %vm407, %v400, %v404
  %v409 = vand.u32 2147483647, %v230
  %vm410 = vcmp.eq.f32.partialorder %v409, 8.507059e+37
  %v411 = vand.u32 %v230, 2147483648
  %v412 = vor.u32 1.1754944e-38, %v411
  %v413 = vsel %vm410, %v412, %v408
  %v414 = vmul.f32 1.0, %v413
  %v415 = vrcp.pop %v231
  %v416 = vmul.f32 %v231, %v415
  %v417 = vsub.f32 1.0, %v416
  %v418 = vmul.f32 %v415, %v417
  %v419 = vadd.f32 %v415, %v418
  %vm420 = vweird.f32 %v231
  %vm421 = vweird.f32 %v415
  %vm422 = vmor %vm420, %vm421
  %v423 = vsel %vm422, %v415, %v419
  %v424 = vand.u32 2147483647, %v231
  %vm425 = vcmp.eq.f32.partialorder %v424, 8.507059e+37
  %v426 = vand.u32 %v231, 2147483648
  %v427 = vor.u32 1.1754944e-38, %v426
  %v428 = vsel %vm425, %v427, %v423
  %v429 = vmul.f32 1.0, %v428
  %v430 = vrcp.pop %v232
  %v431 = vmul.f32 %v232, %v430
  %v432 = vsub.f32 1.0, %v431
  %v433 = vmul.f32 %v430, %v432
  %v434 = vadd.f32 %v430, %v433
  %vm435 = vweird.f32 %v232
  %vm436 = vweird.f32 %v430
  %vm437 = vmor %vm435, %vm436
  %v438 = vsel %vm437, %v430, %v434
  %v439 = vand.u32 2147483647, %v232
  %vm440 = vcmp.eq.f32.partialorder %v439, 8.507059e+37
  %v441 = vand.u32 %v232, 2147483648
  %v442 = vor.u32 1.1754944e-38, %v441
  %v443 = vsel %vm440, %v442, %v438
  %v444 = vmul.f32 1.0, %v443
  %v445 = vrcp.pop %v233
  %v446 = vmul.f32 %v233, %v445
  %v447 = vsub.f32 1.0, %v446
  %v448 = vmul.f32 %v445, %v447
  %v449 = vadd.f32 %v445, %v448
  %vm450 = vweird.f32 %v233
  %vm451 = vweird.f32 %v445
  %vm452 = vmor %vm450, %vm451
  %v453 = vsel %vm452, %v445, %v449
  %v454 = vand.u32 2147483647, %v233
  %vm455 = vcmp.eq.f32.partialorder %v454, 8.507059e+37
  %v456 = vand.u32 %v233, 2147483648
  %v457 = vor.u32 1.1754944e-38, %v456
  %v458 = vsel %vm455, %v457, %v453
  %v459 = vmul.f32 1.0, %v458
  %v460 = vrcp.pop %v234
  %v461 = vmul.f32 %v234, %v460
  %v462 = vsub.f32 1.0, %v461
  %v463 = vmul.f32 %v460, %v462
  %v464 = vadd.f32 %v460, %v463
  %vm465 = vweird.f32 %v234
  %vm466 = vweird.f32 %v460
  %vm467 = vmor %vm465, %vm466
  %v468 = vsel %vm467, %v460, %v464
  %v469 = vand.u32 2147483647, %v234
  %vm470 = vcmp.eq.f32.partialorder %v469, 8.507059e+37
  %v471 = vand.u32 %v234, 2147483648
  %v472 = vor.u32 1.1754944e-38, %v471
  %v473 = vsel %vm470, %v472, %v468
  %v474 = vmul.f32 1.0, %v473
  %v475 = vmul.f32 %v155, %v249
  %v476 = vmul.f32 %v156, %v264
  %v477 = vmul.f32 %v157, %v279
  %v478 = vmul.f32 %v158, %v294
  %v479 = vmul.f32 %v159, %v309
  %v480 = vmul.f32 %v160, %v324
  %v481 = vmul.f32 %v161, %v339
  %v482 = vmul.f32 %v162, %v354
  %v483 = vmul.f32 %v163, %v369
  %v484 = vmul.f32 %v164, %v384
  %v485 = vmul.f32 %v165, %v399
  %v486 = vmul.f32 %v166, %v414
  %v487 = vmul.f32 %v167, %v429
  %v488 = vmul.f32 %v168, %v444
  %v489 = vmul.f32 %v169, %v459
  %v490 = vmul.f32 %v170, %v474
  %v491 = vpack.c.bf16 %v475, %v475
  %v492 = vpack.c.bf16 %v476, %v476
  %v493 = vpack.c.bf16 %v477, %v477
  %v494 = vpack.c.bf16 %v478, %v478
  %v495 = vpack.c.bf16 %v479, %v479
  %v496 = vpack.c.bf16 %v480, %v480
  %v497 = vpack.c.bf16 %v481, %v481
  %v498 = vpack.c.bf16 %v482, %v482
  %v499 = vpack.c.bf16 %v483, %v483
  %v500 = vpack.c.bf16 %v484, %v484
  %v501 = vpack.c.bf16 %v485, %v485
  %v502 = vpack.c.bf16 %v486, %v486
  %v503 = vpack.c.bf16 %v487, %v487
  %v504 = vpack.c.bf16 %v488, %v488
  %v505 = vpack.c.bf16 %v489, %v489
  %v506 = vpack.c.bf16 %v490, %v490
  %vm507 = vcmask 125952
  %508 = vst.msk [vmem:[%s5] sm:$0xf] %vm507, %v491
  %509 = vst.msk [vmem:[%s5 + $0x4] sm:$0xf] %vm507, %v492
  %510 = vst.msk [vmem:[%s5 + $0x8] sm:$0xf] %vm507, %v493
  %511 = vst.msk [vmem:[%s5 + $0xc] sm:$0xf] %vm507, %v494
  %512 = vst.msk [vmem:[%s5 + $0x10] sm:$0xf] %vm507, %v495
  %513 = vst.msk [vmem:[%s5 + $0x14] sm:$0xf] %vm507, %v496
  %514 = vst.msk [vmem:[%s5 + $0x18] sm:$0xf] %vm507, %v497
  %515 = vst.msk [vmem:[%s5 + $0x1c] sm:$0xf] %vm507, %v498
  %516 = vst.msk [vmem:[%s5 + $0x20] sm:$0xf] %vm507, %v499
  %517 = vst.msk [vmem:[%s5 + $0x24] sm:$0xf] %vm507, %v500
  %518 = vst.msk [vmem:[%s5 + $0x28] sm:$0xf] %vm507, %v501
  %519 = vst.msk [vmem:[%s5 + $0x2c] sm:$0xf] %vm507, %v502
  %520 = vst.msk [vmem:[%s5 + $0x30] sm:$0xf] %vm507, %v503
  %521 = vst.msk [vmem:[%s5 + $0x34] sm:$0xf] %vm507, %v504
  %522 = vst.msk [vmem:[%s5 + $0x38] sm:$0xf] %vm507, %v505
  %523 = vst.msk [vmem:[%s5 + $0x3c] sm:$0xf] %vm507, %v506
  // Predicated region
  $region22: #{_lambda_.27} parent=0 // pred_check
    _
  $region23: #{_lambda_.27} parent=0 // pred_check_branch
    %525 = sbr.rel (0) target = $region25
  $region24: #{_lambda_.27} parent=0 // pred_region
    _
  $region25: #{_lambda_.27} parent=0 // pred_fallthru
    _
  // Predicated region
  $region26: #{_lambda_.27} parent=0 // pred_check
    _
  $region27: #{_lambda_.27} parent=0 // pred_check_branch
    %527 = sbr.rel (0) target = $region29
  $region28: #{_lambda_.27} parent=0 // pred_region
    _
  $region29: #{_lambda_.27} parent=0 // pred_fallthru
    _

// kernel: _lambda_.28
$region0: #{_lambda_.28}
  #allocation0 [shape = 'u32[]', space=smem, size = 0x4, offset = 0x4, fixed_abs, tag = 'smem constant byte address 0x4 - core index']
  #allocation1 [shape = 'u32[72,128]{1,0:T(1,128)}', space=vmem, size = 0x9000, scoped, tag = 'internal scratch']
  %s0 = inlined_call_operand.vmem [shape: bf16[2,8,8,16], index: 0, kind: input, shape index: {}]
  %s1 = inlined_call_operand.vmem [shape: f32[3,3,16], index: 1, kind: input, shape index: {}]
  %s2 = inlined_call_operand.vmem [shape: f32[1,16], index: 2, kind: input, shape index: {}]
  %s3 = inlined_call_operand.vmem [shape: bf16[2,8,8,16], index: 3, kind: output, shape index: {0}]
  %s4 = inlined_call_operand.vmem [shape: f32[2,1,16], index: 4, kind: output, shape index: {1}]
  %5 = xla_tuple %s3, %s4
  %s6 = sld [smem:[#allocation0]]
  $region53: #{_lambda_.28} parent=0
    _
  %s8 = ssub.s32 1, %s6
  %s9 = scalar_select 0, %s8, %s6
  loop: start=0, step=1, limit=4
  $region2: #{_lambda_.28} parent=0 // loop_pre_header
    _
  $region3: #{_lambda_.28} parent=0 // loop_header
    %s11 = sphi 0, %s15
    %p12 = scmp.ge.s32.totalorder %s11, 4
    %s18 = sphi 0, %s30
    %s19 = sphi 0, %s26
    %s20 = sphi 0, %s18
    %s21 = sphi 0, %s19
    %s22 = sphi 0, %s20
    %s23 = sphi 0, %s21
    %s35 = sphi 0, %s37
    %s38 = sphi 0, %s35
    %s39 = sphi 0, %s38
    %s55 = sphi 0, %s39
    %s61 = sphi 0, %s63
    %s64 = sphi 0, %s61
    %s65 = sphi 0, %s64
    %s81 = sphi 0, %s65
    %s87 = sphi 0, %s89
    %s90 = sphi 0, %s87
    %s91 = sphi 0, %s90
    %s107 = sphi 0, %s91
    %s115 = sphi 0, %s117
    %s118 = sphi 0, %s115
    %s119 = sphi 0, %s118
    %s135 = sphi 0, %s119
    %s143 = sphi 0, %s145
    %s146 = sphi 0, %s143
    %s147 = sphi 0, %s146
    %s163 = sphi 0, %s147
  $region4: #{_lambda_.28} parent=0 // loop_header_branch
    %14 = sbr.rel (%p12) target = $region8
  $region5: #{_lambda_.28} parent=0 // loop_body
    %s16 = ssub.s32 %s11, 1
    %s17 = ssub.s32 %s11, 2
    %s24 = sadd.s32 1, %s19
    %p25 = scmp.ge.s32.totalorder %s24, 1
    %s26 = scalar_select %p25, 0, %s24
    %s27 = sadd.s32 1, %s18
    %s28 = scalar_select %p25, %s27, %s18
    %p29 = scmp.ge.s32.totalorder %s28, 2
    %s30 = scalar_select %p29, 0, %s28
    %s31 = ssub.s32 %s18, %s30
    %s32 = ssub.s32 %s19, %s26
    %s33 = sor.u32 %s31, %s32
    %p34 = scmp.eq.s32.totalorder %s33, 0
    %s36 = sadd.s32 %s35, 1
    %s37 = scalar_select %p34, %s35, %s36
    %p40 = pneg %p34
    %p41 = scmp.eq.s32.totalorder %s11, 1
    %p42 = por %p40, %p41
    %p43 = scmp.ne.s32.totalorder %s35, %s38
    %p44 = scmp.eq.s32.totalorder %s11, 0
    %p45 = por %p43, %p44
    %p46 = scmp.ne.s32.totalorder %s35, %s38
    %p47 = scmp.eq.s32.totalorder %s16, 1
    %p48 = por %p46, %p47
    %p49 = scmp.ne.s32.totalorder %s38, %s39
    %p50 = scmp.eq.s32.totalorder %s16, 0
    %p51 = por %p49, %p50
    %p52 = scmp.ne.s32.totalorder %s38, %s39
    %p53 = scmp.eq.s32.totalorder %s17, 1
    %p54 = por %p52, %p53
    %p56 = scmp.ne.s32.totalorder %s39, %s55
    %p57 = scmp.eq.s32.totalorder %s17, 0
    %p58 = por %p56, %p57
    %s59 = ssub.s32 %s19, %s26
    %p60 = scmp.eq.s32.totalorder %s59, 0
    %s62 = sadd.s32 %s61, 1
    %s63 = scalar_select %p60, %s61, %s62
    %p66 = pneg %p60
    %p67 = scmp.eq.s32.totalorder %s11, 1
    %p68 = por %p66, %p67
    %p69 = scmp.ne.s32.totalorder %s61, %s64
    %p70 = scmp.eq.s32.totalorder %s11, 0
    %p71 = por %p69, %p70
    %p72 = scmp.ne.s32.totalorder %s61, %s64
    %p73 = scmp.eq.s32.totalorder %s16, 1
    %p74 = por %p72, %p73
    %p75 = scmp.ne.s32.totalorder %s64, %s65
    %p76 = scmp.eq.s32.totalorder %s16, 0
    %p77 = por %p75, %p76
    %p78 = scmp.ne.s32.totalorder %s64, %s65
    %p79 = scmp.eq.s32.totalorder %s17, 1
    %p80 = por %p78, %p79
    %p82 = scmp.ne.s32.totalorder %s65, %s81
    %p83 = scmp.eq.s32.totalorder %s17, 0
    %p84 = por %p82, %p83
    %s85 = ssub.s32 %s19, %s26
    %p86 = scmp.eq.s32.totalorder %s85, 0
    %s88 = sadd.s32 %s87, 1
    %s89 = scalar_select %p86, %s87, %s88
    %p92 = pneg %p86
    %p93 = scmp.eq.s32.totalorder %s11, 1
    %p94 = por %p92, %p93
    %p95 = scmp.ne.s32.totalorder %s87, %s90
    %p96 = scmp.eq.s32.totalorder %s11, 0
    %p97 = por %p95, %p96
    %p98 = scmp.ne.s32.totalorder %s87, %s90
    %p99 = scmp.eq.s32.totalorder %s16, 1
    %p100 = por %p98, %p99
    %p101 = scmp.ne.s32.totalorder %s90, %s91
    %p102 = scmp.eq.s32.totalorder %s16, 0
    %p103 = por %p101, %p102
    %p104 = scmp.ne.s32.totalorder %s90, %s91
    %p105 = scmp.eq.s32.totalorder %s17, 1
    %p106 = por %p104, %p105
    %p108 = scmp.ne.s32.totalorder %s91, %s107
    %p109 = scmp.eq.s32.totalorder %s17, 0
    %p110 = por %p108, %p109
    %s111 = ssub.s32 %s18, %s30
    %s112 = ssub.s32 %s19, %s26
    %s113 = sor.u32 %s111, %s112
    %p114 = scmp.eq.s32.totalorder %s113, 0
    %s116 = sadd.s32 %s115, 1
    %s117 = scalar_select %p114, %s115, %s116
    %p120 = pneg %p114
    %p121 = scmp.eq.s32.totalorder %s11, 1
    %p122 = por %p120, %p121
    %p123 = scmp.ne.s32.totalorder %s115, %s118
    %p124 = scmp.eq.s32.totalorder %s11, 0
    %p125 = por %p123, %p124
    %p126 = scmp.ne.s32.totalorder %s115, %s118
    %p127 = scmp.eq.s32.totalorder %s16, 1
    %p128 = por %p126, %p127
    %p129 = scmp.ne.s32.totalorder %s118, %s119
    %p130 = scmp.eq.s32.totalorder %s16, 0
    %p131 = por %p129, %p130
    %p132 = scmp.ne.s32.totalorder %s118, %s119
    %p133 = scmp.eq.s32.totalorder %s17, 1
    %p134 = por %p132, %p133
    %p136 = scmp.ne.s32.totalorder %s119, %s135
    %p137 = scmp.eq.s32.totalorder %s17, 0
    %p138 = por %p136, %p137
    %s139 = ssub.s32 %s18, %s30
    %s140 = ssub.s32 %s19, %s26
    %s141 = sor.u32 %s139, %s140
    %p142 = scmp.eq.s32.totalorder %s141, 0
    %s144 = sadd.s32 %s143, 1
    %s145 = scalar_select %p142, %s143, %s144
    %p148 = pneg %p142
    %p149 = scmp.eq.s32.totalorder %s11, 1
    %p150 = por %p148, %p149
    %p151 = scmp.ne.s32.totalorder %s143, %s146
    %p152 = scmp.eq.s32.totalorder %s11, 0
    %p153 = por %p151, %p152
    %p154 = scmp.ne.s32.totalorder %s143, %s146
    %p155 = scmp.eq.s32.totalorder %s16, 1
    %p156 = por %p154, %p155
    %p157 = scmp.ne.s32.totalorder %s146, %s147
    %p158 = scmp.eq.s32.totalorder %s16, 0
    %p159 = por %p157, %p158
    %p160 = scmp.ne.s32.totalorder %s146, %s147
    %p161 = scmp.eq.s32.totalorder %s17, 1
    %p162 = por %p160, %p161
    %p164 = scmp.ne.s32.totalorder %s147, %s163
    %p165 = scmp.eq.s32.totalorder %s17, 0
    %p166 = por %p164, %p165
    %p167 = scmp.le.s32.totalorder 1, %s11
    %p168 = scmp.lt.s32.totalorder %s11, 3
    %p169 = pnand %p167, %p168
    %p170 = pneg %p169
    // Predicated region
    $region9: #{_lambda_.28} parent=5 // pred_check
      _
    $region10: #{_lambda_.28} parent=5 // pred_check_branch
      %172 = sbr.rel (%p169) target = $region12
    $region11: #{_lambda_.28} parent=5 // pred_region
      %s173 = ssub.s32 %s11, 1
      // Predicated region
      $region13: #{_lambda_.28} parent=11 // pred_check
        %p174 = pneg %p77
      $region14: #{_lambda_.28} parent=11 // pred_check_branch
        %176 = sbr.rel (%p174) target = $region16
      $region15: #{_lambda_.28} parent=11 // pred_region
        %p177 = scmp.lt.s32.totalorder %s21, 0
        %s178 = scalar_select %p177, %s21, 0
        %s179 = smul.addr %s178, 4
        %s180 = scalar_lea.vmem %s1, %s179
      $region16: #{_lambda_.28} parent=11 // pred_fallthru
        _
      // Predicated region
      $region17: #{_lambda_.28} parent=11 // pred_check
        %p181 = pneg %p103
      $region18: #{_lambda_.28} parent=11 // pred_check_branch
        %183 = sbr.rel (%p181) target = $region20
      $region19: #{_lambda_.28} parent=11 // pred_region
        %p184 = scmp.lt.s32.totalorder %s21, 0
        %s185 = scalar_select %p184, %s21, 0
        %s186 = scalar_lea.vmem %s2, %s185
      $region20: #{_lambda_.28} parent=11 // pred_fallthru
        _
    $region12: #{_lambda_.28} parent=5 // pred_fallthru
      _
    %p187 = scmp.lt.s32.totalorder %s11, 2
    // Predicated region
    $region21: #{_lambda_.28} parent=5 // pred_check
      %p188 = pneg %p187
    $region22: #{_lambda_.28} parent=5 // pred_check_branch
      %190 = sbr.rel (%p188) target = $region24
    $region23: #{_lambda_.28} parent=5 // pred_region
      // Predicated region
      $region25: #{_lambda_.28} parent=23 // pred_check
        %p191 = pneg %p45
      $region26: #{_lambda_.28} parent=23 // pred_check_branch
        %193 = sbr.rel (%p191) target = $region28
      $region27: #{_lambda_.28} parent=23 // pred_region
        %p194 = scmp.lt.s32.totalorder %s18, 1
        %s195 = scalar_select %p194, %s18, 1
        %p196 = scmp.lt.s32.totalorder %s19, 0
        %s197 = scalar_select %p196, %s19, 0
        %s198 = smul.addr %s195, 8
        %s199 = sadd.s32 %s197, %s198
        %s200 = smul.addr %s199, 4
        %s201 = scalar_lea.vmem %s0, %s200
      $region28: #{_lambda_.28} parent=23 // pred_fallthru
        _
    $region24: #{_lambda_.28} parent=5 // pred_fallthru
      _
    %p202 = scmp.le.s32.totalorder 1, %s11
    %p203 = scmp.lt.s32.totalorder %s11, 3
    %p204 = pnand %p202, %p203
    %p205 = pneg %p204
    // Predicated region
    $region29: #{_lambda_.28} parent=5 // pred_check
      _
    $region30: #{_lambda_.28} parent=5 // pred_check_branch
      %207 = sbr.rel (%p204) target = $region32
    $region31: #{_lambda_.28} parent=5 // pred_region
      %s208 = ssub.s32 %s11, 1
      %p209 = scmp.lt.s32.totalorder %s20, 1
      %s210 = scalar_select %p209, %s20, 1
      %p211 = scmp.lt.s32.totalorder %s21, 0
      %s212 = scalar_select %p211, %s21, 0
      %s213 = smul.addr %s210, 8
      %s214 = sadd.s32 %s212, %s213
      %s215 = smul.addr %s214, 4
      %s216 = scalar_lea.vmem %s0, %s215
      %p217 = pneg %p51
      %p218 = pneg %p48
      %p219 = scmp.lt.s32.totalorder %s21, 0
      %s220 = scalar_select %p219, %s21, 0
      %s221 = smul.addr %s220, 4
      %s222 = scalar_lea.vmem %s1, %s221
      %p223 = pneg %p77
      %p224 = pneg %p74
      %p225 = scmp.lt.s32.totalorder %s21, 0
      %s226 = scalar_select %p225, %s21, 0
      %s227 = scalar_lea.vmem %s2, %s226
      %p228 = pneg %p103
      %p229 = pneg %p100
      %p230 = pneg %p131
      %p231 = pneg %p128
      %p232 = scmp.lt.s32.totalorder %s20, 1
      %s233 = scalar_select %p232, %s20, 1
      %p234 = scmp.lt.s32.totalorder %s21, 0
      %s235 = scalar_select %p234, %s21, 0
      %s236 = smul.addr %s233, 8
      %s237 = sadd.s32 %s235, %s236
      %s238 = smul.addr %s237, 4
      %s239 = scalar_lea.vmem %s3, %s238
      %p240 = pneg %p159
      %p241 = pneg %p156
      %p242 = scmp.lt.s32.totalorder %s20, 1
      %s243 = scalar_select %p242, %s20, 1
      %p244 = scmp.lt.s32.totalorder %s21, 0
      %s245 = scalar_select %p244, %s21, 0
      %s246 = sadd.s32 %s245, %s243
      %s247 = scalar_lea.vmem %s4, %s246
      %p248 = scmp.lt.s32.totalorder %s20, 1
      %s249 = scalar_select %p248, %s20, 1
      %p250 = scmp.lt.s32.totalorder %s21, 0
      %s251 = scalar_select %p250, %s21, 0
      %s252 = smul.addr %s249, 8
      %s253 = sadd.s32 %s251, %s252
      %s254 = smul.addr %s253, 4
      %s255 = scalar_lea.vmem %s0, %s254
      %p256 = scmp.lt.s32.totalorder %s21, 0
      %s257 = scalar_select %p256, %s21, 0
      %s258 = smul.addr %s257, 4
      %s259 = scalar_lea.vmem %s1, %s258
      %p260 = scmp.lt.s32.totalorder %s21, 0
      %s261 = scalar_select %p260, %s21, 0
      %s262 = scalar_lea.vmem %s2, %s261
      %p263 = scmp.lt.s32.totalorder %s20, 1
      %s264 = scalar_select %p263, %s20, 1
      %p265 = scmp.lt.s32.totalorder %s21, 0
      %s266 = scalar_select %p265, %s21, 0
      %s267 = smul.addr %s264, 8
      %s268 = sadd.s32 %s266, %s267
      %s269 = smul.addr %s268, 4
      %s270 = scalar_lea.vmem %s3, %s269
      %p271 = scmp.lt.s32.totalorder %s20, 1
      %s272 = scalar_select %p271, %s20, 1
      %p273 = scmp.lt.s32.totalorder %s21, 0
      %s274 = scalar_select %p273, %s21, 0
      %s275 = sadd.s32 %s274, %s272
      %s276 = scalar_lea.vmem %s4, %s275
      %v277 = vld [vmem:[%s255] sm:$0xf]
      %v278 = vld [vmem:[%s255 + $0x4] sm:$0xf]
      %v279 = vld [vmem:[%s255 + $0x8] sm:$0xf]
      %v280 = vld [vmem:[%s255 + $0xc] sm:$0xf]
      %v281 = vld [vmem:[%s255 + $0x10] sm:$0xf]
      %v282 = vld [vmem:[%s255 + $0x14] sm:$0xf]
      %v283 = vld [vmem:[%s255 + $0x18] sm:$0xf]
      %v284 = vld [vmem:[%s255 + $0x1c] sm:$0xf]
      %v285 = vunpack.c.l.bf16 %v277
      %v286 = vunpack.c.l.bf16 %v278
      %v287 = vunpack.c.l.bf16 %v279
      %v288 = vunpack.c.l.bf16 %v280
      %v289 = vunpack.c.l.bf16 %v281
      %v290 = vunpack.c.l.bf16 %v282
      %v291 = vunpack.c.l.bf16 %v283
      %v292 = vunpack.c.l.bf16 %v284
      %v293 = vld [vmem:[%s262] sm:$0x1]
      %v295 = vperm.slane %v293, 0
      %v297 = vadd.f32 %v295, 0.0
      %v306 = vrot.slane 0.0, 7
      %v307 = vrot.slane %v285, 7
      %v308 = vrot.slane %v286, 7
      %v309 = vrot.slane %v287, 7
      %v310 = vrot.slane %v288, 7
      %v311 = vrot.slane %v289, 7
      %v312 = vrot.slane %v290, 7
      %v313 = vrot.slane %v291, 7
      %vm322 = vcmask 1040384
      %v323 = vsel %vm322, 0.0, %v306
      %v324 = vsel %vm322, 0.0, %v307
      %v325 = vsel %vm322, 0.0, %v308
      %v326 = vsel %vm322, 0.0, %v309
      %v327 = vsel %vm322, 0.0, %v310
      %v328 = vsel %vm322, 0.0, %v311
      %v329 = vsel %vm322, 0.0, %v312
      %v330 = vsel %vm322, 0.0, %v313
      %v331 = vld [vmem:[%s259] sm:$0x1]
      %v332 = vperm.slane %v331, 0
      %v333 = vmul.f32 %v323, %v332
      %v334 = vmul.f32 %v324, %v332
      %v335 = vmul.f32 %v325, %v332
      %v336 = vmul.f32 %v326, %v332
      %v337 = vmul.f32 %v327, %v332
      %v338 = vmul.f32 %v328, %v332
      %v339 = vmul.f32 %v329, %v332
      %v340 = vmul.f32 %v330, %v332
      %v341 = vadd.f32 %v297, %v333
      %v342 = vadd.f32 %v297, %v334
      %v343 = vadd.f32 %v297, %v335
      %v344 = vadd.f32 %v297, %v336
      %v345 = vadd.f32 %v297, %v337
      %v346 = vadd.f32 %v297, %v338
      %v347 = vadd.f32 %v297, %v339
      %v348 = vadd.f32 %v297, %v340
      %v349 = vld [vmem:[%s259 + $0x1] sm:$0x1]
      %v350 = vperm.slane %v349, 0
      %v351 = vmul.f32 %v350, 0.0
      %v352 = vmul.f32 %v285, %v350
      %v353 = vmul.f32 %v286, %v350
      %v354 = vmul.f32 %v287, %v350
      %v355 = vmul.f32 %v288, %v350
      %v356 = vmul.f32 %v289, %v350
      %v357 = vmul.f32 %v290, %v350
      %v358 = vmul.f32 %v291, %v350
      %v359 = vadd.f32 %v341, %v351
      %v360 = vadd.f32 %v342, %v352
      %v361 = vadd.f32 %v343, %v353
      %v362 = vadd.f32 %v344, %v354
      %v363 = vadd.f32 %v345, %v355
      %v364 = vadd.f32 %v346, %v356
      %v365 = vadd.f32 %v347, %v357
      %v366 = vadd.f32 %v348, %v358
      %v367 = vrot.slane 0.0, 1
      %v368 = vrot.slane %v285, 1
      %v369 = vrot.slane %v286, 1
      %v370 = vrot.slane %v287, 1
      %v371 = vrot.slane %v288, 1
      %v372 = vrot.slane %v289, 1
      %v373 = vrot.slane %v290, 1
      %v374 = vrot.slane %v291, 1
      %vm383 = vcmask 1046528
      %v384 = vsel %vm383, %v367, 0.0
      %v385 = vsel %vm383, %v368, 0.0
      %v386 = vsel %vm383, %v369, 0.0
      %v387 = vsel %vm383, %v370, 0.0
      %v388 = vsel %vm383, %v371, 0.0
      %v389 = vsel %vm383, %v372, 0.0
      %v390 = vsel %vm383, %v373, 0.0
      %v391 = vsel %vm383, %v374, 0.0
      %v392 = vld [vmem:[%s259 + $0x2] sm:$0x1]
      %v393 = vperm.slane %v392, 0
      %v394 = vmul.f32 %v384, %v393
      %v395 = vmul.f32 %v385, %v393
      %v396 = vmul.f32 %v386, %v393
      %v397 = vmul.f32 %v387, %v393
      %v398 = vmul.f32 %v388, %v393
      %v399 = vmul.f32 %v389, %v393
      %v400 = vmul.f32 %v390, %v393
      %v401 = vmul.f32 %v391, %v393
      %v402 = vadd.f32 %v359, %v394
      %v403 = vadd.f32 %v360, %v395
      %v404 = vadd.f32 %v361, %v396
      %v405 = vadd.f32 %v362, %v397
      %v406 = vadd.f32 %v363, %v398
      %v407 = vadd.f32 %v364, %v399
      %v408 = vadd.f32 %v365, %v400
      %v409 = vadd.f32 %v366, %v401
      %v411 = vrot.slane %v292, 7
      %v413 = vsel %vm322, 0.0, %v411
      %s414 = scalar_lea.vmem %s259, 4
      %v415 = vld [vmem:[%s414] sm:$0x1]
      %v416 = vperm.slane %v415, 0
      %v417 = vmul.f32 %v324, %v416
      %v418 = vmul.f32 %v325, %v416
      %v419 = vmul.f32 %v326, %v416
      %v420 = vmul.f32 %v327, %v416
      %v421 = vmul.f32 %v328, %v416
      %v422 = vmul.f32 %v329, %v416
      %v423 = vmul.f32 %v330, %v416
      %v424 = vmul.f32 %v413, %v416
      %v425 = vadd.f32 %v402, %v417
      %v426 = vadd.f32 %v403, %v418
      %v427 = vadd.f32 %v404, %v419
      %v428 = vadd.f32 %v405, %v420
      %v429 = vadd.f32 %v406, %v421
      %v430 = vadd.f32 %v407, %v422
      %v431 = vadd.f32 %v408, %v423
      %v432 = vadd.f32 %v409, %v424
      %v433 = vld [vmem:[%s414 + $0x1] sm:$0x1]
      %v434 = vperm.slane %v433, 0
      %v435 = vmul.f32 %v285, %v434
      %v436 = vmul.f32 %v286, %v434
      %v437 = vmul.f32 %v287, %v434
      %v438 = vmul.f32 %v288, %v434
      %v439 = vmul.f32 %v289, %v434
      %v440 = vmul.f32 %v290, %v434
      %v441 = vmul.f32 %v291, %v434
      %v442 = vmul.f32 %v292, %v434
      %v443 = vadd.f32 %v425, %v435
      %v444 = vadd.f32 %v426, %v436
      %v445 = vadd.f32 %v427, %v437
      %v446 = vadd.f32 %v428, %v438
      %v447 = vadd.f32 %v429, %v439
      %v448 = vadd.f32 %v430, %v440
      %v449 = vadd.f32 %v431, %v441
      %v450 = vadd.f32 %v432, %v442
      %v451 = vrot.slane %v292, 1
      %v453 = vsel %vm383, %v451, 0.0
      %v454 = vld [vmem:[%s414 + $0x2] sm:$0x1]
      %v455 = vperm.slane %v454, 0
      %v456 = vmul.f32 %v385, %v455
      %v457 = vmul.f32 %v386, %v455
      %v458 = vmul.f32 %v387, %v455
      %v459 = vmul.f32 %v388, %v455
      %v460 = vmul.f32 %v389, %v455
      %v461 = vmul.f32 %v390, %v455
      %v462 = vmul.f32 %v391, %v455
      %v463 = vmul.f32 %v453, %v455
      %v464 = vadd.f32 %v443, %v456
      %v465 = vadd.f32 %v444, %v457
      %v466 = vadd.f32 %v445, %v458
      %v467 = vadd.f32 %v446, %v459
      %v468 = vadd.f32 %v447, %v460
      %v469 = vadd.f32 %v448, %v461
      %v470 = vadd.f32 %v449, %v462
      %v471 = vadd.f32 %v450, %v463
      %s472 = scalar_lea.vmem %s259, 8
      %v473 = vld [vmem:[%s472] sm:$0x1]
      %v474 = vperm.slane %v473, 0
      %v475 = vmul.f32 %v325, %v474
      %v476 = vmul.f32 %v326, %v474
      %v477 = vmul.f32 %v327, %v474
      %v478 = vmul.f32 %v328, %v474
      %v479 = vmul.f32 %v329, %v474
      %v480 = vmul.f32 %v330, %v474
      %v481 = vmul.f32 %v413, %v474
      %v482 = vmul.f32 %v323, %v474
      %v483 = vadd.f32 %v464, %v475
      %v484 = vadd.f32 %v465, %v476
      %v485 = vadd.f32 %v466, %v477
      %v486 = vadd.f32 %v467, %v478
      %v487 = vadd.f32 %v468, %v479
      %v488 = vadd.f32 %v469, %v480
      %v489 = vadd.f32 %v470, %v481
      %v490 = vadd.f32 %v471, %v482
      %v491 = vld [vmem:[%s472 + $0x1] sm:$0x1]
      %v492 = vperm.slane %v491, 0
      %v493 = vmul.f32 %v286, %v492
      %v494 = vmul.f32 %v287, %v492
      %v495 = vmul.f32 %v288, %v492
      %v496 = vmul.f32 %v289, %v492
      %v497 = vmul.f32 %v290, %v492
      %v498 = vmul.f32 %v291, %v492
      %v499 = vmul.f32 %v292, %v492
      %v500 = vmul.f32 %v492, 0.0
      %v501 = vadd.f32 %v483, %v493
      %v502 = vadd.f32 %v484, %v494
      %v503 = vadd.f32 %v485, %v495
      %v504 = vadd.f32 %v486, %v496
      %v505 = vadd.f32 %v487, %v497
      %v506 = vadd.f32 %v488, %v498
      %v507 = vadd.f32 %v489, %v499
      %v508 = vadd.f32 %v490, %v500
      %v509 = vld [vmem:[%s472 + $0x2] sm:$0x1]
      %v510 = vperm.slane %v509, 0
      %v511 = vmul.f32 %v386, %v510
      %v512 = vmul.f32 %v387, %v510
      %v513 = vmul.f32 %v388, %v510
      %v514 = vmul.f32 %v389, %v510
      %v515 = vmul.f32 %v390, %v510
      %v516 = vmul.f32 %v391, %v510
      %v517 = vmul.f32 %v453, %v510
      %v518 = vmul.f32 %v384, %v510
      %v519 = vadd.f32 %v501, %v511
      %v520 = vadd.f32 %v502, %v512
      %v521 = vadd.f32 %v503, %v513
      %v522 = vadd.f32 %v504, %v514
      %v523 = vadd.f32 %v505, %v515
      %v524 = vadd.f32 %v506, %v516
      %v525 = vadd.f32 %v507, %v517
      %v526 = vadd.f32 %v508, %v518
      %v527 = vpack.c.bf16 %v519, %v519
      %v528 = vpack.c.bf16 %v520, %v520
      %v529 = vpack.c.bf16 %v521, %v521
      %v530 = vpack.c.bf16 %v522, %v522
      %v531 = vpack.c.bf16 %v523, %v523
      %v532 = vpack.c.bf16 %v524, %v524
      %v533 = vpack.c.bf16 %v525, %v525
      %v534 = vpack.c.bf16 %v526, %v526
      %vm535 = vcmask 125952
      %536 = vst.msk [vmem:[%s270] sm:$0xf] %vm535, %v527
      %537 = vst.msk [vmem:[%s270 + $0x4] sm:$0xf] %vm535, %v528
      %538 = vst.msk [vmem:[%s270 + $0x8] sm:$0xf] %vm535, %v529
      %539 = vst.msk [vmem:[%s270 + $0xc] sm:$0xf] %vm535, %v530
      %540 = vst.msk [vmem:[%s270 + $0x10] sm:$0xf] %vm535, %v531
      %541 = vst.msk [vmem:[%s270 + $0x14] sm:$0xf] %vm535, %v532
      %542 = vst.msk [vmem:[%s270 + $0x18] sm:$0xf] %vm535, %v533
      %543 = vst.msk [vmem:[%s270 + $0x1c] sm:$0xf] %vm535, %v534
      %vm544 = vcmask 130048
      %v545 = vsel %vm544, %v519, 0.0
      %v546 = vsel %vm544, %v520, 0.0
      %v547 = vadd.f32 %v545, %v546
      %v548 = vsel %vm544, %v521, 0.0
      %v549 = vadd.f32 %v547, %v548
      %v550 = vsel %vm544, %v522, 0.0
      %v551 = vadd.f32 %v549, %v550
      %v552 = vsel %vm544, %v523, 0.0
      %v553 = vadd.f32 %v551, %v552
      %v554 = vsel %vm544, %v524, 0.0
      %v555 = vadd.f32 %v553, %v554
      %v556 = vsel %vm544, %v525, 0.0
      %v557 = vadd.f32 %v555, %v556
      %v558 = vsel %vm544, %v526, 0.0
      %v559 = vadd.f32 %v557, %v558
      %v560 = vrot.slane %v559, 4
      %v561 = vadd.f32 %v559, %v560
      %v562 = vrot.slane %v561, 2
      %v563 = vadd.f32 %v561, %v562
      %v564 = vrot.slane %v563, 1
      %v565 = vadd.f32 %v563, %v564
      %v566 = vrcp.pop 64.0
      %v567 = vmul.f32 64.0, %v566
      %v568 = vsub.f32 1.0, %v567
      %v569 = vmul.f32 %v566, %v568
      %v570 = vadd.f32 %v566, %v569
      %vm571 = vweird.f32 %v566
      %v572 = vsel %vm571, %v566, %v570
      %v573 = vmul.f32 %v565, %v572
      %vm574 = vcmask 122880
      %575 = vst.msk [vmem:[%s276] sm:$0x1] %vm574, %v573
      %p576 = scmp.lt.s32.totalorder %s20, 1
      %s577 = scalar_select %p576, %s20, 1
      %p578 = scmp.lt.s32.totalorder %s21, 0
      %s579 = scalar_select %p578, %s21, 0
      %s580 = smul.addr %s577, 8
      %s581 = sadd.s32 %s579, %s580
      %s582 = smul.addr %s581, 4
      %s583 = scalar_lea.vmem %s3, %s582
      %p584 = scmp.lt.s32.totalorder %s20, 1
      %s585 = scalar_select %p584, %s20, 1
      %p586 = scmp.lt.s32.totalorder %s21, 0
      %s587 = scalar_select %p586, %s21, 0
      %s588 = sadd.s32 %s587, %s585
      %s589 = scalar_lea.vmem %s4, %s588
      // Predicated region
      $region33: #{_lambda_.28} parent=31 // pred_check
        %p590 = pneg %p128
      $region34: #{_lambda_.28} parent=31 // pred_check_branch
        %592 = sbr.rel (%p590) target = $region36
      $region35: #{_lambda_.28} parent=31 // pred_region
        _
      $region36: #{_lambda_.28} parent=31 // pred_fallthru
        _
      // Predicated region
      $region37: #{_lambda_.28} parent=31 // pred_check
        %p593 = pneg %p156
      $region38: #{_lambda_.28} parent=31 // pred_check_branch
        %595 = sbr.rel (%p593) target = $region40
      $region39: #{_lambda_.28} parent=31 // pred_region
        _
      $region40: #{_lambda_.28} parent=31 // pred_fallthru
        _
    $region32: #{_lambda_.28} parent=5 // pred_fallthru
      _
    %p596 = scmp.le.s32.totalorder 2, %s11
    // Predicated region
    $region41: #{_lambda_.28} parent=5 // pred_check
      %p597 = pneg %p596
    $region42: #{_lambda_.28} parent=5 // pred_check_branch
      %599 = sbr.rel (%p597) target = $region44
    $region43: #{_lambda_.28} parent=5 // pred_region
      %s600 = ssub.s32 %s11, 2
      // Predicated region
      $region45: #{_lambda_.28} parent=43 // pred_check
        %p601 = pneg %p134
      $region46: #{_lambda_.28} parent=43 // pred_check_branch
        %603 = sbr.rel (%p601) target = $region48
      $region47: #{_lambda_.28} parent=43 // pred_region
        %p604 = scmp.lt.s32.totalorder %s22, 1
        %s605 = scalar_select %p604, %s22, 1
        %p606 = scmp.lt.s32.totalorder %s23, 0
        %s607 = scalar_select %p606, %s23, 0
        %s608 = smul.addr %s605, 8
        %s609 = sadd.s32 %s607, %s608
        %s610 = smul.addr %s609, 4
        %s611 = scalar_lea.vmem %s3, %s610
      $region48: #{_lambda_.28} parent=43 // pred_fallthru
        _
      // Predicated region
      $region49: #{_lambda_.28} parent=43 // pred_check
        %p612 = pneg %p162
      $region50: #{_lambda_.28} parent=43 // pred_check_branch
        %614 = sbr.rel (%p612) target = $region52
      $region51: #{_lambda_.28} parent=43 // pred_region
        %p615 = scmp.lt.s32.totalorder %s22, 1
        %s616 = scalar_select %p615, %s22, 1
        %p617 = scmp.lt.s32.totalorder %s23, 0
        %s618 = scalar_select %p617, %s23, 0
        %s619 = sadd.s32 %s618, %s616
        %s620 = scalar_lea.vmem %s4, %s619
      $region52: #{_lambda_.28} parent=43 // pred_fallthru
        _
    $region44: #{_lambda_.28} parent=5 // pred_fallthru
      _
  $region6: #{_lambda_.28} parent=0 // loop_footer
    %s15 = sadd.s32 1, %s11
  $region7: #{_lambda_.28} parent=0 // loop_footer_branch
    %10 = sbr.rel target = $region3
  $region8: #{_lambda_.28} parent=0 // loop_exit
    _

</llo_original>
